<compile_context>
chip_gen: v7x
topology: tpu7x:2x2x1
jax: 0.10.0
libtpu: 0.0.40
codegen_flags: <defaults>
</compile_context>

<pallas_src>
import jax
import jax.numpy as jnp
from jax import lax
from jax.experimental import pallas as pl
from jax.experimental.pallas import tpu as pltpu

N_EMBD = 384                      # matches module global n_embd
NUM_HEADS = 6
HEAD_SIZE = N_EMBD // NUM_HEADS   # 64
BLOCK_SIZE = 256                  # causal-mask buffer size in the module (T <= this)


def _mha_kernel(x_ref, wqkv_ref, wp_ref, bp_ref, o_ref):
    """Grid = (B // Bb,). Each step handles Bb batch rows, all heads fused."""
    Bb, T, C = x_ref.shape
    H, hs = NUM_HEADS, HEAD_SIZE

    x2 = x_ref[...].reshape(Bb * T, C)          # (Bb*T, C) bf16 (cast in wrapper)
    wqkv = wqkv_ref[...]                        # (C, 3C) bf16, VMEM-resident
    wp = wp_ref[...]                            # (C, C)  bf16, VMEM-resident

    # Single fused, lane-dense QKV projection: one MXU pass with N = 3C = 1152.
    qkv = jnp.dot(x2, wqkv, preferred_element_type=jnp.float32)     # (Bb*T, 3C) f32

    # q/k/v slices are lane-aligned (offsets 0 / 384 / 768).  Cast to bf16 once
    # on the full tensors; fold the softmax scale into q here.
    scale = hs ** -0.5
    q = (qkv[:, 0:C] * scale).astype(jnp.bfloat16).reshape(Bb, T, C)
    k = qkv[:, C:2 * C].astype(jnp.bfloat16).reshape(Bb, T, C)
    v = qkv[:, 2 * C:3 * C].astype(jnp.bfloat16).reshape(Bb, T, C)

    # Additive causal mask, built once per grid step (strictly f32).
    row = lax.broadcasted_iota(jnp.int32, (T, T), 0)
    col = lax.broadcasted_iota(jnp.int32, (T, T), 1)
    mask_add = jnp.where(row >= col, 0.0, -1e30).astype(jnp.float32)   # (T, T)

    out_acc = jnp.zeros((Bb * T, C), jnp.float32)
    for h in range(H):                          # unrolled, static slices
        sl = slice(h * hs, (h + 1) * hs)
        qh = q[:, :, sl]                        # (Bb, T, hs) bf16
        kh = k[:, :, sl]
        vh = v[:, :, sl]

        # QK^T without a materialized transpose: contract last dims of q and k.
        s = lax.dot_general(qh, kh, (((2,), (2,)), ((0,), (0,))),
                            preferred_element_type=jnp.float32)       # (Bb, T, T) f32
        s = s + mask_add                        # broadcast over batch block

        # softmax over last axis (strictly f32); EUP reciprocal for the denom.
        m = jnp.max(s, axis=-1, keepdims=True)
        p = jnp.exp(s - m)
        p = p * pl.reciprocal(jnp.sum(p, axis=-1, keepdims=True), approx=True)

        oh = lax.dot_general(p.astype(jnp.bfloat16), vh,
                             (((2,), (1,)), ((0,), (0,))),
                             preferred_element_type=jnp.float32)       # (Bb, T, hs) f32

        # Accumulate directly into the output projection via the sublane-aligned
        # row slice of wp (no concatenate of head outputs).
        out_acc = out_acc + jnp.dot(
            oh.reshape(Bb * T, hs).astype(jnp.bfloat16), wp[sl, :],
            preferred_element_type=jnp.float32)                        # (Bb*T, C)

    out = out_acc + bp_ref[...]                 # (Bb*T, C) + (1, C)
    o_ref[...] = out.reshape(Bb, T, C).astype(o_ref.dtype)


def _pick_block_b(B):
    """Largest batch block in {8,4,2} keeping the grid length >= 2 (v7x: 2 TCs)."""
    for bb in (8, 4, 2):
        if B % bb == 0 and B // bb >= 2:
            return bb
    return 1


@jax.jit
def multi_head_attention(x, wq, wk, wv, wp, bp):
    """x: (B, T, C);  wq/wk/wv: (C, C) fused over heads (column block h = head h);
    wp: (C, C) (= proj.weight.T);  bp: (1, C)."""
    B, T, C = x.shape
    assert C == N_EMBD and T <= BLOCK_SIZE

    Bb = _pick_block_b(B)

    # Fuse the three projection weights into one (C, 3C) matrix and cast all
    # weights + activations to bf16 once in the wrapper (halves DMA bytes).
    wqkv_b = jnp.concatenate([wq, wk, wv], axis=1).astype(jnp.bfloat16)   # (C, 3C)
    wp_b = wp.astype(jnp.bfloat16)
    x_b = x.astype(jnp.bfloat16)

    return pl.pallas_call(
        _mha_kernel,
        out_shape=jax.ShapeDtypeStruct((B, T, C), x.dtype),
        grid_spec=pltpu.PrefetchScalarGridSpec(
            num_scalar_prefetch=0,
            grid=(B // Bb,),
            in_specs=[
                pl.BlockSpec((Bb, T, C), lambda b: (b, 0, 0)),     # x (batch block)
                pl.BlockSpec((C, 3 * C), lambda b: (0, 0)),        # fused wqkv
                pl.BlockSpec((C, C), lambda b: (0, 0)),            # wp
                pl.BlockSpec((1, C), lambda b: (0, 0)),            # proj bias
            ],
            out_specs=pl.BlockSpec((Bb, T, C), lambda b: (b, 0, 0)),
        ),
        compiler_params=pltpu.CompilerParams(
            dimension_semantics=("parallel",),
            vmem_limit_bytes=32 * 1024 * 1024),
    )(x_b, wqkv_b, wp_b, bp)


def _reference(x, wq, wk, wv, wp, bp):
    """Pure-JAX f32 reference mirroring the PyTorch forward (eval mode)."""
    B, T, C = x.shape
    hs = HEAD_SIZE
    outs = []
    for h in range(NUM_HEADS):
        sl = slice(h * hs, (h + 1) * hs)
        q = x @ wq[:, sl]
        k = x @ wk[:, sl]
        v = x @ wv[:, sl]
        s = (q @ jnp.swapaxes(k, -1, -2)) * (hs ** -0.5)
        mask = jnp.tril(jnp.ones((T, T), dtype=bool))
        s = jnp.where(mask, s, -jnp.inf)
        p = jax.nn.softmax(s, axis=-1)
        outs.append(p @ v)
    cat = jnp.concatenate(outs, axis=-1)          # (B, T, H*hs)
    return cat @ wp + bp[0]


if __name__ == "__main__":
    B, T = 2, 128
    C, H, hs = N_EMBD, NUM_HEADS, HEAD_SIZE
    assert T <= BLOCK_SIZE

    key = jax.random.PRNGKey(0)
    kx, kq, kk, kv, kp, kb = jax.random.split(key, 6)

    x = jax.random.normal(kx, (B, T, C), dtype=jnp.float32)

    # nn.Linear(n_embd, head_size, bias=False) per head: weight (hs, C); y = x @ W.T
    # -> fused over heads & pre-transposed as one (C, H*hs) = (C, C) matrix.
    scale_in = 1.0 / jnp.sqrt(C)
    wq = jax.random.uniform(kq, (C, C), jnp.float32, -scale_in, scale_in)
    wk = jax.random.uniform(kk, (C, C), jnp.float32, -scale_in, scale_in)
    wv = jax.random.uniform(kv, (C, C), jnp.float32, -scale_in, scale_in)

    # nn.Linear(H*hs, n_embd): weight (C, H*hs), bias (C,); y = cat @ W.T + b
    # -> store W.T as (H*hs, C) = (C, C).
    scale_p = 1.0 / jnp.sqrt(H * hs)
    wp = jax.random.uniform(kp, (C, C), jnp.float32, -scale_p, scale_p)
    bp = jax.random.uniform(kb, (1, C), jnp.float32, -scale_p, scale_p)

    out = multi_head_attention(x, wq, wk, wv, wp, bp)
    jax.block_until_ready(out)

    ref = _reference(x, wq, wk, wv, wp, bp)
    assert out.shape == (B, T, C)
    # bf16 MXU operands -> relaxed tolerance vs f32 reference.
    assert jnp.allclose(out, ref, atol=5e-2, rtol=5e-2), (
        f"max abs err {jnp.max(jnp.abs(out - ref))}")

    print("KERNEL_OK")
</pallas_src>

<mosaic_0001>
module attributes {stable_mosaic.version = 11 : i64} {
  func.func @_mha_kernel(%arg0: i32, %arg1: memref<1x128x384xbf16, #tpu.memory_space<vmem>>, %arg2: memref<384x1152xbf16, #tpu.memory_space<vmem>>, %arg3: memref<384x384xbf16, #tpu.memory_space<vmem>>, %arg4: memref<1x384xf32, #tpu.memory_space<vmem>>, %arg5: memref<1x128x384xf32, #tpu.memory_space<vmem>>) attributes {dimension_semantics = [#tpu.dimension_semantics<parallel>], iteration_bounds = array<i64: 2>, scalar_prefetch = 0 : i64, scratch_operands = 0 : i64, tpu.core_type = #tpu.core_type<tc>, window_params = [{transform_indices = @transform_0, window_bounds = array<i64: 1, 128, 384>}, {pipeline_mode = #tpu.pipeline_mode<synchronous>, transform_indices = @transform_1, window_bounds = array<i64: 384, 1152>}, {pipeline_mode = #tpu.pipeline_mode<synchronous>, transform_indices = @transform_2, window_bounds = array<i64: 384, 384>}, {pipeline_mode = #tpu.pipeline_mode<synchronous>, transform_indices = @transform_3, window_bounds = array<i64: 1, 384>}, {transform_indices = @transform_4, window_bounds = array<i64: 1, 128, 384>}]} {
    %c0 = arith.constant 0 : index
    %c0_0 = arith.constant 0 : index
    %c0_1 = arith.constant 0 : index
    %0 = vector.load %arg1[%c0, %c0_0, %c0_1] : memref<1x128x384xbf16, #tpu.memory_space<vmem>>, vector<1x128x384xbf16>
    %1 = vector.shape_cast %0 : vector<1x128x384xbf16> to vector<128x384xbf16>
    %c0_2 = arith.constant 0 : index
    %c0_3 = arith.constant 0 : index
    %2 = vector.load %arg2[%c0_2, %c0_3] : memref<384x1152xbf16, #tpu.memory_space<vmem>>, vector<384x1152xbf16>
    %c0_4 = arith.constant 0 : index
    %c0_5 = arith.constant 0 : index
    %3 = vector.load %arg3[%c0_4, %c0_5] : memref<384x384xbf16, #tpu.memory_space<vmem>>, vector<384x384xbf16>
    %cst = arith.constant dense<0.000000e+00> : vector<128x1152xf32>
    %4 = tpu.matmul %1, %2, %cst {dimension_numbers = #tpu.dot_dimension_numbers<[1], [0], [0], [1], [0, 0, 1, 1], [], []>} : vector<128x384xbf16>, vector<384x1152xbf16>, vector<128x1152xf32> -> vector<128x1152xf32>
    %5 = vector.extract_strided_slice %4 {offsets = [0, 0], sizes = [128, 384], strides = [1, 1]} : vector<128x1152xf32> to vector<128x384xf32>
    %cst_6 = arith.constant 1.250000e-01 : f32
    %6 = vector.broadcast %cst_6 : f32 to vector<128x384xf32>
    %7 = arith.mulf %5, %6 : vector<128x384xf32>
    %8 = arith.truncf %7 : vector<128x384xf32> to vector<128x384xbf16>
    %9 = vector.shape_cast %8 : vector<128x384xbf16> to vector<1x128x384xbf16>
    %10 = vector.extract_strided_slice %4 {offsets = [0, 384], sizes = [128, 384], strides = [1, 1]} : vector<128x1152xf32> to vector<128x384xf32>
    %11 = arith.truncf %10 : vector<128x384xf32> to vector<128x384xbf16>
    %12 = vector.shape_cast %11 : vector<128x384xbf16> to vector<1x128x384xbf16>
    %13 = vector.extract_strided_slice %4 {offsets = [0, 768], sizes = [128, 384], strides = [1, 1]} : vector<128x1152xf32> to vector<128x384xf32>
    %14 = arith.truncf %13 : vector<128x384xf32> to vector<128x384xbf16>
    %15 = vector.shape_cast %14 : vector<128x384xbf16> to vector<1x128x384xbf16>
    %16 = tpu.iota {dimensions = array<i32: 0>} : vector<128x128xi32>
    %17 = tpu.iota {dimensions = array<i32: 1>} : vector<128x128xi32>
    %18 = arith.cmpi sge, %16, %17 : vector<128x128xi32>
    %cst_7 = arith.constant 0.000000e+00 : f32
    %cst_8 = arith.constant -1.000000e+30 : f32
    %19 = vector.broadcast %cst_7 : f32 to vector<128x128xf32>
    %20 = vector.broadcast %cst_8 : f32 to vector<128x128xf32>
    %21 = arith.select %18, %19, %20 : vector<128x128xi1>, vector<128x128xf32>
    %cst_9 = arith.constant 0.000000e+00 : f32
    %22 = vector.broadcast %cst_9 : f32 to vector<128x384xf32>
    %23 = vector.extract_strided_slice %9 {offsets = [0, 0, 0], sizes = [1, 128, 64], strides = [1, 1, 1]} : vector<1x128x384xbf16> to vector<1x128x64xbf16>
    %24 = vector.extract_strided_slice %12 {offsets = [0, 0, 0], sizes = [1, 128, 64], strides = [1, 1, 1]} : vector<1x128x384xbf16> to vector<1x128x64xbf16>
    %25 = vector.extract_strided_slice %15 {offsets = [0, 0, 0], sizes = [1, 128, 64], strides = [1, 1, 1]} : vector<1x128x384xbf16> to vector<1x128x64xbf16>
    %cst_10 = arith.constant dense<0.000000e+00> : vector<1x128x128xf32>
    %26 = tpu.matmul %23, %24, %cst_10 {dimension_numbers = #tpu.dot_dimension_numbers<[2], [2], [1], [1], [0, 0, 0, 1, 1, 1], [0], [0]>} : vector<1x128x64xbf16>, vector<1x128x64xbf16>, vector<1x128x128xf32> -> vector<1x128x128xf32>
    %27 = vector.shape_cast %21 : vector<128x128xf32> to vector<1x128x128xf32>
    %28 = arith.addf %26, %27 : vector<1x128x128xf32>
    %cst_11 = arith.constant dense<0xFF800000> : vector<1x128xf32>
    %29 = vector.multi_reduction <maximumf>, %28, %cst_11 [2] : vector<1x128x128xf32> to vector<1x128xf32>
    %30 = vector.shape_cast %29 : vector<1x128xf32> to vector<1x128x1xf32>
    %31 = vector.broadcast %30 : vector<1x128x1xf32> to vector<1x128x128xf32>
    %32 = arith.subf %28, %31 : vector<1x128x128xf32>
    %33 = math.exp %32 : vector<1x128x128xf32>
    %cst_12 = arith.constant dense<0.000000e+00> : vector<1x128xf32>
    %34 = vector.multi_reduction <add>, %33, %cst_12 [2] : vector<1x128x128xf32> to vector<1x128xf32>
    %35 = vector.shape_cast %34 : vector<1x128xf32> to vector<1x128x1xf32>
    %36 = tpu.reciprocal %35 {approx = true} : vector<1x128x1xf32> -> vector<1x128x1xf32>
    %37 = vector.broadcast %36 : vector<1x128x1xf32> to vector<1x128x128xf32>
    %38 = arith.mulf %33, %37 : vector<1x128x128xf32>
    %39 = arith.truncf %38 : vector<1x128x128xf32> to vector<1x128x128xbf16>
    %cst_13 = arith.constant dense<0.000000e+00> : vector<1x128x64xf32>
    %40 = tpu.matmul %39, %25, %cst_13 {dimension_numbers = #tpu.dot_dimension_numbers<[2], [1], [1], [2], [0, 0, 0, 1, 1, 2], [0], [0]>} : vector<1x128x128xbf16>, vector<1x128x64xbf16>, vector<1x128x64xf32> -> vector<1x128x64xf32>
    %41 = vector.shape_cast %40 : vector<1x128x64xf32> to vector<128x64xf32>
    %42 = arith.truncf %41 : vector<128x64xf32> to vector<128x64xbf16>
    %43 = vector.extract_strided_slice %3 {offsets = [0, 0], sizes = [64, 384], strides = [1, 1]} : vector<384x384xbf16> to vector<64x384xbf16>
    %cst_14 = arith.constant dense<0.000000e+00> : vector<128x384xf32>
    %44 = tpu.matmul %42, %43, %cst_14 {dimension_numbers = #tpu.dot_dimension_numbers<[1], [0], [0], [1], [0, 0, 1, 1], [], []>} : vector<128x64xbf16>, vector<64x384xbf16>, vector<128x384xf32> -> vector<128x384xf32>
    %45 = arith.addf %22, %44 : vector<128x384xf32>
    %46 = vector.extract_strided_slice %9 {offsets = [0, 0, 64], sizes = [1, 128, 64], strides = [1, 1, 1]} : vector<1x128x384xbf16> to vector<1x128x64xbf16>
    %47 = vector.extract_strided_slice %12 {offsets = [0, 0, 64], sizes = [1, 128, 64], strides = [1, 1, 1]} : vector<1x128x384xbf16> to vector<1x128x64xbf16>
    %48 = vector.extract_strided_slice %15 {offsets = [0, 0, 64], sizes = [1, 128, 64], strides = [1, 1, 1]} : vector<1x128x384xbf16> to vector<1x128x64xbf16>
    %cst_15 = arith.constant dense<0.000000e+00> : vector<1x128x128xf32>
    %49 = tpu.matmul %46, %47, %cst_15 {dimension_numbers = #tpu.dot_dimension_numbers<[2], [2], [1], [1], [0, 0, 0, 1, 1, 1], [0], [0]>} : vector<1x128x64xbf16>, vector<1x128x64xbf16>, vector<1x128x128xf32> -> vector<1x128x128xf32>
    %50 = vector.shape_cast %21 : vector<128x128xf32> to vector<1x128x128xf32>
    %51 = arith.addf %49, %50 : vector<1x128x128xf32>
    %cst_16 = arith.constant dense<0xFF800000> : vector<1x128xf32>
    %52 = vector.multi_reduction <maximumf>, %51, %cst_16 [2] : vector<1x128x128xf32> to vector<1x128xf32>
    %53 = vector.shape_cast %52 : vector<1x128xf32> to vector<1x128x1xf32>
    %54 = vector.broadcast %53 : vector<1x128x1xf32> to vector<1x128x128xf32>
    %55 = arith.subf %51, %54 : vector<1x128x128xf32>
    %56 = math.exp %55 : vector<1x128x128xf32>
    %cst_17 = arith.constant dense<0.000000e+00> : vector<1x128xf32>
    %57 = vector.multi_reduction <add>, %56, %cst_17 [2] : vector<1x128x128xf32> to vector<1x128xf32>
    %58 = vector.shape_cast %57 : vector<1x128xf32> to vector<1x128x1xf32>
    %59 = tpu.reciprocal %58 {approx = true} : vector<1x128x1xf32> -> vector<1x128x1xf32>
    %60 = vector.broadcast %59 : vector<1x128x1xf32> to vector<1x128x128xf32>
    %61 = arith.mulf %56, %60 : vector<1x128x128xf32>
    %62 = arith.truncf %61 : vector<1x128x128xf32> to vector<1x128x128xbf16>
    %cst_18 = arith.constant dense<0.000000e+00> : vector<1x128x64xf32>
    %63 = tpu.matmul %62, %48, %cst_18 {dimension_numbers = #tpu.dot_dimension_numbers<[2], [1], [1], [2], [0, 0, 0, 1, 1, 2], [0], [0]>} : vector<1x128x128xbf16>, vector<1x128x64xbf16>, vector<1x128x64xf32> -> vector<1x128x64xf32>
    %64 = vector.shape_cast %63 : vector<1x128x64xf32> to vector<128x64xf32>
    %65 = arith.truncf %64 : vector<128x64xf32> to vector<128x64xbf16>
    %66 = vector.extract_strided_slice %3 {offsets = [64, 0], sizes = [64, 384], strides = [1, 1]} : vector<384x384xbf16> to vector<64x384xbf16>
    %cst_19 = arith.constant dense<0.000000e+00> : vector<128x384xf32>
    %67 = tpu.matmul %65, %66, %cst_19 {dimension_numbers = #tpu.dot_dimension_numbers<[1], [0], [0], [1], [0, 0, 1, 1], [], []>} : vector<128x64xbf16>, vector<64x384xbf16>, vector<128x384xf32> -> vector<128x384xf32>
    %68 = arith.addf %45, %67 : vector<128x384xf32>
    %69 = vector.extract_strided_slice %9 {offsets = [0, 0, 128], sizes = [1, 128, 64], strides = [1, 1, 1]} : vector<1x128x384xbf16> to vector<1x128x64xbf16>
    %70 = vector.extract_strided_slice %12 {offsets = [0, 0, 128], sizes = [1, 128, 64], strides = [1, 1, 1]} : vector<1x128x384xbf16> to vector<1x128x64xbf16>
    %71 = vector.extract_strided_slice %15 {offsets = [0, 0, 128], sizes = [1, 128, 64], strides = [1, 1, 1]} : vector<1x128x384xbf16> to vector<1x128x64xbf16>
    %cst_20 = arith.constant dense<0.000000e+00> : vector<1x128x128xf32>
    %72 = tpu.matmul %69, %70, %cst_20 {dimension_numbers = #tpu.dot_dimension_numbers<[2], [2], [1], [1], [0, 0, 0, 1, 1, 1], [0], [0]>} : vector<1x128x64xbf16>, vector<1x128x64xbf16>, vector<1x128x128xf32> -> vector<1x128x128xf32>
    %73 = vector.shape_cast %21 : vector<128x128xf32> to vector<1x128x128xf32>
    %74 = arith.addf %72, %73 : vector<1x128x128xf32>
    %cst_21 = arith.constant dense<0xFF800000> : vector<1x128xf32>
    %75 = vector.multi_reduction <maximumf>, %74, %cst_21 [2] : vector<1x128x128xf32> to vector<1x128xf32>
    %76 = vector.shape_cast %75 : vector<1x128xf32> to vector<1x128x1xf32>
    %77 = vector.broadcast %76 : vector<1x128x1xf32> to vector<1x128x128xf32>
    %78 = arith.subf %74, %77 : vector<1x128x128xf32>
    %79 = math.exp %78 : vector<1x128x128xf32>
    %cst_22 = arith.constant dense<0.000000e+00> : vector<1x128xf32>
    %80 = vector.multi_reduction <add>, %79, %cst_22 [2] : vector<1x128x128xf32> to vector<1x128xf32>
    %81 = vector.shape_cast %80 : vector<1x128xf32> to vector<1x128x1xf32>
    %82 = tpu.reciprocal %81 {approx = true} : vector<1x128x1xf32> -> vector<1x128x1xf32>
    %83 = vector.broadcast %82 : vector<1x128x1xf32> to vector<1x128x128xf32>
    %84 = arith.mulf %79, %83 : vector<1x128x128xf32>
    %85 = arith.truncf %84 : vector<1x128x128xf32> to vector<1x128x128xbf16>
    %cst_23 = arith.constant dense<0.000000e+00> : vector<1x128x64xf32>
    %86 = tpu.matmul %85, %71, %cst_23 {dimension_numbers = #tpu.dot_dimension_numbers<[2], [1], [1], [2], [0, 0, 0, 1, 1, 2], [0], [0]>} : vector<1x128x128xbf16>, vector<1x128x64xbf16>, vector<1x128x64xf32> -> vector<1x128x64xf32>
    %87 = vector.shape_cast %86 : vector<1x128x64xf32> to vector<128x64xf32>
    %88 = arith.truncf %87 : vector<128x64xf32> to vector<128x64xbf16>
    %89 = vector.extract_strided_slice %3 {offsets = [128, 0], sizes = [64, 384], strides = [1, 1]} : vector<384x384xbf16> to vector<64x384xbf16>
    %cst_24 = arith.constant dense<0.000000e+00> : vector<128x384xf32>
    %90 = tpu.matmul %88, %89, %cst_24 {dimension_numbers = #tpu.dot_dimension_numbers<[1], [0], [0], [1], [0, 0, 1, 1], [], []>} : vector<128x64xbf16>, vector<64x384xbf16>, vector<128x384xf32> -> vector<128x384xf32>
    %91 = arith.addf %68, %90 : vector<128x384xf32>
    %92 = vector.extract_strided_slice %9 {offsets = [0, 0, 192], sizes = [1, 128, 64], strides = [1, 1, 1]} : vector<1x128x384xbf16> to vector<1x128x64xbf16>
    %93 = vector.extract_strided_slice %12 {offsets = [0, 0, 192], sizes = [1, 128, 64], strides = [1, 1, 1]} : vector<1x128x384xbf16> to vector<1x128x64xbf16>
    %94 = vector.extract_strided_slice %15 {offsets = [0, 0, 192], sizes = [1, 128, 64], strides = [1, 1, 1]} : vector<1x128x384xbf16> to vector<1x128x64xbf16>
    %cst_25 = arith.constant dense<0.000000e+00> : vector<1x128x128xf32>
    %95 = tpu.matmul %92, %93, %cst_25 {dimension_numbers = #tpu.dot_dimension_numbers<[2], [2], [1], [1], [0, 0, 0, 1, 1, 1], [0], [0]>} : vector<1x128x64xbf16>, vector<1x128x64xbf16>, vector<1x128x128xf32> -> vector<1x128x128xf32>
    %96 = vector.shape_cast %21 : vector<128x128xf32> to vector<1x128x128xf32>
    %97 = arith.addf %95, %96 : vector<1x128x128xf32>
    %cst_26 = arith.constant dense<0xFF800000> : vector<1x128xf32>
    %98 = vector.multi_reduction <maximumf>, %97, %cst_26 [2] : vector<1x128x128xf32> to vector<1x128xf32>
    %99 = vector.shape_cast %98 : vector<1x128xf32> to vector<1x128x1xf32>
    %100 = vector.broadcast %99 : vector<1x128x1xf32> to vector<1x128x128xf32>
    %101 = arith.subf %97, %100 : vector<1x128x128xf32>
    %102 = math.exp %101 : vector<1x128x128xf32>
    %cst_27 = arith.constant dense<0.000000e+00> : vector<1x128xf32>
    %103 = vector.multi_reduction <add>, %102, %cst_27 [2] : vector<1x128x128xf32> to vector<1x128xf32>
    %104 = vector.shape_cast %103 : vector<1x128xf32> to vector<1x128x1xf32>
    %105 = tpu.reciprocal %104 {approx = true} : vector<1x128x1xf32> -> vector<1x128x1xf32>
    %106 = vector.broadcast %105 : vector<1x128x1xf32> to vector<1x128x128xf32>
    %107 = arith.mulf %102, %106 : vector<1x128x128xf32>
    %108 = arith.truncf %107 : vector<1x128x128xf32> to vector<1x128x128xbf16>
    %cst_28 = arith.constant dense<0.000000e+00> : vector<1x128x64xf32>
    %109 = tpu.matmul %108, %94, %cst_28 {dimension_numbers = #tpu.dot_dimension_numbers<[2], [1], [1], [2], [0, 0, 0, 1, 1, 2], [0], [0]>} : vector<1x128x128xbf16>, vector<1x128x64xbf16>, vector<1x128x64xf32> -> vector<1x128x64xf32>
    %110 = vector.shape_cast %109 : vector<1x128x64xf32> to vector<128x64xf32>
    %111 = arith.truncf %110 : vector<128x64xf32> to vector<128x64xbf16>
    %112 = vector.extract_strided_slice %3 {offsets = [192, 0], sizes = [64, 384], strides = [1, 1]} : vector<384x384xbf16> to vector<64x384xbf16>
    %cst_29 = arith.constant dense<0.000000e+00> : vector<128x384xf32>
    %113 = tpu.matmul %111, %112, %cst_29 {dimension_numbers = #tpu.dot_dimension_numbers<[1], [0], [0], [1], [0, 0, 1, 1], [], []>} : vector<128x64xbf16>, vector<64x384xbf16>, vector<128x384xf32> -> vector<128x384xf32>
    %114 = arith.addf %91, %113 : vector<128x384xf32>
    %115 = vector.extract_strided_slice %9 {offsets = [0, 0, 256], sizes = [1, 128, 64], strides = [1, 1, 1]} : vector<1x128x384xbf16> to vector<1x128x64xbf16>
    %116 = vector.extract_strided_slice %12 {offsets = [0, 0, 256], sizes = [1, 128, 64], strides = [1, 1, 1]} : vector<1x128x384xbf16> to vector<1x128x64xbf16>
    %117 = vector.extract_strided_slice %15 {offsets = [0, 0, 256], sizes = [1, 128, 64], strides = [1, 1, 1]} : vector<1x128x384xbf16> to vector<1x128x64xbf16>
    %cst_30 = arith.constant dense<0.000000e+00> : vector<1x128x128xf32>
    %118 = tpu.matmul %115, %116, %cst_30 {dimension_numbers = #tpu.dot_dimension_numbers<[2], [2], [1], [1], [0, 0, 0, 1, 1, 1], [0], [0]>} : vector<1x128x64xbf16>, vector<1x128x64xbf16>, vector<1x128x128xf32> -> vector<1x128x128xf32>
    %119 = vector.shape_cast %21 : vector<128x128xf32> to vector<1x128x128xf32>
    %120 = arith.addf %118, %119 : vector<1x128x128xf32>
    %cst_31 = arith.constant dense<0xFF800000> : vector<1x128xf32>
    %121 = vector.multi_reduction <maximumf>, %120, %cst_31 [2] : vector<1x128x128xf32> to vector<1x128xf32>
    %122 = vector.shape_cast %121 : vector<1x128xf32> to vector<1x128x1xf32>
    %123 = vector.broadcast %122 : vector<1x128x1xf32> to vector<1x128x128xf32>
    %124 = arith.subf %120, %123 : vector<1x128x128xf32>
    %125 = math.exp %124 : vector<1x128x128xf32>
    %cst_32 = arith.constant dense<0.000000e+00> : vector<1x128xf32>
    %126 = vector.multi_reduction <add>, %125, %cst_32 [2] : vector<1x128x128xf32> to vector<1x128xf32>
    %127 = vector.shape_cast %126 : vector<1x128xf32> to vector<1x128x1xf32>
    %128 = tpu.reciprocal %127 {approx = true} : vector<1x128x1xf32> -> vector<1x128x1xf32>
    %129 = vector.broadcast %128 : vector<1x128x1xf32> to vector<1x128x128xf32>
    %130 = arith.mulf %125, %129 : vector<1x128x128xf32>
    %131 = arith.truncf %130 : vector<1x128x128xf32> to vector<1x128x128xbf16>
    %cst_33 = arith.constant dense<0.000000e+00> : vector<1x128x64xf32>
    %132 = tpu.matmul %131, %117, %cst_33 {dimension_numbers = #tpu.dot_dimension_numbers<[2], [1], [1], [2], [0, 0, 0, 1, 1, 2], [0], [0]>} : vector<1x128x128xbf16>, vector<1x128x64xbf16>, vector<1x128x64xf32> -> vector<1x128x64xf32>
    %133 = vector.shape_cast %132 : vector<1x128x64xf32> to vector<128x64xf32>
    %134 = arith.truncf %133 : vector<128x64xf32> to vector<128x64xbf16>
    %135 = vector.extract_strided_slice %3 {offsets = [256, 0], sizes = [64, 384], strides = [1, 1]} : vector<384x384xbf16> to vector<64x384xbf16>
    %cst_34 = arith.constant dense<0.000000e+00> : vector<128x384xf32>
    %136 = tpu.matmul %134, %135, %cst_34 {dimension_numbers = #tpu.dot_dimension_numbers<[1], [0], [0], [1], [0, 0, 1, 1], [], []>} : vector<128x64xbf16>, vector<64x384xbf16>, vector<128x384xf32> -> vector<128x384xf32>
    %137 = arith.addf %114, %136 : vector<128x384xf32>
    %138 = vector.extract_strided_slice %9 {offsets = [0, 0, 320], sizes = [1, 128, 64], strides = [1, 1, 1]} : vector<1x128x384xbf16> to vector<1x128x64xbf16>
    %139 = vector.extract_strided_slice %12 {offsets = [0, 0, 320], sizes = [1, 128, 64], strides = [1, 1, 1]} : vector<1x128x384xbf16> to vector<1x128x64xbf16>
    %140 = vector.extract_strided_slice %15 {offsets = [0, 0, 320], sizes = [1, 128, 64], strides = [1, 1, 1]} : vector<1x128x384xbf16> to vector<1x128x64xbf16>
    %cst_35 = arith.constant dense<0.000000e+00> : vector<1x128x128xf32>
    %141 = tpu.matmul %138, %139, %cst_35 {dimension_numbers = #tpu.dot_dimension_numbers<[2], [2], [1], [1], [0, 0, 0, 1, 1, 1], [0], [0]>} : vector<1x128x64xbf16>, vector<1x128x64xbf16>, vector<1x128x128xf32> -> vector<1x128x128xf32>
    %142 = vector.shape_cast %21 : vector<128x128xf32> to vector<1x128x128xf32>
    %143 = arith.addf %141, %142 : vector<1x128x128xf32>
    %cst_36 = arith.constant dense<0xFF800000> : vector<1x128xf32>
    %144 = vector.multi_reduction <maximumf>, %143, %cst_36 [2] : vector<1x128x128xf32> to vector<1x128xf32>
    %145 = vector.shape_cast %144 : vector<1x128xf32> to vector<1x128x1xf32>
    %146 = vector.broadcast %145 : vector<1x128x1xf32> to vector<1x128x128xf32>
    %147 = arith.subf %143, %146 : vector<1x128x128xf32>
    %148 = math.exp %147 : vector<1x128x128xf32>
    %cst_37 = arith.constant dense<0.000000e+00> : vector<1x128xf32>
    %149 = vector.multi_reduction <add>, %148, %cst_37 [2] : vector<1x128x128xf32> to vector<1x128xf32>
    %150 = vector.shape_cast %149 : vector<1x128xf32> to vector<1x128x1xf32>
    %151 = tpu.reciprocal %150 {approx = true} : vector<1x128x1xf32> -> vector<1x128x1xf32>
    %152 = vector.broadcast %151 : vector<1x128x1xf32> to vector<1x128x128xf32>
    %153 = arith.mulf %148, %152 : vector<1x128x128xf32>
    %154 = arith.truncf %153 : vector<1x128x128xf32> to vector<1x128x128xbf16>
    %cst_38 = arith.constant dense<0.000000e+00> : vector<1x128x64xf32>
    %155 = tpu.matmul %154, %140, %cst_38 {dimension_numbers = #tpu.dot_dimension_numbers<[2], [1], [1], [2], [0, 0, 0, 1, 1, 2], [0], [0]>} : vector<1x128x128xbf16>, vector<1x128x64xbf16>, vector<1x128x64xf32> -> vector<1x128x64xf32>
    %156 = vector.shape_cast %155 : vector<1x128x64xf32> to vector<128x64xf32>
    %157 = arith.truncf %156 : vector<128x64xf32> to vector<128x64xbf16>
    %158 = vector.extract_strided_slice %3 {offsets = [320, 0], sizes = [64, 384], strides = [1, 1]} : vector<384x384xbf16> to vector<64x384xbf16>
    %cst_39 = arith.constant dense<0.000000e+00> : vector<128x384xf32>
    %159 = tpu.matmul %157, %158, %cst_39 {dimension_numbers = #tpu.dot_dimension_numbers<[1], [0], [0], [1], [0, 0, 1, 1], [], []>} : vector<128x64xbf16>, vector<64x384xbf16>, vector<128x384xf32> -> vector<128x384xf32>
    %160 = arith.addf %137, %159 : vector<128x384xf32>
    %c0_40 = arith.constant 0 : index
    %c0_41 = arith.constant 0 : index
    %161 = vector.load %arg4[%c0_40, %c0_41] : memref<1x384xf32, #tpu.memory_space<vmem>>, vector<1x384xf32>
    %162 = vector.broadcast %161 : vector<1x384xf32> to vector<128x384xf32>
    %163 = arith.addf %160, %162 : vector<128x384xf32>
    %164 = vector.shape_cast %163 : vector<128x384xf32> to vector<1x128x384xf32>
    %c0_42 = arith.constant 0 : index
    %c0_43 = arith.constant 0 : index
    %c0_44 = arith.constant 0 : index
    %165 = vector.load %arg5[%c0_42, %c0_43, %c0_44] : memref<1x128x384xf32, #tpu.memory_space<vmem>>, vector<1x128x384xf32>
    tpu.vector_store %arg5[%c0_42, %c0_43, %c0_44], %164 {strides = array<i32>} : memref<1x128x384xf32, #tpu.memory_space<vmem>>, vector<1x128x384xf32>,
    return
  }
  func.func @transform_0(%arg0: i32) -> (i32, i32, i32) {
    %c0_i32 = arith.constant 0 : i32
    %c0_i32_0 = arith.constant 0 : i32
    %c0_i32_1 = arith.constant 0 : i32
    return %arg0, %c0_i32, %c0_i32_0 : i32, i32, i32
  }
  func.func @transform_1(%arg0: i32) -> (i32, i32) {
    %c0_i32 = arith.constant 0 : i32
    %c0_i32_0 = arith.constant 0 : i32
    %c0_i32_1 = arith.constant 0 : i32
    return %c0_i32, %c0_i32_0 : i32, i32
  }
  func.func @transform_2(%arg0: i32) -> (i32, i32) {
    %c0_i32 = arith.constant 0 : i32
    %c0_i32_0 = arith.constant 0 : i32
    %c0_i32_1 = arith.constant 0 : i32
    return %c0_i32, %c0_i32_0 : i32, i32
  }
  func.func @transform_3(%arg0: i32) -> (i32, i32) {
    %c0_i32 = arith.constant 0 : i32
    %c0_i32_0 = arith.constant 0 : i32
    %c0_i32_1 = arith.constant 0 : i32
    return %c0_i32, %c0_i32_0 : i32, i32
  }
  func.func @transform_4(%arg0: i32) -> (i32, i32, i32) {
    %c0_i32 = arith.constant 0 : i32
    %c0_i32_0 = arith.constant 0 : i32
    %c0_i32_1 = arith.constant 0 : i32
    return %arg0, %c0_i32, %c0_i32_0 : i32, i32, i32
  }
}

</mosaic_0001>

<llo_original>
// kernel: multi_head_attention.1
$region0: #{multi_head_attention.1}
  #allocation0 [shape = 'u32[]', space=smem, size = 0x4, offset = 0x4, fixed_abs, tag = 'smem constant byte address 0x4 - core index']
  #allocation1 [shape = 'u32[144,128]{1,0:T(1,128)}', space=vmem, size = 0x12000, scoped, tag = 'internal scratch']
  %s0 = inlined_call_operand.vmem [shape: bf16[2,128,384], index: 0, kind: input, shape index: {}]
  %s1 = inlined_call_operand.vmem [shape: bf16[384,1152], index: 1, kind: input, shape index: {}]
  %s2 = inlined_call_operand.vmem [shape: bf16[384,384], index: 2, kind: input, shape index: {}]
  %s3 = inlined_call_operand.vmem [shape: f32[1,384], index: 3, kind: input, shape index: {}]
  %s4 = inlined_call_operand.hbm [shape: f32[2,128,384], index: 4, kind: output, shape index: {}]
  %s5 = sld [smem:[#allocation0]]
  $region49: #{multi_head_attention.1} parent=0
    _
  %s7 = ssub.s32 1, %s5
  %s8 = scalar_select 0, %s7, %s5
  $region1: #{multi_head_attention.1} parent=0
    #allocation2 [shape = 'u8[393216]{0}', space=vmem, size = 0x60000, scoped, tag = 'output window, operand 0']
    #allocation3 [shape = 's32[2]{0}', space=sflag, size = 0x8, scoped, tag = 'scoped memory for multi_head_attention.1']
    %9 = vsyncpa [#allocation3], 0
    %s10 = scalar_lea.sflag [#allocation3], 1
    %11 = vsyncpa %s10, 0
    loop: start=0, step=1, limit=4
    $region2: #{multi_head_attention.1} parent=1 // loop_pre_header
      _
    $region3: #{multi_head_attention.1} parent=1 // loop_header
      %s13 = sphi 0, %s17
      %p14 = scmp.ge.s32.totalorder %s13, 4
      %s23 = sphi 0, %s25
      %s26 = sphi 0, %s23
      %s27 = sphi 0, %s26
      %s43 = sphi 0, %s27
      %s47 = sphi 0, %s47
      %s49 = sphi 0, %s47
      %s50 = sphi 0, %s49
      %s64 = sphi 0, %s50
      %s68 = sphi 0, %s68
      %s70 = sphi 0, %s68
      %s71 = sphi 0, %s70
      %s85 = sphi 0, %s71
      %s89 = sphi 0, %s89
      %s91 = sphi 0, %s89
      %s92 = sphi 0, %s91
      %s106 = sphi 0, %s92
      %s112 = sphi 0, %s114
      %s115 = sphi 0, %s112
      %s116 = sphi 0, %s115
      %s132 = sphi 0, %s116
    $region4: #{multi_head_attention.1} parent=1 // loop_header_branch
      %16 = sbr.rel (%p14) target = $region8
    $region5: #{multi_head_attention.1} parent=1 // loop_body
      %s18 = ssub.s32 %s13, 1
      %s19 = ssub.s32 %s13, 2
      %s20 = sadd.s32 %s13, 1
      %s21 = ssub.s32 %s13, %s20
      %p22 = scmp.eq.s32.totalorder %s21, 0
      %s24 = sadd.s32 %s23, 1
      %s25 = scalar_select %p22, %s23, %s24
      %p28 = pneg %p22
      %p29 = scmp.eq.s32.totalorder %s13, 1
      %p30 = por %p28, %p29
      %p31 = scmp.ne.s32.totalorder %s23, %s26
      %p32 = scmp.eq.s32.totalorder %s13, 0
      %p33 = por %p31, %p32
      %p34 = scmp.ne.s32.totalorder %s23, %s26
      %p35 = scmp.eq.s32.totalorder %s18, 1
      %p36 = por %p34, %p35
      %p37 = scmp.ne.s32.totalorder %s26, %s27
      %p38 = scmp.eq.s32.totalorder %s18, 0
      %p39 = por %p37, %p38
      %p40 = scmp.ne.s32.totalorder %s26, %s27
      %p41 = scmp.eq.s32.totalorder %s19, 1
      %p42 = por %p40, %p41
      %p44 = scmp.ne.s32.totalorder %s27, %s43
      %p45 = scmp.eq.s32.totalorder %s19, 0
      %p46 = por %p44, %p45
      %s48 = sadd.s32 %s47, 1
      %p51 = scmp.eq.s32.totalorder %s13, 1
      %p52 = scmp.ne.s32.totalorder %s47, %s49
      %p53 = scmp.eq.s32.totalorder %s13, 0
      %p54 = por %p52, %p53
      %p55 = scmp.ne.s32.totalorder %s47, %s49
      %p56 = scmp.eq.s32.totalorder %s18, 1
      %p57 = por %p55, %p56
      %p58 = scmp.ne.s32.totalorder %s49, %s50
      %p59 = scmp.eq.s32.totalorder %s18, 0
      %p60 = por %p58, %p59
      %p61 = scmp.ne.s32.totalorder %s49, %s50
      %p62 = scmp.eq.s32.totalorder %s19, 1
      %p63 = por %p61, %p62
      %p65 = scmp.ne.s32.totalorder %s50, %s64
      %p66 = scmp.eq.s32.totalorder %s19, 0
      %p67 = por %p65, %p66
      %s69 = sadd.s32 %s68, 1
      %p72 = scmp.eq.s32.totalorder %s13, 1
      %p73 = scmp.ne.s32.totalorder %s68, %s70
      %p74 = scmp.eq.s32.totalorder %s13, 0
      %p75 = por %p73, %p74
      %p76 = scmp.ne.s32.totalorder %s68, %s70
      %p77 = scmp.eq.s32.totalorder %s18, 1
      %p78 = por %p76, %p77
      %p79 = scmp.ne.s32.totalorder %s70, %s71
      %p80 = scmp.eq.s32.totalorder %s18, 0
      %p81 = por %p79, %p80
      %p82 = scmp.ne.s32.totalorder %s70, %s71
      %p83 = scmp.eq.s32.totalorder %s19, 1
      %p84 = por %p82, %p83
      %p86 = scmp.ne.s32.totalorder %s71, %s85
      %p87 = scmp.eq.s32.totalorder %s19, 0
      %p88 = por %p86, %p87
      %s90 = sadd.s32 %s89, 1
      %p93 = scmp.eq.s32.totalorder %s13, 1
      %p94 = scmp.ne.s32.totalorder %s89, %s91
      %p95 = scmp.eq.s32.totalorder %s13, 0
      %p96 = por %p94, %p95
      %p97 = scmp.ne.s32.totalorder %s89, %s91
      %p98 = scmp.eq.s32.totalorder %s18, 1
      %p99 = por %p97, %p98
      %p100 = scmp.ne.s32.totalorder %s91, %s92
      %p101 = scmp.eq.s32.totalorder %s18, 0
      %p102 = por %p100, %p101
      %p103 = scmp.ne.s32.totalorder %s91, %s92
      %p104 = scmp.eq.s32.totalorder %s19, 1
      %p105 = por %p103, %p104
      %p107 = scmp.ne.s32.totalorder %s92, %s106
      %p108 = scmp.eq.s32.totalorder %s19, 0
      %p109 = por %p107, %p108
      %s110 = ssub.s32 %s13, %s20
      %p111 = scmp.eq.s32.totalorder %s110, 0
      %s113 = sadd.s32 %s112, 1
      %s114 = scalar_select %p111, %s112, %s113
      %p117 = pneg %p111
      %p118 = scmp.eq.s32.totalorder %s13, 1
      %p119 = por %p117, %p118
      %p120 = scmp.ne.s32.totalorder %s112, %s115
      %p121 = scmp.eq.s32.totalorder %s13, 0
      %p122 = por %p120, %p121
      %p123 = scmp.ne.s32.totalorder %s112, %s115
      %p124 = scmp.eq.s32.totalorder %s18, 1
      %p125 = por %p123, %p124
      %p126 = scmp.ne.s32.totalorder %s115, %s116
      %p127 = scmp.eq.s32.totalorder %s18, 0
      %p128 = por %p126, %p127
      %p129 = scmp.ne.s32.totalorder %s115, %s116
      %p130 = scmp.eq.s32.totalorder %s19, 1
      %p131 = por %p129, %p130
      %p133 = scmp.ne.s32.totalorder %s116, %s132
      %p134 = scmp.eq.s32.totalorder %s19, 0
      %p135 = por %p133, %p134
      %p136 = scmp.le.s32.totalorder 1, %s13
      %p137 = scmp.lt.s32.totalorder %s13, 3
      %p138 = pnand %p136, %p137
      %p139 = pneg %p138
      // Predicated region
      $region9: #{multi_head_attention.1} parent=5 // pred_check
        _
      $region10: #{multi_head_attention.1} parent=5 // pred_check_branch
        %141 = sbr.rel (%p138) target = $region12
      $region11: #{multi_head_attention.1} parent=5 // pred_region
        %s142 = ssub.s32 %s13, 1
        // Predicated region
        $region13: #{multi_head_attention.1} parent=11 // pred_check
          %p143 = pneg %p60
        $region14: #{multi_head_attention.1} parent=11 // pred_check_branch
          %145 = sbr.rel (%p143) target = $region16
        $region15: #{multi_head_attention.1} parent=11 // pred_region
          _
        $region16: #{multi_head_attention.1} parent=11 // pred_fallthru
          _
        // Predicated region
        $region17: #{multi_head_attention.1} parent=11 // pred_check
          %p146 = pneg %p81
        $region18: #{multi_head_attention.1} parent=11 // pred_check_branch
          %148 = sbr.rel (%p146) target = $region20
        $region19: #{multi_head_attention.1} parent=11 // pred_region
          _
        $region20: #{multi_head_attention.1} parent=11 // pred_fallthru
          _
        // Predicated region
        $region21: #{multi_head_attention.1} parent=11 // pred_check
          %p149 = pneg %p102
        $region22: #{multi_head_attention.1} parent=11 // pred_check_branch
          %151 = sbr.rel (%p149) target = $region24
        $region23: #{multi_head_attention.1} parent=11 // pred_region
          _
        $region24: #{multi_head_attention.1} parent=11 // pred_fallthru
          _
      $region12: #{multi_head_attention.1} parent=5 // pred_fallthru
        _
      %p152 = scmp.lt.s32.totalorder %s13, 2
      // Predicated region
      $region25: #{multi_head_attention.1} parent=5 // pred_check
        %p153 = pneg %p152
      $region26: #{multi_head_attention.1} parent=5 // pred_check_branch
        %155 = sbr.rel (%p153) target = $region28
      $region27: #{multi_head_attention.1} parent=5 // pred_region
        // Predicated region
        $region29: #{multi_head_attention.1} parent=27 // pred_check
          %p156 = pneg %p33
        $region30: #{multi_head_attention.1} parent=27 // pred_check_branch
          %158 = sbr.rel (%p156) target = $region32
        $region31: #{multi_head_attention.1} parent=27 // pred_region
          %p159 = scmp.lt.s32.totalorder %s13, 1
          %s160 = scalar_select %p159, %s13, 1
          %s161 = smul.addr %s160, 48
          %s162 = smul.addr %s161, 4
          %s163 = scalar_lea.vmem %s0, %s162
        $region32: #{multi_head_attention.1} parent=27 // pred_fallthru
          _
      $region28: #{multi_head_attention.1} parent=5 // pred_fallthru
        _
      %p164 = scmp.le.s32.totalorder 1, %s13
      %p165 = scmp.lt.s32.totalorder %s13, 3
      %p166 = pnand %p164, %p165
      %p167 = pneg %p166
      // Predicated region
      $region33: #{multi_head_attention.1} parent=5 // pred_check
        _
      $region34: #{multi_head_attention.1} parent=5 // pred_check_branch
        %169 = sbr.rel (%p166) target = $region36
      $region35: #{multi_head_attention.1} parent=5 // pred_region
        %s170 = ssub.s32 %s13, 1
        %p171 = scmp.lt.s32.totalorder %s18, 1
        %s172 = scalar_select %p171, %s18, 1
        %s173 = smul.addr %s172, 48
        %s174 = smul.addr %s173, 4
        %s175 = scalar_lea.vmem %s0, %s174
        %p176 = pneg %p39
        %p177 = pneg %p36
        %p178 = pneg %p60
        %p179 = pneg %p57
        %p180 = pneg %p81
        %p181 = pneg %p78
        %p182 = pneg %p102
        %p183 = pneg %p99
        %p184 = pneg %p128
        %p185 = pneg %p125
        %s186 = sand.u32 %s115, 1
        %s187 = scalar_lea.sflag [#allocation3], %s186
        %s188 = sand.u32 %s115, 1
        %s189 = smul.addr %s188, 384
        %s190 = scalar_lea.vmem [#allocation2], %s189
        %p191 = scmp.lt.s32.totalorder %s18, 1
        %s192 = scalar_select %p191, %s18, 1
        %s193 = smul.addr %s192, 48
        %s194 = smul.addr %s193, 4
        %s195 = scalar_lea.vmem %s0, %s194
        %v197 = vld [vmem:[%s195] sm:$0xff]
        %v198 = vld [vmem:[%s195 + $0x8] sm:$0xf]
        %v199 = vld [vmem:[%s195 + $0xc] sm:$0xff]
        %v200 = vld [vmem:[%s195 + $0x14] sm:$0xf]
        %v201 = vld [vmem:[%s195 + $0x18] sm:$0xff]
        %v202 = vld [vmem:[%s195 + $0x20] sm:$0xf]
        %v203 = vld [vmem:[%s195 + $0x24] sm:$0xff]
        %v204 = vld [vmem:[%s195 + $0x2c] sm:$0xf]
        %v205 = vld [vmem:[%s195 + $0x30] sm:$0xff]
        %v206 = vld [vmem:[%s195 + $0x38] sm:$0xf]
        %v207 = vld [vmem:[%s195 + $0x3c] sm:$0xff]
        %v208 = vld [vmem:[%s195 + $0x44] sm:$0xf]
        %v209 = vld [vmem:[%s195 + $0x48] sm:$0xff]
        %v210 = vld [vmem:[%s195 + $0x50] sm:$0xf]
        %v211 = vld [vmem:[%s195 + $0x54] sm:$0xff]
        %v212 = vld [vmem:[%s195 + $0x5c] sm:$0xf]
        %v213 = vld [vmem:[%s195 + $0x60] sm:$0xff]
        %v214 = vld [vmem:[%s195 + $0x68] sm:$0xf]
        %v215 = vld [vmem:[%s195 + $0x6c] sm:$0xff]
        %v216 = vld [vmem:[%s195 + $0x74] sm:$0xf]
        %v217 = vld [vmem:[%s195 + $0x78] sm:$0xff]
        %v218 = vld [vmem:[%s195 + $0x80] sm:$0xf]
        %v219 = vld [vmem:[%s195 + $0x84] sm:$0xff]
        %v220 = vld [vmem:[%s195 + $0x8c] sm:$0xf]
        %v221 = vld [vmem:[%s195 + $0x90] sm:$0xff]
        %v222 = vld [vmem:[%s195 + $0x98] sm:$0xf]
        %v223 = vld [vmem:[%s195 + $0x9c] sm:$0xff]
        %v224 = vld [vmem:[%s195 + $0xa4] sm:$0xf]
        %v225 = vld [vmem:[%s195 + $0xa8] sm:$0xff]
        %v226 = vld [vmem:[%s195 + $0xb0] sm:$0xf]
        %v227 = vld [vmem:[%s195 + $0xb4] sm:$0xff]
        %v228 = vld [vmem:[%s195 + $0xbc] sm:$0xf]
        %v229 = vld [vmem:[%s1] sm:$0xff]
        %v230 = vld [vmem:[%s1 + $0x8] sm:$0xff]
        %v231 = vld [vmem:[%s1 + $0x10] sm:$0xff]
        %v232 = vld [vmem:[%s1 + $0x18] sm:$0xff]
        %v233 = vld [vmem:[%s1 + $0x20] sm:$0xf]
        %v234 = vld [vmem:[%s1 + $0x24] sm:$0xff]
        %v235 = vld [vmem:[%s1 + $0x2c] sm:$0xff]
        %v236 = vld [vmem:[%s1 + $0x34] sm:$0xff]
        %v237 = vld [vmem:[%s1 + $0x3c] sm:$0xff]
        %v238 = vld [vmem:[%s1 + $0x44] sm:$0xf]
        %v239 = vld [vmem:[%s1 + $0x48] sm:$0xff]
        %v240 = vld [vmem:[%s1 + $0x50] sm:$0xff]
        %v241 = vld [vmem:[%s1 + $0x58] sm:$0xff]
        %v242 = vld [vmem:[%s1 + $0x60] sm:$0xff]
        %v243 = vld [vmem:[%s1 + $0x68] sm:$0xf]
        %v244 = vld [vmem:[%s1 + $0x6c] sm:$0xff]
        %v245 = vld [vmem:[%s1 + $0x74] sm:$0xff]
        %v246 = vld [vmem:[%s1 + $0x7c] sm:$0xff]
        %v247 = vld [vmem:[%s1 + $0x84] sm:$0xff]
        %v248 = vld [vmem:[%s1 + $0x8c] sm:$0xf]
        %v249 = vld [vmem:[%s1 + $0x90] sm:$0xff]
        %v250 = vld [vmem:[%s1 + $0x98] sm:$0xff]
        %v251 = vld [vmem:[%s1 + $0xa0] sm:$0xff]
        %v252 = vld [vmem:[%s1 + $0xa8] sm:$0xff]
        %v253 = vld [vmem:[%s1 + $0xb0] sm:$0xf]
        %v254 = vld [vmem:[%s1 + $0xb4] sm:$0xff]
        %v255 = vld [vmem:[%s1 + $0xbc] sm:$0xff]
        %v256 = vld [vmem:[%s1 + $0xc4] sm:$0xff]
        %v257 = vld [vmem:[%s1 + $0xcc] sm:$0xff]
        %v258 = vld [vmem:[%s1 + $0xd4] sm:$0xf]
        %v259 = vld [vmem:[%s1 + $0xd8] sm:$0xff]
        %v260 = vld [vmem:[%s1 + $0xe0] sm:$0xff]
        %v261 = vld [vmem:[%s1 + $0xe8] sm:$0xff]
        %v262 = vld [vmem:[%s1 + $0xf0] sm:$0xff]
        %v263 = vld [vmem:[%s1 + $0xf8] sm:$0xf]
        %v264 = vld [vmem:[%s1 + $0xfc] sm:$0xff]
        %v265 = vld [vmem:[%s1 + $0x104] sm:$0xff]
        %v266 = vld [vmem:[%s1 + $0x10c] sm:$0xff]
        %v267 = vld [vmem:[%s1 + $0x114] sm:$0xff]
        %v268 = vld [vmem:[%s1 + $0x11c] sm:$0xf]
        %v269 = vld [vmem:[%s1 + $0x120] sm:$0xff]
        %v270 = vld [vmem:[%s1 + $0x128] sm:$0xff]
        %v271 = vld [vmem:[%s1 + $0x130] sm:$0xff]
        %v272 = vld [vmem:[%s1 + $0x138] sm:$0xff]
        %v273 = vld [vmem:[%s1 + $0x140] sm:$0xf]
        %v274 = vld [vmem:[%s1 + $0x144] sm:$0xff]
        %v275 = vld [vmem:[%s1 + $0x14c] sm:$0xff]
        %v276 = vld [vmem:[%s1 + $0x154] sm:$0xff]
        %v277 = vld [vmem:[%s1 + $0x15c] sm:$0xff]
        %v278 = vld [vmem:[%s1 + $0x164] sm:$0xf]
        %v279 = vld [vmem:[%s1 + $0x168] sm:$0xff]
        %v280 = vld [vmem:[%s1 + $0x170] sm:$0xff]
        %v281 = vld [vmem:[%s1 + $0x178] sm:$0xff]
        %v282 = vld [vmem:[%s1 + $0x180] sm:$0xff]
        %v283 = vld [vmem:[%s1 + $0x188] sm:$0xf]
        %v284 = vld [vmem:[%s1 + $0x18c] sm:$0xff]
        %v285 = vld [vmem:[%s1 + $0x194] sm:$0xff]
        %v286 = vld [vmem:[%s1 + $0x19c] sm:$0xff]
        %v287 = vld [vmem:[%s1 + $0x1a4] sm:$0xff]
        %v288 = vld [vmem:[%s1 + $0x1ac] sm:$0xf]
        %v289 = vld [vmem:[%s1 + $0x1b0] sm:$0xff]
        %v290 = vld [vmem:[%s1 + $0x1b8] sm:$0xff]
        %v291 = vld [vmem:[%s1 + $0x1c0] sm:$0xff]
        %v292 = vld [vmem:[%s1 + $0x1c8] sm:$0xff]
        %v293 = vld [vmem:[%s1 + $0x1d0] sm:$0xf]
        %v294 = vld [vmem:[%s1 + $0x1d4] sm:$0xff]
        %v295 = vld [vmem:[%s1 + $0x1dc] sm:$0xff]
        %v296 = vld [vmem:[%s1 + $0x1e4] sm:$0xff]
        %v297 = vld [vmem:[%s1 + $0x1ec] sm:$0xff]
        %v298 = vld [vmem:[%s1 + $0x1f4] sm:$0xf]
        %v299 = vld [vmem:[%s1 + $0x1f8] sm:$0xff]
        %v300 = vld [vmem:[%s1 + $0x200] sm:$0xff]
        %v301 = vld [vmem:[%s1 + $0x208] sm:$0xff]
        %v302 = vld [vmem:[%s1 + $0x210] sm:$0xff]
        %v303 = vld [vmem:[%s1 + $0x218] sm:$0xf]
        %v304 = vld [vmem:[%s1 + $0x21c] sm:$0xff]
        %v305 = vld [vmem:[%s1 + $0x224] sm:$0xff]
        %v306 = vld [vmem:[%s1 + $0x22c] sm:$0xff]
        %v307 = vld [vmem:[%s1 + $0x234] sm:$0xff]
        %v308 = vld [vmem:[%s1 + $0x23c] sm:$0xf]
        %v309 = vld [vmem:[%s1 + $0x240] sm:$0xff]
        %v310 = vld [vmem:[%s1 + $0x248] sm:$0xff]
        %v311 = vld [vmem:[%s1 + $0x250] sm:$0xff]
        %v312 = vld [vmem:[%s1 + $0x258] sm:$0xff]
        %v313 = vld [vmem:[%s1 + $0x260] sm:$0xf]
        %v314 = vld [vmem:[%s1 + $0x264] sm:$0xff]
        %v315 = vld [vmem:[%s1 + $0x26c] sm:$0xff]
        %v316 = vld [vmem:[%s1 + $0x274] sm:$0xff]
        %v317 = vld [vmem:[%s1 + $0x27c] sm:$0xff]
        %v318 = vld [vmem:[%s1 + $0x284] sm:$0xf]
        %v319 = vld [vmem:[%s1 + $0x288] sm:$0xff]
        %v320 = vld [vmem:[%s1 + $0x290] sm:$0xff]
        %v321 = vld [vmem:[%s1 + $0x298] sm:$0xff]
        %v322 = vld [vmem:[%s1 + $0x2a0] sm:$0xff]
        %v323 = vld [vmem:[%s1 + $0x2a8] sm:$0xf]
        %v324 = vld [vmem:[%s1 + $0x2ac] sm:$0xff]
        %v325 = vld [vmem:[%s1 + $0x2b4] sm:$0xff]
        %v326 = vld [vmem:[%s1 + $0x2bc] sm:$0xff]
        %v327 = vld [vmem:[%s1 + $0x2c4] sm:$0xff]
        %v328 = vld [vmem:[%s1 + $0x2cc] sm:$0xf]
        %v329 = vld [vmem:[%s1 + $0x2d0] sm:$0xff]
        %v330 = vld [vmem:[%s1 + $0x2d8] sm:$0xff]
        %v331 = vld [vmem:[%s1 + $0x2e0] sm:$0xff]
        %v332 = vld [vmem:[%s1 + $0x2e8] sm:$0xff]
        %v333 = vld [vmem:[%s1 + $0x2f0] sm:$0xf]
        %v334 = vld [vmem:[%s1 + $0x2f4] sm:$0xff]
        %v335 = vld [vmem:[%s1 + $0x2fc] sm:$0xff]
        %v336 = vld [vmem:[%s1 + $0x304] sm:$0xff]
        %v337 = vld [vmem:[%s1 + $0x30c] sm:$0xff]
        %v338 = vld [vmem:[%s1 + $0x314] sm:$0xf]
        %v339 = vld [vmem:[%s1 + $0x318] sm:$0xff]
        %v340 = vld [vmem:[%s1 + $0x320] sm:$0xff]
        %v341 = vld [vmem:[%s1 + $0x328] sm:$0xff]
        %v342 = vld [vmem:[%s1 + $0x330] sm:$0xff]
        %v343 = vld [vmem:[%s1 + $0x338] sm:$0xf]
        %v344 = vld [vmem:[%s1 + $0x33c] sm:$0xff]
        %v345 = vld [vmem:[%s1 + $0x344] sm:$0xff]
        %v346 = vld [vmem:[%s1 + $0x34c] sm:$0xff]
        %v347 = vld [vmem:[%s1 + $0x354] sm:$0xff]
        %v348 = vld [vmem:[%s1 + $0x35c] sm:$0xf]
        %v349 = vld [vmem:[%s1 + $0x360] sm:$0xff]
        %v350 = vld [vmem:[%s1 + $0x368] sm:$0xff]
        %v351 = vld [vmem:[%s1 + $0x370] sm:$0xff]
        %v352 = vld [vmem:[%s1 + $0x378] sm:$0xff]
        %v353 = vld [vmem:[%s1 + $0x380] sm:$0xf]
        %v354 = vld [vmem:[%s1 + $0x384] sm:$0xff]
        %v355 = vld [vmem:[%s1 + $0x38c] sm:$0xff]
        %v356 = vld [vmem:[%s1 + $0x394] sm:$0xff]
        %v357 = vld [vmem:[%s1 + $0x39c] sm:$0xff]
        %v358 = vld [vmem:[%s1 + $0x3a4] sm:$0xf]
        %v359 = vld [vmem:[%s1 + $0x3a8] sm:$0xff]
        %v360 = vld [vmem:[%s1 + $0x3b0] sm:$0xff]
        %v361 = vld [vmem:[%s1 + $0x3b8] sm:$0xff]
        %v362 = vld [vmem:[%s1 + $0x3c0] sm:$0xff]
        %v363 = vld [vmem:[%s1 + $0x3c8] sm:$0xf]
        %v364 = vld [vmem:[%s1 + $0x3cc] sm:$0xff]
        %v365 = vld [vmem:[%s1 + $0x3d4] sm:$0xff]
        %v366 = vld [vmem:[%s1 + $0x3dc] sm:$0xff]
        %v367 = vld [vmem:[%s1 + $0x3e4] sm:$0xff]
        %v368 = vld [vmem:[%s1 + $0x3ec] sm:$0xf]
        %v369 = vld [vmem:[%s1 + $0x3f0] sm:$0xff]
        %v370 = vld [vmem:[%s1 + $0x3f8] sm:$0xff]
        %v371 = vld [vmem:[%s1 + $0x400] sm:$0xff]
        %v372 = vld [vmem:[%s1 + $0x408] sm:$0xff]
        %v373 = vld [vmem:[%s1 + $0x410] sm:$0xf]
        %v374 = vld [vmem:[%s1 + $0x414] sm:$0xff]
        %v375 = vld [vmem:[%s1 + $0x41c] sm:$0xff]
        %v376 = vld [vmem:[%s1 + $0x424] sm:$0xff]
        %v377 = vld [vmem:[%s1 + $0x42c] sm:$0xff]
        %v378 = vld [vmem:[%s1 + $0x434] sm:$0xf]
        %v379 = vld [vmem:[%s1 + $0x438] sm:$0xff]
        %v380 = vld [vmem:[%s1 + $0x440] sm:$0xff]
        %v381 = vld [vmem:[%s1 + $0x448] sm:$0xff]
        %v382 = vld [vmem:[%s1 + $0x450] sm:$0xff]
        %v383 = vld [vmem:[%s1 + $0x458] sm:$0xf]
        %v384 = vld [vmem:[%s1 + $0x45c] sm:$0xff]
        %v385 = vld [vmem:[%s1 + $0x464] sm:$0xff]
        %v386 = vld [vmem:[%s1 + $0x46c] sm:$0xff]
        %v387 = vld [vmem:[%s1 + $0x474] sm:$0xff]
        %v388 = vld [vmem:[%s1 + $0x47c] sm:$0xf]
        %v389 = vld [vmem:[%s1 + $0x480] sm:$0xff]
        %v390 = vld [vmem:[%s1 + $0x488] sm:$0xff]
        %v391 = vld [vmem:[%s1 + $0x490] sm:$0xff]
        %v392 = vld [vmem:[%s1 + $0x498] sm:$0xff]
        %v393 = vld [vmem:[%s1 + $0x4a0] sm:$0xf]
        %v394 = vld [vmem:[%s1 + $0x4a4] sm:$0xff]
        %v395 = vld [vmem:[%s1 + $0x4ac] sm:$0xff]
        %v396 = vld [vmem:[%s1 + $0x4b4] sm:$0xff]
        %v397 = vld [vmem:[%s1 + $0x4bc] sm:$0xff]
        %v398 = vld [vmem:[%s1 + $0x4c4] sm:$0xf]
        %v399 = vld [vmem:[%s1 + $0x4c8] sm:$0xff]
        %v400 = vld [vmem:[%s1 + $0x4d0] sm:$0xff]
        %v401 = vld [vmem:[%s1 + $0x4d8] sm:$0xff]
        %v402 = vld [vmem:[%s1 + $0x4e0] sm:$0xff]
        %v403 = vld [vmem:[%s1 + $0x4e8] sm:$0xf]
        %v404 = vld [vmem:[%s1 + $0x4ec] sm:$0xff]
        %v405 = vld [vmem:[%s1 + $0x4f4] sm:$0xff]
        %v406 = vld [vmem:[%s1 + $0x4fc] sm:$0xff]
        %v407 = vld [vmem:[%s1 + $0x504] sm:$0xff]
        %v408 = vld [vmem:[%s1 + $0x50c] sm:$0xf]
        %v409 = vld [vmem:[%s1 + $0x510] sm:$0xff]
        %v410 = vld [vmem:[%s1 + $0x518] sm:$0xff]
        %v411 = vld [vmem:[%s1 + $0x520] sm:$0xff]
        %v412 = vld [vmem:[%s1 + $0x528] sm:$0xff]
        %v413 = vld [vmem:[%s1 + $0x530] sm:$0xf]
        %v414 = vld [vmem:[%s1 + $0x534] sm:$0xff]
        %v415 = vld [vmem:[%s1 + $0x53c] sm:$0xff]
        %v416 = vld [vmem:[%s1 + $0x544] sm:$0xff]
        %v417 = vld [vmem:[%s1 + $0x54c] sm:$0xff]
        %v418 = vld [vmem:[%s1 + $0x554] sm:$0xf]
        %v419 = vld [vmem:[%s1 + $0x558] sm:$0xff]
        %v420 = vld [vmem:[%s1 + $0x560] sm:$0xff]
        %v421 = vld [vmem:[%s1 + $0x568] sm:$0xff]
        %v422 = vld [vmem:[%s1 + $0x570] sm:$0xff]
        %v423 = vld [vmem:[%s1 + $0x578] sm:$0xf]
        %v424 = vld [vmem:[%s1 + $0x57c] sm:$0xff]
        %v425 = vld [vmem:[%s1 + $0x584] sm:$0xff]
        %v426 = vld [vmem:[%s1 + $0x58c] sm:$0xff]
        %v427 = vld [vmem:[%s1 + $0x594] sm:$0xff]
        %v428 = vld [vmem:[%s1 + $0x59c] sm:$0xf]
        %v429 = vld [vmem:[%s1 + $0x5a0] sm:$0xff]
        %v430 = vld [vmem:[%s1 + $0x5a8] sm:$0xff]
        %v431 = vld [vmem:[%s1 + $0x5b0] sm:$0xff]
        %v432 = vld [vmem:[%s1 + $0x5b8] sm:$0xff]
        %v433 = vld [vmem:[%s1 + $0x5c0] sm:$0xf]
        %v434 = vld [vmem:[%s1 + $0x5c4] sm:$0xff]
        %v435 = vld [vmem:[%s1 + $0x5cc] sm:$0xff]
        %v436 = vld [vmem:[%s1 + $0x5d4] sm:$0xff]
        %v437 = vld [vmem:[%s1 + $0x5dc] sm:$0xff]
        %v438 = vld [vmem:[%s1 + $0x5e4] sm:$0xf]
        %v439 = vld [vmem:[%s1 + $0x5e8] sm:$0xff]
        %v440 = vld [vmem:[%s1 + $0x5f0] sm:$0xff]
        %v441 = vld [vmem:[%s1 + $0x5f8] sm:$0xff]
        %v442 = vld [vmem:[%s1 + $0x600] sm:$0xff]
        %v443 = vld [vmem:[%s1 + $0x608] sm:$0xf]
        %v444 = vld [vmem:[%s1 + $0x60c] sm:$0xff]
        %v445 = vld [vmem:[%s1 + $0x614] sm:$0xff]
        %v446 = vld [vmem:[%s1 + $0x61c] sm:$0xff]
        %v447 = vld [vmem:[%s1 + $0x624] sm:$0xff]
        %v448 = vld [vmem:[%s1 + $0x62c] sm:$0xf]
        %v449 = vld [vmem:[%s1 + $0x630] sm:$0xff]
        %v450 = vld [vmem:[%s1 + $0x638] sm:$0xff]
        %v451 = vld [vmem:[%s1 + $0x640] sm:$0xff]
        %v452 = vld [vmem:[%s1 + $0x648] sm:$0xff]
        %v453 = vld [vmem:[%s1 + $0x650] sm:$0xf]
        %v454 = vld [vmem:[%s1 + $0x654] sm:$0xff]
        %v455 = vld [vmem:[%s1 + $0x65c] sm:$0xff]
        %v456 = vld [vmem:[%s1 + $0x664] sm:$0xff]
        %v457 = vld [vmem:[%s1 + $0x66c] sm:$0xff]
        %v458 = vld [vmem:[%s1 + $0x674] sm:$0xf]
        %v459 = vld [vmem:[%s1 + $0x678] sm:$0xff]
        %v460 = vld [vmem:[%s1 + $0x680] sm:$0xff]
        %v461 = vld [vmem:[%s1 + $0x688] sm:$0xff]
        %v462 = vld [vmem:[%s1 + $0x690] sm:$0xff]
        %v463 = vld [vmem:[%s1 + $0x698] sm:$0xf]
        %v464 = vld [vmem:[%s1 + $0x69c] sm:$0xff]
        %v465 = vld [vmem:[%s1 + $0x6a4] sm:$0xff]
        %v466 = vld [vmem:[%s1 + $0x6ac] sm:$0xff]
        %v467 = vld [vmem:[%s1 + $0x6b4] sm:$0xff]
        %v468 = vld [vmem:[%s1 + $0x6bc] sm:$0xf]
        %v469 = vld [vmem:[%s2] sm:$0xff]
        %v470 = vld [vmem:[%s2 + $0x8] sm:$0xf]
        %v471 = vld [vmem:[%s2 + $0xc] sm:$0xff]
        %v472 = vld [vmem:[%s2 + $0x14] sm:$0xf]
        %v473 = vld [vmem:[%s2 + $0x18] sm:$0xff]
        %v474 = vld [vmem:[%s2 + $0x20] sm:$0xf]
        %v475 = vld [vmem:[%s2 + $0x24] sm:$0xff]
        %v476 = vld [vmem:[%s2 + $0x2c] sm:$0xf]
        %v477 = vld [vmem:[%s2 + $0x30] sm:$0xff]
        %v478 = vld [vmem:[%s2 + $0x38] sm:$0xf]
        %v479 = vld [vmem:[%s2 + $0x3c] sm:$0xff]
        %v480 = vld [vmem:[%s2 + $0x44] sm:$0xf]
        %v481 = vld [vmem:[%s2 + $0x48] sm:$0xff]
        %v482 = vld [vmem:[%s2 + $0x50] sm:$0xf]
        %v483 = vld [vmem:[%s2 + $0x54] sm:$0xff]
        %v484 = vld [vmem:[%s2 + $0x5c] sm:$0xf]
        %v485 = vld [vmem:[%s2 + $0x60] sm:$0xff]
        %v486 = vld [vmem:[%s2 + $0x68] sm:$0xf]
        %v487 = vld [vmem:[%s2 + $0x6c] sm:$0xff]
        %v488 = vld [vmem:[%s2 + $0x74] sm:$0xf]
        %v489 = vld [vmem:[%s2 + $0x78] sm:$0xff]
        %v490 = vld [vmem:[%s2 + $0x80] sm:$0xf]
        %v491 = vld [vmem:[%s2 + $0x84] sm:$0xff]
        %v492 = vld [vmem:[%s2 + $0x8c] sm:$0xf]
        %v493 = vld [vmem:[%s2 + $0x90] sm:$0xff]
        %v494 = vld [vmem:[%s2 + $0x98] sm:$0xf]
        %v495 = vld [vmem:[%s2 + $0x9c] sm:$0xff]
        %v496 = vld [vmem:[%s2 + $0xa4] sm:$0xf]
        %v497 = vld [vmem:[%s2 + $0xa8] sm:$0xff]
        %v498 = vld [vmem:[%s2 + $0xb0] sm:$0xf]
        %v499 = vld [vmem:[%s2 + $0xb4] sm:$0xff]
        %v500 = vld [vmem:[%s2 + $0xbc] sm:$0xf]
        %v501 = vld [vmem:[%s2 + $0xc0] sm:$0xff]
        %v502 = vld [vmem:[%s2 + $0xc8] sm:$0xf]
        %v503 = vld [vmem:[%s2 + $0xcc] sm:$0xff]
        %v504 = vld [vmem:[%s2 + $0xd4] sm:$0xf]
        %v505 = vld [vmem:[%s2 + $0xd8] sm:$0xff]
        %v506 = vld [vmem:[%s2 + $0xe0] sm:$0xf]
        %v507 = vld [vmem:[%s2 + $0xe4] sm:$0xff]
        %v508 = vld [vmem:[%s2 + $0xec] sm:$0xf]
        %v509 = vld [vmem:[%s2 + $0xf0] sm:$0xff]
        %v510 = vld [vmem:[%s2 + $0xf8] sm:$0xf]
        %v511 = vld [vmem:[%s2 + $0xfc] sm:$0xff]
        %v512 = vld [vmem:[%s2 + $0x104] sm:$0xf]
        %v513 = vld [vmem:[%s2 + $0x108] sm:$0xff]
        %v514 = vld [vmem:[%s2 + $0x110] sm:$0xf]
        %v515 = vld [vmem:[%s2 + $0x114] sm:$0xff]
        %v516 = vld [vmem:[%s2 + $0x11c] sm:$0xf]
        %v517 = vld [vmem:[%s2 + $0x120] sm:$0xff]
        %v518 = vld [vmem:[%s2 + $0x128] sm:$0xf]
        %v519 = vld [vmem:[%s2 + $0x12c] sm:$0xff]
        %v520 = vld [vmem:[%s2 + $0x134] sm:$0xf]
        %v521 = vld [vmem:[%s2 + $0x138] sm:$0xff]
        %v522 = vld [vmem:[%s2 + $0x140] sm:$0xf]
        %v523 = vld [vmem:[%s2 + $0x144] sm:$0xff]
        %v524 = vld [vmem:[%s2 + $0x14c] sm:$0xf]
        %v525 = vld [vmem:[%s2 + $0x150] sm:$0xff]
        %v526 = vld [vmem:[%s2 + $0x158] sm:$0xf]
        %v527 = vld [vmem:[%s2 + $0x15c] sm:$0xff]
        %v528 = vld [vmem:[%s2 + $0x164] sm:$0xf]
        %v529 = vld [vmem:[%s2 + $0x168] sm:$0xff]
        %v530 = vld [vmem:[%s2 + $0x170] sm:$0xf]
        %v531 = vld [vmem:[%s2 + $0x174] sm:$0xff]
        %v532 = vld [vmem:[%s2 + $0x17c] sm:$0xf]
        %v533 = vld [vmem:[%s2 + $0x180] sm:$0xff]
        %v534 = vld [vmem:[%s2 + $0x188] sm:$0xf]
        %v535 = vld [vmem:[%s2 + $0x18c] sm:$0xff]
        %v536 = vld [vmem:[%s2 + $0x194] sm:$0xf]
        %v537 = vld [vmem:[%s2 + $0x198] sm:$0xff]
        %v538 = vld [vmem:[%s2 + $0x1a0] sm:$0xf]
        %v539 = vld [vmem:[%s2 + $0x1a4] sm:$0xff]
        %v540 = vld [vmem:[%s2 + $0x1ac] sm:$0xf]
        %v541 = vld [vmem:[%s2 + $0x1b0] sm:$0xff]
        %v542 = vld [vmem:[%s2 + $0x1b8] sm:$0xf]
        %v543 = vld [vmem:[%s2 + $0x1bc] sm:$0xff]
        %v544 = vld [vmem:[%s2 + $0x1c4] sm:$0xf]
        %v545 = vld [vmem:[%s2 + $0x1c8] sm:$0xff]
        %v546 = vld [vmem:[%s2 + $0x1d0] sm:$0xf]
        %v547 = vld [vmem:[%s2 + $0x1d4] sm:$0xff]
        %v548 = vld [vmem:[%s2 + $0x1dc] sm:$0xf]
        %v549 = vld [vmem:[%s2 + $0x1e0] sm:$0xff]
        %v550 = vld [vmem:[%s2 + $0x1e8] sm:$0xf]
        %v551 = vld [vmem:[%s2 + $0x1ec] sm:$0xff]
        %v552 = vld [vmem:[%s2 + $0x1f4] sm:$0xf]
        %v553 = vld [vmem:[%s2 + $0x1f8] sm:$0xff]
        %v554 = vld [vmem:[%s2 + $0x200] sm:$0xf]
        %v555 = vld [vmem:[%s2 + $0x204] sm:$0xff]
        %v556 = vld [vmem:[%s2 + $0x20c] sm:$0xf]
        %v557 = vld [vmem:[%s2 + $0x210] sm:$0xff]
        %v558 = vld [vmem:[%s2 + $0x218] sm:$0xf]
        %v559 = vld [vmem:[%s2 + $0x21c] sm:$0xff]
        %v560 = vld [vmem:[%s2 + $0x224] sm:$0xf]
        %v561 = vld [vmem:[%s2 + $0x228] sm:$0xff]
        %v562 = vld [vmem:[%s2 + $0x230] sm:$0xf]
        %v563 = vld [vmem:[%s2 + $0x234] sm:$0xff]
        %v564 = vld [vmem:[%s2 + $0x23c] sm:$0xf]
        %v597 = vunpack.c.l.b16 %v197
        %v598 = vunpack.c.h.b16 %v197
        %v599 = vunpack.c.l.b16 %v198
        %v600 = vunpack.c.l.b16 %v199
        %v601 = vunpack.c.h.b16 %v199
        %v602 = vunpack.c.l.b16 %v200
        %v603 = vunpack.c.l.b16 %v201
        %v604 = vunpack.c.h.b16 %v201
        %v605 = vunpack.c.l.b16 %v202
        %v606 = vunpack.c.l.b16 %v203
        %v607 = vunpack.c.h.b16 %v203
        %v608 = vunpack.c.l.b16 %v204
        %v609 = vunpack.c.l.b16 %v205
        %v610 = vunpack.c.h.b16 %v205
        %v611 = vunpack.c.l.b16 %v206
        %v612 = vunpack.c.l.b16 %v207
        %v613 = vunpack.c.h.b16 %v207
        %v614 = vunpack.c.l.b16 %v208
        %v615 = vunpack.c.l.b16 %v209
        %v616 = vunpack.c.h.b16 %v209
        %v617 = vunpack.c.l.b16 %v210
        %v618 = vunpack.c.l.b16 %v211
        %v619 = vunpack.c.h.b16 %v211
        %v620 = vunpack.c.l.b16 %v212
        %v621 = vunpack.c.l.b16 %v213
        %v622 = vunpack.c.h.b16 %v213
        %v623 = vunpack.c.l.b16 %v214
        %v624 = vunpack.c.l.b16 %v215
        %v625 = vunpack.c.h.b16 %v215
        %v626 = vunpack.c.l.b16 %v216
        %v627 = vunpack.c.l.b16 %v217
        %v628 = vunpack.c.h.b16 %v217
        %v629 = vunpack.c.l.b16 %v218
        %v630 = vunpack.c.l.b16 %v219
        %v631 = vunpack.c.h.b16 %v219
        %v632 = vunpack.c.l.b16 %v220
        %v633 = vunpack.c.l.b16 %v221
        %v634 = vunpack.c.h.b16 %v221
        %v635 = vunpack.c.l.b16 %v222
        %v636 = vunpack.c.l.b16 %v223
        %v637 = vunpack.c.h.b16 %v223
        %v638 = vunpack.c.l.b16 %v224
        %v639 = vunpack.c.l.b16 %v225
        %v640 = vunpack.c.h.b16 %v225
        %v641 = vunpack.c.l.b16 %v226
        %v642 = vunpack.c.l.b16 %v227
        %v643 = vunpack.c.h.b16 %v227
        %v644 = vunpack.c.l.b16 %v228
        %v645 = vpack.c.b16 %v600, %v597
        %v646 = vpack.c.b16 %v601, %v598
        %v647 = vpack.c.b16 %v602, %v599
        %v648 = vpack.c.b16 %v606, %v603
        %v649 = vpack.c.b16 %v607, %v604
        %v650 = vpack.c.b16 %v608, %v605
        %v651 = vpack.c.b16 %v612, %v609
        %v652 = vpack.c.b16 %v613, %v610
        %v653 = vpack.c.b16 %v614, %v611
        %v654 = vpack.c.b16 %v618, %v615
        %v655 = vpack.c.b16 %v619, %v616
        %v656 = vpack.c.b16 %v620, %v617
        %v657 = vpack.c.b16 %v624, %v621
        %v658 = vpack.c.b16 %v625, %v622
        %v659 = vpack.c.b16 %v626, %v623
        %v660 = vpack.c.b16 %v630, %v627
        %v661 = vpack.c.b16 %v631, %v628
        %v662 = vpack.c.b16 %v632, %v629
        %v663 = vpack.c.b16 %v636, %v633
        %v664 = vpack.c.b16 %v637, %v634
        %v665 = vpack.c.b16 %v638, %v635
        %v666 = vpack.c.b16 %v642, %v639
        %v667 = vpack.c.b16 %v643, %v640
        %v668 = vpack.c.b16 %v644, %v641
        %v933 = vunpack.c.l.b16 %v229
        %v934 = vunpack.c.h.b16 %v229
        %v935 = vunpack.c.l.b16 %v230
        %v936 = vunpack.c.h.b16 %v230
        %v937 = vunpack.c.l.b16 %v231
        %v938 = vunpack.c.h.b16 %v231
        %v939 = vunpack.c.l.b16 %v232
        %v940 = vunpack.c.h.b16 %v232
        %v941 = vunpack.c.l.b16 %v233
        %v942 = vunpack.c.l.b16 %v234
        %v943 = vunpack.c.h.b16 %v234
        %v944 = vunpack.c.l.b16 %v235
        %v945 = vunpack.c.h.b16 %v235
        %v946 = vunpack.c.l.b16 %v236
        %v947 = vunpack.c.h.b16 %v236
        %v948 = vunpack.c.l.b16 %v237
        %v949 = vunpack.c.h.b16 %v237
        %v950 = vunpack.c.l.b16 %v238
        %v951 = vunpack.c.l.b16 %v239
        %v952 = vunpack.c.h.b16 %v239
        %v953 = vunpack.c.l.b16 %v240
        %v954 = vunpack.c.h.b16 %v240
        %v955 = vunpack.c.l.b16 %v241
        %v956 = vunpack.c.h.b16 %v241
        %v957 = vunpack.c.l.b16 %v242
        %v958 = vunpack.c.h.b16 %v242
        %v959 = vunpack.c.l.b16 %v243
        %v960 = vunpack.c.l.b16 %v244
        %v961 = vunpack.c.h.b16 %v244
        %v962 = vunpack.c.l.b16 %v245
        %v963 = vunpack.c.h.b16 %v245
        %v964 = vunpack.c.l.b16 %v246
        %v965 = vunpack.c.h.b16 %v246
        %v966 = vunpack.c.l.b16 %v247
        %v967 = vunpack.c.h.b16 %v247
        %v968 = vunpack.c.l.b16 %v248
        %v969 = vunpack.c.l.b16 %v249
        %v970 = vunpack.c.h.b16 %v249
        %v971 = vunpack.c.l.b16 %v250
        %v972 = vunpack.c.h.b16 %v250
        %v973 = vunpack.c.l.b16 %v251
        %v974 = vunpack.c.h.b16 %v251
        %v975 = vunpack.c.l.b16 %v252
        %v976 = vunpack.c.h.b16 %v252
        %v977 = vunpack.c.l.b16 %v253
        %v978 = vunpack.c.l.b16 %v254
        %v979 = vunpack.c.h.b16 %v254
        %v980 = vunpack.c.l.b16 %v255
        %v981 = vunpack.c.h.b16 %v255
        %v982 = vunpack.c.l.b16 %v256
        %v983 = vunpack.c.h.b16 %v256
        %v984 = vunpack.c.l.b16 %v257
        %v985 = vunpack.c.h.b16 %v257
        %v986 = vunpack.c.l.b16 %v258
        %v987 = vunpack.c.l.b16 %v259
        %v988 = vunpack.c.h.b16 %v259
        %v989 = vunpack.c.l.b16 %v260
        %v990 = vunpack.c.h.b16 %v260
        %v991 = vunpack.c.l.b16 %v261
        %v992 = vunpack.c.h.b16 %v261
        %v993 = vunpack.c.l.b16 %v262
        %v994 = vunpack.c.h.b16 %v262
        %v995 = vunpack.c.l.b16 %v263
        %v996 = vunpack.c.l.b16 %v264
        %v997 = vunpack.c.h.b16 %v264
        %v998 = vunpack.c.l.b16 %v265
        %v999 = vunpack.c.h.b16 %v265
        %v1000 = vunpack.c.l.b16 %v266
        %v1001 = vunpack.c.h.b16 %v266
        %v1002 = vunpack.c.l.b16 %v267
        %v1003 = vunpack.c.h.b16 %v267
        %v1004 = vunpack.c.l.b16 %v268
        %v1005 = vunpack.c.l.b16 %v269
        %v1006 = vunpack.c.h.b16 %v269
        %v1007 = vunpack.c.l.b16 %v270
        %v1008 = vunpack.c.h.b16 %v270
        %v1009 = vunpack.c.l.b16 %v271
        %v1010 = vunpack.c.h.b16 %v271
        %v1011 = vunpack.c.l.b16 %v272
        %v1012 = vunpack.c.h.b16 %v272
        %v1013 = vunpack.c.l.b16 %v273
        %v1014 = vunpack.c.l.b16 %v274
        %v1015 = vunpack.c.h.b16 %v274
        %v1016 = vunpack.c.l.b16 %v275
        %v1017 = vunpack.c.h.b16 %v275
        %v1018 = vunpack.c.l.b16 %v276
        %v1019 = vunpack.c.h.b16 %v276
        %v1020 = vunpack.c.l.b16 %v277
        %v1021 = vunpack.c.h.b16 %v277
        %v1022 = vunpack.c.l.b16 %v278
        %v1023 = vunpack.c.l.b16 %v279
        %v1024 = vunpack.c.h.b16 %v279
        %v1025 = vunpack.c.l.b16 %v280
        %v1026 = vunpack.c.h.b16 %v280
        %v1027 = vunpack.c.l.b16 %v281
        %v1028 = vunpack.c.h.b16 %v281
        %v1029 = vunpack.c.l.b16 %v282
        %v1030 = vunpack.c.h.b16 %v282
        %v1031 = vunpack.c.l.b16 %v283
        %v1032 = vunpack.c.l.b16 %v284
        %v1033 = vunpack.c.h.b16 %v284
        %v1034 = vunpack.c.l.b16 %v285
        %v1035 = vunpack.c.h.b16 %v285
        %v1036 = vunpack.c.l.b16 %v286
        %v1037 = vunpack.c.h.b16 %v286
        %v1038 = vunpack.c.l.b16 %v287
        %v1039 = vunpack.c.h.b16 %v287
        %v1040 = vunpack.c.l.b16 %v288
        %v1041 = vunpack.c.l.b16 %v289
        %v1042 = vunpack.c.h.b16 %v289
        %v1043 = vunpack.c.l.b16 %v290
        %v1044 = vunpack.c.h.b16 %v290
        %v1045 = vunpack.c.l.b16 %v291
        %v1046 = vunpack.c.h.b16 %v291
        %v1047 = vunpack.c.l.b16 %v292
        %v1048 = vunpack.c.h.b16 %v292
        %v1049 = vunpack.c.l.b16 %v293
        %v1050 = vunpack.c.l.b16 %v294
        %v1051 = vunpack.c.h.b16 %v294
        %v1052 = vunpack.c.l.b16 %v295
        %v1053 = vunpack.c.h.b16 %v295
        %v1054 = vunpack.c.l.b16 %v296
        %v1055 = vunpack.c.h.b16 %v296
        %v1056 = vunpack.c.l.b16 %v297
        %v1057 = vunpack.c.h.b16 %v297
        %v1058 = vunpack.c.l.b16 %v298
        %v1059 = vunpack.c.l.b16 %v299
        %v1060 = vunpack.c.h.b16 %v299
        %v1061 = vunpack.c.l.b16 %v300
        %v1062 = vunpack.c.h.b16 %v300
        %v1063 = vunpack.c.l.b16 %v301
        %v1064 = vunpack.c.h.b16 %v301
        %v1065 = vunpack.c.l.b16 %v302
        %v1066 = vunpack.c.h.b16 %v302
        %v1067 = vunpack.c.l.b16 %v303
        %v1068 = vunpack.c.l.b16 %v304
        %v1069 = vunpack.c.h.b16 %v304
        %v1070 = vunpack.c.l.b16 %v305
        %v1071 = vunpack.c.h.b16 %v305
        %v1072 = vunpack.c.l.b16 %v306
        %v1073 = vunpack.c.h.b16 %v306
        %v1074 = vunpack.c.l.b16 %v307
        %v1075 = vunpack.c.h.b16 %v307
        %v1076 = vunpack.c.l.b16 %v308
        %v1077 = vunpack.c.l.b16 %v309
        %v1078 = vunpack.c.h.b16 %v309
        %v1079 = vunpack.c.l.b16 %v310
        %v1080 = vunpack.c.h.b16 %v310
        %v1081 = vunpack.c.l.b16 %v311
        %v1082 = vunpack.c.h.b16 %v311
        %v1083 = vunpack.c.l.b16 %v312
        %v1084 = vunpack.c.h.b16 %v312
        %v1085 = vunpack.c.l.b16 %v313
        %v1086 = vunpack.c.l.b16 %v314
        %v1087 = vunpack.c.h.b16 %v314
        %v1088 = vunpack.c.l.b16 %v315
        %v1089 = vunpack.c.h.b16 %v315
        %v1090 = vunpack.c.l.b16 %v316
        %v1091 = vunpack.c.h.b16 %v316
        %v1092 = vunpack.c.l.b16 %v317
        %v1093 = vunpack.c.h.b16 %v317
        %v1094 = vunpack.c.l.b16 %v318
        %v1095 = vunpack.c.l.b16 %v319
        %v1096 = vunpack.c.h.b16 %v319
        %v1097 = vunpack.c.l.b16 %v320
        %v1098 = vunpack.c.h.b16 %v320
        %v1099 = vunpack.c.l.b16 %v321
        %v1100 = vunpack.c.h.b16 %v321
        %v1101 = vunpack.c.l.b16 %v322
        %v1102 = vunpack.c.h.b16 %v322
        %v1103 = vunpack.c.l.b16 %v323
        %v1104 = vunpack.c.l.b16 %v324
        %v1105 = vunpack.c.h.b16 %v324
        %v1106 = vunpack.c.l.b16 %v325
        %v1107 = vunpack.c.h.b16 %v325
        %v1108 = vunpack.c.l.b16 %v326
        %v1109 = vunpack.c.h.b16 %v326
        %v1110 = vunpack.c.l.b16 %v327
        %v1111 = vunpack.c.h.b16 %v327
        %v1112 = vunpack.c.l.b16 %v328
        %v1113 = vunpack.c.l.b16 %v329
        %v1114 = vunpack.c.h.b16 %v329
        %v1115 = vunpack.c.l.b16 %v330
        %v1116 = vunpack.c.h.b16 %v330
        %v1117 = vunpack.c.l.b16 %v331
        %v1118 = vunpack.c.h.b16 %v331
        %v1119 = vunpack.c.l.b16 %v332
        %v1120 = vunpack.c.h.b16 %v332
        %v1121 = vunpack.c.l.b16 %v333
        %v1122 = vunpack.c.l.b16 %v334
        %v1123 = vunpack.c.h.b16 %v334
        %v1124 = vunpack.c.l.b16 %v335
        %v1125 = vunpack.c.h.b16 %v335
        %v1126 = vunpack.c.l.b16 %v336
        %v1127 = vunpack.c.h.b16 %v336
        %v1128 = vunpack.c.l.b16 %v337
        %v1129 = vunpack.c.h.b16 %v337
        %v1130 = vunpack.c.l.b16 %v338
        %v1131 = vunpack.c.l.b16 %v339
        %v1132 = vunpack.c.h.b16 %v339
        %v1133 = vunpack.c.l.b16 %v340
        %v1134 = vunpack.c.h.b16 %v340
        %v1135 = vunpack.c.l.b16 %v341
        %v1136 = vunpack.c.h.b16 %v341
        %v1137 = vunpack.c.l.b16 %v342
        %v1138 = vunpack.c.h.b16 %v342
        %v1139 = vunpack.c.l.b16 %v343
        %v1140 = vunpack.c.l.b16 %v344
        %v1141 = vunpack.c.h.b16 %v344
        %v1142 = vunpack.c.l.b16 %v345
        %v1143 = vunpack.c.h.b16 %v345
        %v1144 = vunpack.c.l.b16 %v346
        %v1145 = vunpack.c.h.b16 %v346
        %v1146 = vunpack.c.l.b16 %v347
        %v1147 = vunpack.c.h.b16 %v347
        %v1148 = vunpack.c.l.b16 %v348
        %v1149 = vunpack.c.l.b16 %v349
        %v1150 = vunpack.c.h.b16 %v349
        %v1151 = vunpack.c.l.b16 %v350
        %v1152 = vunpack.c.h.b16 %v350
        %v1153 = vunpack.c.l.b16 %v351
        %v1154 = vunpack.c.h.b16 %v351
        %v1155 = vunpack.c.l.b16 %v352
        %v1156 = vunpack.c.h.b16 %v352
        %v1157 = vunpack.c.l.b16 %v353
        %v1158 = vunpack.c.l.b16 %v354
        %v1159 = vunpack.c.h.b16 %v354
        %v1160 = vunpack.c.l.b16 %v355
        %v1161 = vunpack.c.h.b16 %v355
        %v1162 = vunpack.c.l.b16 %v356
        %v1163 = vunpack.c.h.b16 %v356
        %v1164 = vunpack.c.l.b16 %v357
        %v1165 = vunpack.c.h.b16 %v357
        %v1166 = vunpack.c.l.b16 %v358
        %v1167 = vunpack.c.l.b16 %v359
        %v1168 = vunpack.c.h.b16 %v359
        %v1169 = vunpack.c.l.b16 %v360
        %v1170 = vunpack.c.h.b16 %v360
        %v1171 = vunpack.c.l.b16 %v361
        %v1172 = vunpack.c.h.b16 %v361
        %v1173 = vunpack.c.l.b16 %v362
        %v1174 = vunpack.c.h.b16 %v362
        %v1175 = vunpack.c.l.b16 %v363
        %v1176 = vunpack.c.l.b16 %v364
        %v1177 = vunpack.c.h.b16 %v364
        %v1178 = vunpack.c.l.b16 %v365
        %v1179 = vunpack.c.h.b16 %v365
        %v1180 = vunpack.c.l.b16 %v366
        %v1181 = vunpack.c.h.b16 %v366
        %v1182 = vunpack.c.l.b16 %v367
        %v1183 = vunpack.c.h.b16 %v367
        %v1184 = vunpack.c.l.b16 %v368
        %v1185 = vunpack.c.l.b16 %v369
        %v1186 = vunpack.c.h.b16 %v369
        %v1187 = vunpack.c.l.b16 %v370
        %v1188 = vunpack.c.h.b16 %v370
        %v1189 = vunpack.c.l.b16 %v371
        %v1190 = vunpack.c.h.b16 %v371
        %v1191 = vunpack.c.l.b16 %v372
        %v1192 = vunpack.c.h.b16 %v372
        %v1193 = vunpack.c.l.b16 %v373
        %v1194 = vunpack.c.l.b16 %v374
        %v1195 = vunpack.c.h.b16 %v374
        %v1196 = vunpack.c.l.b16 %v375
        %v1197 = vunpack.c.h.b16 %v375
        %v1198 = vunpack.c.l.b16 %v376
        %v1199 = vunpack.c.h.b16 %v376
        %v1200 = vunpack.c.l.b16 %v377
        %v1201 = vunpack.c.h.b16 %v377
        %v1202 = vunpack.c.l.b16 %v378
        %v1203 = vunpack.c.l.b16 %v379
        %v1204 = vunpack.c.h.b16 %v379
        %v1205 = vunpack.c.l.b16 %v380
        %v1206 = vunpack.c.h.b16 %v380
        %v1207 = vunpack.c.l.b16 %v381
        %v1208 = vunpack.c.h.b16 %v381
        %v1209 = vunpack.c.l.b16 %v382
        %v1210 = vunpack.c.h.b16 %v382
        %v1211 = vunpack.c.l.b16 %v383
        %v1212 = vunpack.c.l.b16 %v384
        %v1213 = vunpack.c.h.b16 %v384
        %v1214 = vunpack.c.l.b16 %v385
        %v1215 = vunpack.c.h.b16 %v385
        %v1216 = vunpack.c.l.b16 %v386
        %v1217 = vunpack.c.h.b16 %v386
        %v1218 = vunpack.c.l.b16 %v387
        %v1219 = vunpack.c.h.b16 %v387
        %v1220 = vunpack.c.l.b16 %v388
        %v1221 = vunpack.c.l.b16 %v389
        %v1222 = vunpack.c.h.b16 %v389
        %v1223 = vunpack.c.l.b16 %v390
        %v1224 = vunpack.c.h.b16 %v390
        %v1225 = vunpack.c.l.b16 %v391
        %v1226 = vunpack.c.h.b16 %v391
        %v1227 = vunpack.c.l.b16 %v392
        %v1228 = vunpack.c.h.b16 %v392
        %v1229 = vunpack.c.l.b16 %v393
        %v1230 = vunpack.c.l.b16 %v394
        %v1231 = vunpack.c.h.b16 %v394
        %v1232 = vunpack.c.l.b16 %v395
        %v1233 = vunpack.c.h.b16 %v395
        %v1234 = vunpack.c.l.b16 %v396
        %v1235 = vunpack.c.h.b16 %v396
        %v1236 = vunpack.c.l.b16 %v397
        %v1237 = vunpack.c.h.b16 %v397
        %v1238 = vunpack.c.l.b16 %v398
        %v1239 = vunpack.c.l.b16 %v399
        %v1240 = vunpack.c.h.b16 %v399
        %v1241 = vunpack.c.l.b16 %v400
        %v1242 = vunpack.c.h.b16 %v400
        %v1243 = vunpack.c.l.b16 %v401
        %v1244 = vunpack.c.h.b16 %v401
        %v1245 = vunpack.c.l.b16 %v402
        %v1246 = vunpack.c.h.b16 %v402
        %v1247 = vunpack.c.l.b16 %v403
        %v1248 = vunpack.c.l.b16 %v404
        %v1249 = vunpack.c.h.b16 %v404
        %v1250 = vunpack.c.l.b16 %v405
        %v1251 = vunpack.c.h.b16 %v405
        %v1252 = vunpack.c.l.b16 %v406
        %v1253 = vunpack.c.h.b16 %v406
        %v1254 = vunpack.c.l.b16 %v407
        %v1255 = vunpack.c.h.b16 %v407
        %v1256 = vunpack.c.l.b16 %v408
        %v1257 = vunpack.c.l.b16 %v409
        %v1258 = vunpack.c.h.b16 %v409
        %v1259 = vunpack.c.l.b16 %v410
        %v1260 = vunpack.c.h.b16 %v410
        %v1261 = vunpack.c.l.b16 %v411
        %v1262 = vunpack.c.h.b16 %v411
        %v1263 = vunpack.c.l.b16 %v412
        %v1264 = vunpack.c.h.b16 %v412
        %v1265 = vunpack.c.l.b16 %v413
        %v1266 = vunpack.c.l.b16 %v414
        %v1267 = vunpack.c.h.b16 %v414
        %v1268 = vunpack.c.l.b16 %v415
        %v1269 = vunpack.c.h.b16 %v415
        %v1270 = vunpack.c.l.b16 %v416
        %v1271 = vunpack.c.h.b16 %v416
        %v1272 = vunpack.c.l.b16 %v417
        %v1273 = vunpack.c.h.b16 %v417
        %v1274 = vunpack.c.l.b16 %v418
        %v1275 = vunpack.c.l.b16 %v419
        %v1276 = vunpack.c.h.b16 %v419
        %v1277 = vunpack.c.l.b16 %v420
        %v1278 = vunpack.c.h.b16 %v420
        %v1279 = vunpack.c.l.b16 %v421
        %v1280 = vunpack.c.h.b16 %v421
        %v1281 = vunpack.c.l.b16 %v422
        %v1282 = vunpack.c.h.b16 %v422
        %v1283 = vunpack.c.l.b16 %v423
        %v1284 = vunpack.c.l.b16 %v424
        %v1285 = vunpack.c.h.b16 %v424
        %v1286 = vunpack.c.l.b16 %v425
        %v1287 = vunpack.c.h.b16 %v425
        %v1288 = vunpack.c.l.b16 %v426
        %v1289 = vunpack.c.h.b16 %v426
        %v1290 = vunpack.c.l.b16 %v427
        %v1291 = vunpack.c.h.b16 %v427
        %v1292 = vunpack.c.l.b16 %v428
        %v1293 = vunpack.c.l.b16 %v429
        %v1294 = vunpack.c.h.b16 %v429
        %v1295 = vunpack.c.l.b16 %v430
        %v1296 = vunpack.c.h.b16 %v430
        %v1297 = vunpack.c.l.b16 %v431
        %v1298 = vunpack.c.h.b16 %v431
        %v1299 = vunpack.c.l.b16 %v432
        %v1300 = vunpack.c.h.b16 %v432
        %v1301 = vunpack.c.l.b16 %v433
        %v1302 = vunpack.c.l.b16 %v434
        %v1303 = vunpack.c.h.b16 %v434
        %v1304 = vunpack.c.l.b16 %v435
        %v1305 = vunpack.c.h.b16 %v435
        %v1306 = vunpack.c.l.b16 %v436
        %v1307 = vunpack.c.h.b16 %v436
        %v1308 = vunpack.c.l.b16 %v437
        %v1309 = vunpack.c.h.b16 %v437
        %v1310 = vunpack.c.l.b16 %v438
        %v1311 = vunpack.c.l.b16 %v439
        %v1312 = vunpack.c.h.b16 %v439
        %v1313 = vunpack.c.l.b16 %v440
        %v1314 = vunpack.c.h.b16 %v440
        %v1315 = vunpack.c.l.b16 %v441
        %v1316 = vunpack.c.h.b16 %v441
        %v1317 = vunpack.c.l.b16 %v442
        %v1318 = vunpack.c.h.b16 %v442
        %v1319 = vunpack.c.l.b16 %v443
        %v1320 = vunpack.c.l.b16 %v444
        %v1321 = vunpack.c.h.b16 %v444
        %v1322 = vunpack.c.l.b16 %v445
        %v1323 = vunpack.c.h.b16 %v445
        %v1324 = vunpack.c.l.b16 %v446
        %v1325 = vunpack.c.h.b16 %v446
        %v1326 = vunpack.c.l.b16 %v447
        %v1327 = vunpack.c.h.b16 %v447
        %v1328 = vunpack.c.l.b16 %v448
        %v1329 = vunpack.c.l.b16 %v449
        %v1330 = vunpack.c.h.b16 %v449
        %v1331 = vunpack.c.l.b16 %v450
        %v1332 = vunpack.c.h.b16 %v450
        %v1333 = vunpack.c.l.b16 %v451
        %v1334 = vunpack.c.h.b16 %v451
        %v1335 = vunpack.c.l.b16 %v452
        %v1336 = vunpack.c.h.b16 %v452
        %v1337 = vunpack.c.l.b16 %v453
        %v1338 = vunpack.c.l.b16 %v454
        %v1339 = vunpack.c.h.b16 %v454
        %v1340 = vunpack.c.l.b16 %v455
        %v1341 = vunpack.c.h.b16 %v455
        %v1342 = vunpack.c.l.b16 %v456
        %v1343 = vunpack.c.h.b16 %v456
        %v1344 = vunpack.c.l.b16 %v457
        %v1345 = vunpack.c.h.b16 %v457
        %v1346 = vunpack.c.l.b16 %v458
        %v1347 = vunpack.c.l.b16 %v459
        %v1348 = vunpack.c.h.b16 %v459
        %v1349 = vunpack.c.l.b16 %v460
        %v1350 = vunpack.c.h.b16 %v460
        %v1351 = vunpack.c.l.b16 %v461
        %v1352 = vunpack.c.h.b16 %v461
        %v1353 = vunpack.c.l.b16 %v462
        %v1354 = vunpack.c.h.b16 %v462
        %v1355 = vunpack.c.l.b16 %v463
        %v1356 = vunpack.c.l.b16 %v464
        %v1357 = vunpack.c.h.b16 %v464
        %v1358 = vunpack.c.l.b16 %v465
        %v1359 = vunpack.c.h.b16 %v465
        %v1360 = vunpack.c.l.b16 %v466
        %v1361 = vunpack.c.h.b16 %v466
        %v1362 = vunpack.c.l.b16 %v467
        %v1363 = vunpack.c.h.b16 %v467
        %v1364 = vunpack.c.l.b16 %v468
        %v1365 = vpack.c.b16 %v942, %v933
        %v1366 = vpack.c.b16 %v943, %v934
        %v1367 = vpack.c.b16 %v944, %v935
        %v1368 = vpack.c.b16 %v945, %v936
        %v1369 = vpack.c.b16 %v946, %v937
        %v1370 = vpack.c.b16 %v947, %v938
        %v1371 = vpack.c.b16 %v948, %v939
        %v1372 = vpack.c.b16 %v949, %v940
        %v1373 = vpack.c.b16 %v950, %v941
        %v1374 = vpack.c.b16 %v960, %v951
        %v1375 = vpack.c.b16 %v961, %v952
        %v1376 = vpack.c.b16 %v962, %v953
        %v1377 = vpack.c.b16 %v963, %v954
        %v1378 = vpack.c.b16 %v964, %v955
        %v1379 = vpack.c.b16 %v965, %v956
        %v1380 = vpack.c.b16 %v966, %v957
        %v1381 = vpack.c.b16 %v967, %v958
        %v1382 = vpack.c.b16 %v968, %v959
        %v1383 = vpack.c.b16 %v978, %v969
        %v1384 = vpack.c.b16 %v979, %v970
        %v1385 = vpack.c.b16 %v980, %v971
        %v1386 = vpack.c.b16 %v981, %v972
        %v1387 = vpack.c.b16 %v982, %v973
        %v1388 = vpack.c.b16 %v983, %v974
        %v1389 = vpack.c.b16 %v984, %v975
        %v1390 = vpack.c.b16 %v985, %v976
        %v1391 = vpack.c.b16 %v986, %v977
        %v1392 = vpack.c.b16 %v996, %v987
        %v1393 = vpack.c.b16 %v997, %v988
        %v1394 = vpack.c.b16 %v998, %v989
        %v1395 = vpack.c.b16 %v999, %v990
        %v1396 = vpack.c.b16 %v1000, %v991
        %v1397 = vpack.c.b16 %v1001, %v992
        %v1398 = vpack.c.b16 %v1002, %v993
        %v1399 = vpack.c.b16 %v1003, %v994
        %v1400 = vpack.c.b16 %v1004, %v995
        %v1401 = vpack.c.b16 %v1014, %v1005
        %v1402 = vpack.c.b16 %v1015, %v1006
        %v1403 = vpack.c.b16 %v1016, %v1007
        %v1404 = vpack.c.b16 %v1017, %v1008
        %v1405 = vpack.c.b16 %v1018, %v1009
        %v1406 = vpack.c.b16 %v1019, %v1010
        %v1407 = vpack.c.b16 %v1020, %v1011
        %v1408 = vpack.c.b16 %v1021, %v1012
        %v1409 = vpack.c.b16 %v1022, %v1013
        %v1410 = vpack.c.b16 %v1032, %v1023
        %v1411 = vpack.c.b16 %v1033, %v1024
        %v1412 = vpack.c.b16 %v1034, %v1025
        %v1413 = vpack.c.b16 %v1035, %v1026
        %v1414 = vpack.c.b16 %v1036, %v1027
        %v1415 = vpack.c.b16 %v1037, %v1028
        %v1416 = vpack.c.b16 %v1038, %v1029
        %v1417 = vpack.c.b16 %v1039, %v1030
        %v1418 = vpack.c.b16 %v1040, %v1031
        %v1419 = vpack.c.b16 %v1050, %v1041
        %v1420 = vpack.c.b16 %v1051, %v1042
        %v1421 = vpack.c.b16 %v1052, %v1043
        %v1422 = vpack.c.b16 %v1053, %v1044
        %v1423 = vpack.c.b16 %v1054, %v1045
        %v1424 = vpack.c.b16 %v1055, %v1046
        %v1425 = vpack.c.b16 %v1056, %v1047
        %v1426 = vpack.c.b16 %v1057, %v1048
        %v1427 = vpack.c.b16 %v1058, %v1049
        %v1428 = vpack.c.b16 %v1068, %v1059
        %v1429 = vpack.c.b16 %v1069, %v1060
        %v1430 = vpack.c.b16 %v1070, %v1061
        %v1431 = vpack.c.b16 %v1071, %v1062
        %v1432 = vpack.c.b16 %v1072, %v1063
        %v1433 = vpack.c.b16 %v1073, %v1064
        %v1434 = vpack.c.b16 %v1074, %v1065
        %v1435 = vpack.c.b16 %v1075, %v1066
        %v1436 = vpack.c.b16 %v1076, %v1067
        %v1437 = vpack.c.b16 %v1086, %v1077
        %v1438 = vpack.c.b16 %v1087, %v1078
        %v1439 = vpack.c.b16 %v1088, %v1079
        %v1440 = vpack.c.b16 %v1089, %v1080
        %v1441 = vpack.c.b16 %v1090, %v1081
        %v1442 = vpack.c.b16 %v1091, %v1082
        %v1443 = vpack.c.b16 %v1092, %v1083
        %v1444 = vpack.c.b16 %v1093, %v1084
        %v1445 = vpack.c.b16 %v1094, %v1085
        %v1446 = vpack.c.b16 %v1104, %v1095
        %v1447 = vpack.c.b16 %v1105, %v1096
        %v1448 = vpack.c.b16 %v1106, %v1097
        %v1449 = vpack.c.b16 %v1107, %v1098
        %v1450 = vpack.c.b16 %v1108, %v1099
        %v1451 = vpack.c.b16 %v1109, %v1100
        %v1452 = vpack.c.b16 %v1110, %v1101
        %v1453 = vpack.c.b16 %v1111, %v1102
        %v1454 = vpack.c.b16 %v1112, %v1103
        %v1455 = vpack.c.b16 %v1122, %v1113
        %v1456 = vpack.c.b16 %v1123, %v1114
        %v1457 = vpack.c.b16 %v1124, %v1115
        %v1458 = vpack.c.b16 %v1125, %v1116
        %v1459 = vpack.c.b16 %v1126, %v1117
        %v1460 = vpack.c.b16 %v1127, %v1118
        %v1461 = vpack.c.b16 %v1128, %v1119
        %v1462 = vpack.c.b16 %v1129, %v1120
        %v1463 = vpack.c.b16 %v1130, %v1121
        %v1464 = vpack.c.b16 %v1140, %v1131
        %v1465 = vpack.c.b16 %v1141, %v1132
        %v1466 = vpack.c.b16 %v1142, %v1133
        %v1467 = vpack.c.b16 %v1143, %v1134
        %v1468 = vpack.c.b16 %v1144, %v1135
        %v1469 = vpack.c.b16 %v1145, %v1136
        %v1470 = vpack.c.b16 %v1146, %v1137
        %v1471 = vpack.c.b16 %v1147, %v1138
        %v1472 = vpack.c.b16 %v1148, %v1139
        %v1473 = vpack.c.b16 %v1158, %v1149
        %v1474 = vpack.c.b16 %v1159, %v1150
        %v1475 = vpack.c.b16 %v1160, %v1151
        %v1476 = vpack.c.b16 %v1161, %v1152
        %v1477 = vpack.c.b16 %v1162, %v1153
        %v1478 = vpack.c.b16 %v1163, %v1154
        %v1479 = vpack.c.b16 %v1164, %v1155
        %v1480 = vpack.c.b16 %v1165, %v1156
        %v1481 = vpack.c.b16 %v1166, %v1157
        %v1482 = vpack.c.b16 %v1176, %v1167
        %v1483 = vpack.c.b16 %v1177, %v1168
        %v1484 = vpack.c.b16 %v1178, %v1169
        %v1485 = vpack.c.b16 %v1179, %v1170
        %v1486 = vpack.c.b16 %v1180, %v1171
        %v1487 = vpack.c.b16 %v1181, %v1172
        %v1488 = vpack.c.b16 %v1182, %v1173
        %v1489 = vpack.c.b16 %v1183, %v1174
        %v1490 = vpack.c.b16 %v1184, %v1175
        %v1491 = vpack.c.b16 %v1194, %v1185
        %v1492 = vpack.c.b16 %v1195, %v1186
        %v1493 = vpack.c.b16 %v1196, %v1187
        %v1494 = vpack.c.b16 %v1197, %v1188
        %v1495 = vpack.c.b16 %v1198, %v1189
        %v1496 = vpack.c.b16 %v1199, %v1190
        %v1497 = vpack.c.b16 %v1200, %v1191
        %v1498 = vpack.c.b16 %v1201, %v1192
        %v1499 = vpack.c.b16 %v1202, %v1193
        %v1500 = vpack.c.b16 %v1212, %v1203
        %v1501 = vpack.c.b16 %v1213, %v1204
        %v1502 = vpack.c.b16 %v1214, %v1205
        %v1503 = vpack.c.b16 %v1215, %v1206
        %v1504 = vpack.c.b16 %v1216, %v1207
        %v1505 = vpack.c.b16 %v1217, %v1208
        %v1506 = vpack.c.b16 %v1218, %v1209
        %v1507 = vpack.c.b16 %v1219, %v1210
        %v1508 = vpack.c.b16 %v1220, %v1211
        %v1509 = vpack.c.b16 %v1230, %v1221
        %v1510 = vpack.c.b16 %v1231, %v1222
        %v1511 = vpack.c.b16 %v1232, %v1223
        %v1512 = vpack.c.b16 %v1233, %v1224
        %v1513 = vpack.c.b16 %v1234, %v1225
        %v1514 = vpack.c.b16 %v1235, %v1226
        %v1515 = vpack.c.b16 %v1236, %v1227
        %v1516 = vpack.c.b16 %v1237, %v1228
        %v1517 = vpack.c.b16 %v1238, %v1229
        %v1518 = vpack.c.b16 %v1248, %v1239
        %v1519 = vpack.c.b16 %v1249, %v1240
        %v1520 = vpack.c.b16 %v1250, %v1241
        %v1521 = vpack.c.b16 %v1251, %v1242
        %v1522 = vpack.c.b16 %v1252, %v1243
        %v1523 = vpack.c.b16 %v1253, %v1244
        %v1524 = vpack.c.b16 %v1254, %v1245
        %v1525 = vpack.c.b16 %v1255, %v1246
        %v1526 = vpack.c.b16 %v1256, %v1247
        %v1527 = vpack.c.b16 %v1266, %v1257
        %v1528 = vpack.c.b16 %v1267, %v1258
        %v1529 = vpack.c.b16 %v1268, %v1259
        %v1530 = vpack.c.b16 %v1269, %v1260
        %v1531 = vpack.c.b16 %v1270, %v1261
        %v1532 = vpack.c.b16 %v1271, %v1262
        %v1533 = vpack.c.b16 %v1272, %v1263
        %v1534 = vpack.c.b16 %v1273, %v1264
        %v1535 = vpack.c.b16 %v1274, %v1265
        %v1536 = vpack.c.b16 %v1284, %v1275
        %v1537 = vpack.c.b16 %v1285, %v1276
        %v1538 = vpack.c.b16 %v1286, %v1277
        %v1539 = vpack.c.b16 %v1287, %v1278
        %v1540 = vpack.c.b16 %v1288, %v1279
        %v1541 = vpack.c.b16 %v1289, %v1280
        %v1542 = vpack.c.b16 %v1290, %v1281
        %v1543 = vpack.c.b16 %v1291, %v1282
        %v1544 = vpack.c.b16 %v1292, %v1283
        %v1545 = vpack.c.b16 %v1302, %v1293
        %v1546 = vpack.c.b16 %v1303, %v1294
        %v1547 = vpack.c.b16 %v1304, %v1295
        %v1548 = vpack.c.b16 %v1305, %v1296
        %v1549 = vpack.c.b16 %v1306, %v1297
        %v1550 = vpack.c.b16 %v1307, %v1298
        %v1551 = vpack.c.b16 %v1308, %v1299
        %v1552 = vpack.c.b16 %v1309, %v1300
        %v1553 = vpack.c.b16 %v1310, %v1301
        %v1554 = vpack.c.b16 %v1320, %v1311
        %v1555 = vpack.c.b16 %v1321, %v1312
        %v1556 = vpack.c.b16 %v1322, %v1313
        %v1557 = vpack.c.b16 %v1323, %v1314
        %v1558 = vpack.c.b16 %v1324, %v1315
        %v1559 = vpack.c.b16 %v1325, %v1316
        %v1560 = vpack.c.b16 %v1326, %v1317
        %v1561 = vpack.c.b16 %v1327, %v1318
        %v1562 = vpack.c.b16 %v1328, %v1319
        %v1563 = vpack.c.b16 %v1338, %v1329
        %v1564 = vpack.c.b16 %v1339, %v1330
        %v1565 = vpack.c.b16 %v1340, %v1331
        %v1566 = vpack.c.b16 %v1341, %v1332
        %v1567 = vpack.c.b16 %v1342, %v1333
        %v1568 = vpack.c.b16 %v1343, %v1334
        %v1569 = vpack.c.b16 %v1344, %v1335
        %v1570 = vpack.c.b16 %v1345, %v1336
        %v1571 = vpack.c.b16 %v1346, %v1337
        %v1572 = vpack.c.b16 %v1356, %v1347
        %v1573 = vpack.c.b16 %v1357, %v1348
        %v1574 = vpack.c.b16 %v1358, %v1349
        %v1575 = vpack.c.b16 %v1359, %v1350
        %v1576 = vpack.c.b16 %v1360, %v1351
        %v1577 = vpack.c.b16 %v1361, %v1352
        %v1578 = vpack.c.b16 %v1362, %v1353
        %v1579 = vpack.c.b16 %v1363, %v1354
        %v1580 = vpack.c.b16 %v1364, %v1355
        %1797 = vmatprep.subr.bf16.mxu0 %v1366
        %1798 = vmatpush1.bf16.msra.mxu0 %v1365
        %1799 = vmatprep.subr.bf16.mxu0 %v1375
        %1800 = vmatpush1.bf16.msra.mxu0 %v1374
        %1801 = vmatprep.subr.bf16.mxu0 %v1384
        %1802 = vmatpush1.bf16.msra.mxu0 %v1383
        %1803 = vmatprep.subr.bf16.mxu0 %v1393
        %1804 = vmatpush1.bf16.msra.mxu0 %v1392
        %1805 = vmatprep.subr.bf16.mxu0 %v1402
        %1806 = vmatpush1.bf16.msra.mxu0 %v1401
        %1807 = vmatprep.subr.bf16.mxu0 %v1411
        %1808 = vmatpush1.bf16.msra.mxu0 %v1410
        %1809 = vmatprep.subr.bf16.mxu0 %v1420
        %1810 = vmatpush1.bf16.msra.mxu0 %v1419
        %1811 = vmatprep.subr.bf16.mxu0 %v1429
        %1812 = vmatpush1.bf16.msra.mxu0 %v1428
        %1813 = vmatprep.subr.bf16.mxu0 %v1438
        %1814 = vmatpush1.bf16.msra.mxu0 %v1437
        %1815 = vmatprep.subr.bf16.mxu0 %v1447
        %1816 = vmatpush1.bf16.msra.mxu0 %v1446
        %1817 = vmatprep.subr.bf16.mxu0 %v1456
        %1818 = vmatpush1.bf16.msra.mxu0 %v1455
        %1819 = vmatprep.subr.bf16.mxu0 %v1465
        %1820 = vmatpush1.bf16.msra.mxu0 %v1464
        %1821 = vmatprep.subr.bf16.mxu0 %v1474
        %1822 = vmatpush1.bf16.msra.mxu0 %v1473
        %1823 = vmatprep.subr.bf16.mxu0 %v1483
        %1824 = vmatpush1.bf16.msra.mxu0 %v1482
        %1825 = vmatprep.subr.bf16.mxu0 %v1492
        %1826 = vmatpush1.bf16.msra.mxu0 %v1491
        %1827 = vmatprep.subr.bf16.mxu0 %v1501
        %1828 = vmatpush1.bf16.msra.mxu0 %v1500
        %1829 = vmatprep.mubr.bf16.mxu0 %v646
        %1830 = vmatmul.mubr.bf16.gmra.mrb[0].mxu0 %v645
        %v1831 = vpop.f32.mrb[0].mxu0
        %v1832 = vadd.f32 0.0, %v1831
        %v1833 = vpop.f32.mrb[0].mxu0
        %v1834 = vadd.f32 0.0, %v1833
        %v1835 = vpop.f32.mrb[0].mxu0
        %v1836 = vadd.f32 0.0, %v1835
        %v1837 = vpop.f32.mrb[0].mxu0
        %v1838 = vadd.f32 0.0, %v1837
        %1839 = vmatprep.mubr.bf16.mxu0 %v649
        %1840 = vmatmul.mubr.bf16.gmra.mrb[0].mxu0 %v648
        %v1841 = vpop.f32.mrb[0].mxu0
        %v1842 = vadd.f32 0.0, %v1841
        %v1843 = vpop.f32.mrb[0].mxu0
        %v1844 = vadd.f32 0.0, %v1843
        %v1845 = vpop.f32.mrb[0].mxu0
        %v1846 = vadd.f32 0.0, %v1845
        %v1847 = vpop.f32.mrb[0].mxu0
        %v1848 = vadd.f32 0.0, %v1847
        %1849 = vmatprep.mubr.bf16.mxu0 %v652
        %1850 = vmatmul.mubr.bf16.gmra.mrb[0].mxu0 %v651
        %v1851 = vpop.f32.mrb[0].mxu0
        %v1852 = vadd.f32 0.0, %v1851
        %v1853 = vpop.f32.mrb[0].mxu0
        %v1854 = vadd.f32 0.0, %v1853
        %v1855 = vpop.f32.mrb[0].mxu0
        %v1856 = vadd.f32 0.0, %v1855
        %v1857 = vpop.f32.mrb[0].mxu0
        %v1858 = vadd.f32 0.0, %v1857
        %1859 = vmatprep.mubr.bf16.mxu0 %v655
        %1860 = vmatmul.mubr.bf16.gmra.mrb[0].mxu0 %v654
        %v1861 = vpop.f32.mrb[0].mxu0
        %v1862 = vadd.f32 0.0, %v1861
        %v1863 = vpop.f32.mrb[0].mxu0
        %v1864 = vadd.f32 0.0, %v1863
        %v1865 = vpop.f32.mrb[0].mxu0
        %v1866 = vadd.f32 0.0, %v1865
        %v1867 = vpop.f32.mrb[0].mxu0
        %v1868 = vadd.f32 0.0, %v1867
        %1869 = vmatprep.mubr.bf16.mxu0 %v658
        %1870 = vmatmul.mubr.bf16.gmra.mrb[0].mxu0 %v657
        %v1871 = vpop.f32.mrb[0].mxu0
        %v1872 = vadd.f32 0.0, %v1871
        %v1873 = vpop.f32.mrb[0].mxu0
        %v1874 = vadd.f32 0.0, %v1873
        %v1875 = vpop.f32.mrb[0].mxu0
        %v1876 = vadd.f32 0.0, %v1875
        %v1877 = vpop.f32.mrb[0].mxu0
        %v1878 = vadd.f32 0.0, %v1877
        %1879 = vmatprep.mubr.bf16.mxu0 %v661
        %1880 = vmatmul.mubr.bf16.gmra.mrb[0].mxu0 %v660
        %v1881 = vpop.f32.mrb[0].mxu0
        %v1882 = vadd.f32 0.0, %v1881
        %v1883 = vpop.f32.mrb[0].mxu0
        %v1884 = vadd.f32 0.0, %v1883
        %v1885 = vpop.f32.mrb[0].mxu0
        %v1886 = vadd.f32 0.0, %v1885
        %v1887 = vpop.f32.mrb[0].mxu0
        %v1888 = vadd.f32 0.0, %v1887
        %1889 = vmatprep.mubr.bf16.mxu0 %v664
        %1890 = vmatmul.mubr.bf16.gmra.mrb[0].mxu0 %v663
        %v1891 = vpop.f32.mrb[0].mxu0
        %v1892 = vadd.f32 0.0, %v1891
        %v1893 = vpop.f32.mrb[0].mxu0
        %v1894 = vadd.f32 0.0, %v1893
        %v1895 = vpop.f32.mrb[0].mxu0
        %v1896 = vadd.f32 0.0, %v1895
        %v1897 = vpop.f32.mrb[0].mxu0
        %v1898 = vadd.f32 0.0, %v1897
        %1899 = vmatprep.mubr.bf16.mxu0 %v667
        %1900 = vmatmul.mubr.bf16.gmra.mrb[0].mxu0 %v666
        %v1901 = vpop.f32.mrb[0].mxu0
        %v1902 = vadd.f32 0.0, %v1901
        %v1903 = vpop.f32.mrb[0].mxu0
        %v1904 = vadd.f32 0.0, %v1903
        %v1905 = vpop.f32.mrb[0].mxu0
        %v1906 = vadd.f32 0.0, %v1905
        %v1907 = vpop.f32.mrb[0].mxu0
        %v1908 = vadd.f32 0.0, %v1907
        %1909 = vdwg.mxu0
        %1910 = vmatprep.subr.bf16.mxu0 %v1510
        %1911 = vmatpush1.bf16.msra.mxu0 %v1509
        %1912 = vmatprep.subr.bf16.mxu0 %v1519
        %1913 = vmatpush1.bf16.msra.mxu0 %v1518
        %1914 = vmatprep.subr.bf16.mxu0 %v1528
        %1915 = vmatpush1.bf16.msra.mxu0 %v1527
        %1916 = vmatprep.subr.bf16.mxu0 %v1537
        %1917 = vmatpush1.bf16.msra.mxu0 %v1536
        %1918 = vmatprep.subr.bf16.mxu0 %v1546
        %1919 = vmatpush1.bf16.msra.mxu0 %v1545
        %1920 = vmatprep.subr.bf16.mxu0 %v1555
        %1921 = vmatpush1.bf16.msra.mxu0 %v1554
        %1922 = vmatprep.subr.bf16.mxu0 %v1564
        %1923 = vmatpush1.bf16.msra.mxu0 %v1563
        %1924 = vmatprep.subr.bf16.mxu0 %v1573
        %1925 = vmatpush1.bf16.msra.mxu0 %v1572
        %1926 = vmatprep.subr.bf16.mxu0 0
        %1927 = vmatpush1.bf16.msra.mxu0 0
        %1928 = vmatprep.subr.bf16.mxu0 0
        %1929 = vmatpush1.bf16.msra.mxu0 0
        %1930 = vmatprep.subr.bf16.mxu0 0
        %1931 = vmatpush1.bf16.msra.mxu0 0
        %1932 = vmatprep.subr.bf16.mxu0 0
        %1933 = vmatpush1.bf16.msra.mxu0 0
        %1934 = vmatprep.subr.bf16.mxu0 0
        %1935 = vmatpush1.bf16.msra.mxu0 0
        %1936 = vmatprep.subr.bf16.mxu0 0
        %1937 = vmatpush1.bf16.msra.mxu0 0
        %1938 = vmatprep.subr.bf16.mxu0 0
        %1939 = vmatpush1.bf16.msra.mxu0 0
        %1940 = vmatprep.subr.bf16.mxu0 0
        %1941 = vmatpush1.bf16.msra.mxu0 0
        %1942 = vmatprep.mubr.bf16.mxu0 0
        %1943 = vmatmul.mubr.bf16.gmra.mrb[0].mxu0 %v647
        %v1944 = vpop.f32.mrb[0].mxu0
        %v1945 = vadd.f32 %v1832, %v1944
        %v1946 = vpop.f32.mrb[0].mxu0
        %v1947 = vadd.f32 %v1834, %v1946
        %v1948 = vpop.f32.mrb[0].mxu0
        %v1949 = vadd.f32 %v1836, %v1948
        %v1950 = vpop.f32.mrb[0].mxu0
        %v1951 = vadd.f32 %v1838, %v1950
        %1952 = vmatprep.mubr.bf16.mxu0 0
        %1953 = vmatmul.mubr.bf16.gmra.mrb[0].mxu0 %v650
        %v1954 = vpop.f32.mrb[0].mxu0
        %v1955 = vadd.f32 %v1842, %v1954
        %v1956 = vpop.f32.mrb[0].mxu0
        %v1957 = vadd.f32 %v1844, %v1956
        %v1958 = vpop.f32.mrb[0].mxu0
        %v1959 = vadd.f32 %v1846, %v1958
        %v1960 = vpop.f32.mrb[0].mxu0
        %v1961 = vadd.f32 %v1848, %v1960
        %1962 = vmatprep.mubr.bf16.mxu0 0
        %1963 = vmatmul.mubr.bf16.gmra.mrb[0].mxu0 %v653
        %v1964 = vpop.f32.mrb[0].mxu0
        %v1965 = vadd.f32 %v1852, %v1964
        %v1966 = vpop.f32.mrb[0].mxu0
        %v1967 = vadd.f32 %v1854, %v1966
        %v1968 = vpop.f32.mrb[0].mxu0
        %v1969 = vadd.f32 %v1856, %v1968
        %v1970 = vpop.f32.mrb[0].mxu0
        %v1971 = vadd.f32 %v1858, %v1970
        %1972 = vmatprep.mubr.bf16.mxu0 0
        %1973 = vmatmul.mubr.bf16.gmra.mrb[0].mxu0 %v656
        %v1974 = vpop.f32.mrb[0].mxu0
        %v1975 = vadd.f32 %v1862, %v1974
        %v1976 = vpop.f32.mrb[0].mxu0
        %v1977 = vadd.f32 %v1864, %v1976
        %v1978 = vpop.f32.mrb[0].mxu0
        %v1979 = vadd.f32 %v1866, %v1978
        %v1980 = vpop.f32.mrb[0].mxu0
        %v1981 = vadd.f32 %v1868, %v1980
        %1982 = vmatprep.mubr.bf16.mxu0 0
        %1983 = vmatmul.mubr.bf16.gmra.mrb[0].mxu0 %v659
        %v1984 = vpop.f32.mrb[0].mxu0
        %v1985 = vadd.f32 %v1872, %v1984
        %v1986 = vpop.f32.mrb[0].mxu0
        %v1987 = vadd.f32 %v1874, %v1986
        %v1988 = vpop.f32.mrb[0].mxu0
        %v1989 = vadd.f32 %v1876, %v1988
        %v1990 = vpop.f32.mrb[0].mxu0
        %v1991 = vadd.f32 %v1878, %v1990
        %1992 = vmatprep.mubr.bf16.mxu0 0
        %1993 = vmatmul.mubr.bf16.gmra.mrb[0].mxu0 %v662
        %v1994 = vpop.f32.mrb[0].mxu0
        %v1995 = vadd.f32 %v1882, %v1994
        %v1996 = vpop.f32.mrb[0].mxu0
        %v1997 = vadd.f32 %v1884, %v1996
        %v1998 = vpop.f32.mrb[0].mxu0
        %v1999 = vadd.f32 %v1886, %v1998
        %v2000 = vpop.f32.mrb[0].mxu0
        %v2001 = vadd.f32 %v1888, %v2000
        %2002 = vmatprep.mubr.bf16.mxu0 0
        %2003 = vmatmul.mubr.bf16.gmra.mrb[0].mxu0 %v665
        %v2004 = vpop.f32.mrb[0].mxu0
        %v2005 = vadd.f32 %v1892, %v2004
        %v2006 = vpop.f32.mrb[0].mxu0
        %v2007 = vadd.f32 %v1894, %v2006
        %v2008 = vpop.f32.mrb[0].mxu0
        %v2009 = vadd.f32 %v1896, %v2008
        %v2010 = vpop.f32.mrb[0].mxu0
        %v2011 = vadd.f32 %v1898, %v2010
        %2012 = vmatprep.mubr.bf16.mxu0 0
        %2013 = vmatmul.mubr.bf16.gmra.mrb[0].mxu0 %v668
        %v2014 = vpop.f32.mrb[0].mxu0
        %v2015 = vadd.f32 %v1902, %v2014
        %v2016 = vpop.f32.mrb[0].mxu0
        %v2017 = vadd.f32 %v1904, %v2016
        %v2018 = vpop.f32.mrb[0].mxu0
        %v2019 = vadd.f32 %v1906, %v2018
        %v2020 = vpop.f32.mrb[0].mxu0
        %v2021 = vadd.f32 %v1908, %v2020
        %2022 = vdwg.mxu0
        %2023 = vmatprep.subr.bf16.mxu0 %v1368
        %2024 = vmatpush1.bf16.msra.mxu0 %v1367
        %2025 = vmatprep.subr.bf16.mxu0 %v1377
        %2026 = vmatpush1.bf16.msra.mxu0 %v1376
        %2027 = vmatprep.subr.bf16.mxu0 %v1386
        %2028 = vmatpush1.bf16.msra.mxu0 %v1385
        %2029 = vmatprep.subr.bf16.mxu0 %v1395
        %2030 = vmatpush1.bf16.msra.mxu0 %v1394
        %2031 = vmatprep.subr.bf16.mxu0 %v1404
        %2032 = vmatpush1.bf16.msra.mxu0 %v1403
        %2033 = vmatprep.subr.bf16.mxu0 %v1413
        %2034 = vmatpush1.bf16.msra.mxu0 %v1412
        %2035 = vmatprep.subr.bf16.mxu0 %v1422
        %2036 = vmatpush1.bf16.msra.mxu0 %v1421
        %2037 = vmatprep.subr.bf16.mxu0 %v1431
        %2038 = vmatpush1.bf16.msra.mxu0 %v1430
        %2039 = vmatprep.subr.bf16.mxu0 %v1440
        %2040 = vmatpush1.bf16.msra.mxu0 %v1439
        %2041 = vmatprep.subr.bf16.mxu0 %v1449
        %2042 = vmatpush1.bf16.msra.mxu0 %v1448
        %2043 = vmatprep.subr.bf16.mxu0 %v1458
        %2044 = vmatpush1.bf16.msra.mxu0 %v1457
        %2045 = vmatprep.subr.bf16.mxu0 %v1467
        %2046 = vmatpush1.bf16.msra.mxu0 %v1466
        %2047 = vmatprep.subr.bf16.mxu0 %v1476
        %2048 = vmatpush1.bf16.msra.mxu0 %v1475
        %2049 = vmatprep.subr.bf16.mxu0 %v1485
        %2050 = vmatpush1.bf16.msra.mxu0 %v1484
        %2051 = vmatprep.subr.bf16.mxu0 %v1494
        %2052 = vmatpush1.bf16.msra.mxu0 %v1493
        %2053 = vmatprep.subr.bf16.mxu0 %v1503
        %2054 = vmatpush1.bf16.msra.mxu0 %v1502
        %2055 = vmatprep.mubr.bf16.mxu0 %v646
        %2056 = vmatmul.mubr.bf16.gmra.mrb[0].mxu0 %v645
        %v2057 = vpop.f32.mrb[0].mxu0
        %v2058 = vadd.f32 0.0, %v2057
        %v2059 = vpop.f32.mrb[0].mxu0
        %v2060 = vadd.f32 0.0, %v2059
        %v2061 = vpop.f32.mrb[0].mxu0
        %v2062 = vadd.f32 0.0, %v2061
        %v2063 = vpop.f32.mrb[0].mxu0
        %v2064 = vadd.f32 0.0, %v2063
        %2065 = vmatprep.mubr.bf16.mxu0 %v649
        %2066 = vmatmul.mubr.bf16.gmra.mrb[0].mxu0 %v648
        %v2067 = vpop.f32.mrb[0].mxu0
        %v2068 = vadd.f32 0.0, %v2067
        %v2069 = vpop.f32.mrb[0].mxu0
        %v2070 = vadd.f32 0.0, %v2069
        %v2071 = vpop.f32.mrb[0].mxu0
        %v2072 = vadd.f32 0.0, %v2071
        %v2073 = vpop.f32.mrb[0].mxu0
        %v2074 = vadd.f32 0.0, %v2073
        %2075 = vmatprep.mubr.bf16.mxu0 %v652
        %2076 = vmatmul.mubr.bf16.gmra.mrb[0].mxu0 %v651
        %v2077 = vpop.f32.mrb[0].mxu0
        %v2078 = vadd.f32 0.0, %v2077
        %v2079 = vpop.f32.mrb[0].mxu0
        %v2080 = vadd.f32 0.0, %v2079
        %v2081 = vpop.f32.mrb[0].mxu0
        %v2082 = vadd.f32 0.0, %v2081
        %v2083 = vpop.f32.mrb[0].mxu0
        %v2084 = vadd.f32 0.0, %v2083
        %2085 = vmatprep.mubr.bf16.mxu0 %v655
        %2086 = vmatmul.mubr.bf16.gmra.mrb[0].mxu0 %v654
        %v2087 = vpop.f32.mrb[0].mxu0
        %v2088 = vadd.f32 0.0, %v2087
        %v2089 = vpop.f32.mrb[0].mxu0
        %v2090 = vadd.f32 0.0, %v2089
        %v2091 = vpop.f32.mrb[0].mxu0
        %v2092 = vadd.f32 0.0, %v2091
        %v2093 = vpop.f32.mrb[0].mxu0
        %v2094 = vadd.f32 0.0, %v2093
        %2095 = vmatprep.mubr.bf16.mxu0 %v658
        %2096 = vmatmul.mubr.bf16.gmra.mrb[0].mxu0 %v657
        %v2097 = vpop.f32.mrb[0].mxu0
        %v2098 = vadd.f32 0.0, %v2097
        %v2099 = vpop.f32.mrb[0].mxu0
        %v2100 = vadd.f32 0.0, %v2099
        %v2101 = vpop.f32.mrb[0].mxu0
        %v2102 = vadd.f32 0.0, %v2101
        %v2103 = vpop.f32.mrb[0].mxu0
        %v2104 = vadd.f32 0.0, %v2103
        %2105 = vmatprep.mubr.bf16.mxu0 %v661
        %2106 = vmatmul.mubr.bf16.gmra.mrb[0].mxu0 %v660
        %v2107 = vpop.f32.mrb[0].mxu0
        %v2108 = vadd.f32 0.0, %v2107
        %v2109 = vpop.f32.mrb[0].mxu0
        %v2110 = vadd.f32 0.0, %v2109
        %v2111 = vpop.f32.mrb[0].mxu0
        %v2112 = vadd.f32 0.0, %v2111
        %v2113 = vpop.f32.mrb[0].mxu0
        %v2114 = vadd.f32 0.0, %v2113
        %2115 = vmatprep.mubr.bf16.mxu0 %v664
        %2116 = vmatmul.mubr.bf16.gmra.mrb[0].mxu0 %v663
        %v2117 = vpop.f32.mrb[0].mxu0
        %v2118 = vadd.f32 0.0, %v2117
        %v2119 = vpop.f32.mrb[0].mxu0
        %v2120 = vadd.f32 0.0, %v2119
        %v2121 = vpop.f32.mrb[0].mxu0
        %v2122 = vadd.f32 0.0, %v2121
        %v2123 = vpop.f32.mrb[0].mxu0
        %v2124 = vadd.f32 0.0, %v2123
        %2125 = vmatprep.mubr.bf16.mxu0 %v667
        %2126 = vmatmul.mubr.bf16.gmra.mrb[0].mxu0 %v666
        %v2127 = vpop.f32.mrb[0].mxu0
        %v2128 = vadd.f32 0.0, %v2127
        %v2129 = vpop.f32.mrb[0].mxu0
        %v2130 = vadd.f32 0.0, %v2129
        %v2131 = vpop.f32.mrb[0].mxu0
        %v2132 = vadd.f32 0.0, %v2131
        %v2133 = vpop.f32.mrb[0].mxu0
        %v2134 = vadd.f32 0.0, %v2133
        %2135 = vdwg.mxu0
        %2136 = vmatprep.subr.bf16.mxu0 %v1512
        %2137 = vmatpush1.bf16.msra.mxu0 %v1511
        %2138 = vmatprep.subr.bf16.mxu0 %v1521
        %2139 = vmatpush1.bf16.msra.mxu0 %v1520
        %2140 = vmatprep.subr.bf16.mxu0 %v1530
        %2141 = vmatpush1.bf16.msra.mxu0 %v1529
        %2142 = vmatprep.subr.bf16.mxu0 %v1539
        %2143 = vmatpush1.bf16.msra.mxu0 %v1538
        %2144 = vmatprep.subr.bf16.mxu0 %v1548
        %2145 = vmatpush1.bf16.msra.mxu0 %v1547
        %2146 = vmatprep.subr.bf16.mxu0 %v1557
        %2147 = vmatpush1.bf16.msra.mxu0 %v1556
        %2148 = vmatprep.subr.bf16.mxu0 %v1566
        %2149 = vmatpush1.bf16.msra.mxu0 %v1565
        %2150 = vmatprep.subr.bf16.mxu0 %v1575
        %2151 = vmatpush1.bf16.msra.mxu0 %v1574
        %2152 = vmatprep.subr.bf16.mxu0 0
        %2153 = vmatpush1.bf16.msra.mxu0 0
        %2154 = vmatprep.subr.bf16.mxu0 0
        %2155 = vmatpush1.bf16.msra.mxu0 0
        %2156 = vmatprep.subr.bf16.mxu0 0
        %2157 = vmatpush1.bf16.msra.mxu0 0
        %2158 = vmatprep.subr.bf16.mxu0 0
        %2159 = vmatpush1.bf16.msra.mxu0 0
        %2160 = vmatprep.subr.bf16.mxu0 0
        %2161 = vmatpush1.bf16.msra.mxu0 0
        %2162 = vmatprep.subr.bf16.mxu0 0
        %2163 = vmatpush1.bf16.msra.mxu0 0
        %2164 = vmatprep.subr.bf16.mxu0 0
        %2165 = vmatpush1.bf16.msra.mxu0 0
        %2166 = vmatprep.subr.bf16.mxu0 0
        %2167 = vmatpush1.bf16.msra.mxu0 0
        %2168 = vmatprep.mubr.bf16.mxu0 0
        %2169 = vmatmul.mubr.bf16.gmra.mrb[0].mxu0 %v647
        %v2170 = vpop.f32.mrb[0].mxu0
        %v2171 = vadd.f32 %v2058, %v2170
        %v2172 = vpop.f32.mrb[0].mxu0
        %v2173 = vadd.f32 %v2060, %v2172
        %v2174 = vpop.f32.mrb[0].mxu0
        %v2175 = vadd.f32 %v2062, %v2174
        %v2176 = vpop.f32.mrb[0].mxu0
        %v2177 = vadd.f32 %v2064, %v2176
        %2178 = vmatprep.mubr.bf16.mxu0 0
        %2179 = vmatmul.mubr.bf16.gmra.mrb[0].mxu0 %v650
        %v2180 = vpop.f32.mrb[0].mxu0
        %v2181 = vadd.f32 %v2068, %v2180
        %v2182 = vpop.f32.mrb[0].mxu0
        %v2183 = vadd.f32 %v2070, %v2182
        %v2184 = vpop.f32.mrb[0].mxu0
        %v2185 = vadd.f32 %v2072, %v2184
        %v2186 = vpop.f32.mrb[0].mxu0
        %v2187 = vadd.f32 %v2074, %v2186
        %2188 = vmatprep.mubr.bf16.mxu0 0
        %2189 = vmatmul.mubr.bf16.gmra.mrb[0].mxu0 %v653
        %v2190 = vpop.f32.mrb[0].mxu0
        %v2191 = vadd.f32 %v2078, %v2190
        %v2192 = vpop.f32.mrb[0].mxu0
        %v2193 = vadd.f32 %v2080, %v2192
        %v2194 = vpop.f32.mrb[0].mxu0
        %v2195 = vadd.f32 %v2082, %v2194
        %v2196 = vpop.f32.mrb[0].mxu0
        %v2197 = vadd.f32 %v2084, %v2196
        %2198 = vmatprep.mubr.bf16.mxu0 0
        %2199 = vmatmul.mubr.bf16.gmra.mrb[0].mxu0 %v656
        %v2200 = vpop.f32.mrb[0].mxu0
        %v2201 = vadd.f32 %v2088, %v2200
        %v2202 = vpop.f32.mrb[0].mxu0
        %v2203 = vadd.f32 %v2090, %v2202
        %v2204 = vpop.f32.mrb[0].mxu0
        %v2205 = vadd.f32 %v2092, %v2204
        %v2206 = vpop.f32.mrb[0].mxu0
        %v2207 = vadd.f32 %v2094, %v2206
        %2208 = vmatprep.mubr.bf16.mxu0 0
        %2209 = vmatmul.mubr.bf16.gmra.mrb[0].mxu0 %v659
        %v2210 = vpop.f32.mrb[0].mxu0
        %v2211 = vadd.f32 %v2098, %v2210
        %v2212 = vpop.f32.mrb[0].mxu0
        %v2213 = vadd.f32 %v2100, %v2212
        %v2214 = vpop.f32.mrb[0].mxu0
        %v2215 = vadd.f32 %v2102, %v2214
        %v2216 = vpop.f32.mrb[0].mxu0
        %v2217 = vadd.f32 %v2104, %v2216
        %2218 = vmatprep.mubr.bf16.mxu0 0
        %2219 = vmatmul.mubr.bf16.gmra.mrb[0].mxu0 %v662
        %v2220 = vpop.f32.mrb[0].mxu0
        %v2221 = vadd.f32 %v2108, %v2220
        %v2222 = vpop.f32.mrb[0].mxu0
        %v2223 = vadd.f32 %v2110, %v2222
        %v2224 = vpop.f32.mrb[0].mxu0
        %v2225 = vadd.f32 %v2112, %v2224
        %v2226 = vpop.f32.mrb[0].mxu0
        %v2227 = vadd.f32 %v2114, %v2226
        %2228 = vmatprep.mubr.bf16.mxu0 0
        %2229 = vmatmul.mubr.bf16.gmra.mrb[0].mxu0 %v665
        %v2230 = vpop.f32.mrb[0].mxu0
        %v2231 = vadd.f32 %v2118, %v2230
        %v2232 = vpop.f32.mrb[0].mxu0
        %v2233 = vadd.f32 %v2120, %v2232
        %v2234 = vpop.f32.mrb[0].mxu0
        %v2235 = vadd.f32 %v2122, %v2234
        %v2236 = vpop.f32.mrb[0].mxu0
        %v2237 = vadd.f32 %v2124, %v2236
        %2238 = vmatprep.mubr.bf16.mxu0 0
        %2239 = vmatmul.mubr.bf16.gmra.mrb[0].mxu0 %v668
        %v2240 = vpop.f32.mrb[0].mxu0
        %v2241 = vadd.f32 %v2128, %v2240
        %v2242 = vpop.f32.mrb[0].mxu0
        %v2243 = vadd.f32 %v2130, %v2242
        %v2244 = vpop.f32.mrb[0].mxu0
        %v2245 = vadd.f32 %v2132, %v2244
        %v2246 = vpop.f32.mrb[0].mxu0
        %v2247 = vadd.f32 %v2134, %v2246
        %2248 = vdwg.mxu0
        %2249 = vmatprep.subr.bf16.mxu0 %v1370
        %2250 = vmatpush1.bf16.msra.mxu0 %v1369
        %2251 = vmatprep.subr.bf16.mxu0 %v1379
        %2252 = vmatpush1.bf16.msra.mxu0 %v1378
        %2253 = vmatprep.subr.bf16.mxu0 %v1388
        %2254 = vmatpush1.bf16.msra.mxu0 %v1387
        %2255 = vmatprep.subr.bf16.mxu0 %v1397
        %2256 = vmatpush1.bf16.msra.mxu0 %v1396
        %2257 = vmatprep.subr.bf16.mxu0 %v1406
        %2258 = vmatpush1.bf16.msra.mxu0 %v1405
        %2259 = vmatprep.subr.bf16.mxu0 %v1415
        %2260 = vmatpush1.bf16.msra.mxu0 %v1414
        %2261 = vmatprep.subr.bf16.mxu0 %v1424
        %2262 = vmatpush1.bf16.msra.mxu0 %v1423
        %2263 = vmatprep.subr.bf16.mxu0 %v1433
        %2264 = vmatpush1.bf16.msra.mxu0 %v1432
        %2265 = vmatprep.subr.bf16.mxu0 %v1442
        %2266 = vmatpush1.bf16.msra.mxu0 %v1441
        %2267 = vmatprep.subr.bf16.mxu0 %v1451
        %2268 = vmatpush1.bf16.msra.mxu0 %v1450
        %2269 = vmatprep.subr.bf16.mxu0 %v1460
        %2270 = vmatpush1.bf16.msra.mxu0 %v1459
        %2271 = vmatprep.subr.bf16.mxu0 %v1469
        %2272 = vmatpush1.bf16.msra.mxu0 %v1468
        %2273 = vmatprep.subr.bf16.mxu0 %v1478
        %2274 = vmatpush1.bf16.msra.mxu0 %v1477
        %2275 = vmatprep.subr.bf16.mxu0 %v1487
        %2276 = vmatpush1.bf16.msra.mxu0 %v1486
        %2277 = vmatprep.subr.bf16.mxu0 %v1496
        %2278 = vmatpush1.bf16.msra.mxu0 %v1495
        %2279 = vmatprep.subr.bf16.mxu0 %v1505
        %2280 = vmatpush1.bf16.msra.mxu0 %v1504
        %2281 = vmatprep.mubr.bf16.mxu0 %v646
        %2282 = vmatmul.mubr.bf16.gmra.mrb[0].mxu0 %v645
        %v2283 = vpop.f32.mrb[0].mxu0
        %v2284 = vadd.f32 0.0, %v2283
        %v2285 = vpop.f32.mrb[0].mxu0
        %v2286 = vadd.f32 0.0, %v2285
        %v2287 = vpop.f32.mrb[0].mxu0
        %v2288 = vadd.f32 0.0, %v2287
        %v2289 = vpop.f32.mrb[0].mxu0
        %v2290 = vadd.f32 0.0, %v2289
        %2291 = vmatprep.mubr.bf16.mxu0 %v649
        %2292 = vmatmul.mubr.bf16.gmra.mrb[0].mxu0 %v648
        %v2293 = vpop.f32.mrb[0].mxu0
        %v2294 = vadd.f32 0.0, %v2293
        %v2295 = vpop.f32.mrb[0].mxu0
        %v2296 = vadd.f32 0.0, %v2295
        %v2297 = vpop.f32.mrb[0].mxu0
        %v2298 = vadd.f32 0.0, %v2297
        %v2299 = vpop.f32.mrb[0].mxu0
        %v2300 = vadd.f32 0.0, %v2299
        %2301 = vmatprep.mubr.bf16.mxu0 %v652
        %2302 = vmatmul.mubr.bf16.gmra.mrb[0].mxu0 %v651
        %v2303 = vpop.f32.mrb[0].mxu0
        %v2304 = vadd.f32 0.0, %v2303
        %v2305 = vpop.f32.mrb[0].mxu0
        %v2306 = vadd.f32 0.0, %v2305
        %v2307 = vpop.f32.mrb[0].mxu0
        %v2308 = vadd.f32 0.0, %v2307
        %v2309 = vpop.f32.mrb[0].mxu0
        %v2310 = vadd.f32 0.0, %v2309
        %2311 = vmatprep.mubr.bf16.mxu0 %v655
        %2312 = vmatmul.mubr.bf16.gmra.mrb[0].mxu0 %v654
        %v2313 = vpop.f32.mrb[0].mxu0
        %v2314 = vadd.f32 0.0, %v2313
        %v2315 = vpop.f32.mrb[0].mxu0
        %v2316 = vadd.f32 0.0, %v2315
        %v2317 = vpop.f32.mrb[0].mxu0
        %v2318 = vadd.f32 0.0, %v2317
        %v2319 = vpop.f32.mrb[0].mxu0
        %v2320 = vadd.f32 0.0, %v2319
        %2321 = vmatprep.mubr.bf16.mxu0 %v658
        %2322 = vmatmul.mubr.bf16.gmra.mrb[0].mxu0 %v657
        %v2323 = vpop.f32.mrb[0].mxu0
        %v2324 = vadd.f32 0.0, %v2323
        %v2325 = vpop.f32.mrb[0].mxu0
        %v2326 = vadd.f32 0.0, %v2325
        %v2327 = vpop.f32.mrb[0].mxu0
        %v2328 = vadd.f32 0.0, %v2327
        %v2329 = vpop.f32.mrb[0].mxu0
        %v2330 = vadd.f32 0.0, %v2329
        %2331 = vmatprep.mubr.bf16.mxu0 %v661
        %2332 = vmatmul.mubr.bf16.gmra.mrb[0].mxu0 %v660
        %v2333 = vpop.f32.mrb[0].mxu0
        %v2334 = vadd.f32 0.0, %v2333
        %v2335 = vpop.f32.mrb[0].mxu0
        %v2336 = vadd.f32 0.0, %v2335
        %v2337 = vpop.f32.mrb[0].mxu0
        %v2338 = vadd.f32 0.0, %v2337
        %v2339 = vpop.f32.mrb[0].mxu0
        %v2340 = vadd.f32 0.0, %v2339
        %2341 = vmatprep.mubr.bf16.mxu0 %v664
        %2342 = vmatmul.mubr.bf16.gmra.mrb[0].mxu0 %v663
        %v2343 = vpop.f32.mrb[0].mxu0
        %v2344 = vadd.f32 0.0, %v2343
        %v2345 = vpop.f32.mrb[0].mxu0
        %v2346 = vadd.f32 0.0, %v2345
        %v2347 = vpop.f32.mrb[0].mxu0
        %v2348 = vadd.f32 0.0, %v2347
        %v2349 = vpop.f32.mrb[0].mxu0
        %v2350 = vadd.f32 0.0, %v2349
        %2351 = vmatprep.mubr.bf16.mxu0 %v667
        %2352 = vmatmul.mubr.bf16.gmra.mrb[0].mxu0 %v666
        %v2353 = vpop.f32.mrb[0].mxu0
        %v2354 = vadd.f32 0.0, %v2353
        %v2355 = vpop.f32.mrb[0].mxu0
        %v2356 = vadd.f32 0.0, %v2355
        %v2357 = vpop.f32.mrb[0].mxu0
        %v2358 = vadd.f32 0.0, %v2357
        %v2359 = vpop.f32.mrb[0].mxu0
        %v2360 = vadd.f32 0.0, %v2359
        %2361 = vdwg.mxu0
        %2362 = vmatprep.subr.bf16.mxu0 %v1514
        %2363 = vmatpush1.bf16.msra.mxu0 %v1513
        %2364 = vmatprep.subr.bf16.mxu0 %v1523
        %2365 = vmatpush1.bf16.msra.mxu0 %v1522
        %2366 = vmatprep.subr.bf16.mxu0 %v1532
        %2367 = vmatpush1.bf16.msra.mxu0 %v1531
        %2368 = vmatprep.subr.bf16.mxu0 %v1541
        %2369 = vmatpush1.bf16.msra.mxu0 %v1540
        %2370 = vmatprep.subr.bf16.mxu0 %v1550
        %2371 = vmatpush1.bf16.msra.mxu0 %v1549
        %2372 = vmatprep.subr.bf16.mxu0 %v1559
        %2373 = vmatpush1.bf16.msra.mxu0 %v1558
        %2374 = vmatprep.subr.bf16.mxu0 %v1568
        %2375 = vmatpush1.bf16.msra.mxu0 %v1567
        %2376 = vmatprep.subr.bf16.mxu0 %v1577
        %2377 = vmatpush1.bf16.msra.mxu0 %v1576
        %2378 = vmatprep.subr.bf16.mxu0 0
        %2379 = vmatpush1.bf16.msra.mxu0 0
        %2380 = vmatprep.subr.bf16.mxu0 0
        %2381 = vmatpush1.bf16.msra.mxu0 0
        %2382 = vmatprep.subr.bf16.mxu0 0
        %2383 = vmatpush1.bf16.msra.mxu0 0
        %2384 = vmatprep.subr.bf16.mxu0 0
        %2385 = vmatpush1.bf16.msra.mxu0 0
        %2386 = vmatprep.subr.bf16.mxu0 0
        %2387 = vmatpush1.bf16.msra.mxu0 0
        %2388 = vmatprep.subr.bf16.mxu0 0
        %2389 = vmatpush1.bf16.msra.mxu0 0
        %2390 = vmatprep.subr.bf16.mxu0 0
        %2391 = vmatpush1.bf16.msra.mxu0 0
        %2392 = vmatprep.subr.bf16.mxu0 0
        %2393 = vmatpush1.bf16.msra.mxu0 0
        %2394 = vmatprep.mubr.bf16.mxu0 0
        %2395 = vmatmul.mubr.bf16.gmra.mrb[0].mxu0 %v647
        %v2396 = vpop.f32.mrb[0].mxu0
        %v2397 = vadd.f32 %v2284, %v2396
        %v2398 = vpop.f32.mrb[0].mxu0
        %v2399 = vadd.f32 %v2286, %v2398
        %v2400 = vpop.f32.mrb[0].mxu0
        %v2401 = vadd.f32 %v2288, %v2400
        %v2402 = vpop.f32.mrb[0].mxu0
        %v2403 = vadd.f32 %v2290, %v2402
        %2404 = vmatprep.mubr.bf16.mxu0 0
        %2405 = vmatmul.mubr.bf16.gmra.mrb[0].mxu0 %v650
        %v2406 = vpop.f32.mrb[0].mxu0
        %v2407 = vadd.f32 %v2294, %v2406
        %v2408 = vpop.f32.mrb[0].mxu0
        %v2409 = vadd.f32 %v2296, %v2408
        %v2410 = vpop.f32.mrb[0].mxu0
        %v2411 = vadd.f32 %v2298, %v2410
        %v2412 = vpop.f32.mrb[0].mxu0
        %v2413 = vadd.f32 %v2300, %v2412
        %2414 = vmatprep.mubr.bf16.mxu0 0
        %2415 = vmatmul.mubr.bf16.gmra.mrb[0].mxu0 %v653
        %v2416 = vpop.f32.mrb[0].mxu0
        %v2417 = vadd.f32 %v2304, %v2416
        %v2418 = vpop.f32.mrb[0].mxu0
        %v2419 = vadd.f32 %v2306, %v2418
        %v2420 = vpop.f32.mrb[0].mxu0
        %v2421 = vadd.f32 %v2308, %v2420
        %v2422 = vpop.f32.mrb[0].mxu0
        %v2423 = vadd.f32 %v2310, %v2422
        %2424 = vmatprep.mubr.bf16.mxu0 0
        %2425 = vmatmul.mubr.bf16.gmra.mrb[0].mxu0 %v656
        %v2426 = vpop.f32.mrb[0].mxu0
        %v2427 = vadd.f32 %v2314, %v2426
        %v2428 = vpop.f32.mrb[0].mxu0
        %v2429 = vadd.f32 %v2316, %v2428
        %v2430 = vpop.f32.mrb[0].mxu0
        %v2431 = vadd.f32 %v2318, %v2430
        %v2432 = vpop.f32.mrb[0].mxu0
        %v2433 = vadd.f32 %v2320, %v2432
        %2434 = vmatprep.mubr.bf16.mxu0 0
        %2435 = vmatmul.mubr.bf16.gmra.mrb[0].mxu0 %v659
        %v2436 = vpop.f32.mrb[0].mxu0
        %v2437 = vadd.f32 %v2324, %v2436
        %v2438 = vpop.f32.mrb[0].mxu0
        %v2439 = vadd.f32 %v2326, %v2438
        %v2440 = vpop.f32.mrb[0].mxu0
        %v2441 = vadd.f32 %v2328, %v2440
        %v2442 = vpop.f32.mrb[0].mxu0
        %v2443 = vadd.f32 %v2330, %v2442
        %2444 = vmatprep.mubr.bf16.mxu0 0
        %2445 = vmatmul.mubr.bf16.gmra.mrb[0].mxu0 %v662
        %v2446 = vpop.f32.mrb[0].mxu0
        %v2447 = vadd.f32 %v2334, %v2446
        %v2448 = vpop.f32.mrb[0].mxu0
        %v2449 = vadd.f32 %v2336, %v2448
        %v2450 = vpop.f32.mrb[0].mxu0
        %v2451 = vadd.f32 %v2338, %v2450
        %v2452 = vpop.f32.mrb[0].mxu0
        %v2453 = vadd.f32 %v2340, %v2452
        %2454 = vmatprep.mubr.bf16.mxu0 0
        %2455 = vmatmul.mubr.bf16.gmra.mrb[0].mxu0 %v665
        %v2456 = vpop.f32.mrb[0].mxu0
        %v2457 = vadd.f32 %v2344, %v2456
        %v2458 = vpop.f32.mrb[0].mxu0
        %v2459 = vadd.f32 %v2346, %v2458
        %v2460 = vpop.f32.mrb[0].mxu0
        %v2461 = vadd.f32 %v2348, %v2460
        %v2462 = vpop.f32.mrb[0].mxu0
        %v2463 = vadd.f32 %v2350, %v2462
        %2464 = vmatprep.mubr.bf16.mxu0 0
        %2465 = vmatmul.mubr.bf16.gmra.mrb[0].mxu0 %v668
        %v2466 = vpop.f32.mrb[0].mxu0
        %v2467 = vadd.f32 %v2354, %v2466
        %v2468 = vpop.f32.mrb[0].mxu0
        %v2469 = vadd.f32 %v2356, %v2468
        %v2470 = vpop.f32.mrb[0].mxu0
        %v2471 = vadd.f32 %v2358, %v2470
        %v2472 = vpop.f32.mrb[0].mxu0
        %v2473 = vadd.f32 %v2360, %v2472
        %2474 = vdwg.mxu0
        %2475 = vmatprep.subr.bf16.mxu0 %v1372
        %2476 = vmatpush1.bf16.msra.mxu0 %v1371
        %2477 = vmatprep.subr.bf16.mxu0 %v1381
        %2478 = vmatpush1.bf16.msra.mxu0 %v1380
        %2479 = vmatprep.subr.bf16.mxu0 %v1390
        %2480 = vmatpush1.bf16.msra.mxu0 %v1389
        %2481 = vmatprep.subr.bf16.mxu0 %v1399
        %2482 = vmatpush1.bf16.msra.mxu0 %v1398
        %2483 = vmatprep.subr.bf16.mxu0 %v1408
        %2484 = vmatpush1.bf16.msra.mxu0 %v1407
        %2485 = vmatprep.subr.bf16.mxu0 %v1417
        %2486 = vmatpush1.bf16.msra.mxu0 %v1416
        %2487 = vmatprep.subr.bf16.mxu0 %v1426
        %2488 = vmatpush1.bf16.msra.mxu0 %v1425
        %2489 = vmatprep.subr.bf16.mxu0 %v1435
        %2490 = vmatpush1.bf16.msra.mxu0 %v1434
        %2491 = vmatprep.subr.bf16.mxu0 %v1444
        %2492 = vmatpush1.bf16.msra.mxu0 %v1443
        %2493 = vmatprep.subr.bf16.mxu0 %v1453
        %2494 = vmatpush1.bf16.msra.mxu0 %v1452
        %2495 = vmatprep.subr.bf16.mxu0 %v1462
        %2496 = vmatpush1.bf16.msra.mxu0 %v1461
        %2497 = vmatprep.subr.bf16.mxu0 %v1471
        %2498 = vmatpush1.bf16.msra.mxu0 %v1470
        %2499 = vmatprep.subr.bf16.mxu0 %v1480
        %2500 = vmatpush1.bf16.msra.mxu0 %v1479
        %2501 = vmatprep.subr.bf16.mxu0 %v1489
        %2502 = vmatpush1.bf16.msra.mxu0 %v1488
        %2503 = vmatprep.subr.bf16.mxu0 %v1498
        %2504 = vmatpush1.bf16.msra.mxu0 %v1497
        %2505 = vmatprep.subr.bf16.mxu0 %v1507
        %2506 = vmatpush1.bf16.msra.mxu0 %v1506
        %2507 = vmatprep.mubr.bf16.mxu0 %v646
        %2508 = vmatmul.mubr.bf16.gmra.mrb[0].mxu0 %v645
        %v2509 = vpop.f32.mrb[0].mxu0
        %v2510 = vadd.f32 0.0, %v2509
        %v2511 = vpop.f32.mrb[0].mxu0
        %v2512 = vadd.f32 0.0, %v2511
        %v2513 = vpop.f32.mrb[0].mxu0
        %v2514 = vadd.f32 0.0, %v2513
        %v2515 = vpop.f32.mrb[0].mxu0
        %v2516 = vadd.f32 0.0, %v2515
        %2517 = vmatprep.mubr.bf16.mxu0 %v649
        %2518 = vmatmul.mubr.bf16.gmra.mrb[0].mxu0 %v648
        %v2519 = vpop.f32.mrb[0].mxu0
        %v2520 = vadd.f32 0.0, %v2519
        %v2521 = vpop.f32.mrb[0].mxu0
        %v2522 = vadd.f32 0.0, %v2521
        %v2523 = vpop.f32.mrb[0].mxu0
        %v2524 = vadd.f32 0.0, %v2523
        %v2525 = vpop.f32.mrb[0].mxu0
        %v2526 = vadd.f32 0.0, %v2525
        %2527 = vmatprep.mubr.bf16.mxu0 %v652
        %2528 = vmatmul.mubr.bf16.gmra.mrb[0].mxu0 %v651
        %v2529 = vpop.f32.mrb[0].mxu0
        %v2530 = vadd.f32 0.0, %v2529
        %v2531 = vpop.f32.mrb[0].mxu0
        %v2532 = vadd.f32 0.0, %v2531
        %v2533 = vpop.f32.mrb[0].mxu0
        %v2534 = vadd.f32 0.0, %v2533
        %v2535 = vpop.f32.mrb[0].mxu0
        %v2536 = vadd.f32 0.0, %v2535
        %2537 = vmatprep.mubr.bf16.mxu0 %v655
        %2538 = vmatmul.mubr.bf16.gmra.mrb[0].mxu0 %v654
        %v2539 = vpop.f32.mrb[0].mxu0
        %v2540 = vadd.f32 0.0, %v2539
        %v2541 = vpop.f32.mrb[0].mxu0
        %v2542 = vadd.f32 0.0, %v2541
        %v2543 = vpop.f32.mrb[0].mxu0
        %v2544 = vadd.f32 0.0, %v2543
        %v2545 = vpop.f32.mrb[0].mxu0
        %v2546 = vadd.f32 0.0, %v2545
        %2547 = vmatprep.mubr.bf16.mxu0 %v658
        %2548 = vmatmul.mubr.bf16.gmra.mrb[0].mxu0 %v657
        %v2549 = vpop.f32.mrb[0].mxu0
        %v2550 = vadd.f32 0.0, %v2549
        %v2551 = vpop.f32.mrb[0].mxu0
        %v2552 = vadd.f32 0.0, %v2551
        %v2553 = vpop.f32.mrb[0].mxu0
        %v2554 = vadd.f32 0.0, %v2553
        %v2555 = vpop.f32.mrb[0].mxu0
        %v2556 = vadd.f32 0.0, %v2555
        %2557 = vmatprep.mubr.bf16.mxu0 %v661
        %2558 = vmatmul.mubr.bf16.gmra.mrb[0].mxu0 %v660
        %v2559 = vpop.f32.mrb[0].mxu0
        %v2560 = vadd.f32 0.0, %v2559
        %v2561 = vpop.f32.mrb[0].mxu0
        %v2562 = vadd.f32 0.0, %v2561
        %v2563 = vpop.f32.mrb[0].mxu0
        %v2564 = vadd.f32 0.0, %v2563
        %v2565 = vpop.f32.mrb[0].mxu0
        %v2566 = vadd.f32 0.0, %v2565
        %2567 = vmatprep.mubr.bf16.mxu0 %v664
        %2568 = vmatmul.mubr.bf16.gmra.mrb[0].mxu0 %v663
        %v2569 = vpop.f32.mrb[0].mxu0
        %v2570 = vadd.f32 0.0, %v2569
        %v2571 = vpop.f32.mrb[0].mxu0
        %v2572 = vadd.f32 0.0, %v2571
        %v2573 = vpop.f32.mrb[0].mxu0
        %v2574 = vadd.f32 0.0, %v2573
        %v2575 = vpop.f32.mrb[0].mxu0
        %v2576 = vadd.f32 0.0, %v2575
        %2577 = vmatprep.mubr.bf16.mxu0 %v667
        %2578 = vmatmul.mubr.bf16.gmra.mrb[0].mxu0 %v666
        %v2579 = vpop.f32.mrb[0].mxu0
        %v2580 = vadd.f32 0.0, %v2579
        %v2581 = vpop.f32.mrb[0].mxu0
        %v2582 = vadd.f32 0.0, %v2581
        %v2583 = vpop.f32.mrb[0].mxu0
        %v2584 = vadd.f32 0.0, %v2583
        %v2585 = vpop.f32.mrb[0].mxu0
        %v2586 = vadd.f32 0.0, %v2585
        %2587 = vdwg.mxu0
        %2588 = vmatprep.subr.bf16.mxu0 %v1516
        %2589 = vmatpush1.bf16.msra.mxu0 %v1515
        %2590 = vmatprep.subr.bf16.mxu0 %v1525
        %2591 = vmatpush1.bf16.msra.mxu0 %v1524
        %2592 = vmatprep.subr.bf16.mxu0 %v1534
        %2593 = vmatpush1.bf16.msra.mxu0 %v1533
        %2594 = vmatprep.subr.bf16.mxu0 %v1543
        %2595 = vmatpush1.bf16.msra.mxu0 %v1542
        %2596 = vmatprep.subr.bf16.mxu0 %v1552
        %2597 = vmatpush1.bf16.msra.mxu0 %v1551
        %2598 = vmatprep.subr.bf16.mxu0 %v1561
        %2599 = vmatpush1.bf16.msra.mxu0 %v1560
        %2600 = vmatprep.subr.bf16.mxu0 %v1570
        %2601 = vmatpush1.bf16.msra.mxu0 %v1569
        %2602 = vmatprep.subr.bf16.mxu0 %v1579
        %2603 = vmatpush1.bf16.msra.mxu0 %v1578
        %2604 = vmatprep.subr.bf16.mxu0 0
        %2605 = vmatpush1.bf16.msra.mxu0 0
        %2606 = vmatprep.subr.bf16.mxu0 0
        %2607 = vmatpush1.bf16.msra.mxu0 0
        %2608 = vmatprep.subr.bf16.mxu0 0
        %2609 = vmatpush1.bf16.msra.mxu0 0
        %2610 = vmatprep.subr.bf16.mxu0 0
        %2611 = vmatpush1.bf16.msra.mxu0 0
        %2612 = vmatprep.subr.bf16.mxu0 0
        %2613 = vmatpush1.bf16.msra.mxu0 0
        %2614 = vmatprep.subr.bf16.mxu0 0
        %2615 = vmatpush1.bf16.msra.mxu0 0
        %2616 = vmatprep.subr.bf16.mxu0 0
        %2617 = vmatpush1.bf16.msra.mxu0 0
        %2618 = vmatprep.subr.bf16.mxu0 0
        %2619 = vmatpush1.bf16.msra.mxu0 0
        %2620 = vmatprep.mubr.bf16.mxu0 0
        %2621 = vmatmul.mubr.bf16.gmra.mrb[0].mxu0 %v647
        %v2622 = vpop.f32.mrb[0].mxu0
        %v2623 = vadd.f32 %v2510, %v2622
        %v2624 = vpop.f32.mrb[0].mxu0
        %v2625 = vadd.f32 %v2512, %v2624
        %v2626 = vpop.f32.mrb[0].mxu0
        %v2627 = vadd.f32 %v2514, %v2626
        %v2628 = vpop.f32.mrb[0].mxu0
        %v2629 = vadd.f32 %v2516, %v2628
        %2630 = vmatprep.mubr.bf16.mxu0 0
        %2631 = vmatmul.mubr.bf16.gmra.mrb[0].mxu0 %v650
        %v2632 = vpop.f32.mrb[0].mxu0
        %v2633 = vadd.f32 %v2520, %v2632
        %v2634 = vpop.f32.mrb[0].mxu0
        %v2635 = vadd.f32 %v2522, %v2634
        %v2636 = vpop.f32.mrb[0].mxu0
        %v2637 = vadd.f32 %v2524, %v2636
        %v2638 = vpop.f32.mrb[0].mxu0
        %v2639 = vadd.f32 %v2526, %v2638
        %2640 = vmatprep.mubr.bf16.mxu0 0
        %2641 = vmatmul.mubr.bf16.gmra.mrb[0].mxu0 %v653
        %v2642 = vpop.f32.mrb[0].mxu0
        %v2643 = vadd.f32 %v2530, %v2642
        %v2644 = vpop.f32.mrb[0].mxu0
        %v2645 = vadd.f32 %v2532, %v2644
        %v2646 = vpop.f32.mrb[0].mxu0
        %v2647 = vadd.f32 %v2534, %v2646
        %v2648 = vpop.f32.mrb[0].mxu0
        %v2649 = vadd.f32 %v2536, %v2648
        %2650 = vmatprep.mubr.bf16.mxu0 0
        %2651 = vmatmul.mubr.bf16.gmra.mrb[0].mxu0 %v656
        %v2652 = vpop.f32.mrb[0].mxu0
        %v2653 = vadd.f32 %v2540, %v2652
        %v2654 = vpop.f32.mrb[0].mxu0
        %v2655 = vadd.f32 %v2542, %v2654
        %v2656 = vpop.f32.mrb[0].mxu0
        %v2657 = vadd.f32 %v2544, %v2656
        %v2658 = vpop.f32.mrb[0].mxu0
        %v2659 = vadd.f32 %v2546, %v2658
        %2660 = vmatprep.mubr.bf16.mxu0 0
        %2661 = vmatmul.mubr.bf16.gmra.mrb[0].mxu0 %v659
        %v2662 = vpop.f32.mrb[0].mxu0
        %v2663 = vadd.f32 %v2550, %v2662
        %v2664 = vpop.f32.mrb[0].mxu0
        %v2665 = vadd.f32 %v2552, %v2664
        %v2666 = vpop.f32.mrb[0].mxu0
        %v2667 = vadd.f32 %v2554, %v2666
        %v2668 = vpop.f32.mrb[0].mxu0
        %v2669 = vadd.f32 %v2556, %v2668
        %2670 = vmatprep.mubr.bf16.mxu0 0
        %2671 = vmatmul.mubr.bf16.gmra.mrb[0].mxu0 %v662
        %v2672 = vpop.f32.mrb[0].mxu0
        %v2673 = vadd.f32 %v2560, %v2672
        %v2674 = vpop.f32.mrb[0].mxu0
        %v2675 = vadd.f32 %v2562, %v2674
        %v2676 = vpop.f32.mrb[0].mxu0
        %v2677 = vadd.f32 %v2564, %v2676
        %v2678 = vpop.f32.mrb[0].mxu0
        %v2679 = vadd.f32 %v2566, %v2678
        %2680 = vmatprep.mubr.bf16.mxu0 0
        %2681 = vmatmul.mubr.bf16.gmra.mrb[0].mxu0 %v665
        %v2682 = vpop.f32.mrb[0].mxu0
        %v2683 = vadd.f32 %v2570, %v2682
        %v2684 = vpop.f32.mrb[0].mxu0
        %v2685 = vadd.f32 %v2572, %v2684
        %v2686 = vpop.f32.mrb[0].mxu0
        %v2687 = vadd.f32 %v2574, %v2686
        %v2688 = vpop.f32.mrb[0].mxu0
        %v2689 = vadd.f32 %v2576, %v2688
        %2690 = vmatprep.mubr.bf16.mxu0 0
        %2691 = vmatmul.mubr.bf16.gmra.mrb[0].mxu0 %v668
        %v2692 = vpop.f32.mrb[0].mxu0
        %v2693 = vadd.f32 %v2580, %v2692
        %v2694 = vpop.f32.mrb[0].mxu0
        %v2695 = vadd.f32 %v2582, %v2694
        %v2696 = vpop.f32.mrb[0].mxu0
        %v2697 = vadd.f32 %v2584, %v2696
        %v2698 = vpop.f32.mrb[0].mxu0
        %v2699 = vadd.f32 %v2586, %v2698
        %2700 = vdwg.mxu0
        %2701 = vmatprep.subr.bf16.mxu0 0
        %2702 = vmatpush1.bf16.msra.mxu0 %v1373
        %2703 = vmatprep.subr.bf16.mxu0 0
        %2704 = vmatpush1.bf16.msra.mxu0 %v1382
        %2705 = vmatprep.subr.bf16.mxu0 0
        %2706 = vmatpush1.bf16.msra.mxu0 %v1391
        %2707 = vmatprep.subr.bf16.mxu0 0
        %2708 = vmatpush1.bf16.msra.mxu0 %v1400
        %2709 = vmatprep.subr.bf16.mxu0 0
        %2710 = vmatpush1.bf16.msra.mxu0 %v1409
        %2711 = vmatprep.subr.bf16.mxu0 0
        %2712 = vmatpush1.bf16.msra.mxu0 %v1418
        %2713 = vmatprep.subr.bf16.mxu0 0
        %2714 = vmatpush1.bf16.msra.mxu0 %v1427
        %2715 = vmatprep.subr.bf16.mxu0 0
        %2716 = vmatpush1.bf16.msra.mxu0 %v1436
        %2717 = vmatprep.subr.bf16.mxu0 0
        %2718 = vmatpush1.bf16.msra.mxu0 %v1445
        %2719 = vmatprep.subr.bf16.mxu0 0
        %2720 = vmatpush1.bf16.msra.mxu0 %v1454
        %2721 = vmatprep.subr.bf16.mxu0 0
        %2722 = vmatpush1.bf16.msra.mxu0 %v1463
        %2723 = vmatprep.subr.bf16.mxu0 0
        %2724 = vmatpush1.bf16.msra.mxu0 %v1472
        %2725 = vmatprep.subr.bf16.mxu0 0
        %2726 = vmatpush1.bf16.msra.mxu0 %v1481
        %2727 = vmatprep.subr.bf16.mxu0 0
        %2728 = vmatpush1.bf16.msra.mxu0 %v1490
        %2729 = vmatprep.subr.bf16.mxu0 0
        %2730 = vmatpush1.bf16.msra.mxu0 %v1499
        %2731 = vmatprep.subr.bf16.mxu0 0
        %2732 = vmatpush1.bf16.msra.mxu0 %v1508
        %2733 = vmatprep.mubr.bf16.mxu0 %v646
        %2734 = vmatmul.mubr.bf16.gmra.mrb[0].mxu0 %v645
        %v2735 = vpop.f32.mrb[0].mxu0
        %v2736 = vadd.f32 0.0, %v2735
        %v2737 = vpop.f32.mrb[0].mxu0
        %v2738 = vpop.f32.mrb[0].mxu0
        %v2739 = vadd.f32 0.0, %v2738
        %v2740 = vpop.f32.mrb[0].mxu0
        %2741 = vmatprep.mubr.bf16.mxu0 %v649
        %2742 = vmatmul.mubr.bf16.gmra.mrb[0].mxu0 %v648
        %v2743 = vpop.f32.mrb[0].mxu0
        %v2744 = vadd.f32 0.0, %v2743
        %v2745 = vpop.f32.mrb[0].mxu0
        %v2746 = vpop.f32.mrb[0].mxu0
        %v2747 = vadd.f32 0.0, %v2746
        %v2748 = vpop.f32.mrb[0].mxu0
        %2749 = vmatprep.mubr.bf16.mxu0 %v652
        %2750 = vmatmul.mubr.bf16.gmra.mrb[0].mxu0 %v651
        %v2751 = vpop.f32.mrb[0].mxu0
        %v2752 = vadd.f32 0.0, %v2751
        %v2753 = vpop.f32.mrb[0].mxu0
        %v2754 = vpop.f32.mrb[0].mxu0
        %v2755 = vadd.f32 0.0, %v2754
        %v2756 = vpop.f32.mrb[0].mxu0
        %2757 = vmatprep.mubr.bf16.mxu0 %v655
        %2758 = vmatmul.mubr.bf16.gmra.mrb[0].mxu0 %v654
        %v2759 = vpop.f32.mrb[0].mxu0
        %v2760 = vadd.f32 0.0, %v2759
        %v2761 = vpop.f32.mrb[0].mxu0
        %v2762 = vpop.f32.mrb[0].mxu0
        %v2763 = vadd.f32 0.0, %v2762
        %v2764 = vpop.f32.mrb[0].mxu0
        %2765 = vmatprep.mubr.bf16.mxu0 %v658
        %2766 = vmatmul.mubr.bf16.gmra.mrb[0].mxu0 %v657
        %v2767 = vpop.f32.mrb[0].mxu0
        %v2768 = vadd.f32 0.0, %v2767
        %v2769 = vpop.f32.mrb[0].mxu0
        %v2770 = vpop.f32.mrb[0].mxu0
        %v2771 = vadd.f32 0.0, %v2770
        %v2772 = vpop.f32.mrb[0].mxu0
        %2773 = vmatprep.mubr.bf16.mxu0 %v661
        %2774 = vmatmul.mubr.bf16.gmra.mrb[0].mxu0 %v660
        %v2775 = vpop.f32.mrb[0].mxu0
        %v2776 = vadd.f32 0.0, %v2775
        %v2777 = vpop.f32.mrb[0].mxu0
        %v2778 = vpop.f32.mrb[0].mxu0
        %v2779 = vadd.f32 0.0, %v2778
        %v2780 = vpop.f32.mrb[0].mxu0
        %2781 = vmatprep.mubr.bf16.mxu0 %v664
        %2782 = vmatmul.mubr.bf16.gmra.mrb[0].mxu0 %v663
        %v2783 = vpop.f32.mrb[0].mxu0
        %v2784 = vadd.f32 0.0, %v2783
        %v2785 = vpop.f32.mrb[0].mxu0
        %v2786 = vpop.f32.mrb[0].mxu0
        %v2787 = vadd.f32 0.0, %v2786
        %v2788 = vpop.f32.mrb[0].mxu0
        %2789 = vmatprep.mubr.bf16.mxu0 %v667
        %2790 = vmatmul.mubr.bf16.gmra.mrb[0].mxu0 %v666
        %v2791 = vpop.f32.mrb[0].mxu0
        %v2792 = vadd.f32 0.0, %v2791
        %v2793 = vpop.f32.mrb[0].mxu0
        %v2794 = vpop.f32.mrb[0].mxu0
        %v2795 = vadd.f32 0.0, %v2794
        %v2796 = vpop.f32.mrb[0].mxu0
        %2797 = vdwg.mxu0
        %2798 = vmatprep.subr.bf16.mxu0 0
        %2799 = vmatpush1.bf16.msra.mxu0 %v1517
        %2800 = vmatprep.subr.bf16.mxu0 0
        %2801 = vmatpush1.bf16.msra.mxu0 %v1526
        %2802 = vmatprep.subr.bf16.mxu0 0
        %2803 = vmatpush1.bf16.msra.mxu0 %v1535
        %2804 = vmatprep.subr.bf16.mxu0 0
        %2805 = vmatpush1.bf16.msra.mxu0 %v1544
        %2806 = vmatprep.subr.bf16.mxu0 0
        %2807 = vmatpush1.bf16.msra.mxu0 %v1553
        %2808 = vmatprep.subr.bf16.mxu0 0
        %2809 = vmatpush1.bf16.msra.mxu0 %v1562
        %2810 = vmatprep.subr.bf16.mxu0 0
        %2811 = vmatpush1.bf16.msra.mxu0 %v1571
        %2812 = vmatprep.subr.bf16.mxu0 0
        %2813 = vmatpush1.bf16.msra.mxu0 %v1580
        %2814 = vmatprep.subr.bf16.mxu0 0
        %2815 = vmatpush1.bf16.msra.mxu0 0
        %2816 = vmatprep.subr.bf16.mxu0 0
        %2817 = vmatpush1.bf16.msra.mxu0 0
        %2818 = vmatprep.subr.bf16.mxu0 0
        %2819 = vmatpush1.bf16.msra.mxu0 0
        %2820 = vmatprep.subr.bf16.mxu0 0
        %2821 = vmatpush1.bf16.msra.mxu0 0
        %2822 = vmatprep.subr.bf16.mxu0 0
        %2823 = vmatpush1.bf16.msra.mxu0 0
        %2824 = vmatprep.subr.bf16.mxu0 0
        %2825 = vmatpush1.bf16.msra.mxu0 0
        %2826 = vmatprep.subr.bf16.mxu0 0
        %2827 = vmatpush1.bf16.msra.mxu0 0
        %2828 = vmatprep.subr.bf16.mxu0 0
        %2829 = vmatpush1.bf16.msra.mxu0 0
        %2830 = vmatprep.mubr.bf16.mxu0 0
        %2831 = vmatmul.mubr.bf16.gmra.mrb[0].mxu0 %v647
        %v2832 = vpop.f32.mrb[0].mxu0
        %v2833 = vadd.f32 %v2736, %v2832
        %v2834 = vpop.f32.mrb[0].mxu0
        %v2835 = vpop.f32.mrb[0].mxu0
        %v2836 = vadd.f32 %v2739, %v2835
        %v2837 = vpop.f32.mrb[0].mxu0
        %2838 = vmatprep.mubr.bf16.mxu0 0
        %2839 = vmatmul.mubr.bf16.gmra.mrb[0].mxu0 %v650
        %v2840 = vpop.f32.mrb[0].mxu0
        %v2841 = vadd.f32 %v2744, %v2840
        %v2842 = vpop.f32.mrb[0].mxu0
        %v2843 = vpop.f32.mrb[0].mxu0
        %v2844 = vadd.f32 %v2747, %v2843
        %v2845 = vpop.f32.mrb[0].mxu0
        %2846 = vmatprep.mubr.bf16.mxu0 0
        %2847 = vmatmul.mubr.bf16.gmra.mrb[0].mxu0 %v653
        %v2848 = vpop.f32.mrb[0].mxu0
        %v2849 = vadd.f32 %v2752, %v2848
        %v2850 = vpop.f32.mrb[0].mxu0
        %v2851 = vpop.f32.mrb[0].mxu0
        %v2852 = vadd.f32 %v2755, %v2851
        %v2853 = vpop.f32.mrb[0].mxu0
        %2854 = vmatprep.mubr.bf16.mxu0 0
        %2855 = vmatmul.mubr.bf16.gmra.mrb[0].mxu0 %v656
        %v2856 = vpop.f32.mrb[0].mxu0
        %v2857 = vadd.f32 %v2760, %v2856
        %v2858 = vpop.f32.mrb[0].mxu0
        %v2859 = vpop.f32.mrb[0].mxu0
        %v2860 = vadd.f32 %v2763, %v2859
        %v2861 = vpop.f32.mrb[0].mxu0
        %2862 = vmatprep.mubr.bf16.mxu0 0
        %2863 = vmatmul.mubr.bf16.gmra.mrb[0].mxu0 %v659
        %v2864 = vpop.f32.mrb[0].mxu0
        %v2865 = vadd.f32 %v2768, %v2864
        %v2866 = vpop.f32.mrb[0].mxu0
        %v2867 = vpop.f32.mrb[0].mxu0
        %v2868 = vadd.f32 %v2771, %v2867
        %v2869 = vpop.f32.mrb[0].mxu0
        %2870 = vmatprep.mubr.bf16.mxu0 0
        %2871 = vmatmul.mubr.bf16.gmra.mrb[0].mxu0 %v662
        %v2872 = vpop.f32.mrb[0].mxu0
        %v2873 = vadd.f32 %v2776, %v2872
        %v2874 = vpop.f32.mrb[0].mxu0
        %v2875 = vpop.f32.mrb[0].mxu0
        %v2876 = vadd.f32 %v2779, %v2875
        %v2877 = vpop.f32.mrb[0].mxu0
        %2878 = vmatprep.mubr.bf16.mxu0 0
        %2879 = vmatmul.mubr.bf16.gmra.mrb[0].mxu0 %v665
        %v2880 = vpop.f32.mrb[0].mxu0
        %v2881 = vadd.f32 %v2784, %v2880
        %v2882 = vpop.f32.mrb[0].mxu0
        %v2883 = vpop.f32.mrb[0].mxu0
        %v2884 = vadd.f32 %v2787, %v2883
        %v2885 = vpop.f32.mrb[0].mxu0
        %2886 = vmatprep.mubr.bf16.mxu0 0
        %2887 = vmatmul.mubr.bf16.gmra.mrb[0].mxu0 %v668
        %v2888 = vpop.f32.mrb[0].mxu0
        %v2889 = vadd.f32 %v2792, %v2888
        %v2890 = vpop.f32.mrb[0].mxu0
        %v2891 = vpop.f32.mrb[0].mxu0
        %v2892 = vadd.f32 %v2795, %v2891
        %v2893 = vpop.f32.mrb[0].mxu0
        %2894 = vdwg.mxu0
        %v2895 = vmul.f32 %v1945, 0.125
        %v2896 = vmul.f32 %v1947, 0.125
        %v2897 = vmul.f32 %v2171, 0.125
        %v2898 = vmul.f32 %v1949, 0.125
        %v2899 = vmul.f32 %v1951, 0.125
        %v2900 = vmul.f32 %v2175, 0.125
        %v2901 = vmul.f32 %v1955, 0.125
        %v2902 = vmul.f32 %v1957, 0.125
        %v2903 = vmul.f32 %v2181, 0.125
        %v2904 = vmul.f32 %v1959, 0.125
        %v2905 = vmul.f32 %v1961, 0.125
        %v2906 = vmul.f32 %v2185, 0.125
        %v2907 = vmul.f32 %v1965, 0.125
        %v2908 = vmul.f32 %v1967, 0.125
        %v2909 = vmul.f32 %v2191, 0.125
        %v2910 = vmul.f32 %v1969, 0.125
        %v2911 = vmul.f32 %v1971, 0.125
        %v2912 = vmul.f32 %v2195, 0.125
        %v2913 = vmul.f32 %v1975, 0.125
        %v2914 = vmul.f32 %v1977, 0.125
        %v2915 = vmul.f32 %v2201, 0.125
        %v2916 = vmul.f32 %v1979, 0.125
        %v2917 = vmul.f32 %v1981, 0.125
        %v2918 = vmul.f32 %v2205, 0.125
        %v2919 = vmul.f32 %v1985, 0.125
        %v2920 = vmul.f32 %v1987, 0.125
        %v2921 = vmul.f32 %v2211, 0.125
        %v2922 = vmul.f32 %v1989, 0.125
        %v2923 = vmul.f32 %v1991, 0.125
        %v2924 = vmul.f32 %v2215, 0.125
        %v2925 = vmul.f32 %v1995, 0.125
        %v2926 = vmul.f32 %v1997, 0.125
        %v2927 = vmul.f32 %v2221, 0.125
        %v2928 = vmul.f32 %v1999, 0.125
        %v2929 = vmul.f32 %v2001, 0.125
        %v2930 = vmul.f32 %v2225, 0.125
        %v2931 = vmul.f32 %v2005, 0.125
        %v2932 = vmul.f32 %v2007, 0.125
        %v2933 = vmul.f32 %v2231, 0.125
        %v2934 = vmul.f32 %v2009, 0.125
        %v2935 = vmul.f32 %v2011, 0.125
        %v2936 = vmul.f32 %v2235, 0.125
        %v2937 = vmul.f32 %v2015, 0.125
        %v2938 = vmul.f32 %v2017, 0.125
        %v2939 = vmul.f32 %v2241, 0.125
        %v2940 = vmul.f32 %v2019, 0.125
        %v2941 = vmul.f32 %v2021, 0.125
        %v2942 = vmul.f32 %v2245, 0.125
        %v2943 = vpack.c.bf16 %v2898, %v2895
        %v2944 = vpack.c.bf16 %v2899, %v2896
        %v2945 = vpack.c.bf16 %v2900, %v2897
        %v2946 = vpack.c.bf16 %v2904, %v2901
        %v2947 = vpack.c.bf16 %v2905, %v2902
        %v2948 = vpack.c.bf16 %v2906, %v2903
        %v2949 = vpack.c.bf16 %v2910, %v2907
        %v2950 = vpack.c.bf16 %v2911, %v2908
        %v2951 = vpack.c.bf16 %v2912, %v2909
        %v2952 = vpack.c.bf16 %v2916, %v2913
        %v2953 = vpack.c.bf16 %v2917, %v2914
        %v2954 = vpack.c.bf16 %v2918, %v2915
        %v2955 = vpack.c.bf16 %v2922, %v2919
        %v2956 = vpack.c.bf16 %v2923, %v2920
        %v2957 = vpack.c.bf16 %v2924, %v2921
        %v2958 = vpack.c.bf16 %v2928, %v2925
        %v2959 = vpack.c.bf16 %v2929, %v2926
        %v2960 = vpack.c.bf16 %v2930, %v2927
        %v2961 = vpack.c.bf16 %v2934, %v2931
        %v2962 = vpack.c.bf16 %v2935, %v2932
        %v2963 = vpack.c.bf16 %v2936, %v2933
        %v2964 = vpack.c.bf16 %v2940, %v2937
        %v2965 = vpack.c.bf16 %v2941, %v2938
        %v2966 = vpack.c.bf16 %v2942, %v2939
        %v2967 = vpack.c.bf16 %v2177, %v2173
        %v2968 = vpack.c.bf16 %v2401, %v2397
        %v2969 = vpack.c.bf16 %v2403, %v2399
        %v2970 = vpack.c.bf16 %v2187, %v2183
        %v2971 = vpack.c.bf16 %v2411, %v2407
        %v2972 = vpack.c.bf16 %v2413, %v2409
        %v2973 = vpack.c.bf16 %v2197, %v2193
        %v2974 = vpack.c.bf16 %v2421, %v2417
        %v2975 = vpack.c.bf16 %v2423, %v2419
        %v2976 = vpack.c.bf16 %v2207, %v2203
        %v2977 = vpack.c.bf16 %v2431, %v2427
        %v2978 = vpack.c.bf16 %v2433, %v2429
        %v2979 = vpack.c.bf16 %v2217, %v2213
        %v2980 = vpack.c.bf16 %v2441, %v2437
        %v2981 = vpack.c.bf16 %v2443, %v2439
        %v2982 = vpack.c.bf16 %v2227, %v2223
        %v2983 = vpack.c.bf16 %v2451, %v2447
        %v2984 = vpack.c.bf16 %v2453, %v2449
        %v2985 = vpack.c.bf16 %v2237, %v2233
        %v2986 = vpack.c.bf16 %v2461, %v2457
        %v2987 = vpack.c.bf16 %v2463, %v2459
        %v2988 = vpack.c.bf16 %v2247, %v2243
        %v2989 = vpack.c.bf16 %v2471, %v2467
        %v2990 = vpack.c.bf16 %v2473, %v2469
        %v2991 = vpack.c.bf16 %v2627, %v2623
        %v2992 = vpack.c.bf16 %v2629, %v2625
        %v2993 = vpack.c.bf16 %v2836, %v2833
        %v2994 = vpack.c.bf16 %v2637, %v2633
        %v2995 = vpack.c.bf16 %v2639, %v2635
        %v2996 = vpack.c.bf16 %v2844, %v2841
        %v2997 = vpack.c.bf16 %v2647, %v2643
        %v2998 = vpack.c.bf16 %v2649, %v2645
        %v2999 = vpack.c.bf16 %v2852, %v2849
        %v3000 = vpack.c.bf16 %v2657, %v2653
        %v3001 = vpack.c.bf16 %v2659, %v2655
        %v3002 = vpack.c.bf16 %v2860, %v2857
        %v3003 = vpack.c.bf16 %v2667, %v2663
        %v3004 = vpack.c.bf16 %v2669, %v2665
        %v3005 = vpack.c.bf16 %v2868, %v2865
        %v3006 = vpack.c.bf16 %v2677, %v2673
        %v3007 = vpack.c.bf16 %v2679, %v2675
        %v3008 = vpack.c.bf16 %v2876, %v2873
        %v3009 = vpack.c.bf16 %v2687, %v2683
        %v3010 = vpack.c.bf16 %v2689, %v2685
        %v3011 = vpack.c.bf16 %v2884, %v2881
        %v3012 = vpack.c.bf16 %v2697, %v2693
        %v3013 = vpack.c.bf16 %v2699, %v2695
        %v3014 = vpack.c.bf16 %v2892, %v2889
        %v3015 = vlaneseq
        %v3016 = vshrl.u32 %v3015, 7
        %v3017 = vadd.s32 %v3016, 8
        %v3018 = vadd.s32 %v3016, 16
        %v3019 = vadd.s32 %v3016, 24
        %v3020 = vadd.s32 %v3016, 32
        %v3021 = vadd.s32 %v3016, 40
        %v3022 = vadd.s32 %v3016, 48
        %v3023 = vadd.s32 %v3016, 56
        %v3024 = vadd.s32 %v3016, 64
        %v3025 = vadd.s32 %v3016, 72
        %v3026 = vadd.s32 %v3016, 80
        %v3027 = vadd.s32 %v3016, 88
        %v3028 = vadd.s32 %v3016, 96
        %v3029 = vadd.s32 %v3016, 104
        %v3030 = vadd.s32 %v3016, 112
        %v3031 = vadd.s32 %v3016, 120
        %v3032 = vlaneseq
        %v3033 = vand.u32 %v3032, 127
        %vm3034 = vcmp.ge.s32.totalorder %v3016, %v3033
        %vm3035 = vcmp.ge.s32.totalorder %v3017, %v3033
        %vm3036 = vcmp.ge.s32.totalorder %v3018, %v3033
        %vm3037 = vcmp.ge.s32.totalorder %v3019, %v3033
        %vm3038 = vcmp.ge.s32.totalorder %v3020, %v3033
        %vm3039 = vcmp.ge.s32.totalorder %v3021, %v3033
        %vm3040 = vcmp.ge.s32.totalorder %v3022, %v3033
        %vm3041 = vcmp.ge.s32.totalorder %v3023, %v3033
        %vm3042 = vcmp.ge.s32.totalorder %v3024, %v3033
        %vm3043 = vcmp.ge.s32.totalorder %v3025, %v3033
        %vm3044 = vcmp.ge.s32.totalorder %v3026, %v3033
        %vm3045 = vcmp.ge.s32.totalorder %v3027, %v3033
        %vm3046 = vcmp.ge.s32.totalorder %v3028, %v3033
        %vm3047 = vcmp.ge.s32.totalorder %v3029, %v3033
        %vm3048 = vcmp.ge.s32.totalorder %v3030, %v3033
        %vm3049 = vcmp.ge.s32.totalorder %v3031, %v3033
        %v3050 = vsel %vm3034, 0.0, -1e+30
        %v3051 = vsel %vm3035, 0.0, -1e+30
        %v3052 = vsel %vm3036, 0.0, -1e+30
        %v3053 = vsel %vm3037, 0.0, -1e+30
        %v3054 = vsel %vm3038, 0.0, -1e+30
        %v3055 = vsel %vm3039, 0.0, -1e+30
        %v3056 = vsel %vm3040, 0.0, -1e+30
        %v3057 = vsel %vm3041, 0.0, -1e+30
        %v3058 = vsel %vm3042, 0.0, -1e+30
        %v3059 = vsel %vm3043, 0.0, -1e+30
        %v3060 = vsel %vm3044, 0.0, -1e+30
        %v3061 = vsel %vm3045, 0.0, -1e+30
        %v3062 = vsel %vm3046, 0.0, -1e+30
        %v3063 = vsel %vm3047, 0.0, -1e+30
        %v3064 = vsel %vm3048, 0.0, -1e+30
        %v3065 = vsel %vm3049, 0.0, -1e+30
        %vm3066 = vcmask 523264
        %v3068 = vsel %vm3066, %v2943, 0
        %v3071 = vsel %vm3066, %v2946, 0
        %v3074 = vsel %vm3066, %v2949, 0
        %v3077 = vsel %vm3066, %v2952, 0
        %v3080 = vsel %vm3066, %v2955, 0
        %v3083 = vsel %vm3066, %v2958, 0
        %v3086 = vsel %vm3066, %v2961, 0
        %v3089 = vsel %vm3066, %v2964, 0
        %v3092 = vsel %vm3066, %v2967, 0
        %v3095 = vsel %vm3066, %v2970, 0
        %v3098 = vsel %vm3066, %v2973, 0
        %v3101 = vsel %vm3066, %v2976, 0
        %v3104 = vsel %vm3066, %v2979, 0
        %v3107 = vsel %vm3066, %v2982, 0
        %v3110 = vsel %vm3066, %v2985, 0
        %v3113 = vsel %vm3066, %v2988, 0
        %3115 = vmatprep.subr.bf16.mxu0 0
        %3116 = vmatpush1.bf16.xpose.msra.mxu0 %v3092
        %3117 = vmatprep.subr.bf16.mxu0 0
        %3118 = vmatpush1.bf16.xpose.msra.mxu0 %v3095
        %3119 = vmatprep.subr.bf16.mxu0 0
        %3120 = vmatpush1.bf16.xpose.msra.mxu0 %v3098
        %3121 = vmatprep.subr.bf16.mxu0 0
        %3122 = vmatpush1.bf16.xpose.msra.mxu0 %v3101
        %3123 = vmatprep.subr.bf16.mxu0 0
        %3124 = vmatpush1.bf16.xpose.msra.mxu0 %v3104
        %3125 = vmatprep.subr.bf16.mxu0 0
        %3126 = vmatpush1.bf16.xpose.msra.mxu0 %v3107
        %3127 = vmatprep.subr.bf16.mxu0 0
        %3128 = vmatpush1.bf16.xpose.msra.mxu0 %v3110
        %3129 = vmatprep.subr.bf16.mxu0 0
        %3130 = vmatpush1.bf16.xpose.msra.mxu0 %v3113
        %3131 = vmatprep.subr.bf16.mxu0 0
        %3132 = vmatpush1.bf16.xpose.msra.mxu0 0
        %3133 = vmatprep.subr.bf16.mxu0 0
        %3134 = vmatpush1.bf16.xpose.msra.mxu0 0
        %3135 = vmatprep.subr.bf16.mxu0 0
        %3136 = vmatpush1.bf16.xpose.msra.mxu0 0
        %3137 = vmatprep.subr.bf16.mxu0 0
        %3138 = vmatpush1.bf16.xpose.msra.mxu0 0
        %3139 = vmatprep.subr.bf16.mxu0 0
        %3140 = vmatpush1.bf16.xpose.msra.mxu0 0
        %3141 = vmatprep.subr.bf16.mxu0 0
        %3142 = vmatpush1.bf16.xpose.msra.mxu0 0
        %3143 = vmatprep.subr.bf16.mxu0 0
        %3144 = vmatpush1.bf16.xpose.msra.mxu0 0
        %3145 = vmatprep.subr.bf16.mxu0 0
        %3146 = vmatpush1.bf16.xpose.msra.mxu0 0
        %3147 = vmatprep.mubr.bf16.mxu0 0
        %3148 = vmatmul.mubr.bf16.gmra.mrb[0].mxu0 %v3068
        %v3149 = vpop.f32.mrb[0].mxu0
        %v3150 = vadd.f32 %v3050, %v3149
        %v3151 = vpop.f32.mrb[0].mxu0
        %v3152 = vpop.f32.mrb[0].mxu0
        %v3153 = vadd.f32 %v3051, %v3152
        %v3154 = vpop.f32.mrb[0].mxu0
        %3155 = vmatprep.mubr.bf16.mxu0 0
        %3156 = vmatmul.mubr.bf16.gmra.mrb[0].mxu0 %v3071
        %v3157 = vpop.f32.mrb[0].mxu0
        %v3158 = vadd.f32 %v3052, %v3157
        %v3159 = vpop.f32.mrb[0].mxu0
        %v3160 = vpop.f32.mrb[0].mxu0
        %v3161 = vadd.f32 %v3053, %v3160
        %v3162 = vpop.f32.mrb[0].mxu0
        %3163 = vmatprep.mubr.bf16.mxu0 0
        %3164 = vmatmul.mubr.bf16.gmra.mrb[0].mxu0 %v3074
        %v3165 = vpop.f32.mrb[0].mxu0
        %v3166 = vadd.f32 %v3054, %v3165
        %v3167 = vpop.f32.mrb[0].mxu0
        %v3168 = vpop.f32.mrb[0].mxu0
        %v3169 = vadd.f32 %v3055, %v3168
        %v3170 = vpop.f32.mrb[0].mxu0
        %3171 = vmatprep.mubr.bf16.mxu0 0
        %3172 = vmatmul.mubr.bf16.gmra.mrb[0].mxu0 %v3077
        %v3173 = vpop.f32.mrb[0].mxu0
        %v3174 = vadd.f32 %v3056, %v3173
        %v3175 = vpop.f32.mrb[0].mxu0
        %v3176 = vpop.f32.mrb[0].mxu0
        %v3177 = vadd.f32 %v3057, %v3176
        %v3178 = vpop.f32.mrb[0].mxu0
        %3179 = vmatprep.mubr.bf16.mxu0 0
        %3180 = vmatmul.mubr.bf16.gmra.mrb[0].mxu0 %v3080
        %v3181 = vpop.f32.mrb[0].mxu0
        %v3182 = vadd.f32 %v3058, %v3181
        %v3183 = vpop.f32.mrb[0].mxu0
        %v3184 = vpop.f32.mrb[0].mxu0
        %v3185 = vadd.f32 %v3059, %v3184
        %v3186 = vpop.f32.mrb[0].mxu0
        %3187 = vmatprep.mubr.bf16.mxu0 0
        %3188 = vmatmul.mubr.bf16.gmra.mrb[0].mxu0 %v3083
        %v3189 = vpop.f32.mrb[0].mxu0
        %v3190 = vadd.f32 %v3060, %v3189
        %v3191 = vpop.f32.mrb[0].mxu0
        %v3192 = vpop.f32.mrb[0].mxu0
        %v3193 = vadd.f32 %v3061, %v3192
        %v3194 = vpop.f32.mrb[0].mxu0
        %3195 = vmatprep.mubr.bf16.mxu0 0
        %3196 = vmatmul.mubr.bf16.gmra.mrb[0].mxu0 %v3086
        %v3197 = vpop.f32.mrb[0].mxu0
        %v3198 = vadd.f32 %v3062, %v3197
        %v3199 = vpop.f32.mrb[0].mxu0
        %v3200 = vpop.f32.mrb[0].mxu0
        %v3201 = vadd.f32 %v3063, %v3200
        %v3202 = vpop.f32.mrb[0].mxu0
        %3203 = vmatprep.mubr.bf16.mxu0 0
        %3204 = vmatmul.mubr.bf16.gmra.mrb[0].mxu0 %v3089
        %v3205 = vpop.f32.mrb[0].mxu0
        %v3206 = vadd.f32 %v3064, %v3205
        %v3207 = vpop.f32.mrb[0].mxu0
        %v3208 = vpop.f32.mrb[0].mxu0
        %v3209 = vadd.f32 %v3065, %v3208
        %v3210 = vpop.f32.mrb[0].mxu0
        %3211 = vdwg.mxu0
        %3212 = vmax.xlane.f32.xlu0 %v3150
        %v3213 = vpop.xlane.xlu0 %3212
        %3214 = vmax.xlane.f32.xlu0 %v3153
        %v3215 = vpop.xlane.xlu0 %3214
        %3216 = vmax.xlane.f32.xlu0 %v3158
        %v3217 = vpop.xlane.xlu0 %3216
        %3218 = vmax.xlane.f32.xlu0 %v3161
        %v3219 = vpop.xlane.xlu0 %3218
        %3220 = vmax.xlane.f32.xlu0 %v3166
        %v3221 = vpop.xlane.xlu0 %3220
        %3222 = vmax.xlane.f32.xlu0 %v3169
        %v3223 = vpop.xlane.xlu0 %3222
        %3224 = vmax.xlane.f32.xlu0 %v3174
        %v3225 = vpop.xlane.xlu0 %3224
        %3226 = vmax.xlane.f32.xlu0 %v3177
        %v3227 = vpop.xlane.xlu0 %3226
        %3228 = vmax.xlane.f32.xlu0 %v3182
        %v3229 = vpop.xlane.xlu0 %3228
        %3230 = vmax.xlane.f32.xlu0 %v3185
        %v3231 = vpop.xlane.xlu0 %3230
        %3232 = vmax.xlane.f32.xlu0 %v3190
        %v3233 = vpop.xlane.xlu0 %3232
        %3234 = vmax.xlane.f32.xlu0 %v3193
        %v3235 = vpop.xlane.xlu0 %3234
        %3236 = vmax.xlane.f32.xlu0 %v3198
        %v3237 = vpop.xlane.xlu0 %3236
        %3238 = vmax.xlane.f32.xlu0 %v3201
        %v3239 = vpop.xlane.xlu0 %3238
        %3240 = vmax.xlane.f32.xlu0 %v3206
        %v3241 = vpop.xlane.xlu0 %3240
        %3242 = vmax.xlane.f32.xlu0 %v3209
        %v3243 = vpop.xlane.xlu0 %3242
        %v3244 = vsub.f32 %v3150, %v3213
        %v3245 = vsub.f32 %v3153, %v3215
        %v3246 = vsub.f32 %v3158, %v3217
        %v3247 = vsub.f32 %v3161, %v3219
        %v3248 = vsub.f32 %v3166, %v3221
        %v3249 = vsub.f32 %v3169, %v3223
        %v3250 = vsub.f32 %v3174, %v3225
        %v3251 = vsub.f32 %v3177, %v3227
        %v3252 = vsub.f32 %v3182, %v3229
        %v3253 = vsub.f32 %v3185, %v3231
        %v3254 = vsub.f32 %v3190, %v3233
        %v3255 = vsub.f32 %v3193, %v3235
        %v3256 = vsub.f32 %v3198, %v3237
        %v3257 = vsub.f32 %v3201, %v3239
        %v3258 = vsub.f32 %v3206, %v3241
        %v3259 = vsub.f32 %v3209, %v3243
        %v3260 = vmul.f32 %v3244, 1.442695
        %v3261 = vpow.pop %v3260
        %v3262 = vmul.f32 %v3245, 1.442695
        %v3263 = vpow.pop %v3262
        %v3264 = vmul.f32 %v3246, 1.442695
        %v3265 = vpow.pop %v3264
        %v3266 = vmul.f32 %v3247, 1.442695
        %v3267 = vpow.pop %v3266
        %v3268 = vmul.f32 %v3248, 1.442695
        %v3269 = vpow.pop %v3268
        %v3270 = vmul.f32 %v3249, 1.442695
        %v3271 = vpow.pop %v3270
        %v3272 = vmul.f32 %v3250, 1.442695
        %v3273 = vpow.pop %v3272
        %v3274 = vmul.f32 %v3251, 1.442695
        %v3275 = vpow.pop %v3274
        %v3276 = vmul.f32 %v3252, 1.442695
        %v3277 = vpow.pop %v3276
        %v3278 = vmul.f32 %v3253, 1.442695
        %v3279 = vpow.pop %v3278
        %v3280 = vmul.f32 %v3254, 1.442695
        %v3281 = vpow.pop %v3280
        %v3282 = vmul.f32 %v3255, 1.442695
        %v3283 = vpow.pop %v3282
        %v3284 = vmul.f32 %v3256, 1.442695
        %v3285 = vpow.pop %v3284
        %v3286 = vmul.f32 %v3257, 1.442695
        %v3287 = vpow.pop %v3286
        %v3288 = vmul.f32 %v3258, 1.442695
        %v3289 = vpow.pop %v3288
        %v3290 = vmul.f32 %v3259, 1.442695
        %v3291 = vpow.pop %v3290
        %3292 = vadd.xlane.f32.xlu0 %v3261
        %v3293 = vpop.xlane.xlu0 %3292
        %3294 = vadd.xlane.f32.xlu0 %v3263
        %v3295 = vpop.xlane.xlu0 %3294
        %3296 = vadd.xlane.f32.xlu0 %v3265
        %v3297 = vpop.xlane.xlu0 %3296
        %3298 = vadd.xlane.f32.xlu0 %v3267
        %v3299 = vpop.xlane.xlu0 %3298
        %3300 = vadd.xlane.f32.xlu0 %v3269
        %v3301 = vpop.xlane.xlu0 %3300
        %3302 = vadd.xlane.f32.xlu0 %v3271
        %v3303 = vpop.xlane.xlu0 %3302
        %3304 = vadd.xlane.f32.xlu0 %v3273
        %v3305 = vpop.xlane.xlu0 %3304
        %3306 = vadd.xlane.f32.xlu0 %v3275
        %v3307 = vpop.xlane.xlu0 %3306
        %3308 = vadd.xlane.f32.xlu0 %v3277
        %v3309 = vpop.xlane.xlu0 %3308
        %3310 = vadd.xlane.f32.xlu0 %v3279
        %v3311 = vpop.xlane.xlu0 %3310
        %3312 = vadd.xlane.f32.xlu0 %v3281
        %v3313 = vpop.xlane.xlu0 %3312
        %3314 = vadd.xlane.f32.xlu0 %v3283
        %v3315 = vpop.xlane.xlu0 %3314
        %3316 = vadd.xlane.f32.xlu0 %v3285
        %v3317 = vpop.xlane.xlu0 %3316
        %3318 = vadd.xlane.f32.xlu0 %v3287
        %v3319 = vpop.xlane.xlu0 %3318
        %3320 = vadd.xlane.f32.xlu0 %v3289
        %v3321 = vpop.xlane.xlu0 %3320
        %3322 = vadd.xlane.f32.xlu0 %v3291
        %v3323 = vpop.xlane.xlu0 %3322
        %v3324 = vrcp.pop %v3293
        %v3325 = vrcp.pop %v3295
        %v3326 = vrcp.pop %v3297
        %v3327 = vrcp.pop %v3299
        %v3328 = vrcp.pop %v3301
        %v3329 = vrcp.pop %v3303
        %v3330 = vrcp.pop %v3305
        %v3331 = vrcp.pop %v3307
        %v3332 = vrcp.pop %v3309
        %v3333 = vrcp.pop %v3311
        %v3334 = vrcp.pop %v3313
        %v3335 = vrcp.pop %v3315
        %v3336 = vrcp.pop %v3317
        %v3337 = vrcp.pop %v3319
        %v3338 = vrcp.pop %v3321
        %v3339 = vrcp.pop %v3323
        %v3340 = vmul.f32 %v3261, %v3324
        %v3341 = vmul.f32 %v3263, %v3325
        %v3342 = vmul.f32 %v3265, %v3326
        %v3343 = vmul.f32 %v3267, %v3327
        %v3344 = vmul.f32 %v3269, %v3328
        %v3345 = vmul.f32 %v3271, %v3329
        %v3346 = vmul.f32 %v3273, %v3330
        %v3347 = vmul.f32 %v3275, %v3331
        %v3348 = vmul.f32 %v3277, %v3332
        %v3349 = vmul.f32 %v3279, %v3333
        %v3350 = vmul.f32 %v3281, %v3334
        %v3351 = vmul.f32 %v3283, %v3335
        %v3352 = vmul.f32 %v3285, %v3336
        %v3353 = vmul.f32 %v3287, %v3337
        %v3354 = vmul.f32 %v3289, %v3338
        %v3355 = vmul.f32 %v3291, %v3339
        %v3356 = vpack.c.bf16 %v3341, %v3340
        %v3357 = vpack.c.bf16 %v3343, %v3342
        %v3358 = vpack.c.bf16 %v3345, %v3344
        %v3359 = vpack.c.bf16 %v3347, %v3346
        %v3360 = vpack.c.bf16 %v3349, %v3348
        %v3361 = vpack.c.bf16 %v3351, %v3350
        %v3362 = vpack.c.bf16 %v3353, %v3352
        %v3363 = vpack.c.bf16 %v3355, %v3354
        %3364 = vmatprep.subr.bf16.mxu0 0
        %3365 = vmatpush1.bf16.msra.mxu0 %v2991
        %3366 = vmatprep.subr.bf16.mxu0 0
        %3367 = vmatpush1.bf16.msra.mxu0 %v2994
        %3368 = vmatprep.subr.bf16.mxu0 0
        %3369 = vmatpush1.bf16.msra.mxu0 %v2997
        %3370 = vmatprep.subr.bf16.mxu0 0
        %3371 = vmatpush1.bf16.msra.mxu0 %v3000
        %3372 = vmatprep.subr.bf16.mxu0 0
        %3373 = vmatpush1.bf16.msra.mxu0 %v3003
        %3374 = vmatprep.subr.bf16.mxu0 0
        %3375 = vmatpush1.bf16.msra.mxu0 %v3006
        %3376 = vmatprep.subr.bf16.mxu0 0
        %3377 = vmatpush1.bf16.msra.mxu0 %v3009
        %3378 = vmatprep.subr.bf16.mxu0 0
        %3379 = vmatpush1.bf16.msra.mxu0 %v3012
        %3380 = vmatprep.subr.bf16.mxu0 0
        %3381 = vmatpush1.bf16.msra.mxu0 0
        %3382 = vmatprep.subr.bf16.mxu0 0
        %3383 = vmatpush1.bf16.msra.mxu0 0
        %3384 = vmatprep.subr.bf16.mxu0 0
        %3385 = vmatpush1.bf16.msra.mxu0 0
        %3386 = vmatprep.subr.bf16.mxu0 0
        %3387 = vmatpush1.bf16.msra.mxu0 0
        %3388 = vmatprep.subr.bf16.mxu0 0
        %3389 = vmatpush1.bf16.msra.mxu0 0
        %3390 = vmatprep.subr.bf16.mxu0 0
        %3391 = vmatpush1.bf16.msra.mxu0 0
        %3392 = vmatprep.subr.bf16.mxu0 0
        %3393 = vmatpush1.bf16.msra.mxu0 0
        %3394 = vmatprep.subr.bf16.mxu0 0
        %3395 = vmatpush1.bf16.msra.mxu0 0
        %3396 = vmatprep.mubr.bf16.mxu0 0
        %3397 = vmatmul.mubr.bf16.gmra.mrb[0].mxu0 %v3356
        %v3398 = vpop.f32.mrb[0].mxu0
        %v3399 = vadd.f32 0.0, %v3398
        %v3400 = vpop.f32.mrb[0].mxu0
        %v3401 = vpop.f32.mrb[0].mxu0
        %v3402 = vadd.f32 0.0, %v3401
        %v3403 = vpop.f32.mrb[0].mxu0
        %3404 = vmatprep.mubr.bf16.mxu0 0
        %3405 = vmatmul.mubr.bf16.gmra.mrb[0].mxu0 %v3357
        %v3406 = vpop.f32.mrb[0].mxu0
        %v3407 = vadd.f32 0.0, %v3406
        %v3408 = vpop.f32.mrb[0].mxu0
        %v3409 = vpop.f32.mrb[0].mxu0
        %v3410 = vadd.f32 0.0, %v3409
        %v3411 = vpop.f32.mrb[0].mxu0
        %3412 = vmatprep.mubr.bf16.mxu0 0
        %3413 = vmatmul.mubr.bf16.gmra.mrb[0].mxu0 %v3358
        %v3414 = vpop.f32.mrb[0].mxu0
        %v3415 = vadd.f32 0.0, %v3414
        %v3416 = vpop.f32.mrb[0].mxu0
        %v3417 = vpop.f32.mrb[0].mxu0
        %v3418 = vadd.f32 0.0, %v3417
        %v3419 = vpop.f32.mrb[0].mxu0
        %3420 = vmatprep.mubr.bf16.mxu0 0
        %3421 = vmatmul.mubr.bf16.gmra.mrb[0].mxu0 %v3359
        %v3422 = vpop.f32.mrb[0].mxu0
        %v3423 = vadd.f32 0.0, %v3422
        %v3424 = vpop.f32.mrb[0].mxu0
        %v3425 = vpop.f32.mrb[0].mxu0
        %v3426 = vadd.f32 0.0, %v3425
        %v3427 = vpop.f32.mrb[0].mxu0
        %3428 = vmatprep.mubr.bf16.mxu0 0
        %3429 = vmatmul.mubr.bf16.gmra.mrb[0].mxu0 %v3360
        %v3430 = vpop.f32.mrb[0].mxu0
        %v3431 = vadd.f32 0.0, %v3430
        %v3432 = vpop.f32.mrb[0].mxu0
        %v3433 = vpop.f32.mrb[0].mxu0
        %v3434 = vadd.f32 0.0, %v3433
        %v3435 = vpop.f32.mrb[0].mxu0
        %3436 = vmatprep.mubr.bf16.mxu0 0
        %3437 = vmatmul.mubr.bf16.gmra.mrb[0].mxu0 %v3361
        %v3438 = vpop.f32.mrb[0].mxu0
        %v3439 = vadd.f32 0.0, %v3438
        %v3440 = vpop.f32.mrb[0].mxu0
        %v3441 = vpop.f32.mrb[0].mxu0
        %v3442 = vadd.f32 0.0, %v3441
        %v3443 = vpop.f32.mrb[0].mxu0
        %3444 = vmatprep.mubr.bf16.mxu0 0
        %3445 = vmatmul.mubr.bf16.gmra.mrb[0].mxu0 %v3362
        %v3446 = vpop.f32.mrb[0].mxu0
        %v3447 = vadd.f32 0.0, %v3446
        %v3448 = vpop.f32.mrb[0].mxu0
        %v3449 = vpop.f32.mrb[0].mxu0
        %v3450 = vadd.f32 0.0, %v3449
        %v3451 = vpop.f32.mrb[0].mxu0
        %3452 = vmatprep.mubr.bf16.mxu0 0
        %3453 = vmatmul.mubr.bf16.gmra.mrb[0].mxu0 %v3363
        %v3454 = vpop.f32.mrb[0].mxu0
        %v3455 = vadd.f32 0.0, %v3454
        %v3456 = vpop.f32.mrb[0].mxu0
        %v3457 = vpop.f32.mrb[0].mxu0
        %v3458 = vadd.f32 0.0, %v3457
        %v3459 = vpop.f32.mrb[0].mxu0
        %3460 = vdwg.mxu0
        %v3461 = vpack.c.bf16 %v3402, %v3399
        %v3462 = vpack.c.bf16 %v3410, %v3407
        %v3463 = vpack.c.bf16 %v3418, %v3415
        %v3464 = vpack.c.bf16 %v3426, %v3423
        %v3465 = vpack.c.bf16 %v3434, %v3431
        %v3466 = vpack.c.bf16 %v3442, %v3439
        %v3467 = vpack.c.bf16 %v3450, %v3447
        %v3468 = vpack.c.bf16 %v3458, %v3455
        %3477 = vrot.lane.b32.xlu0 %v2943, 64
        %v3478 = vpop.permute.xlu0 %3477
        %3479 = vrot.lane.b32.xlu0 %v2946, 64
        %v3480 = vpop.permute.xlu0 %3479
        %3481 = vrot.lane.b32.xlu0 %v2949, 64
        %v3482 = vpop.permute.xlu0 %3481
        %3483 = vrot.lane.b32.xlu0 %v2952, 64
        %v3484 = vpop.permute.xlu0 %3483
        %3485 = vrot.lane.b32.xlu0 %v2955, 64
        %v3486 = vpop.permute.xlu0 %3485
        %3487 = vrot.lane.b32.xlu0 %v2958, 64
        %v3488 = vpop.permute.xlu0 %3487
        %3489 = vrot.lane.b32.xlu0 %v2961, 64
        %v3490 = vpop.permute.xlu0 %3489
        %3491 = vrot.lane.b32.xlu0 %v2964, 64
        %v3492 = vpop.permute.xlu0 %3491
        %3501 = vrot.lane.b32.xlu0 %v2967, 64
        %v3502 = vpop.permute.xlu0 %3501
        %3503 = vrot.lane.b32.xlu0 %v2970, 64
        %v3504 = vpop.permute.xlu0 %3503
        %3505 = vrot.lane.b32.xlu0 %v2973, 64
        %v3506 = vpop.permute.xlu0 %3505
        %3507 = vrot.lane.b32.xlu0 %v2976, 64
        %v3508 = vpop.permute.xlu0 %3507
        %3509 = vrot.lane.b32.xlu0 %v2979, 64
        %v3510 = vpop.permute.xlu0 %3509
        %3511 = vrot.lane.b32.xlu0 %v2982, 64
        %v3512 = vpop.permute.xlu0 %3511
        %3513 = vrot.lane.b32.xlu0 %v2985, 64
        %v3514 = vpop.permute.xlu0 %3513
        %3515 = vrot.lane.b32.xlu0 %v2988, 64
        %v3516 = vpop.permute.xlu0 %3515
        %v3518 = vsel %vm3066, %v3478, 0
        %v3521 = vsel %vm3066, %v3480, 0
        %v3524 = vsel %vm3066, %v3482, 0
        %v3527 = vsel %vm3066, %v3484, 0
        %v3530 = vsel %vm3066, %v3486, 0
        %v3533 = vsel %vm3066, %v3488, 0
        %v3536 = vsel %vm3066, %v3490, 0
        %v3539 = vsel %vm3066, %v3492, 0
        %v3542 = vsel %vm3066, %v3502, 0
        %v3545 = vsel %vm3066, %v3504, 0
        %v3548 = vsel %vm3066, %v3506, 0
        %v3551 = vsel %vm3066, %v3508, 0
        %v3554 = vsel %vm3066, %v3510, 0
        %v3557 = vsel %vm3066, %v3512, 0
        %v3560 = vsel %vm3066, %v3514, 0
        %v3563 = vsel %vm3066, %v3516, 0
        %3565 = vmatprep.subr.bf16.mxu0 0
        %3566 = vmatpush1.bf16.xpose.msra.mxu0 %v3542
        %3567 = vmatprep.subr.bf16.mxu0 0
        %3568 = vmatpush1.bf16.xpose.msra.mxu0 %v3545
        %3569 = vmatprep.subr.bf16.mxu0 0
        %3570 = vmatpush1.bf16.xpose.msra.mxu0 %v3548
        %3571 = vmatprep.subr.bf16.mxu0 0
        %3572 = vmatpush1.bf16.xpose.msra.mxu0 %v3551
        %3573 = vmatprep.subr.bf16.mxu0 0
        %3574 = vmatpush1.bf16.xpose.msra.mxu0 %v3554
        %3575 = vmatprep.subr.bf16.mxu0 0
        %3576 = vmatpush1.bf16.xpose.msra.mxu0 %v3557
        %3577 = vmatprep.subr.bf16.mxu0 0
        %3578 = vmatpush1.bf16.xpose.msra.mxu0 %v3560
        %3579 = vmatprep.subr.bf16.mxu0 0
        %3580 = vmatpush1.bf16.xpose.msra.mxu0 %v3563
        %3581 = vmatprep.subr.bf16.mxu0 0
        %3582 = vmatpush1.bf16.xpose.msra.mxu0 0
        %3583 = vmatprep.subr.bf16.mxu0 0
        %3584 = vmatpush1.bf16.xpose.msra.mxu0 0
        %3585 = vmatprep.subr.bf16.mxu0 0
        %3586 = vmatpush1.bf16.xpose.msra.mxu0 0
        %3587 = vmatprep.subr.bf16.mxu0 0
        %3588 = vmatpush1.bf16.xpose.msra.mxu0 0
        %3589 = vmatprep.subr.bf16.mxu0 0
        %3590 = vmatpush1.bf16.xpose.msra.mxu0 0
        %3591 = vmatprep.subr.bf16.mxu0 0
        %3592 = vmatpush1.bf16.xpose.msra.mxu0 0
        %3593 = vmatprep.subr.bf16.mxu0 0
        %3594 = vmatpush1.bf16.xpose.msra.mxu0 0
        %3595 = vmatprep.subr.bf16.mxu0 0
        %3596 = vmatpush1.bf16.xpose.msra.mxu0 0
        %3597 = vmatprep.mubr.bf16.mxu0 0
        %3598 = vmatmul.mubr.bf16.gmra.mrb[0].mxu0 %v3518
        %v3599 = vpop.f32.mrb[0].mxu0
        %v3600 = vadd.f32 %v3050, %v3599
        %v3601 = vpop.f32.mrb[0].mxu0
        %v3602 = vpop.f32.mrb[0].mxu0
        %v3603 = vadd.f32 %v3051, %v3602
        %v3604 = vpop.f32.mrb[0].mxu0
        %3605 = vmatprep.mubr.bf16.mxu0 0
        %3606 = vmatmul.mubr.bf16.gmra.mrb[0].mxu0 %v3521
        %v3607 = vpop.f32.mrb[0].mxu0
        %v3608 = vadd.f32 %v3052, %v3607
        %v3609 = vpop.f32.mrb[0].mxu0
        %v3610 = vpop.f32.mrb[0].mxu0
        %v3611 = vadd.f32 %v3053, %v3610
        %v3612 = vpop.f32.mrb[0].mxu0
        %3613 = vmatprep.mubr.bf16.mxu0 0
        %3614 = vmatmul.mubr.bf16.gmra.mrb[0].mxu0 %v3524
        %v3615 = vpop.f32.mrb[0].mxu0
        %v3616 = vadd.f32 %v3054, %v3615
        %v3617 = vpop.f32.mrb[0].mxu0
        %v3618 = vpop.f32.mrb[0].mxu0
        %v3619 = vadd.f32 %v3055, %v3618
        %v3620 = vpop.f32.mrb[0].mxu0
        %3621 = vmatprep.mubr.bf16.mxu0 0
        %3622 = vmatmul.mubr.bf16.gmra.mrb[0].mxu0 %v3527
        %v3623 = vpop.f32.mrb[0].mxu0
        %v3624 = vadd.f32 %v3056, %v3623
        %v3625 = vpop.f32.mrb[0].mxu0
        %v3626 = vpop.f32.mrb[0].mxu0
        %v3627 = vadd.f32 %v3057, %v3626
        %v3628 = vpop.f32.mrb[0].mxu0
        %3629 = vmatprep.mubr.bf16.mxu0 0
        %3630 = vmatmul.mubr.bf16.gmra.mrb[0].mxu0 %v3530
        %v3631 = vpop.f32.mrb[0].mxu0
        %v3632 = vadd.f32 %v3058, %v3631
        %v3633 = vpop.f32.mrb[0].mxu0
        %v3634 = vpop.f32.mrb[0].mxu0
        %v3635 = vadd.f32 %v3059, %v3634
        %v3636 = vpop.f32.mrb[0].mxu0
        %3637 = vmatprep.mubr.bf16.mxu0 0
        %3638 = vmatmul.mubr.bf16.gmra.mrb[0].mxu0 %v3533
        %v3639 = vpop.f32.mrb[0].mxu0
        %v3640 = vadd.f32 %v3060, %v3639
        %v3641 = vpop.f32.mrb[0].mxu0
        %v3642 = vpop.f32.mrb[0].mxu0
        %v3643 = vadd.f32 %v3061, %v3642
        %v3644 = vpop.f32.mrb[0].mxu0
        %3645 = vmatprep.mubr.bf16.mxu0 0
        %3646 = vmatmul.mubr.bf16.gmra.mrb[0].mxu0 %v3536
        %v3647 = vpop.f32.mrb[0].mxu0
        %v3648 = vadd.f32 %v3062, %v3647
        %v3649 = vpop.f32.mrb[0].mxu0
        %v3650 = vpop.f32.mrb[0].mxu0
        %v3651 = vadd.f32 %v3063, %v3650
        %v3652 = vpop.f32.mrb[0].mxu0
        %3653 = vmatprep.mubr.bf16.mxu0 0
        %3654 = vmatmul.mubr.bf16.gmra.mrb[0].mxu0 %v3539
        %v3655 = vpop.f32.mrb[0].mxu0
        %v3656 = vadd.f32 %v3064, %v3655
        %v3657 = vpop.f32.mrb[0].mxu0
        %v3658 = vpop.f32.mrb[0].mxu0
        %v3659 = vadd.f32 %v3065, %v3658
        %v3660 = vpop.f32.mrb[0].mxu0
        %3661 = vdwg.mxu0
        %3662 = vmax.xlane.f32.xlu0 %v3600
        %v3663 = vpop.xlane.xlu0 %3662
        %3664 = vmax.xlane.f32.xlu0 %v3603
        %v3665 = vpop.xlane.xlu0 %3664
        %3666 = vmax.xlane.f32.xlu0 %v3608
        %v3667 = vpop.xlane.xlu0 %3666
        %3668 = vmax.xlane.f32.xlu0 %v3611
        %v3669 = vpop.xlane.xlu0 %3668
        %3670 = vmax.xlane.f32.xlu0 %v3616
        %v3671 = vpop.xlane.xlu0 %3670
        %3672 = vmax.xlane.f32.xlu0 %v3619
        %v3673 = vpop.xlane.xlu0 %3672
        %3674 = vmax.xlane.f32.xlu0 %v3624
        %v3675 = vpop.xlane.xlu0 %3674
        %3676 = vmax.xlane.f32.xlu0 %v3627
        %v3677 = vpop.xlane.xlu0 %3676
        %3678 = vmax.xlane.f32.xlu0 %v3632
        %v3679 = vpop.xlane.xlu0 %3678
        %3680 = vmax.xlane.f32.xlu0 %v3635
        %v3681 = vpop.xlane.xlu0 %3680
        %3682 = vmax.xlane.f32.xlu0 %v3640
        %v3683 = vpop.xlane.xlu0 %3682
        %3684 = vmax.xlane.f32.xlu0 %v3643
        %v3685 = vpop.xlane.xlu0 %3684
        %3686 = vmax.xlane.f32.xlu0 %v3648
        %v3687 = vpop.xlane.xlu0 %3686
        %3688 = vmax.xlane.f32.xlu0 %v3651
        %v3689 = vpop.xlane.xlu0 %3688
        %3690 = vmax.xlane.f32.xlu0 %v3656
        %v3691 = vpop.xlane.xlu0 %3690
        %3692 = vmax.xlane.f32.xlu0 %v3659
        %v3693 = vpop.xlane.xlu0 %3692
        %v3694 = vsub.f32 %v3600, %v3663
        %v3695 = vsub.f32 %v3603, %v3665
        %v3696 = vsub.f32 %v3608, %v3667
        %v3697 = vsub.f32 %v3611, %v3669
        %v3698 = vsub.f32 %v3616, %v3671
        %v3699 = vsub.f32 %v3619, %v3673
        %v3700 = vsub.f32 %v3624, %v3675
        %v3701 = vsub.f32 %v3627, %v3677
        %v3702 = vsub.f32 %v3632, %v3679
        %v3703 = vsub.f32 %v3635, %v3681
        %v3704 = vsub.f32 %v3640, %v3683
        %v3705 = vsub.f32 %v3643, %v3685
        %v3706 = vsub.f32 %v3648, %v3687
        %v3707 = vsub.f32 %v3651, %v3689
        %v3708 = vsub.f32 %v3656, %v3691
        %v3709 = vsub.f32 %v3659, %v3693
        %v3710 = vmul.f32 %v3694, 1.442695
        %v3711 = vpow.pop %v3710
        %v3712 = vmul.f32 %v3695, 1.442695
        %v3713 = vpow.pop %v3712
        %v3714 = vmul.f32 %v3696, 1.442695
        %v3715 = vpow.pop %v3714
        %v3716 = vmul.f32 %v3697, 1.442695
        %v3717 = vpow.pop %v3716
        %v3718 = vmul.f32 %v3698, 1.442695
        %v3719 = vpow.pop %v3718
        %v3720 = vmul.f32 %v3699, 1.442695
        %v3721 = vpow.pop %v3720
        %v3722 = vmul.f32 %v3700, 1.442695
        %v3723 = vpow.pop %v3722
        %v3724 = vmul.f32 %v3701, 1.442695
        %v3725 = vpow.pop %v3724
        %v3726 = vmul.f32 %v3702, 1.442695
        %v3727 = vpow.pop %v3726
        %v3728 = vmul.f32 %v3703, 1.442695
        %v3729 = vpow.pop %v3728
        %v3730 = vmul.f32 %v3704, 1.442695
        %v3731 = vpow.pop %v3730
        %v3732 = vmul.f32 %v3705, 1.442695
        %v3733 = vpow.pop %v3732
        %v3734 = vmul.f32 %v3706, 1.442695
        %v3735 = vpow.pop %v3734
        %v3736 = vmul.f32 %v3707, 1.442695
        %v3737 = vpow.pop %v3736
        %v3738 = vmul.f32 %v3708, 1.442695
        %v3739 = vpow.pop %v3738
        %v3740 = vmul.f32 %v3709, 1.442695
        %v3741 = vpow.pop %v3740
        %3742 = vadd.xlane.f32.xlu0 %v3711
        %v3743 = vpop.xlane.xlu0 %3742
        %3744 = vadd.xlane.f32.xlu0 %v3713
        %v3745 = vpop.xlane.xlu0 %3744
        %3746 = vadd.xlane.f32.xlu0 %v3715
        %v3747 = vpop.xlane.xlu0 %3746
        %3748 = vadd.xlane.f32.xlu0 %v3717
        %v3749 = vpop.xlane.xlu0 %3748
        %3750 = vadd.xlane.f32.xlu0 %v3719
        %v3751 = vpop.xlane.xlu0 %3750
        %3752 = vadd.xlane.f32.xlu0 %v3721
        %v3753 = vpop.xlane.xlu0 %3752
        %3754 = vadd.xlane.f32.xlu0 %v3723
        %v3755 = vpop.xlane.xlu0 %3754
        %3756 = vadd.xlane.f32.xlu0 %v3725
        %v3757 = vpop.xlane.xlu0 %3756
        %3758 = vadd.xlane.f32.xlu0 %v3727
        %v3759 = vpop.xlane.xlu0 %3758
        %3760 = vadd.xlane.f32.xlu0 %v3729
        %v3761 = vpop.xlane.xlu0 %3760
        %3762 = vadd.xlane.f32.xlu0 %v3731
        %v3763 = vpop.xlane.xlu0 %3762
        %3764 = vadd.xlane.f32.xlu0 %v3733
        %v3765 = vpop.xlane.xlu0 %3764
        %3766 = vadd.xlane.f32.xlu0 %v3735
        %v3767 = vpop.xlane.xlu0 %3766
        %3768 = vadd.xlane.f32.xlu0 %v3737
        %v3769 = vpop.xlane.xlu0 %3768
        %3770 = vadd.xlane.f32.xlu0 %v3739
        %v3771 = vpop.xlane.xlu0 %3770
        %3772 = vadd.xlane.f32.xlu0 %v3741
        %v3773 = vpop.xlane.xlu0 %3772
        %v3774 = vrcp.pop %v3743
        %v3775 = vrcp.pop %v3745
        %v3776 = vrcp.pop %v3747
        %v3777 = vrcp.pop %v3749
        %v3778 = vrcp.pop %v3751
        %v3779 = vrcp.pop %v3753
        %v3780 = vrcp.pop %v3755
        %v3781 = vrcp.pop %v3757
        %v3782 = vrcp.pop %v3759
        %v3783 = vrcp.pop %v3761
        %v3784 = vrcp.pop %v3763
        %v3785 = vrcp.pop %v3765
        %v3786 = vrcp.pop %v3767
        %v3787 = vrcp.pop %v3769
        %v3788 = vrcp.pop %v3771
        %v3789 = vrcp.pop %v3773
        %v3790 = vmul.f32 %v3711, %v3774
        %v3791 = vmul.f32 %v3713, %v3775
        %v3792 = vmul.f32 %v3715, %v3776
        %v3793 = vmul.f32 %v3717, %v3777
        %v3794 = vmul.f32 %v3719, %v3778
        %v3795 = vmul.f32 %v3721, %v3779
        %v3796 = vmul.f32 %v3723, %v3780
        %v3797 = vmul.f32 %v3725, %v3781
        %v3798 = vmul.f32 %v3727, %v3782
        %v3799 = vmul.f32 %v3729, %v3783
        %v3800 = vmul.f32 %v3731, %v3784
        %v3801 = vmul.f32 %v3733, %v3785
        %v3802 = vmul.f32 %v3735, %v3786
        %v3803 = vmul.f32 %v3737, %v3787
        %v3804 = vmul.f32 %v3739, %v3788
        %v3805 = vmul.f32 %v3741, %v3789
        %v3806 = vpack.c.bf16 %v3791, %v3790
        %v3807 = vpack.c.bf16 %v3793, %v3792
        %v3808 = vpack.c.bf16 %v3795, %v3794
        %v3809 = vpack.c.bf16 %v3797, %v3796
        %v3810 = vpack.c.bf16 %v3799, %v3798
        %v3811 = vpack.c.bf16 %v3801, %v3800
        %v3812 = vpack.c.bf16 %v3803, %v3802
        %v3813 = vpack.c.bf16 %v3805, %v3804
        %3822 = vrot.lane.b32.xlu0 %v2991, 64
        %v3823 = vpop.permute.xlu0 %3822
        %3824 = vrot.lane.b32.xlu0 %v2994, 64
        %v3825 = vpop.permute.xlu0 %3824
        %3826 = vrot.lane.b32.xlu0 %v2997, 64
        %v3827 = vpop.permute.xlu0 %3826
        %3828 = vrot.lane.b32.xlu0 %v3000, 64
        %v3829 = vpop.permute.xlu0 %3828
        %3830 = vrot.lane.b32.xlu0 %v3003, 64
        %v3831 = vpop.permute.xlu0 %3830
        %3832 = vrot.lane.b32.xlu0 %v3006, 64
        %v3833 = vpop.permute.xlu0 %3832
        %3834 = vrot.lane.b32.xlu0 %v3009, 64
        %v3835 = vpop.permute.xlu0 %3834
        %3836 = vrot.lane.b32.xlu0 %v3012, 64
        %v3837 = vpop.permute.xlu0 %3836
        %3846 = vmatprep.subr.bf16.mxu0 0
        %3847 = vmatpush1.bf16.msra.mxu0 %v3823
        %3848 = vmatprep.subr.bf16.mxu0 0
        %3849 = vmatpush1.bf16.msra.mxu0 %v3825
        %3850 = vmatprep.subr.bf16.mxu0 0
        %3851 = vmatpush1.bf16.msra.mxu0 %v3827
        %3852 = vmatprep.subr.bf16.mxu0 0
        %3853 = vmatpush1.bf16.msra.mxu0 %v3829
        %3854 = vmatprep.subr.bf16.mxu0 0
        %3855 = vmatpush1.bf16.msra.mxu0 %v3831
        %3856 = vmatprep.subr.bf16.mxu0 0
        %3857 = vmatpush1.bf16.msra.mxu0 %v3833
        %3858 = vmatprep.subr.bf16.mxu0 0
        %3859 = vmatpush1.bf16.msra.mxu0 %v3835
        %3860 = vmatprep.subr.bf16.mxu0 0
        %3861 = vmatpush1.bf16.msra.mxu0 %v3837
        %3862 = vmatprep.subr.bf16.mxu0 0
        %3863 = vmatpush1.bf16.msra.mxu0 0
        %3864 = vmatprep.subr.bf16.mxu0 0
        %3865 = vmatpush1.bf16.msra.mxu0 0
        %3866 = vmatprep.subr.bf16.mxu0 0
        %3867 = vmatpush1.bf16.msra.mxu0 0
        %3868 = vmatprep.subr.bf16.mxu0 0
        %3869 = vmatpush1.bf16.msra.mxu0 0
        %3870 = vmatprep.subr.bf16.mxu0 0
        %3871 = vmatpush1.bf16.msra.mxu0 0
        %3872 = vmatprep.subr.bf16.mxu0 0
        %3873 = vmatpush1.bf16.msra.mxu0 0
        %3874 = vmatprep.subr.bf16.mxu0 0
        %3875 = vmatpush1.bf16.msra.mxu0 0
        %3876 = vmatprep.subr.bf16.mxu0 0
        %3877 = vmatpush1.bf16.msra.mxu0 0
        %3878 = vmatprep.mubr.bf16.mxu0 0
        %3879 = vmatmul.mubr.bf16.gmra.mrb[0].mxu0 %v3806
        %v3880 = vpop.f32.mrb[0].mxu0
        %v3881 = vadd.f32 0.0, %v3880
        %v3882 = vpop.f32.mrb[0].mxu0
        %v3883 = vpop.f32.mrb[0].mxu0
        %v3884 = vadd.f32 0.0, %v3883
        %v3885 = vpop.f32.mrb[0].mxu0
        %3886 = vmatprep.mubr.bf16.mxu0 0
        %3887 = vmatmul.mubr.bf16.gmra.mrb[0].mxu0 %v3807
        %v3888 = vpop.f32.mrb[0].mxu0
        %v3889 = vadd.f32 0.0, %v3888
        %v3890 = vpop.f32.mrb[0].mxu0
        %v3891 = vpop.f32.mrb[0].mxu0
        %v3892 = vadd.f32 0.0, %v3891
        %v3893 = vpop.f32.mrb[0].mxu0
        %3894 = vmatprep.mubr.bf16.mxu0 0
        %3895 = vmatmul.mubr.bf16.gmra.mrb[0].mxu0 %v3808
        %v3896 = vpop.f32.mrb[0].mxu0
        %v3897 = vadd.f32 0.0, %v3896
        %v3898 = vpop.f32.mrb[0].mxu0
        %v3899 = vpop.f32.mrb[0].mxu0
        %v3900 = vadd.f32 0.0, %v3899
        %v3901 = vpop.f32.mrb[0].mxu0
        %3902 = vmatprep.mubr.bf16.mxu0 0
        %3903 = vmatmul.mubr.bf16.gmra.mrb[0].mxu0 %v3809
        %v3904 = vpop.f32.mrb[0].mxu0
        %v3905 = vadd.f32 0.0, %v3904
        %v3906 = vpop.f32.mrb[0].mxu0
        %v3907 = vpop.f32.mrb[0].mxu0
        %v3908 = vadd.f32 0.0, %v3907
        %v3909 = vpop.f32.mrb[0].mxu0
        %3910 = vmatprep.mubr.bf16.mxu0 0
        %3911 = vmatmul.mubr.bf16.gmra.mrb[0].mxu0 %v3810
        %v3912 = vpop.f32.mrb[0].mxu0
        %v3913 = vadd.f32 0.0, %v3912
        %v3914 = vpop.f32.mrb[0].mxu0
        %v3915 = vpop.f32.mrb[0].mxu0
        %v3916 = vadd.f32 0.0, %v3915
        %v3917 = vpop.f32.mrb[0].mxu0
        %3918 = vmatprep.mubr.bf16.mxu0 0
        %3919 = vmatmul.mubr.bf16.gmra.mrb[0].mxu0 %v3811
        %v3920 = vpop.f32.mrb[0].mxu0
        %v3921 = vadd.f32 0.0, %v3920
        %v3922 = vpop.f32.mrb[0].mxu0
        %v3923 = vpop.f32.mrb[0].mxu0
        %v3924 = vadd.f32 0.0, %v3923
        %v3925 = vpop.f32.mrb[0].mxu0
        %3926 = vmatprep.mubr.bf16.mxu0 0
        %3927 = vmatmul.mubr.bf16.gmra.mrb[0].mxu0 %v3812
        %v3928 = vpop.f32.mrb[0].mxu0
        %v3929 = vadd.f32 0.0, %v3928
        %v3930 = vpop.f32.mrb[0].mxu0
        %v3931 = vpop.f32.mrb[0].mxu0
        %v3932 = vadd.f32 0.0, %v3931
        %v3933 = vpop.f32.mrb[0].mxu0
        %3934 = vmatprep.mubr.bf16.mxu0 0
        %3935 = vmatmul.mubr.bf16.gmra.mrb[0].mxu0 %v3813
        %v3936 = vpop.f32.mrb[0].mxu0
        %v3937 = vadd.f32 0.0, %v3936
        %v3938 = vpop.f32.mrb[0].mxu0
        %v3939 = vpop.f32.mrb[0].mxu0
        %v3940 = vadd.f32 0.0, %v3939
        %v3941 = vpop.f32.mrb[0].mxu0
        %3942 = vdwg.mxu0
        %v3943 = vpack.c.bf16 %v3884, %v3881
        %v3944 = vpack.c.bf16 %v3892, %v3889
        %v3945 = vpack.c.bf16 %v3900, %v3897
        %v3946 = vpack.c.bf16 %v3908, %v3905
        %v3947 = vpack.c.bf16 %v3916, %v3913
        %v3948 = vpack.c.bf16 %v3924, %v3921
        %v3949 = vpack.c.bf16 %v3932, %v3929
        %v3950 = vpack.c.bf16 %v3940, %v3937
        %v3967 = vunpack.c.l.b16 %v485
        %v3968 = vunpack.c.h.b16 %v485
        %v3969 = vunpack.c.l.b16 %v486
        %v3970 = vunpack.c.l.b16 %v487
        %v3971 = vunpack.c.h.b16 %v487
        %v3972 = vunpack.c.l.b16 %v488
        %v3973 = vunpack.c.l.b16 %v489
        %v3974 = vunpack.c.h.b16 %v489
        %v3975 = vunpack.c.l.b16 %v490
        %v3976 = vunpack.c.l.b16 %v491
        %v3977 = vunpack.c.h.b16 %v491
        %v3978 = vunpack.c.l.b16 %v492
        %v3979 = vunpack.c.l.b16 %v493
        %v3980 = vunpack.c.h.b16 %v493
        %v3981 = vunpack.c.l.b16 %v494
        %v3982 = vunpack.c.l.b16 %v495
        %v3983 = vunpack.c.h.b16 %v495
        %v3984 = vunpack.c.l.b16 %v496
        %v3985 = vunpack.c.l.b16 %v497
        %v3986 = vunpack.c.h.b16 %v497
        %v3987 = vunpack.c.l.b16 %v498
        %v3988 = vunpack.c.l.b16 %v499
        %v3989 = vunpack.c.h.b16 %v499
        %v3990 = vunpack.c.l.b16 %v500
        %v3991 = vpack.c.b16 %v3970, %v3967
        %v3992 = vpack.c.b16 %v3971, %v3968
        %v3993 = vpack.c.b16 %v3972, %v3969
        %v3994 = vpack.c.b16 %v3976, %v3973
        %v3995 = vpack.c.b16 %v3977, %v3974
        %v3996 = vpack.c.b16 %v3978, %v3975
        %v3997 = vpack.c.b16 %v3982, %v3979
        %v3998 = vpack.c.b16 %v3983, %v3980
        %v3999 = vpack.c.b16 %v3984, %v3981
        %v4000 = vpack.c.b16 %v3988, %v3985
        %v4001 = vpack.c.b16 %v3989, %v3986
        %v4002 = vpack.c.b16 %v3990, %v3987
        %v4016 = vsel %vm3066, %v3943, 0
        %v4019 = vsel %vm3066, %v3944, 0
        %v4022 = vsel %vm3066, %v3945, 0
        %v4025 = vsel %vm3066, %v3946, 0
        %v4028 = vsel %vm3066, %v3947, 0
        %v4031 = vsel %vm3066, %v3948, 0
        %v4034 = vsel %vm3066, %v3949, 0
        %v4037 = vsel %vm3066, %v3950, 0
        %4039 = vmatprep.subr.bf16.mxu0 %v3992
        %4040 = vmatpush1.bf16.msra.mxu0 %v3991
        %4041 = vmatprep.subr.bf16.mxu0 %v3995
        %4042 = vmatpush1.bf16.msra.mxu0 %v3994
        %4043 = vmatprep.subr.bf16.mxu0 %v3998
        %4044 = vmatpush1.bf16.msra.mxu0 %v3997
        %4045 = vmatprep.subr.bf16.mxu0 %v4001
        %4046 = vmatpush1.bf16.msra.mxu0 %v4000
        %4047 = vmatprep.subr.bf16.mxu0 0
        %4048 = vmatpush1.bf16.msra.mxu0 0
        %4049 = vmatprep.subr.bf16.mxu0 0
        %4050 = vmatpush1.bf16.msra.mxu0 0
        %4051 = vmatprep.subr.bf16.mxu0 0
        %4052 = vmatpush1.bf16.msra.mxu0 0
        %4053 = vmatprep.subr.bf16.mxu0 0
        %4054 = vmatpush1.bf16.msra.mxu0 0
        %4055 = vmatprep.subr.bf16.mxu0 0
        %4056 = vmatpush1.bf16.msra.mxu0 0
        %4057 = vmatprep.subr.bf16.mxu0 0
        %4058 = vmatpush1.bf16.msra.mxu0 0
        %4059 = vmatprep.subr.bf16.mxu0 0
        %4060 = vmatpush1.bf16.msra.mxu0 0
        %4061 = vmatprep.subr.bf16.mxu0 0
        %4062 = vmatpush1.bf16.msra.mxu0 0
        %4063 = vmatprep.subr.bf16.mxu0 0
        %4064 = vmatpush1.bf16.msra.mxu0 0
        %4065 = vmatprep.subr.bf16.mxu0 0
        %4066 = vmatpush1.bf16.msra.mxu0 0
        %4067 = vmatprep.subr.bf16.mxu0 0
        %4068 = vmatpush1.bf16.msra.mxu0 0
        %4069 = vmatprep.subr.bf16.mxu0 0
        %4070 = vmatpush1.bf16.msra.mxu0 0
        %4071 = vmatprep.mubr.bf16.mxu0 0
        %4072 = vmatmul.mubr.bf16.gmra.mrb[0].mxu0 %v4016
        %v4073 = vpop.f32.mrb[0].mxu0
        %v4074 = vadd.f32 0.0, %v4073
        %v4075 = vpop.f32.mrb[0].mxu0
        %v4076 = vadd.f32 0.0, %v4075
        %v4077 = vpop.f32.mrb[0].mxu0
        %v4078 = vadd.f32 0.0, %v4077
        %v4079 = vpop.f32.mrb[0].mxu0
        %v4080 = vadd.f32 0.0, %v4079
        %4081 = vmatprep.mubr.bf16.mxu0 0
        %4082 = vmatmul.mubr.bf16.gmra.mrb[0].mxu0 %v4019
        %v4083 = vpop.f32.mrb[0].mxu0
        %v4084 = vadd.f32 0.0, %v4083
        %v4085 = vpop.f32.mrb[0].mxu0
        %v4086 = vadd.f32 0.0, %v4085
        %v4087 = vpop.f32.mrb[0].mxu0
        %v4088 = vadd.f32 0.0, %v4087
        %v4089 = vpop.f32.mrb[0].mxu0
        %v4090 = vadd.f32 0.0, %v4089
        %4091 = vmatprep.mubr.bf16.mxu0 0
        %4092 = vmatmul.mubr.bf16.gmra.mrb[0].mxu0 %v4022
        %v4093 = vpop.f32.mrb[0].mxu0
        %v4094 = vadd.f32 0.0, %v4093
        %v4095 = vpop.f32.mrb[0].mxu0
        %v4096 = vadd.f32 0.0, %v4095
        %v4097 = vpop.f32.mrb[0].mxu0
        %v4098 = vadd.f32 0.0, %v4097
        %v4099 = vpop.f32.mrb[0].mxu0
        %v4100 = vadd.f32 0.0, %v4099
        %4101 = vmatprep.mubr.bf16.mxu0 0
        %4102 = vmatmul.mubr.bf16.gmra.mrb[0].mxu0 %v4025
        %v4103 = vpop.f32.mrb[0].mxu0
        %v4104 = vadd.f32 0.0, %v4103
        %v4105 = vpop.f32.mrb[0].mxu0
        %v4106 = vadd.f32 0.0, %v4105
        %v4107 = vpop.f32.mrb[0].mxu0
        %v4108 = vadd.f32 0.0, %v4107
        %v4109 = vpop.f32.mrb[0].mxu0
        %v4110 = vadd.f32 0.0, %v4109
        %4111 = vmatprep.mubr.bf16.mxu0 0
        %4112 = vmatmul.mubr.bf16.gmra.mrb[0].mxu0 %v4028
        %v4113 = vpop.f32.mrb[0].mxu0
        %v4114 = vadd.f32 0.0, %v4113
        %v4115 = vpop.f32.mrb[0].mxu0
        %v4116 = vadd.f32 0.0, %v4115
        %v4117 = vpop.f32.mrb[0].mxu0
        %v4118 = vadd.f32 0.0, %v4117
        %v4119 = vpop.f32.mrb[0].mxu0
        %v4120 = vadd.f32 0.0, %v4119
        %4121 = vmatprep.mubr.bf16.mxu0 0
        %4122 = vmatmul.mubr.bf16.gmra.mrb[0].mxu0 %v4031
        %v4123 = vpop.f32.mrb[0].mxu0
        %v4124 = vadd.f32 0.0, %v4123
        %v4125 = vpop.f32.mrb[0].mxu0
        %v4126 = vadd.f32 0.0, %v4125
        %v4127 = vpop.f32.mrb[0].mxu0
        %v4128 = vadd.f32 0.0, %v4127
        %v4129 = vpop.f32.mrb[0].mxu0
        %v4130 = vadd.f32 0.0, %v4129
        %4131 = vmatprep.mubr.bf16.mxu0 0
        %4132 = vmatmul.mubr.bf16.gmra.mrb[0].mxu0 %v4034
        %v4133 = vpop.f32.mrb[0].mxu0
        %v4134 = vadd.f32 0.0, %v4133
        %v4135 = vpop.f32.mrb[0].mxu0
        %v4136 = vadd.f32 0.0, %v4135
        %v4137 = vpop.f32.mrb[0].mxu0
        %v4138 = vadd.f32 0.0, %v4137
        %v4139 = vpop.f32.mrb[0].mxu0
        %v4140 = vadd.f32 0.0, %v4139
        %4141 = vmatprep.mubr.bf16.mxu0 0
        %4142 = vmatmul.mubr.bf16.gmra.mrb[0].mxu0 %v4037
        %v4143 = vpop.f32.mrb[0].mxu0
        %v4144 = vadd.f32 0.0, %v4143
        %v4145 = vpop.f32.mrb[0].mxu0
        %v4146 = vadd.f32 0.0, %v4145
        %v4147 = vpop.f32.mrb[0].mxu0
        %v4148 = vadd.f32 0.0, %v4147
        %v4149 = vpop.f32.mrb[0].mxu0
        %v4150 = vadd.f32 0.0, %v4149
        %4151 = vdwg.mxu0
        %4152 = vmatprep.subr.bf16.mxu0 0
        %4153 = vmatpush1.bf16.msra.mxu0 %v3993
        %4154 = vmatprep.subr.bf16.mxu0 0
        %4155 = vmatpush1.bf16.msra.mxu0 %v3996
        %4156 = vmatprep.subr.bf16.mxu0 0
        %4157 = vmatpush1.bf16.msra.mxu0 %v3999
        %4158 = vmatprep.subr.bf16.mxu0 0
        %4159 = vmatpush1.bf16.msra.mxu0 %v4002
        %4160 = vmatprep.subr.bf16.mxu0 0
        %4161 = vmatpush1.bf16.msra.mxu0 0
        %4162 = vmatprep.subr.bf16.mxu0 0
        %4163 = vmatpush1.bf16.msra.mxu0 0
        %4164 = vmatprep.subr.bf16.mxu0 0
        %4165 = vmatpush1.bf16.msra.mxu0 0
        %4166 = vmatprep.subr.bf16.mxu0 0
        %4167 = vmatpush1.bf16.msra.mxu0 0
        %4168 = vmatprep.subr.bf16.mxu0 0
        %4169 = vmatpush1.bf16.msra.mxu0 0
        %4170 = vmatprep.subr.bf16.mxu0 0
        %4171 = vmatpush1.bf16.msra.mxu0 0
        %4172 = vmatprep.subr.bf16.mxu0 0
        %4173 = vmatpush1.bf16.msra.mxu0 0
        %4174 = vmatprep.subr.bf16.mxu0 0
        %4175 = vmatpush1.bf16.msra.mxu0 0
        %4176 = vmatprep.subr.bf16.mxu0 0
        %4177 = vmatpush1.bf16.msra.mxu0 0
        %4178 = vmatprep.subr.bf16.mxu0 0
        %4179 = vmatpush1.bf16.msra.mxu0 0
        %4180 = vmatprep.subr.bf16.mxu0 0
        %4181 = vmatpush1.bf16.msra.mxu0 0
        %4182 = vmatprep.subr.bf16.mxu0 0
        %4183 = vmatpush1.bf16.msra.mxu0 0
        %4184 = vmatprep.mubr.bf16.mxu0 0
        %4185 = vmatmul.mubr.bf16.gmra.mrb[0].mxu0 %v4016
        %v4186 = vpop.f32.mrb[0].mxu0
        %v4187 = vadd.f32 0.0, %v4186
        %v4188 = vpop.f32.mrb[0].mxu0
        %v4189 = vpop.f32.mrb[0].mxu0
        %v4190 = vadd.f32 0.0, %v4189
        %v4191 = vpop.f32.mrb[0].mxu0
        %4192 = vmatprep.mubr.bf16.mxu0 0
        %4193 = vmatmul.mubr.bf16.gmra.mrb[0].mxu0 %v4019
        %v4194 = vpop.f32.mrb[0].mxu0
        %v4195 = vadd.f32 0.0, %v4194
        %v4196 = vpop.f32.mrb[0].mxu0
        %v4197 = vpop.f32.mrb[0].mxu0
        %v4198 = vadd.f32 0.0, %v4197
        %v4199 = vpop.f32.mrb[0].mxu0
        %4200 = vmatprep.mubr.bf16.mxu0 0
        %4201 = vmatmul.mubr.bf16.gmra.mrb[0].mxu0 %v4022
        %v4202 = vpop.f32.mrb[0].mxu0
        %v4203 = vadd.f32 0.0, %v4202
        %v4204 = vpop.f32.mrb[0].mxu0
        %v4205 = vpop.f32.mrb[0].mxu0
        %v4206 = vadd.f32 0.0, %v4205
        %v4207 = vpop.f32.mrb[0].mxu0
        %4208 = vmatprep.mubr.bf16.mxu0 0
        %4209 = vmatmul.mubr.bf16.gmra.mrb[0].mxu0 %v4025
        %v4210 = vpop.f32.mrb[0].mxu0
        %v4211 = vadd.f32 0.0, %v4210
        %v4212 = vpop.f32.mrb[0].mxu0
        %v4213 = vpop.f32.mrb[0].mxu0
        %v4214 = vadd.f32 0.0, %v4213
        %v4215 = vpop.f32.mrb[0].mxu0
        %4216 = vmatprep.mubr.bf16.mxu0 0
        %4217 = vmatmul.mubr.bf16.gmra.mrb[0].mxu0 %v4028
        %v4218 = vpop.f32.mrb[0].mxu0
        %v4219 = vadd.f32 0.0, %v4218
        %v4220 = vpop.f32.mrb[0].mxu0
        %v4221 = vpop.f32.mrb[0].mxu0
        %v4222 = vadd.f32 0.0, %v4221
        %v4223 = vpop.f32.mrb[0].mxu0
        %4224 = vmatprep.mubr.bf16.mxu0 0
        %4225 = vmatmul.mubr.bf16.gmra.mrb[0].mxu0 %v4031
        %v4226 = vpop.f32.mrb[0].mxu0
        %v4227 = vadd.f32 0.0, %v4226
        %v4228 = vpop.f32.mrb[0].mxu0
        %v4229 = vpop.f32.mrb[0].mxu0
        %v4230 = vadd.f32 0.0, %v4229
        %v4231 = vpop.f32.mrb[0].mxu0
        %4232 = vmatprep.mubr.bf16.mxu0 0
        %4233 = vmatmul.mubr.bf16.gmra.mrb[0].mxu0 %v4034
        %v4234 = vpop.f32.mrb[0].mxu0
        %v4235 = vadd.f32 0.0, %v4234
        %v4236 = vpop.f32.mrb[0].mxu0
        %v4237 = vpop.f32.mrb[0].mxu0
        %v4238 = vadd.f32 0.0, %v4237
        %v4239 = vpop.f32.mrb[0].mxu0
        %4240 = vmatprep.mubr.bf16.mxu0 0
        %4241 = vmatmul.mubr.bf16.gmra.mrb[0].mxu0 %v4037
        %v4242 = vpop.f32.mrb[0].mxu0
        %v4243 = vadd.f32 0.0, %v4242
        %v4244 = vpop.f32.mrb[0].mxu0
        %v4245 = vpop.f32.mrb[0].mxu0
        %v4246 = vadd.f32 0.0, %v4245
        %v4247 = vpop.f32.mrb[0].mxu0
        %4248 = vdwg.mxu0
        %v4265 = vunpack.c.l.b16 %v469
        %v4266 = vunpack.c.h.b16 %v469
        %v4267 = vunpack.c.l.b16 %v470
        %v4268 = vunpack.c.l.b16 %v471
        %v4269 = vunpack.c.h.b16 %v471
        %v4270 = vunpack.c.l.b16 %v472
        %v4271 = vunpack.c.l.b16 %v473
        %v4272 = vunpack.c.h.b16 %v473
        %v4273 = vunpack.c.l.b16 %v474
        %v4274 = vunpack.c.l.b16 %v475
        %v4275 = vunpack.c.h.b16 %v475
        %v4276 = vunpack.c.l.b16 %v476
        %v4277 = vunpack.c.l.b16 %v477
        %v4278 = vunpack.c.h.b16 %v477
        %v4279 = vunpack.c.l.b16 %v478
        %v4280 = vunpack.c.l.b16 %v479
        %v4281 = vunpack.c.h.b16 %v479
        %v4282 = vunpack.c.l.b16 %v480
        %v4283 = vunpack.c.l.b16 %v481
        %v4284 = vunpack.c.h.b16 %v481
        %v4285 = vunpack.c.l.b16 %v482
        %v4286 = vunpack.c.l.b16 %v483
        %v4287 = vunpack.c.h.b16 %v483
        %v4288 = vunpack.c.l.b16 %v484
        %v4289 = vpack.c.b16 %v4268, %v4265
        %v4290 = vpack.c.b16 %v4269, %v4266
        %v4291 = vpack.c.b16 %v4270, %v4267
        %v4292 = vpack.c.b16 %v4274, %v4271
        %v4293 = vpack.c.b16 %v4275, %v4272
        %v4294 = vpack.c.b16 %v4276, %v4273
        %v4295 = vpack.c.b16 %v4280, %v4277
        %v4296 = vpack.c.b16 %v4281, %v4278
        %v4297 = vpack.c.b16 %v4282, %v4279
        %v4298 = vpack.c.b16 %v4286, %v4283
        %v4299 = vpack.c.b16 %v4287, %v4284
        %v4300 = vpack.c.b16 %v4288, %v4285
        %v4314 = vsel %vm3066, %v3461, 0
        %v4317 = vsel %vm3066, %v3462, 0
        %v4320 = vsel %vm3066, %v3463, 0
        %v4323 = vsel %vm3066, %v3464, 0
        %v4326 = vsel %vm3066, %v3465, 0
        %v4329 = vsel %vm3066, %v3466, 0
        %v4332 = vsel %vm3066, %v3467, 0
        %v4335 = vsel %vm3066, %v3468, 0
        %4337 = vmatprep.subr.bf16.mxu0 %v4290
        %4338 = vmatpush1.bf16.msra.mxu0 %v4289
        %4339 = vmatprep.subr.bf16.mxu0 %v4293
        %4340 = vmatpush1.bf16.msra.mxu0 %v4292
        %4341 = vmatprep.subr.bf16.mxu0 %v4296
        %4342 = vmatpush1.bf16.msra.mxu0 %v4295
        %4343 = vmatprep.subr.bf16.mxu0 %v4299
        %4344 = vmatpush1.bf16.msra.mxu0 %v4298
        %4345 = vmatprep.subr.bf16.mxu0 0
        %4346 = vmatpush1.bf16.msra.mxu0 0
        %4347 = vmatprep.subr.bf16.mxu0 0
        %4348 = vmatpush1.bf16.msra.mxu0 0
        %4349 = vmatprep.subr.bf16.mxu0 0
        %4350 = vmatpush1.bf16.msra.mxu0 0
        %4351 = vmatprep.subr.bf16.mxu0 0
        %4352 = vmatpush1.bf16.msra.mxu0 0
        %4353 = vmatprep.subr.bf16.mxu0 0
        %4354 = vmatpush1.bf16.msra.mxu0 0
        %4355 = vmatprep.subr.bf16.mxu0 0
        %4356 = vmatpush1.bf16.msra.mxu0 0
        %4357 = vmatprep.subr.bf16.mxu0 0
        %4358 = vmatpush1.bf16.msra.mxu0 0
        %4359 = vmatprep.subr.bf16.mxu0 0
        %4360 = vmatpush1.bf16.msra.mxu0 0
        %4361 = vmatprep.subr.bf16.mxu0 0
        %4362 = vmatpush1.bf16.msra.mxu0 0
        %4363 = vmatprep.subr.bf16.mxu0 0
        %4364 = vmatpush1.bf16.msra.mxu0 0
        %4365 = vmatprep.subr.bf16.mxu0 0
        %4366 = vmatpush1.bf16.msra.mxu0 0
        %4367 = vmatprep.subr.bf16.mxu0 0
        %4368 = vmatpush1.bf16.msra.mxu0 0
        %4369 = vmatprep.mubr.bf16.mxu0 0
        %4370 = vmatmul.mubr.bf16.gmra.mrb[0].mxu0 %v4314
        %v4371 = vpop.f32.mrb[0].mxu0
        %v4372 = vadd.f32 %v4074, %v4371
        %v4373 = vpop.f32.mrb[0].mxu0
        %v4374 = vadd.f32 %v4076, %v4373
        %v4375 = vpop.f32.mrb[0].mxu0
        %v4376 = vadd.f32 %v4078, %v4375
        %v4377 = vpop.f32.mrb[0].mxu0
        %v4378 = vadd.f32 %v4080, %v4377
        %4379 = vmatprep.mubr.bf16.mxu0 0
        %4380 = vmatmul.mubr.bf16.gmra.mrb[0].mxu0 %v4317
        %v4381 = vpop.f32.mrb[0].mxu0
        %v4382 = vadd.f32 %v4084, %v4381
        %v4383 = vpop.f32.mrb[0].mxu0
        %v4384 = vadd.f32 %v4086, %v4383
        %v4385 = vpop.f32.mrb[0].mxu0
        %v4386 = vadd.f32 %v4088, %v4385
        %v4387 = vpop.f32.mrb[0].mxu0
        %v4388 = vadd.f32 %v4090, %v4387
        %4389 = vmatprep.mubr.bf16.mxu0 0
        %4390 = vmatmul.mubr.bf16.gmra.mrb[0].mxu0 %v4320
        %v4391 = vpop.f32.mrb[0].mxu0
        %v4392 = vadd.f32 %v4094, %v4391
        %v4393 = vpop.f32.mrb[0].mxu0
        %v4394 = vadd.f32 %v4096, %v4393
        %v4395 = vpop.f32.mrb[0].mxu0
        %v4396 = vadd.f32 %v4098, %v4395
        %v4397 = vpop.f32.mrb[0].mxu0
        %v4398 = vadd.f32 %v4100, %v4397
        %4399 = vmatprep.mubr.bf16.mxu0 0
        %4400 = vmatmul.mubr.bf16.gmra.mrb[0].mxu0 %v4323
        %v4401 = vpop.f32.mrb[0].mxu0
        %v4402 = vadd.f32 %v4104, %v4401
        %v4403 = vpop.f32.mrb[0].mxu0
        %v4404 = vadd.f32 %v4106, %v4403
        %v4405 = vpop.f32.mrb[0].mxu0
        %v4406 = vadd.f32 %v4108, %v4405
        %v4407 = vpop.f32.mrb[0].mxu0
        %v4408 = vadd.f32 %v4110, %v4407
        %4409 = vmatprep.mubr.bf16.mxu0 0
        %4410 = vmatmul.mubr.bf16.gmra.mrb[0].mxu0 %v4326
        %v4411 = vpop.f32.mrb[0].mxu0
        %v4412 = vadd.f32 %v4114, %v4411
        %v4413 = vpop.f32.mrb[0].mxu0
        %v4414 = vadd.f32 %v4116, %v4413
        %v4415 = vpop.f32.mrb[0].mxu0
        %v4416 = vadd.f32 %v4118, %v4415
        %v4417 = vpop.f32.mrb[0].mxu0
        %v4418 = vadd.f32 %v4120, %v4417
        %4419 = vmatprep.mubr.bf16.mxu0 0
        %4420 = vmatmul.mubr.bf16.gmra.mrb[0].mxu0 %v4329
        %v4421 = vpop.f32.mrb[0].mxu0
        %v4422 = vadd.f32 %v4124, %v4421
        %v4423 = vpop.f32.mrb[0].mxu0
        %v4424 = vadd.f32 %v4126, %v4423
        %v4425 = vpop.f32.mrb[0].mxu0
        %v4426 = vadd.f32 %v4128, %v4425
        %v4427 = vpop.f32.mrb[0].mxu0
        %v4428 = vadd.f32 %v4130, %v4427
        %4429 = vmatprep.mubr.bf16.mxu0 0
        %4430 = vmatmul.mubr.bf16.gmra.mrb[0].mxu0 %v4332
        %v4431 = vpop.f32.mrb[0].mxu0
        %v4432 = vadd.f32 %v4134, %v4431
        %v4433 = vpop.f32.mrb[0].mxu0
        %v4434 = vadd.f32 %v4136, %v4433
        %v4435 = vpop.f32.mrb[0].mxu0
        %v4436 = vadd.f32 %v4138, %v4435
        %v4437 = vpop.f32.mrb[0].mxu0
        %v4438 = vadd.f32 %v4140, %v4437
        %4439 = vmatprep.mubr.bf16.mxu0 0
        %4440 = vmatmul.mubr.bf16.gmra.mrb[0].mxu0 %v4335
        %v4441 = vpop.f32.mrb[0].mxu0
        %v4442 = vadd.f32 %v4144, %v4441
        %v4443 = vpop.f32.mrb[0].mxu0
        %v4444 = vadd.f32 %v4146, %v4443
        %v4445 = vpop.f32.mrb[0].mxu0
        %v4446 = vadd.f32 %v4148, %v4445
        %v4447 = vpop.f32.mrb[0].mxu0
        %v4448 = vadd.f32 %v4150, %v4447
        %4449 = vdwg.mxu0
        %4450 = vmatprep.subr.bf16.mxu0 0
        %4451 = vmatpush1.bf16.msra.mxu0 %v4291
        %4452 = vmatprep.subr.bf16.mxu0 0
        %4453 = vmatpush1.bf16.msra.mxu0 %v4294
        %4454 = vmatprep.subr.bf16.mxu0 0
        %4455 = vmatpush1.bf16.msra.mxu0 %v4297
        %4456 = vmatprep.subr.bf16.mxu0 0
        %4457 = vmatpush1.bf16.msra.mxu0 %v4300
        %4458 = vmatprep.subr.bf16.mxu0 0
        %4459 = vmatpush1.bf16.msra.mxu0 0
        %4460 = vmatprep.subr.bf16.mxu0 0
        %4461 = vmatpush1.bf16.msra.mxu0 0
        %4462 = vmatprep.subr.bf16.mxu0 0
        %4463 = vmatpush1.bf16.msra.mxu0 0
        %4464 = vmatprep.subr.bf16.mxu0 0
        %4465 = vmatpush1.bf16.msra.mxu0 0
        %4466 = vmatprep.subr.bf16.mxu0 0
        %4467 = vmatpush1.bf16.msra.mxu0 0
        %4468 = vmatprep.subr.bf16.mxu0 0
        %4469 = vmatpush1.bf16.msra.mxu0 0
        %4470 = vmatprep.subr.bf16.mxu0 0
        %4471 = vmatpush1.bf16.msra.mxu0 0
        %4472 = vmatprep.subr.bf16.mxu0 0
        %4473 = vmatpush1.bf16.msra.mxu0 0
        %4474 = vmatprep.subr.bf16.mxu0 0
        %4475 = vmatpush1.bf16.msra.mxu0 0
        %4476 = vmatprep.subr.bf16.mxu0 0
        %4477 = vmatpush1.bf16.msra.mxu0 0
        %4478 = vmatprep.subr.bf16.mxu0 0
        %4479 = vmatpush1.bf16.msra.mxu0 0
        %4480 = vmatprep.subr.bf16.mxu0 0
        %4481 = vmatpush1.bf16.msra.mxu0 0
        %4482 = vmatprep.mubr.bf16.mxu0 0
        %4483 = vmatmul.mubr.bf16.gmra.mrb[0].mxu0 %v4314
        %v4484 = vpop.f32.mrb[0].mxu0
        %v4485 = vadd.f32 %v4187, %v4484
        %v4486 = vpop.f32.mrb[0].mxu0
        %v4487 = vpop.f32.mrb[0].mxu0
        %v4488 = vadd.f32 %v4190, %v4487
        %v4489 = vpop.f32.mrb[0].mxu0
        %4490 = vmatprep.mubr.bf16.mxu0 0
        %4491 = vmatmul.mubr.bf16.gmra.mrb[0].mxu0 %v4317
        %v4492 = vpop.f32.mrb[0].mxu0
        %v4493 = vadd.f32 %v4195, %v4492
        %v4494 = vpop.f32.mrb[0].mxu0
        %v4495 = vpop.f32.mrb[0].mxu0
        %v4496 = vadd.f32 %v4198, %v4495
        %v4497 = vpop.f32.mrb[0].mxu0
        %4498 = vmatprep.mubr.bf16.mxu0 0
        %4499 = vmatmul.mubr.bf16.gmra.mrb[0].mxu0 %v4320
        %v4500 = vpop.f32.mrb[0].mxu0
        %v4501 = vadd.f32 %v4203, %v4500
        %v4502 = vpop.f32.mrb[0].mxu0
        %v4503 = vpop.f32.mrb[0].mxu0
        %v4504 = vadd.f32 %v4206, %v4503
        %v4505 = vpop.f32.mrb[0].mxu0
        %4506 = vmatprep.mubr.bf16.mxu0 0
        %4507 = vmatmul.mubr.bf16.gmra.mrb[0].mxu0 %v4323
        %v4508 = vpop.f32.mrb[0].mxu0
        %v4509 = vadd.f32 %v4211, %v4508
        %v4510 = vpop.f32.mrb[0].mxu0
        %v4511 = vpop.f32.mrb[0].mxu0
        %v4512 = vadd.f32 %v4214, %v4511
        %v4513 = vpop.f32.mrb[0].mxu0
        %4514 = vmatprep.mubr.bf16.mxu0 0
        %4515 = vmatmul.mubr.bf16.gmra.mrb[0].mxu0 %v4326
        %v4516 = vpop.f32.mrb[0].mxu0
        %v4517 = vadd.f32 %v4219, %v4516
        %v4518 = vpop.f32.mrb[0].mxu0
        %v4519 = vpop.f32.mrb[0].mxu0
        %v4520 = vadd.f32 %v4222, %v4519
        %v4521 = vpop.f32.mrb[0].mxu0
        %4522 = vmatprep.mubr.bf16.mxu0 0
        %4523 = vmatmul.mubr.bf16.gmra.mrb[0].mxu0 %v4329
        %v4524 = vpop.f32.mrb[0].mxu0
        %v4525 = vadd.f32 %v4227, %v4524
        %v4526 = vpop.f32.mrb[0].mxu0
        %v4527 = vpop.f32.mrb[0].mxu0
        %v4528 = vadd.f32 %v4230, %v4527
        %v4529 = vpop.f32.mrb[0].mxu0
        %4530 = vmatprep.mubr.bf16.mxu0 0
        %4531 = vmatmul.mubr.bf16.gmra.mrb[0].mxu0 %v4332
        %v4532 = vpop.f32.mrb[0].mxu0
        %v4533 = vadd.f32 %v4235, %v4532
        %v4534 = vpop.f32.mrb[0].mxu0
        %v4535 = vpop.f32.mrb[0].mxu0
        %v4536 = vadd.f32 %v4238, %v4535
        %v4537 = vpop.f32.mrb[0].mxu0
        %4538 = vmatprep.mubr.bf16.mxu0 0
        %4539 = vmatmul.mubr.bf16.gmra.mrb[0].mxu0 %v4335
        %v4540 = vpop.f32.mrb[0].mxu0
        %v4541 = vadd.f32 %v4243, %v4540
        %v4542 = vpop.f32.mrb[0].mxu0
        %v4543 = vpop.f32.mrb[0].mxu0
        %v4544 = vadd.f32 %v4246, %v4543
        %v4545 = vpop.f32.mrb[0].mxu0
        %4546 = vdwg.mxu0
        %v4548 = vsel %vm3066, %v2944, 0
        %v4551 = vsel %vm3066, %v2947, 0
        %v4554 = vsel %vm3066, %v2950, 0
        %v4557 = vsel %vm3066, %v2953, 0
        %v4560 = vsel %vm3066, %v2956, 0
        %v4563 = vsel %vm3066, %v2959, 0
        %v4566 = vsel %vm3066, %v2962, 0
        %v4569 = vsel %vm3066, %v2965, 0
        %v4572 = vsel %vm3066, %v2968, 0
        %v4575 = vsel %vm3066, %v2971, 0
        %v4578 = vsel %vm3066, %v2974, 0
        %v4581 = vsel %vm3066, %v2977, 0
        %v4584 = vsel %vm3066, %v2980, 0
        %v4587 = vsel %vm3066, %v2983, 0
        %v4590 = vsel %vm3066, %v2986, 0
        %v4593 = vsel %vm3066, %v2989, 0
        %4595 = vmatprep.subr.bf16.mxu0 0
        %4596 = vmatpush1.bf16.xpose.msra.mxu0 %v4572
        %4597 = vmatprep.subr.bf16.mxu0 0
        %4598 = vmatpush1.bf16.xpose.msra.mxu0 %v4575
        %4599 = vmatprep.subr.bf16.mxu0 0
        %4600 = vmatpush1.bf16.xpose.msra.mxu0 %v4578
        %4601 = vmatprep.subr.bf16.mxu0 0
        %4602 = vmatpush1.bf16.xpose.msra.mxu0 %v4581
        %4603 = vmatprep.subr.bf16.mxu0 0
        %4604 = vmatpush1.bf16.xpose.msra.mxu0 %v4584
        %4605 = vmatprep.subr.bf16.mxu0 0
        %4606 = vmatpush1.bf16.xpose.msra.mxu0 %v4587
        %4607 = vmatprep.subr.bf16.mxu0 0
        %4608 = vmatpush1.bf16.xpose.msra.mxu0 %v4590
        %4609 = vmatprep.subr.bf16.mxu0 0
        %4610 = vmatpush1.bf16.xpose.msra.mxu0 %v4593
        %4611 = vmatprep.subr.bf16.mxu0 0
        %4612 = vmatpush1.bf16.xpose.msra.mxu0 0
        %4613 = vmatprep.subr.bf16.mxu0 0
        %4614 = vmatpush1.bf16.xpose.msra.mxu0 0
        %4615 = vmatprep.subr.bf16.mxu0 0
        %4616 = vmatpush1.bf16.xpose.msra.mxu0 0
        %4617 = vmatprep.subr.bf16.mxu0 0
        %4618 = vmatpush1.bf16.xpose.msra.mxu0 0
        %4619 = vmatprep.subr.bf16.mxu0 0
        %4620 = vmatpush1.bf16.xpose.msra.mxu0 0
        %4621 = vmatprep.subr.bf16.mxu0 0
        %4622 = vmatpush1.bf16.xpose.msra.mxu0 0
        %4623 = vmatprep.subr.bf16.mxu0 0
        %4624 = vmatpush1.bf16.xpose.msra.mxu0 0
        %4625 = vmatprep.subr.bf16.mxu0 0
        %4626 = vmatpush1.bf16.xpose.msra.mxu0 0
        %4627 = vmatprep.mubr.bf16.mxu0 0
        %4628 = vmatmul.mubr.bf16.gmra.mrb[0].mxu0 %v4548
        %v4629 = vpop.f32.mrb[0].mxu0
        %v4630 = vadd.f32 %v3050, %v4629
        %v4631 = vpop.f32.mrb[0].mxu0
        %v4632 = vpop.f32.mrb[0].mxu0
        %v4633 = vadd.f32 %v3051, %v4632
        %v4634 = vpop.f32.mrb[0].mxu0
        %4635 = vmatprep.mubr.bf16.mxu0 0
        %4636 = vmatmul.mubr.bf16.gmra.mrb[0].mxu0 %v4551
        %v4637 = vpop.f32.mrb[0].mxu0
        %v4638 = vadd.f32 %v3052, %v4637
        %v4639 = vpop.f32.mrb[0].mxu0
        %v4640 = vpop.f32.mrb[0].mxu0
        %v4641 = vadd.f32 %v3053, %v4640
        %v4642 = vpop.f32.mrb[0].mxu0
        %4643 = vmatprep.mubr.bf16.mxu0 0
        %4644 = vmatmul.mubr.bf16.gmra.mrb[0].mxu0 %v4554
        %v4645 = vpop.f32.mrb[0].mxu0
        %v4646 = vadd.f32 %v3054, %v4645
        %v4647 = vpop.f32.mrb[0].mxu0
        %v4648 = vpop.f32.mrb[0].mxu0
        %v4649 = vadd.f32 %v3055, %v4648
        %v4650 = vpop.f32.mrb[0].mxu0
        %4651 = vmatprep.mubr.bf16.mxu0 0
        %4652 = vmatmul.mubr.bf16.gmra.mrb[0].mxu0 %v4557
        %v4653 = vpop.f32.mrb[0].mxu0
        %v4654 = vadd.f32 %v3056, %v4653
        %v4655 = vpop.f32.mrb[0].mxu0
        %v4656 = vpop.f32.mrb[0].mxu0
        %v4657 = vadd.f32 %v3057, %v4656
        %v4658 = vpop.f32.mrb[0].mxu0
        %4659 = vmatprep.mubr.bf16.mxu0 0
        %4660 = vmatmul.mubr.bf16.gmra.mrb[0].mxu0 %v4560
        %v4661 = vpop.f32.mrb[0].mxu0
        %v4662 = vadd.f32 %v3058, %v4661
        %v4663 = vpop.f32.mrb[0].mxu0
        %v4664 = vpop.f32.mrb[0].mxu0
        %v4665 = vadd.f32 %v3059, %v4664
        %v4666 = vpop.f32.mrb[0].mxu0
        %4667 = vmatprep.mubr.bf16.mxu0 0
        %4668 = vmatmul.mubr.bf16.gmra.mrb[0].mxu0 %v4563
        %v4669 = vpop.f32.mrb[0].mxu0
        %v4670 = vadd.f32 %v3060, %v4669
        %v4671 = vpop.f32.mrb[0].mxu0
        %v4672 = vpop.f32.mrb[0].mxu0
        %v4673 = vadd.f32 %v3061, %v4672
        %v4674 = vpop.f32.mrb[0].mxu0
        %4675 = vmatprep.mubr.bf16.mxu0 0
        %4676 = vmatmul.mubr.bf16.gmra.mrb[0].mxu0 %v4566
        %v4677 = vpop.f32.mrb[0].mxu0
        %v4678 = vadd.f32 %v3062, %v4677
        %v4679 = vpop.f32.mrb[0].mxu0
        %v4680 = vpop.f32.mrb[0].mxu0
        %v4681 = vadd.f32 %v3063, %v4680
        %v4682 = vpop.f32.mrb[0].mxu0
        %4683 = vmatprep.mubr.bf16.mxu0 0
        %4684 = vmatmul.mubr.bf16.gmra.mrb[0].mxu0 %v4569
        %v4685 = vpop.f32.mrb[0].mxu0
        %v4686 = vadd.f32 %v3064, %v4685
        %v4687 = vpop.f32.mrb[0].mxu0
        %v4688 = vpop.f32.mrb[0].mxu0
        %v4689 = vadd.f32 %v3065, %v4688
        %v4690 = vpop.f32.mrb[0].mxu0
        %4691 = vdwg.mxu0
        %4692 = vmax.xlane.f32.xlu0 %v4630
        %v4693 = vpop.xlane.xlu0 %4692
        %4694 = vmax.xlane.f32.xlu0 %v4633
        %v4695 = vpop.xlane.xlu0 %4694
        %4696 = vmax.xlane.f32.xlu0 %v4638
        %v4697 = vpop.xlane.xlu0 %4696
        %4698 = vmax.xlane.f32.xlu0 %v4641
        %v4699 = vpop.xlane.xlu0 %4698
        %4700 = vmax.xlane.f32.xlu0 %v4646
        %v4701 = vpop.xlane.xlu0 %4700
        %4702 = vmax.xlane.f32.xlu0 %v4649
        %v4703 = vpop.xlane.xlu0 %4702
        %4704 = vmax.xlane.f32.xlu0 %v4654
        %v4705 = vpop.xlane.xlu0 %4704
        %4706 = vmax.xlane.f32.xlu0 %v4657
        %v4707 = vpop.xlane.xlu0 %4706
        %4708 = vmax.xlane.f32.xlu0 %v4662
        %v4709 = vpop.xlane.xlu0 %4708
        %4710 = vmax.xlane.f32.xlu0 %v4665
        %v4711 = vpop.xlane.xlu0 %4710
        %4712 = vmax.xlane.f32.xlu0 %v4670
        %v4713 = vpop.xlane.xlu0 %4712
        %4714 = vmax.xlane.f32.xlu0 %v4673
        %v4715 = vpop.xlane.xlu0 %4714
        %4716 = vmax.xlane.f32.xlu0 %v4678
        %v4717 = vpop.xlane.xlu0 %4716
        %4718 = vmax.xlane.f32.xlu0 %v4681
        %v4719 = vpop.xlane.xlu0 %4718
        %4720 = vmax.xlane.f32.xlu0 %v4686
        %v4721 = vpop.xlane.xlu0 %4720
        %4722 = vmax.xlane.f32.xlu0 %v4689
        %v4723 = vpop.xlane.xlu0 %4722
        %v4724 = vsub.f32 %v4630, %v4693
        %v4725 = vsub.f32 %v4633, %v4695
        %v4726 = vsub.f32 %v4638, %v4697
        %v4727 = vsub.f32 %v4641, %v4699
        %v4728 = vsub.f32 %v4646, %v4701
        %v4729 = vsub.f32 %v4649, %v4703
        %v4730 = vsub.f32 %v4654, %v4705
        %v4731 = vsub.f32 %v4657, %v4707
        %v4732 = vsub.f32 %v4662, %v4709
        %v4733 = vsub.f32 %v4665, %v4711
        %v4734 = vsub.f32 %v4670, %v4713
        %v4735 = vsub.f32 %v4673, %v4715
        %v4736 = vsub.f32 %v4678, %v4717
        %v4737 = vsub.f32 %v4681, %v4719
        %v4738 = vsub.f32 %v4686, %v4721
        %v4739 = vsub.f32 %v4689, %v4723
        %v4740 = vmul.f32 %v4724, 1.442695
        %v4741 = vpow.pop %v4740
        %v4742 = vmul.f32 %v4725, 1.442695
        %v4743 = vpow.pop %v4742
        %v4744 = vmul.f32 %v4726, 1.442695
        %v4745 = vpow.pop %v4744
        %v4746 = vmul.f32 %v4727, 1.442695
        %v4747 = vpow.pop %v4746
        %v4748 = vmul.f32 %v4728, 1.442695
        %v4749 = vpow.pop %v4748
        %v4750 = vmul.f32 %v4729, 1.442695
        %v4751 = vpow.pop %v4750
        %v4752 = vmul.f32 %v4730, 1.442695
        %v4753 = vpow.pop %v4752
        %v4754 = vmul.f32 %v4731, 1.442695
        %v4755 = vpow.pop %v4754
        %v4756 = vmul.f32 %v4732, 1.442695
        %v4757 = vpow.pop %v4756
        %v4758 = vmul.f32 %v4733, 1.442695
        %v4759 = vpow.pop %v4758
        %v4760 = vmul.f32 %v4734, 1.442695
        %v4761 = vpow.pop %v4760
        %v4762 = vmul.f32 %v4735, 1.442695
        %v4763 = vpow.pop %v4762
        %v4764 = vmul.f32 %v4736, 1.442695
        %v4765 = vpow.pop %v4764
        %v4766 = vmul.f32 %v4737, 1.442695
        %v4767 = vpow.pop %v4766
        %v4768 = vmul.f32 %v4738, 1.442695
        %v4769 = vpow.pop %v4768
        %v4770 = vmul.f32 %v4739, 1.442695
        %v4771 = vpow.pop %v4770
        %4772 = vadd.xlane.f32.xlu0 %v4741
        %v4773 = vpop.xlane.xlu0 %4772
        %4774 = vadd.xlane.f32.xlu0 %v4743
        %v4775 = vpop.xlane.xlu0 %4774
        %4776 = vadd.xlane.f32.xlu0 %v4745
        %v4777 = vpop.xlane.xlu0 %4776
        %4778 = vadd.xlane.f32.xlu0 %v4747
        %v4779 = vpop.xlane.xlu0 %4778
        %4780 = vadd.xlane.f32.xlu0 %v4749
        %v4781 = vpop.xlane.xlu0 %4780
        %4782 = vadd.xlane.f32.xlu0 %v4751
        %v4783 = vpop.xlane.xlu0 %4782
        %4784 = vadd.xlane.f32.xlu0 %v4753
        %v4785 = vpop.xlane.xlu0 %4784
        %4786 = vadd.xlane.f32.xlu0 %v4755
        %v4787 = vpop.xlane.xlu0 %4786
        %4788 = vadd.xlane.f32.xlu0 %v4757
        %v4789 = vpop.xlane.xlu0 %4788
        %4790 = vadd.xlane.f32.xlu0 %v4759
        %v4791 = vpop.xlane.xlu0 %4790
        %4792 = vadd.xlane.f32.xlu0 %v4761
        %v4793 = vpop.xlane.xlu0 %4792
        %4794 = vadd.xlane.f32.xlu0 %v4763
        %v4795 = vpop.xlane.xlu0 %4794
        %4796 = vadd.xlane.f32.xlu0 %v4765
        %v4797 = vpop.xlane.xlu0 %4796
        %4798 = vadd.xlane.f32.xlu0 %v4767
        %v4799 = vpop.xlane.xlu0 %4798
        %4800 = vadd.xlane.f32.xlu0 %v4769
        %v4801 = vpop.xlane.xlu0 %4800
        %4802 = vadd.xlane.f32.xlu0 %v4771
        %v4803 = vpop.xlane.xlu0 %4802
        %v4804 = vrcp.pop %v4773
        %v4805 = vrcp.pop %v4775
        %v4806 = vrcp.pop %v4777
        %v4807 = vrcp.pop %v4779
        %v4808 = vrcp.pop %v4781
        %v4809 = vrcp.pop %v4783
        %v4810 = vrcp.pop %v4785
        %v4811 = vrcp.pop %v4787
        %v4812 = vrcp.pop %v4789
        %v4813 = vrcp.pop %v4791
        %v4814 = vrcp.pop %v4793
        %v4815 = vrcp.pop %v4795
        %v4816 = vrcp.pop %v4797
        %v4817 = vrcp.pop %v4799
        %v4818 = vrcp.pop %v4801
        %v4819 = vrcp.pop %v4803
        %v4820 = vmul.f32 %v4741, %v4804
        %v4821 = vmul.f32 %v4743, %v4805
        %v4822 = vmul.f32 %v4745, %v4806
        %v4823 = vmul.f32 %v4747, %v4807
        %v4824 = vmul.f32 %v4749, %v4808
        %v4825 = vmul.f32 %v4751, %v4809
        %v4826 = vmul.f32 %v4753, %v4810
        %v4827 = vmul.f32 %v4755, %v4811
        %v4828 = vmul.f32 %v4757, %v4812
        %v4829 = vmul.f32 %v4759, %v4813
        %v4830 = vmul.f32 %v4761, %v4814
        %v4831 = vmul.f32 %v4763, %v4815
        %v4832 = vmul.f32 %v4765, %v4816
        %v4833 = vmul.f32 %v4767, %v4817
        %v4834 = vmul.f32 %v4769, %v4818
        %v4835 = vmul.f32 %v4771, %v4819
        %v4836 = vpack.c.bf16 %v4821, %v4820
        %v4837 = vpack.c.bf16 %v4823, %v4822
        %v4838 = vpack.c.bf16 %v4825, %v4824
        %v4839 = vpack.c.bf16 %v4827, %v4826
        %v4840 = vpack.c.bf16 %v4829, %v4828
        %v4841 = vpack.c.bf16 %v4831, %v4830
        %v4842 = vpack.c.bf16 %v4833, %v4832
        %v4843 = vpack.c.bf16 %v4835, %v4834
        %4844 = vmatprep.subr.bf16.mxu0 0
        %4845 = vmatpush1.bf16.msra.mxu0 %v2992
        %4846 = vmatprep.subr.bf16.mxu0 0
        %4847 = vmatpush1.bf16.msra.mxu0 %v2995
        %4848 = vmatprep.subr.bf16.mxu0 0
        %4849 = vmatpush1.bf16.msra.mxu0 %v2998
        %4850 = vmatprep.subr.bf16.mxu0 0
        %4851 = vmatpush1.bf16.msra.mxu0 %v3001
        %4852 = vmatprep.subr.bf16.mxu0 0
        %4853 = vmatpush1.bf16.msra.mxu0 %v3004
        %4854 = vmatprep.subr.bf16.mxu0 0
        %4855 = vmatpush1.bf16.msra.mxu0 %v3007
        %4856 = vmatprep.subr.bf16.mxu0 0
        %4857 = vmatpush1.bf16.msra.mxu0 %v3010
        %4858 = vmatprep.subr.bf16.mxu0 0
        %4859 = vmatpush1.bf16.msra.mxu0 %v3013
        %4860 = vmatprep.subr.bf16.mxu0 0
        %4861 = vmatpush1.bf16.msra.mxu0 0
        %4862 = vmatprep.subr.bf16.mxu0 0
        %4863 = vmatpush1.bf16.msra.mxu0 0
        %4864 = vmatprep.subr.bf16.mxu0 0
        %4865 = vmatpush1.bf16.msra.mxu0 0
        %4866 = vmatprep.subr.bf16.mxu0 0
        %4867 = vmatpush1.bf16.msra.mxu0 0
        %4868 = vmatprep.subr.bf16.mxu0 0
        %4869 = vmatpush1.bf16.msra.mxu0 0
        %4870 = vmatprep.subr.bf16.mxu0 0
        %4871 = vmatpush1.bf16.msra.mxu0 0
        %4872 = vmatprep.subr.bf16.mxu0 0
        %4873 = vmatpush1.bf16.msra.mxu0 0
        %4874 = vmatprep.subr.bf16.mxu0 0
        %4875 = vmatpush1.bf16.msra.mxu0 0
        %4876 = vmatprep.mubr.bf16.mxu0 0
        %4877 = vmatmul.mubr.bf16.gmra.mrb[0].mxu0 %v4836
        %v4878 = vpop.f32.mrb[0].mxu0
        %v4879 = vadd.f32 0.0, %v4878
        %v4880 = vpop.f32.mrb[0].mxu0
        %v4881 = vpop.f32.mrb[0].mxu0
        %v4882 = vadd.f32 0.0, %v4881
        %v4883 = vpop.f32.mrb[0].mxu0
        %4884 = vmatprep.mubr.bf16.mxu0 0
        %4885 = vmatmul.mubr.bf16.gmra.mrb[0].mxu0 %v4837
        %v4886 = vpop.f32.mrb[0].mxu0
        %v4887 = vadd.f32 0.0, %v4886
        %v4888 = vpop.f32.mrb[0].mxu0
        %v4889 = vpop.f32.mrb[0].mxu0
        %v4890 = vadd.f32 0.0, %v4889
        %v4891 = vpop.f32.mrb[0].mxu0
        %4892 = vmatprep.mubr.bf16.mxu0 0
        %4893 = vmatmul.mubr.bf16.gmra.mrb[0].mxu0 %v4838
        %v4894 = vpop.f32.mrb[0].mxu0
        %v4895 = vadd.f32 0.0, %v4894
        %v4896 = vpop.f32.mrb[0].mxu0
        %v4897 = vpop.f32.mrb[0].mxu0
        %v4898 = vadd.f32 0.0, %v4897
        %v4899 = vpop.f32.mrb[0].mxu0
        %4900 = vmatprep.mubr.bf16.mxu0 0
        %4901 = vmatmul.mubr.bf16.gmra.mrb[0].mxu0 %v4839
        %v4902 = vpop.f32.mrb[0].mxu0
        %v4903 = vadd.f32 0.0, %v4902
        %v4904 = vpop.f32.mrb[0].mxu0
        %v4905 = vpop.f32.mrb[0].mxu0
        %v4906 = vadd.f32 0.0, %v4905
        %v4907 = vpop.f32.mrb[0].mxu0
        %4908 = vmatprep.mubr.bf16.mxu0 0
        %4909 = vmatmul.mubr.bf16.gmra.mrb[0].mxu0 %v4840
        %v4910 = vpop.f32.mrb[0].mxu0
        %v4911 = vadd.f32 0.0, %v4910
        %v4912 = vpop.f32.mrb[0].mxu0
        %v4913 = vpop.f32.mrb[0].mxu0
        %v4914 = vadd.f32 0.0, %v4913
        %v4915 = vpop.f32.mrb[0].mxu0
        %4916 = vmatprep.mubr.bf16.mxu0 0
        %4917 = vmatmul.mubr.bf16.gmra.mrb[0].mxu0 %v4841
        %v4918 = vpop.f32.mrb[0].mxu0
        %v4919 = vadd.f32 0.0, %v4918
        %v4920 = vpop.f32.mrb[0].mxu0
        %v4921 = vpop.f32.mrb[0].mxu0
        %v4922 = vadd.f32 0.0, %v4921
        %v4923 = vpop.f32.mrb[0].mxu0
        %4924 = vmatprep.mubr.bf16.mxu0 0
        %4925 = vmatmul.mubr.bf16.gmra.mrb[0].mxu0 %v4842
        %v4926 = vpop.f32.mrb[0].mxu0
        %v4927 = vadd.f32 0.0, %v4926
        %v4928 = vpop.f32.mrb[0].mxu0
        %v4929 = vpop.f32.mrb[0].mxu0
        %v4930 = vadd.f32 0.0, %v4929
        %v4931 = vpop.f32.mrb[0].mxu0
        %4932 = vmatprep.mubr.bf16.mxu0 0
        %4933 = vmatmul.mubr.bf16.gmra.mrb[0].mxu0 %v4843
        %v4934 = vpop.f32.mrb[0].mxu0
        %v4935 = vadd.f32 0.0, %v4934
        %v4936 = vpop.f32.mrb[0].mxu0
        %v4937 = vpop.f32.mrb[0].mxu0
        %v4938 = vadd.f32 0.0, %v4937
        %v4939 = vpop.f32.mrb[0].mxu0
        %4940 = vdwg.mxu0
        %v4941 = vpack.c.bf16 %v4882, %v4879
        %v4942 = vpack.c.bf16 %v4890, %v4887
        %v4943 = vpack.c.bf16 %v4898, %v4895
        %v4944 = vpack.c.bf16 %v4906, %v4903
        %v4945 = vpack.c.bf16 %v4914, %v4911
        %v4946 = vpack.c.bf16 %v4922, %v4919
        %v4947 = vpack.c.bf16 %v4930, %v4927
        %v4948 = vpack.c.bf16 %v4938, %v4935
        %v4965 = vunpack.c.l.b16 %v501
        %v4966 = vunpack.c.h.b16 %v501
        %v4967 = vunpack.c.l.b16 %v502
        %v4968 = vunpack.c.l.b16 %v503
        %v4969 = vunpack.c.h.b16 %v503
        %v4970 = vunpack.c.l.b16 %v504
        %v4971 = vunpack.c.l.b16 %v505
        %v4972 = vunpack.c.h.b16 %v505
        %v4973 = vunpack.c.l.b16 %v506
        %v4974 = vunpack.c.l.b16 %v507
        %v4975 = vunpack.c.h.b16 %v507
        %v4976 = vunpack.c.l.b16 %v508
        %v4977 = vunpack.c.l.b16 %v509
        %v4978 = vunpack.c.h.b16 %v509
        %v4979 = vunpack.c.l.b16 %v510
        %v4980 = vunpack.c.l.b16 %v511
        %v4981 = vunpack.c.h.b16 %v511
        %v4982 = vunpack.c.l.b16 %v512
        %v4983 = vunpack.c.l.b16 %v513
        %v4984 = vunpack.c.h.b16 %v513
        %v4985 = vunpack.c.l.b16 %v514
        %v4986 = vunpack.c.l.b16 %v515
        %v4987 = vunpack.c.h.b16 %v515
        %v4988 = vunpack.c.l.b16 %v516
        %v4989 = vpack.c.b16 %v4968, %v4965
        %v4990 = vpack.c.b16 %v4969, %v4966
        %v4991 = vpack.c.b16 %v4970, %v4967
        %v4992 = vpack.c.b16 %v4974, %v4971
        %v4993 = vpack.c.b16 %v4975, %v4972
        %v4994 = vpack.c.b16 %v4976, %v4973
        %v4995 = vpack.c.b16 %v4980, %v4977
        %v4996 = vpack.c.b16 %v4981, %v4978
        %v4997 = vpack.c.b16 %v4982, %v4979
        %v4998 = vpack.c.b16 %v4986, %v4983
        %v4999 = vpack.c.b16 %v4987, %v4984
        %v5000 = vpack.c.b16 %v4988, %v4985
        %v5014 = vsel %vm3066, %v4941, 0
        %v5017 = vsel %vm3066, %v4942, 0
        %v5020 = vsel %vm3066, %v4943, 0
        %v5023 = vsel %vm3066, %v4944, 0
        %v5026 = vsel %vm3066, %v4945, 0
        %v5029 = vsel %vm3066, %v4946, 0
        %v5032 = vsel %vm3066, %v4947, 0
        %v5035 = vsel %vm3066, %v4948, 0
        %5037 = vmatprep.subr.bf16.mxu0 %v4990
        %5038 = vmatpush1.bf16.msra.mxu0 %v4989
        %5039 = vmatprep.subr.bf16.mxu0 %v4993
        %5040 = vmatpush1.bf16.msra.mxu0 %v4992
        %5041 = vmatprep.subr.bf16.mxu0 %v4996
        %5042 = vmatpush1.bf16.msra.mxu0 %v4995
        %5043 = vmatprep.subr.bf16.mxu0 %v4999
        %5044 = vmatpush1.bf16.msra.mxu0 %v4998
        %5045 = vmatprep.subr.bf16.mxu0 0
        %5046 = vmatpush1.bf16.msra.mxu0 0
        %5047 = vmatprep.subr.bf16.mxu0 0
        %5048 = vmatpush1.bf16.msra.mxu0 0
        %5049 = vmatprep.subr.bf16.mxu0 0
        %5050 = vmatpush1.bf16.msra.mxu0 0
        %5051 = vmatprep.subr.bf16.mxu0 0
        %5052 = vmatpush1.bf16.msra.mxu0 0
        %5053 = vmatprep.subr.bf16.mxu0 0
        %5054 = vmatpush1.bf16.msra.mxu0 0
        %5055 = vmatprep.subr.bf16.mxu0 0
        %5056 = vmatpush1.bf16.msra.mxu0 0
        %5057 = vmatprep.subr.bf16.mxu0 0
        %5058 = vmatpush1.bf16.msra.mxu0 0
        %5059 = vmatprep.subr.bf16.mxu0 0
        %5060 = vmatpush1.bf16.msra.mxu0 0
        %5061 = vmatprep.subr.bf16.mxu0 0
        %5062 = vmatpush1.bf16.msra.mxu0 0
        %5063 = vmatprep.subr.bf16.mxu0 0
        %5064 = vmatpush1.bf16.msra.mxu0 0
        %5065 = vmatprep.subr.bf16.mxu0 0
        %5066 = vmatpush1.bf16.msra.mxu0 0
        %5067 = vmatprep.subr.bf16.mxu0 0
        %5068 = vmatpush1.bf16.msra.mxu0 0
        %5069 = vmatprep.mubr.bf16.mxu0 0
        %5070 = vmatmul.mubr.bf16.gmra.mrb[0].mxu0 %v5014
        %v5071 = vpop.f32.mrb[0].mxu0
        %v5072 = vadd.f32 0.0, %v5071
        %v5073 = vpop.f32.mrb[0].mxu0
        %v5074 = vadd.f32 0.0, %v5073
        %v5075 = vpop.f32.mrb[0].mxu0
        %v5076 = vadd.f32 0.0, %v5075
        %v5077 = vpop.f32.mrb[0].mxu0
        %v5078 = vadd.f32 0.0, %v5077
        %5079 = vmatprep.mubr.bf16.mxu0 0
        %5080 = vmatmul.mubr.bf16.gmra.mrb[0].mxu0 %v5017
        %v5081 = vpop.f32.mrb[0].mxu0
        %v5082 = vadd.f32 0.0, %v5081
        %v5083 = vpop.f32.mrb[0].mxu0
        %v5084 = vadd.f32 0.0, %v5083
        %v5085 = vpop.f32.mrb[0].mxu0
        %v5086 = vadd.f32 0.0, %v5085
        %v5087 = vpop.f32.mrb[0].mxu0
        %v5088 = vadd.f32 0.0, %v5087
        %5089 = vmatprep.mubr.bf16.mxu0 0
        %5090 = vmatmul.mubr.bf16.gmra.mrb[0].mxu0 %v5020
        %v5091 = vpop.f32.mrb[0].mxu0
        %v5092 = vadd.f32 0.0, %v5091
        %v5093 = vpop.f32.mrb[0].mxu0
        %v5094 = vadd.f32 0.0, %v5093
        %v5095 = vpop.f32.mrb[0].mxu0
        %v5096 = vadd.f32 0.0, %v5095
        %v5097 = vpop.f32.mrb[0].mxu0
        %v5098 = vadd.f32 0.0, %v5097
        %5099 = vmatprep.mubr.bf16.mxu0 0
        %5100 = vmatmul.mubr.bf16.gmra.mrb[0].mxu0 %v5023
        %v5101 = vpop.f32.mrb[0].mxu0
        %v5102 = vadd.f32 0.0, %v5101
        %v5103 = vpop.f32.mrb[0].mxu0
        %v5104 = vadd.f32 0.0, %v5103
        %v5105 = vpop.f32.mrb[0].mxu0
        %v5106 = vadd.f32 0.0, %v5105
        %v5107 = vpop.f32.mrb[0].mxu0
        %v5108 = vadd.f32 0.0, %v5107
        %5109 = vmatprep.mubr.bf16.mxu0 0
        %5110 = vmatmul.mubr.bf16.gmra.mrb[0].mxu0 %v5026
        %v5111 = vpop.f32.mrb[0].mxu0
        %v5112 = vadd.f32 0.0, %v5111
        %v5113 = vpop.f32.mrb[0].mxu0
        %v5114 = vadd.f32 0.0, %v5113
        %v5115 = vpop.f32.mrb[0].mxu0
        %v5116 = vadd.f32 0.0, %v5115
        %v5117 = vpop.f32.mrb[0].mxu0
        %v5118 = vadd.f32 0.0, %v5117
        %5119 = vmatprep.mubr.bf16.mxu0 0
        %5120 = vmatmul.mubr.bf16.gmra.mrb[0].mxu0 %v5029
        %v5121 = vpop.f32.mrb[0].mxu0
        %v5122 = vadd.f32 0.0, %v5121
        %v5123 = vpop.f32.mrb[0].mxu0
        %v5124 = vadd.f32 0.0, %v5123
        %v5125 = vpop.f32.mrb[0].mxu0
        %v5126 = vadd.f32 0.0, %v5125
        %v5127 = vpop.f32.mrb[0].mxu0
        %v5128 = vadd.f32 0.0, %v5127
        %5129 = vmatprep.mubr.bf16.mxu0 0
        %5130 = vmatmul.mubr.bf16.gmra.mrb[0].mxu0 %v5032
        %v5131 = vpop.f32.mrb[0].mxu0
        %v5132 = vadd.f32 0.0, %v5131
        %v5133 = vpop.f32.mrb[0].mxu0
        %v5134 = vadd.f32 0.0, %v5133
        %v5135 = vpop.f32.mrb[0].mxu0
        %v5136 = vadd.f32 0.0, %v5135
        %v5137 = vpop.f32.mrb[0].mxu0
        %v5138 = vadd.f32 0.0, %v5137
        %5139 = vmatprep.mubr.bf16.mxu0 0
        %5140 = vmatmul.mubr.bf16.gmra.mrb[0].mxu0 %v5035
        %v5141 = vpop.f32.mrb[0].mxu0
        %v5142 = vadd.f32 0.0, %v5141
        %v5143 = vpop.f32.mrb[0].mxu0
        %v5144 = vadd.f32 0.0, %v5143
        %v5145 = vpop.f32.mrb[0].mxu0
        %v5146 = vadd.f32 0.0, %v5145
        %v5147 = vpop.f32.mrb[0].mxu0
        %v5148 = vadd.f32 0.0, %v5147
        %5149 = vdwg.mxu0
        %5150 = vmatprep.subr.bf16.mxu0 0
        %5151 = vmatpush1.bf16.msra.mxu0 %v4991
        %5152 = vmatprep.subr.bf16.mxu0 0
        %5153 = vmatpush1.bf16.msra.mxu0 %v4994
        %5154 = vmatprep.subr.bf16.mxu0 0
        %5155 = vmatpush1.bf16.msra.mxu0 %v4997
        %5156 = vmatprep.subr.bf16.mxu0 0
        %5157 = vmatpush1.bf16.msra.mxu0 %v5000
        %5158 = vmatprep.subr.bf16.mxu0 0
        %5159 = vmatpush1.bf16.msra.mxu0 0
        %5160 = vmatprep.subr.bf16.mxu0 0
        %5161 = vmatpush1.bf16.msra.mxu0 0
        %5162 = vmatprep.subr.bf16.mxu0 0
        %5163 = vmatpush1.bf16.msra.mxu0 0
        %5164 = vmatprep.subr.bf16.mxu0 0
        %5165 = vmatpush1.bf16.msra.mxu0 0
        %5166 = vmatprep.subr.bf16.mxu0 0
        %5167 = vmatpush1.bf16.msra.mxu0 0
        %5168 = vmatprep.subr.bf16.mxu0 0
        %5169 = vmatpush1.bf16.msra.mxu0 0
        %5170 = vmatprep.subr.bf16.mxu0 0
        %5171 = vmatpush1.bf16.msra.mxu0 0
        %5172 = vmatprep.subr.bf16.mxu0 0
        %5173 = vmatpush1.bf16.msra.mxu0 0
        %5174 = vmatprep.subr.bf16.mxu0 0
        %5175 = vmatpush1.bf16.msra.mxu0 0
        %5176 = vmatprep.subr.bf16.mxu0 0
        %5177 = vmatpush1.bf16.msra.mxu0 0
        %5178 = vmatprep.subr.bf16.mxu0 0
        %5179 = vmatpush1.bf16.msra.mxu0 0
        %5180 = vmatprep.subr.bf16.mxu0 0
        %5181 = vmatpush1.bf16.msra.mxu0 0
        %5182 = vmatprep.mubr.bf16.mxu0 0
        %5183 = vmatmul.mubr.bf16.gmra.mrb[0].mxu0 %v5014
        %v5184 = vpop.f32.mrb[0].mxu0
        %v5185 = vadd.f32 0.0, %v5184
        %v5186 = vpop.f32.mrb[0].mxu0
        %v5187 = vpop.f32.mrb[0].mxu0
        %v5188 = vadd.f32 0.0, %v5187
        %v5189 = vpop.f32.mrb[0].mxu0
        %5190 = vmatprep.mubr.bf16.mxu0 0
        %5191 = vmatmul.mubr.bf16.gmra.mrb[0].mxu0 %v5017
        %v5192 = vpop.f32.mrb[0].mxu0
        %v5193 = vadd.f32 0.0, %v5192
        %v5194 = vpop.f32.mrb[0].mxu0
        %v5195 = vpop.f32.mrb[0].mxu0
        %v5196 = vadd.f32 0.0, %v5195
        %v5197 = vpop.f32.mrb[0].mxu0
        %5198 = vmatprep.mubr.bf16.mxu0 0
        %5199 = vmatmul.mubr.bf16.gmra.mrb[0].mxu0 %v5020
        %v5200 = vpop.f32.mrb[0].mxu0
        %v5201 = vadd.f32 0.0, %v5200
        %v5202 = vpop.f32.mrb[0].mxu0
        %v5203 = vpop.f32.mrb[0].mxu0
        %v5204 = vadd.f32 0.0, %v5203
        %v5205 = vpop.f32.mrb[0].mxu0
        %5206 = vmatprep.mubr.bf16.mxu0 0
        %5207 = vmatmul.mubr.bf16.gmra.mrb[0].mxu0 %v5023
        %v5208 = vpop.f32.mrb[0].mxu0
        %v5209 = vadd.f32 0.0, %v5208
        %v5210 = vpop.f32.mrb[0].mxu0
        %v5211 = vpop.f32.mrb[0].mxu0
        %v5212 = vadd.f32 0.0, %v5211
        %v5213 = vpop.f32.mrb[0].mxu0
        %5214 = vmatprep.mubr.bf16.mxu0 0
        %5215 = vmatmul.mubr.bf16.gmra.mrb[0].mxu0 %v5026
        %v5216 = vpop.f32.mrb[0].mxu0
        %v5217 = vadd.f32 0.0, %v5216
        %v5218 = vpop.f32.mrb[0].mxu0
        %v5219 = vpop.f32.mrb[0].mxu0
        %v5220 = vadd.f32 0.0, %v5219
        %v5221 = vpop.f32.mrb[0].mxu0
        %5222 = vmatprep.mubr.bf16.mxu0 0
        %5223 = vmatmul.mubr.bf16.gmra.mrb[0].mxu0 %v5029
        %v5224 = vpop.f32.mrb[0].mxu0
        %v5225 = vadd.f32 0.0, %v5224
        %v5226 = vpop.f32.mrb[0].mxu0
        %v5227 = vpop.f32.mrb[0].mxu0
        %v5228 = vadd.f32 0.0, %v5227
        %v5229 = vpop.f32.mrb[0].mxu0
        %5230 = vmatprep.mubr.bf16.mxu0 0
        %5231 = vmatmul.mubr.bf16.gmra.mrb[0].mxu0 %v5032
        %v5232 = vpop.f32.mrb[0].mxu0
        %v5233 = vadd.f32 0.0, %v5232
        %v5234 = vpop.f32.mrb[0].mxu0
        %v5235 = vpop.f32.mrb[0].mxu0
        %v5236 = vadd.f32 0.0, %v5235
        %v5237 = vpop.f32.mrb[0].mxu0
        %5238 = vmatprep.mubr.bf16.mxu0 0
        %5239 = vmatmul.mubr.bf16.gmra.mrb[0].mxu0 %v5035
        %v5240 = vpop.f32.mrb[0].mxu0
        %v5241 = vadd.f32 0.0, %v5240
        %v5242 = vpop.f32.mrb[0].mxu0
        %v5243 = vpop.f32.mrb[0].mxu0
        %v5244 = vadd.f32 0.0, %v5243
        %v5245 = vpop.f32.mrb[0].mxu0
        %5246 = vdwg.mxu0
        %v5247 = vadd.f32 %v4372, %v5072
        %v5248 = vadd.f32 %v4374, %v5074
        %v5249 = vadd.f32 %v4485, %v5185
        %v5250 = vadd.f32 %v4376, %v5076
        %v5251 = vadd.f32 %v4378, %v5078
        %v5252 = vadd.f32 %v4488, %v5188
        %v5253 = vadd.f32 %v4382, %v5082
        %v5254 = vadd.f32 %v4384, %v5084
        %v5255 = vadd.f32 %v4493, %v5193
        %v5256 = vadd.f32 %v4386, %v5086
        %v5257 = vadd.f32 %v4388, %v5088
        %v5258 = vadd.f32 %v4496, %v5196
        %v5259 = vadd.f32 %v4392, %v5092
        %v5260 = vadd.f32 %v4394, %v5094
        %v5261 = vadd.f32 %v4501, %v5201
        %v5262 = vadd.f32 %v4396, %v5096
        %v5263 = vadd.f32 %v4398, %v5098
        %v5264 = vadd.f32 %v4504, %v5204
        %v5265 = vadd.f32 %v4402, %v5102
        %v5266 = vadd.f32 %v4404, %v5104
        %v5267 = vadd.f32 %v4509, %v5209
        %v5268 = vadd.f32 %v4406, %v5106
        %v5269 = vadd.f32 %v4408, %v5108
        %v5270 = vadd.f32 %v4512, %v5212
        %v5271 = vadd.f32 %v4412, %v5112
        %v5272 = vadd.f32 %v4414, %v5114
        %v5273 = vadd.f32 %v4517, %v5217
        %v5274 = vadd.f32 %v4416, %v5116
        %v5275 = vadd.f32 %v4418, %v5118
        %v5276 = vadd.f32 %v4520, %v5220
        %v5277 = vadd.f32 %v4422, %v5122
        %v5278 = vadd.f32 %v4424, %v5124
        %v5279 = vadd.f32 %v4525, %v5225
        %v5280 = vadd.f32 %v4426, %v5126
        %v5281 = vadd.f32 %v4428, %v5128
        %v5282 = vadd.f32 %v4528, %v5228
        %v5283 = vadd.f32 %v4432, %v5132
        %v5284 = vadd.f32 %v4434, %v5134
        %v5285 = vadd.f32 %v4533, %v5233
        %v5286 = vadd.f32 %v4436, %v5136
        %v5287 = vadd.f32 %v4438, %v5138
        %v5288 = vadd.f32 %v4536, %v5236
        %v5289 = vadd.f32 %v4442, %v5142
        %v5290 = vadd.f32 %v4444, %v5144
        %v5291 = vadd.f32 %v4541, %v5241
        %v5292 = vadd.f32 %v4446, %v5146
        %v5293 = vadd.f32 %v4448, %v5148
        %v5294 = vadd.f32 %v4544, %v5244
        %5303 = vrot.lane.b32.xlu0 %v2944, 64
        %v5304 = vpop.permute.xlu0 %5303
        %5305 = vrot.lane.b32.xlu0 %v2947, 64
        %v5306 = vpop.permute.xlu0 %5305
        %5307 = vrot.lane.b32.xlu0 %v2950, 64
        %v5308 = vpop.permute.xlu0 %5307
        %5309 = vrot.lane.b32.xlu0 %v2953, 64
        %v5310 = vpop.permute.xlu0 %5309
        %5311 = vrot.lane.b32.xlu0 %v2956, 64
        %v5312 = vpop.permute.xlu0 %5311
        %5313 = vrot.lane.b32.xlu0 %v2959, 64
        %v5314 = vpop.permute.xlu0 %5313
        %5315 = vrot.lane.b32.xlu0 %v2962, 64
        %v5316 = vpop.permute.xlu0 %5315
        %5317 = vrot.lane.b32.xlu0 %v2965, 64
        %v5318 = vpop.permute.xlu0 %5317
        %5327 = vrot.lane.b32.xlu0 %v2968, 64
        %v5328 = vpop.permute.xlu0 %5327
        %5329 = vrot.lane.b32.xlu0 %v2971, 64
        %v5330 = vpop.permute.xlu0 %5329
        %5331 = vrot.lane.b32.xlu0 %v2974, 64
        %v5332 = vpop.permute.xlu0 %5331
        %5333 = vrot.lane.b32.xlu0 %v2977, 64
        %v5334 = vpop.permute.xlu0 %5333
        %5335 = vrot.lane.b32.xlu0 %v2980, 64
        %v5336 = vpop.permute.xlu0 %5335
        %5337 = vrot.lane.b32.xlu0 %v2983, 64
        %v5338 = vpop.permute.xlu0 %5337
        %5339 = vrot.lane.b32.xlu0 %v2986, 64
        %v5340 = vpop.permute.xlu0 %5339
        %5341 = vrot.lane.b32.xlu0 %v2989, 64
        %v5342 = vpop.permute.xlu0 %5341
        %v5344 = vsel %vm3066, %v5304, 0
        %v5347 = vsel %vm3066, %v5306, 0
        %v5350 = vsel %vm3066, %v5308, 0
        %v5353 = vsel %vm3066, %v5310, 0
        %v5356 = vsel %vm3066, %v5312, 0
        %v5359 = vsel %vm3066, %v5314, 0
        %v5362 = vsel %vm3066, %v5316, 0
        %v5365 = vsel %vm3066, %v5318, 0
        %v5368 = vsel %vm3066, %v5328, 0
        %v5371 = vsel %vm3066, %v5330, 0
        %v5374 = vsel %vm3066, %v5332, 0
        %v5377 = vsel %vm3066, %v5334, 0
        %v5380 = vsel %vm3066, %v5336, 0
        %v5383 = vsel %vm3066, %v5338, 0
        %v5386 = vsel %vm3066, %v5340, 0
        %v5389 = vsel %vm3066, %v5342, 0
        %5391 = vmatprep.subr.bf16.mxu0 0
        %5392 = vmatpush1.bf16.xpose.msra.mxu0 %v5368
        %5393 = vmatprep.subr.bf16.mxu0 0
        %5394 = vmatpush1.bf16.xpose.msra.mxu0 %v5371
        %5395 = vmatprep.subr.bf16.mxu0 0
        %5396 = vmatpush1.bf16.xpose.msra.mxu0 %v5374
        %5397 = vmatprep.subr.bf16.mxu0 0
        %5398 = vmatpush1.bf16.xpose.msra.mxu0 %v5377
        %5399 = vmatprep.subr.bf16.mxu0 0
        %5400 = vmatpush1.bf16.xpose.msra.mxu0 %v5380
        %5401 = vmatprep.subr.bf16.mxu0 0
        %5402 = vmatpush1.bf16.xpose.msra.mxu0 %v5383
        %5403 = vmatprep.subr.bf16.mxu0 0
        %5404 = vmatpush1.bf16.xpose.msra.mxu0 %v5386
        %5405 = vmatprep.subr.bf16.mxu0 0
        %5406 = vmatpush1.bf16.xpose.msra.mxu0 %v5389
        %5407 = vmatprep.subr.bf16.mxu0 0
        %5408 = vmatpush1.bf16.xpose.msra.mxu0 0
        %5409 = vmatprep.subr.bf16.mxu0 0
        %5410 = vmatpush1.bf16.xpose.msra.mxu0 0
        %5411 = vmatprep.subr.bf16.mxu0 0
        %5412 = vmatpush1.bf16.xpose.msra.mxu0 0
        %5413 = vmatprep.subr.bf16.mxu0 0
        %5414 = vmatpush1.bf16.xpose.msra.mxu0 0
        %5415 = vmatprep.subr.bf16.mxu0 0
        %5416 = vmatpush1.bf16.xpose.msra.mxu0 0
        %5417 = vmatprep.subr.bf16.mxu0 0
        %5418 = vmatpush1.bf16.xpose.msra.mxu0 0
        %5419 = vmatprep.subr.bf16.mxu0 0
        %5420 = vmatpush1.bf16.xpose.msra.mxu0 0
        %5421 = vmatprep.subr.bf16.mxu0 0
        %5422 = vmatpush1.bf16.xpose.msra.mxu0 0
        %5423 = vmatprep.mubr.bf16.mxu0 0
        %5424 = vmatmul.mubr.bf16.gmra.mrb[0].mxu0 %v5344
        %v5425 = vpop.f32.mrb[0].mxu0
        %v5426 = vadd.f32 %v3050, %v5425
        %v5427 = vpop.f32.mrb[0].mxu0
        %v5428 = vpop.f32.mrb[0].mxu0
        %v5429 = vadd.f32 %v3051, %v5428
        %v5430 = vpop.f32.mrb[0].mxu0
        %5431 = vmatprep.mubr.bf16.mxu0 0
        %5432 = vmatmul.mubr.bf16.gmra.mrb[0].mxu0 %v5347
        %v5433 = vpop.f32.mrb[0].mxu0
        %v5434 = vadd.f32 %v3052, %v5433
        %v5435 = vpop.f32.mrb[0].mxu0
        %v5436 = vpop.f32.mrb[0].mxu0
        %v5437 = vadd.f32 %v3053, %v5436
        %v5438 = vpop.f32.mrb[0].mxu0
        %5439 = vmatprep.mubr.bf16.mxu0 0
        %5440 = vmatmul.mubr.bf16.gmra.mrb[0].mxu0 %v5350
        %v5441 = vpop.f32.mrb[0].mxu0
        %v5442 = vadd.f32 %v3054, %v5441
        %v5443 = vpop.f32.mrb[0].mxu0
        %v5444 = vpop.f32.mrb[0].mxu0
        %v5445 = vadd.f32 %v3055, %v5444
        %v5446 = vpop.f32.mrb[0].mxu0
        %5447 = vmatprep.mubr.bf16.mxu0 0
        %5448 = vmatmul.mubr.bf16.gmra.mrb[0].mxu0 %v5353
        %v5449 = vpop.f32.mrb[0].mxu0
        %v5450 = vadd.f32 %v3056, %v5449
        %v5451 = vpop.f32.mrb[0].mxu0
        %v5452 = vpop.f32.mrb[0].mxu0
        %v5453 = vadd.f32 %v3057, %v5452
        %v5454 = vpop.f32.mrb[0].mxu0
        %5455 = vmatprep.mubr.bf16.mxu0 0
        %5456 = vmatmul.mubr.bf16.gmra.mrb[0].mxu0 %v5356
        %v5457 = vpop.f32.mrb[0].mxu0
        %v5458 = vadd.f32 %v3058, %v5457
        %v5459 = vpop.f32.mrb[0].mxu0
        %v5460 = vpop.f32.mrb[0].mxu0
        %v5461 = vadd.f32 %v3059, %v5460
        %v5462 = vpop.f32.mrb[0].mxu0
        %5463 = vmatprep.mubr.bf16.mxu0 0
        %5464 = vmatmul.mubr.bf16.gmra.mrb[0].mxu0 %v5359
        %v5465 = vpop.f32.mrb[0].mxu0
        %v5466 = vadd.f32 %v3060, %v5465
        %v5467 = vpop.f32.mrb[0].mxu0
        %v5468 = vpop.f32.mrb[0].mxu0
        %v5469 = vadd.f32 %v3061, %v5468
        %v5470 = vpop.f32.mrb[0].mxu0
        %5471 = vmatprep.mubr.bf16.mxu0 0
        %5472 = vmatmul.mubr.bf16.gmra.mrb[0].mxu0 %v5362
        %v5473 = vpop.f32.mrb[0].mxu0
        %v5474 = vadd.f32 %v3062, %v5473
        %v5475 = vpop.f32.mrb[0].mxu0
        %v5476 = vpop.f32.mrb[0].mxu0
        %v5477 = vadd.f32 %v3063, %v5476
        %v5478 = vpop.f32.mrb[0].mxu0
        %5479 = vmatprep.mubr.bf16.mxu0 0
        %5480 = vmatmul.mubr.bf16.gmra.mrb[0].mxu0 %v5365
        %v5481 = vpop.f32.mrb[0].mxu0
        %v5482 = vadd.f32 %v3064, %v5481
        %v5483 = vpop.f32.mrb[0].mxu0
        %v5484 = vpop.f32.mrb[0].mxu0
        %v5485 = vadd.f32 %v3065, %v5484
        %v5486 = vpop.f32.mrb[0].mxu0
        %5487 = vdwg.mxu0
        %5488 = vmax.xlane.f32.xlu0 %v5426
        %v5489 = vpop.xlane.xlu0 %5488
        %5490 = vmax.xlane.f32.xlu0 %v5429
        %v5491 = vpop.xlane.xlu0 %5490
        %5492 = vmax.xlane.f32.xlu0 %v5434
        %v5493 = vpop.xlane.xlu0 %5492
        %5494 = vmax.xlane.f32.xlu0 %v5437
        %v5495 = vpop.xlane.xlu0 %5494
        %5496 = vmax.xlane.f32.xlu0 %v5442
        %v5497 = vpop.xlane.xlu0 %5496
        %5498 = vmax.xlane.f32.xlu0 %v5445
        %v5499 = vpop.xlane.xlu0 %5498
        %5500 = vmax.xlane.f32.xlu0 %v5450
        %v5501 = vpop.xlane.xlu0 %5500
        %5502 = vmax.xlane.f32.xlu0 %v5453
        %v5503 = vpop.xlane.xlu0 %5502
        %5504 = vmax.xlane.f32.xlu0 %v5458
        %v5505 = vpop.xlane.xlu0 %5504
        %5506 = vmax.xlane.f32.xlu0 %v5461
        %v5507 = vpop.xlane.xlu0 %5506
        %5508 = vmax.xlane.f32.xlu0 %v5466
        %v5509 = vpop.xlane.xlu0 %5508
        %5510 = vmax.xlane.f32.xlu0 %v5469
        %v5511 = vpop.xlane.xlu0 %5510
        %5512 = vmax.xlane.f32.xlu0 %v5474
        %v5513 = vpop.xlane.xlu0 %5512
        %5514 = vmax.xlane.f32.xlu0 %v5477
        %v5515 = vpop.xlane.xlu0 %5514
        %5516 = vmax.xlane.f32.xlu0 %v5482
        %v5517 = vpop.xlane.xlu0 %5516
        %5518 = vmax.xlane.f32.xlu0 %v5485
        %v5519 = vpop.xlane.xlu0 %5518
        %v5520 = vsub.f32 %v5426, %v5489
        %v5521 = vsub.f32 %v5429, %v5491
        %v5522 = vsub.f32 %v5434, %v5493
        %v5523 = vsub.f32 %v5437, %v5495
        %v5524 = vsub.f32 %v5442, %v5497
        %v5525 = vsub.f32 %v5445, %v5499
        %v5526 = vsub.f32 %v5450, %v5501
        %v5527 = vsub.f32 %v5453, %v5503
        %v5528 = vsub.f32 %v5458, %v5505
        %v5529 = vsub.f32 %v5461, %v5507
        %v5530 = vsub.f32 %v5466, %v5509
        %v5531 = vsub.f32 %v5469, %v5511
        %v5532 = vsub.f32 %v5474, %v5513
        %v5533 = vsub.f32 %v5477, %v5515
        %v5534 = vsub.f32 %v5482, %v5517
        %v5535 = vsub.f32 %v5485, %v5519
        %v5536 = vmul.f32 %v5520, 1.442695
        %v5537 = vpow.pop %v5536
        %v5538 = vmul.f32 %v5521, 1.442695
        %v5539 = vpow.pop %v5538
        %v5540 = vmul.f32 %v5522, 1.442695
        %v5541 = vpow.pop %v5540
        %v5542 = vmul.f32 %v5523, 1.442695
        %v5543 = vpow.pop %v5542
        %v5544 = vmul.f32 %v5524, 1.442695
        %v5545 = vpow.pop %v5544
        %v5546 = vmul.f32 %v5525, 1.442695
        %v5547 = vpow.pop %v5546
        %v5548 = vmul.f32 %v5526, 1.442695
        %v5549 = vpow.pop %v5548
        %v5550 = vmul.f32 %v5527, 1.442695
        %v5551 = vpow.pop %v5550
        %v5552 = vmul.f32 %v5528, 1.442695
        %v5553 = vpow.pop %v5552
        %v5554 = vmul.f32 %v5529, 1.442695
        %v5555 = vpow.pop %v5554
        %v5556 = vmul.f32 %v5530, 1.442695
        %v5557 = vpow.pop %v5556
        %v5558 = vmul.f32 %v5531, 1.442695
        %v5559 = vpow.pop %v5558
        %v5560 = vmul.f32 %v5532, 1.442695
        %v5561 = vpow.pop %v5560
        %v5562 = vmul.f32 %v5533, 1.442695
        %v5563 = vpow.pop %v5562
        %v5564 = vmul.f32 %v5534, 1.442695
        %v5565 = vpow.pop %v5564
        %v5566 = vmul.f32 %v5535, 1.442695
        %v5567 = vpow.pop %v5566
        %5568 = vadd.xlane.f32.xlu0 %v5537
        %v5569 = vpop.xlane.xlu0 %5568
        %5570 = vadd.xlane.f32.xlu0 %v5539
        %v5571 = vpop.xlane.xlu0 %5570
        %5572 = vadd.xlane.f32.xlu0 %v5541
        %v5573 = vpop.xlane.xlu0 %5572
        %5574 = vadd.xlane.f32.xlu0 %v5543
        %v5575 = vpop.xlane.xlu0 %5574
        %5576 = vadd.xlane.f32.xlu0 %v5545
        %v5577 = vpop.xlane.xlu0 %5576
        %5578 = vadd.xlane.f32.xlu0 %v5547
        %v5579 = vpop.xlane.xlu0 %5578
        %5580 = vadd.xlane.f32.xlu0 %v5549
        %v5581 = vpop.xlane.xlu0 %5580
        %5582 = vadd.xlane.f32.xlu0 %v5551
        %v5583 = vpop.xlane.xlu0 %5582
        %5584 = vadd.xlane.f32.xlu0 %v5553
        %v5585 = vpop.xlane.xlu0 %5584
        %5586 = vadd.xlane.f32.xlu0 %v5555
        %v5587 = vpop.xlane.xlu0 %5586
        %5588 = vadd.xlane.f32.xlu0 %v5557
        %v5589 = vpop.xlane.xlu0 %5588
        %5590 = vadd.xlane.f32.xlu0 %v5559
        %v5591 = vpop.xlane.xlu0 %5590
        %5592 = vadd.xlane.f32.xlu0 %v5561
        %v5593 = vpop.xlane.xlu0 %5592
        %5594 = vadd.xlane.f32.xlu0 %v5563
        %v5595 = vpop.xlane.xlu0 %5594
        %5596 = vadd.xlane.f32.xlu0 %v5565
        %v5597 = vpop.xlane.xlu0 %5596
        %5598 = vadd.xlane.f32.xlu0 %v5567
        %v5599 = vpop.xlane.xlu0 %5598
        %v5600 = vrcp.pop %v5569
        %v5601 = vrcp.pop %v5571
        %v5602 = vrcp.pop %v5573
        %v5603 = vrcp.pop %v5575
        %v5604 = vrcp.pop %v5577
        %v5605 = vrcp.pop %v5579
        %v5606 = vrcp.pop %v5581
        %v5607 = vrcp.pop %v5583
        %v5608 = vrcp.pop %v5585
        %v5609 = vrcp.pop %v5587
        %v5610 = vrcp.pop %v5589
        %v5611 = vrcp.pop %v5591
        %v5612 = vrcp.pop %v5593
        %v5613 = vrcp.pop %v5595
        %v5614 = vrcp.pop %v5597
        %v5615 = vrcp.pop %v5599
        %v5616 = vmul.f32 %v5537, %v5600
        %v5617 = vmul.f32 %v5539, %v5601
        %v5618 = vmul.f32 %v5541, %v5602
        %v5619 = vmul.f32 %v5543, %v5603
        %v5620 = vmul.f32 %v5545, %v5604
        %v5621 = vmul.f32 %v5547, %v5605
        %v5622 = vmul.f32 %v5549, %v5606
        %v5623 = vmul.f32 %v5551, %v5607
        %v5624 = vmul.f32 %v5553, %v5608
        %v5625 = vmul.f32 %v5555, %v5609
        %v5626 = vmul.f32 %v5557, %v5610
        %v5627 = vmul.f32 %v5559, %v5611
        %v5628 = vmul.f32 %v5561, %v5612
        %v5629 = vmul.f32 %v5563, %v5613
        %v5630 = vmul.f32 %v5565, %v5614
        %v5631 = vmul.f32 %v5567, %v5615
        %v5632 = vpack.c.bf16 %v5617, %v5616
        %v5633 = vpack.c.bf16 %v5619, %v5618
        %v5634 = vpack.c.bf16 %v5621, %v5620
        %v5635 = vpack.c.bf16 %v5623, %v5622
        %v5636 = vpack.c.bf16 %v5625, %v5624
        %v5637 = vpack.c.bf16 %v5627, %v5626
        %v5638 = vpack.c.bf16 %v5629, %v5628
        %v5639 = vpack.c.bf16 %v5631, %v5630
        %5648 = vrot.lane.b32.xlu0 %v2992, 64
        %v5649 = vpop.permute.xlu0 %5648
        %5650 = vrot.lane.b32.xlu0 %v2995, 64
        %v5651 = vpop.permute.xlu0 %5650
        %5652 = vrot.lane.b32.xlu0 %v2998, 64
        %v5653 = vpop.permute.xlu0 %5652
        %5654 = vrot.lane.b32.xlu0 %v3001, 64
        %v5655 = vpop.permute.xlu0 %5654
        %5656 = vrot.lane.b32.xlu0 %v3004, 64
        %v5657 = vpop.permute.xlu0 %5656
        %5658 = vrot.lane.b32.xlu0 %v3007, 64
        %v5659 = vpop.permute.xlu0 %5658
        %5660 = vrot.lane.b32.xlu0 %v3010, 64
        %v5661 = vpop.permute.xlu0 %5660
        %5662 = vrot.lane.b32.xlu0 %v3013, 64
        %v5663 = vpop.permute.xlu0 %5662
        %5672 = vmatprep.subr.bf16.mxu0 0
        %5673 = vmatpush1.bf16.msra.mxu0 %v5649
        %5674 = vmatprep.subr.bf16.mxu0 0
        %5675 = vmatpush1.bf16.msra.mxu0 %v5651
        %5676 = vmatprep.subr.bf16.mxu0 0
        %5677 = vmatpush1.bf16.msra.mxu0 %v5653
        %5678 = vmatprep.subr.bf16.mxu0 0
        %5679 = vmatpush1.bf16.msra.mxu0 %v5655
        %5680 = vmatprep.subr.bf16.mxu0 0
        %5681 = vmatpush1.bf16.msra.mxu0 %v5657
        %5682 = vmatprep.subr.bf16.mxu0 0
        %5683 = vmatpush1.bf16.msra.mxu0 %v5659
        %5684 = vmatprep.subr.bf16.mxu0 0
        %5685 = vmatpush1.bf16.msra.mxu0 %v5661
        %5686 = vmatprep.subr.bf16.mxu0 0
        %5687 = vmatpush1.bf16.msra.mxu0 %v5663
        %5688 = vmatprep.subr.bf16.mxu0 0
        %5689 = vmatpush1.bf16.msra.mxu0 0
        %5690 = vmatprep.subr.bf16.mxu0 0
        %5691 = vmatpush1.bf16.msra.mxu0 0
        %5692 = vmatprep.subr.bf16.mxu0 0
        %5693 = vmatpush1.bf16.msra.mxu0 0
        %5694 = vmatprep.subr.bf16.mxu0 0
        %5695 = vmatpush1.bf16.msra.mxu0 0
        %5696 = vmatprep.subr.bf16.mxu0 0
        %5697 = vmatpush1.bf16.msra.mxu0 0
        %5698 = vmatprep.subr.bf16.mxu0 0
        %5699 = vmatpush1.bf16.msra.mxu0 0
        %5700 = vmatprep.subr.bf16.mxu0 0
        %5701 = vmatpush1.bf16.msra.mxu0 0
        %5702 = vmatprep.subr.bf16.mxu0 0
        %5703 = vmatpush1.bf16.msra.mxu0 0
        %5704 = vmatprep.mubr.bf16.mxu0 0
        %5705 = vmatmul.mubr.bf16.gmra.mrb[0].mxu0 %v5632
        %v5706 = vpop.f32.mrb[0].mxu0
        %v5707 = vadd.f32 0.0, %v5706
        %v5708 = vpop.f32.mrb[0].mxu0
        %v5709 = vpop.f32.mrb[0].mxu0
        %v5710 = vadd.f32 0.0, %v5709
        %v5711 = vpop.f32.mrb[0].mxu0
        %5712 = vmatprep.mubr.bf16.mxu0 0
        %5713 = vmatmul.mubr.bf16.gmra.mrb[0].mxu0 %v5633
        %v5714 = vpop.f32.mrb[0].mxu0
        %v5715 = vadd.f32 0.0, %v5714
        %v5716 = vpop.f32.mrb[0].mxu0
        %v5717 = vpop.f32.mrb[0].mxu0
        %v5718 = vadd.f32 0.0, %v5717
        %v5719 = vpop.f32.mrb[0].mxu0
        %5720 = vmatprep.mubr.bf16.mxu0 0
        %5721 = vmatmul.mubr.bf16.gmra.mrb[0].mxu0 %v5634
        %v5722 = vpop.f32.mrb[0].mxu0
        %v5723 = vadd.f32 0.0, %v5722
        %v5724 = vpop.f32.mrb[0].mxu0
        %v5725 = vpop.f32.mrb[0].mxu0
        %v5726 = vadd.f32 0.0, %v5725
        %v5727 = vpop.f32.mrb[0].mxu0
        %5728 = vmatprep.mubr.bf16.mxu0 0
        %5729 = vmatmul.mubr.bf16.gmra.mrb[0].mxu0 %v5635
        %v5730 = vpop.f32.mrb[0].mxu0
        %v5731 = vadd.f32 0.0, %v5730
        %v5732 = vpop.f32.mrb[0].mxu0
        %v5733 = vpop.f32.mrb[0].mxu0
        %v5734 = vadd.f32 0.0, %v5733
        %v5735 = vpop.f32.mrb[0].mxu0
        %5736 = vmatprep.mubr.bf16.mxu0 0
        %5737 = vmatmul.mubr.bf16.gmra.mrb[0].mxu0 %v5636
        %v5738 = vpop.f32.mrb[0].mxu0
        %v5739 = vadd.f32 0.0, %v5738
        %v5740 = vpop.f32.mrb[0].mxu0
        %v5741 = vpop.f32.mrb[0].mxu0
        %v5742 = vadd.f32 0.0, %v5741
        %v5743 = vpop.f32.mrb[0].mxu0
        %5744 = vmatprep.mubr.bf16.mxu0 0
        %5745 = vmatmul.mubr.bf16.gmra.mrb[0].mxu0 %v5637
        %v5746 = vpop.f32.mrb[0].mxu0
        %v5747 = vadd.f32 0.0, %v5746
        %v5748 = vpop.f32.mrb[0].mxu0
        %v5749 = vpop.f32.mrb[0].mxu0
        %v5750 = vadd.f32 0.0, %v5749
        %v5751 = vpop.f32.mrb[0].mxu0
        %5752 = vmatprep.mubr.bf16.mxu0 0
        %5753 = vmatmul.mubr.bf16.gmra.mrb[0].mxu0 %v5638
        %v5754 = vpop.f32.mrb[0].mxu0
        %v5755 = vadd.f32 0.0, %v5754
        %v5756 = vpop.f32.mrb[0].mxu0
        %v5757 = vpop.f32.mrb[0].mxu0
        %v5758 = vadd.f32 0.0, %v5757
        %v5759 = vpop.f32.mrb[0].mxu0
        %5760 = vmatprep.mubr.bf16.mxu0 0
        %5761 = vmatmul.mubr.bf16.gmra.mrb[0].mxu0 %v5639
        %v5762 = vpop.f32.mrb[0].mxu0
        %v5763 = vadd.f32 0.0, %v5762
        %v5764 = vpop.f32.mrb[0].mxu0
        %v5765 = vpop.f32.mrb[0].mxu0
        %v5766 = vadd.f32 0.0, %v5765
        %v5767 = vpop.f32.mrb[0].mxu0
        %5768 = vdwg.mxu0
        %v5769 = vpack.c.bf16 %v5710, %v5707
        %v5770 = vpack.c.bf16 %v5718, %v5715
        %v5771 = vpack.c.bf16 %v5726, %v5723
        %v5772 = vpack.c.bf16 %v5734, %v5731
        %v5773 = vpack.c.bf16 %v5742, %v5739
        %v5774 = vpack.c.bf16 %v5750, %v5747
        %v5775 = vpack.c.bf16 %v5758, %v5755
        %v5776 = vpack.c.bf16 %v5766, %v5763
        %v5793 = vunpack.c.l.b16 %v517
        %v5794 = vunpack.c.h.b16 %v517
        %v5795 = vunpack.c.l.b16 %v518
        %v5796 = vunpack.c.l.b16 %v519
        %v5797 = vunpack.c.h.b16 %v519
        %v5798 = vunpack.c.l.b16 %v520
        %v5799 = vunpack.c.l.b16 %v521
        %v5800 = vunpack.c.h.b16 %v521
        %v5801 = vunpack.c.l.b16 %v522
        %v5802 = vunpack.c.l.b16 %v523
        %v5803 = vunpack.c.h.b16 %v523
        %v5804 = vunpack.c.l.b16 %v524
        %v5805 = vunpack.c.l.b16 %v525
        %v5806 = vunpack.c.h.b16 %v525
        %v5807 = vunpack.c.l.b16 %v526
        %v5808 = vunpack.c.l.b16 %v527
        %v5809 = vunpack.c.h.b16 %v527
        %v5810 = vunpack.c.l.b16 %v528
        %v5811 = vunpack.c.l.b16 %v529
        %v5812 = vunpack.c.h.b16 %v529
        %v5813 = vunpack.c.l.b16 %v530
        %v5814 = vunpack.c.l.b16 %v531
        %v5815 = vunpack.c.h.b16 %v531
        %v5816 = vunpack.c.l.b16 %v532
        %v5817 = vpack.c.b16 %v5796, %v5793
        %v5818 = vpack.c.b16 %v5797, %v5794
        %v5819 = vpack.c.b16 %v5798, %v5795
        %v5820 = vpack.c.b16 %v5802, %v5799
        %v5821 = vpack.c.b16 %v5803, %v5800
        %v5822 = vpack.c.b16 %v5804, %v5801
        %v5823 = vpack.c.b16 %v5808, %v5805
        %v5824 = vpack.c.b16 %v5809, %v5806
        %v5825 = vpack.c.b16 %v5810, %v5807
        %v5826 = vpack.c.b16 %v5814, %v5811
        %v5827 = vpack.c.b16 %v5815, %v5812
        %v5828 = vpack.c.b16 %v5816, %v5813
        %v5842 = vsel %vm3066, %v5769, 0
        %v5845 = vsel %vm3066, %v5770, 0
        %v5848 = vsel %vm3066, %v5771, 0
        %v5851 = vsel %vm3066, %v5772, 0
        %v5854 = vsel %vm3066, %v5773, 0
        %v5857 = vsel %vm3066, %v5774, 0
        %v5860 = vsel %vm3066, %v5775, 0
        %v5863 = vsel %vm3066, %v5776, 0
        %5865 = vmatprep.subr.bf16.mxu0 %v5818
        %5866 = vmatpush1.bf16.msra.mxu0 %v5817
        %5867 = vmatprep.subr.bf16.mxu0 %v5821
        %5868 = vmatpush1.bf16.msra.mxu0 %v5820
        %5869 = vmatprep.subr.bf16.mxu0 %v5824
        %5870 = vmatpush1.bf16.msra.mxu0 %v5823
        %5871 = vmatprep.subr.bf16.mxu0 %v5827
        %5872 = vmatpush1.bf16.msra.mxu0 %v5826
        %5873 = vmatprep.subr.bf16.mxu0 0
        %5874 = vmatpush1.bf16.msra.mxu0 0
        %5875 = vmatprep.subr.bf16.mxu0 0
        %5876 = vmatpush1.bf16.msra.mxu0 0
        %5877 = vmatprep.subr.bf16.mxu0 0
        %5878 = vmatpush1.bf16.msra.mxu0 0
        %5879 = vmatprep.subr.bf16.mxu0 0
        %5880 = vmatpush1.bf16.msra.mxu0 0
        %5881 = vmatprep.subr.bf16.mxu0 0
        %5882 = vmatpush1.bf16.msra.mxu0 0
        %5883 = vmatprep.subr.bf16.mxu0 0
        %5884 = vmatpush1.bf16.msra.mxu0 0
        %5885 = vmatprep.subr.bf16.mxu0 0
        %5886 = vmatpush1.bf16.msra.mxu0 0
        %5887 = vmatprep.subr.bf16.mxu0 0
        %5888 = vmatpush1.bf16.msra.mxu0 0
        %5889 = vmatprep.subr.bf16.mxu0 0
        %5890 = vmatpush1.bf16.msra.mxu0 0
        %5891 = vmatprep.subr.bf16.mxu0 0
        %5892 = vmatpush1.bf16.msra.mxu0 0
        %5893 = vmatprep.subr.bf16.mxu0 0
        %5894 = vmatpush1.bf16.msra.mxu0 0
        %5895 = vmatprep.subr.bf16.mxu0 0
        %5896 = vmatpush1.bf16.msra.mxu0 0
        %5897 = vmatprep.mubr.bf16.mxu0 0
        %5898 = vmatmul.mubr.bf16.gmra.mrb[0].mxu0 %v5842
        %v5899 = vpop.f32.mrb[0].mxu0
        %v5900 = vadd.f32 0.0, %v5899
        %v5901 = vpop.f32.mrb[0].mxu0
        %v5902 = vadd.f32 0.0, %v5901
        %v5903 = vpop.f32.mrb[0].mxu0
        %v5904 = vadd.f32 0.0, %v5903
        %v5905 = vpop.f32.mrb[0].mxu0
        %v5906 = vadd.f32 0.0, %v5905
        %5907 = vmatprep.mubr.bf16.mxu0 0
        %5908 = vmatmul.mubr.bf16.gmra.mrb[0].mxu0 %v5845
        %v5909 = vpop.f32.mrb[0].mxu0
        %v5910 = vadd.f32 0.0, %v5909
        %v5911 = vpop.f32.mrb[0].mxu0
        %v5912 = vadd.f32 0.0, %v5911
        %v5913 = vpop.f32.mrb[0].mxu0
        %v5914 = vadd.f32 0.0, %v5913
        %v5915 = vpop.f32.mrb[0].mxu0
        %v5916 = vadd.f32 0.0, %v5915
        %5917 = vmatprep.mubr.bf16.mxu0 0
        %5918 = vmatmul.mubr.bf16.gmra.mrb[0].mxu0 %v5848
        %v5919 = vpop.f32.mrb[0].mxu0
        %v5920 = vadd.f32 0.0, %v5919
        %v5921 = vpop.f32.mrb[0].mxu0
        %v5922 = vadd.f32 0.0, %v5921
        %v5923 = vpop.f32.mrb[0].mxu0
        %v5924 = vadd.f32 0.0, %v5923
        %v5925 = vpop.f32.mrb[0].mxu0
        %v5926 = vadd.f32 0.0, %v5925
        %5927 = vmatprep.mubr.bf16.mxu0 0
        %5928 = vmatmul.mubr.bf16.gmra.mrb[0].mxu0 %v5851
        %v5929 = vpop.f32.mrb[0].mxu0
        %v5930 = vadd.f32 0.0, %v5929
        %v5931 = vpop.f32.mrb[0].mxu0
        %v5932 = vadd.f32 0.0, %v5931
        %v5933 = vpop.f32.mrb[0].mxu0
        %v5934 = vadd.f32 0.0, %v5933
        %v5935 = vpop.f32.mrb[0].mxu0
        %v5936 = vadd.f32 0.0, %v5935
        %5937 = vmatprep.mubr.bf16.mxu0 0
        %5938 = vmatmul.mubr.bf16.gmra.mrb[0].mxu0 %v5854
        %v5939 = vpop.f32.mrb[0].mxu0
        %v5940 = vadd.f32 0.0, %v5939
        %v5941 = vpop.f32.mrb[0].mxu0
        %v5942 = vadd.f32 0.0, %v5941
        %v5943 = vpop.f32.mrb[0].mxu0
        %v5944 = vadd.f32 0.0, %v5943
        %v5945 = vpop.f32.mrb[0].mxu0
        %v5946 = vadd.f32 0.0, %v5945
        %5947 = vmatprep.mubr.bf16.mxu0 0
        %5948 = vmatmul.mubr.bf16.gmra.mrb[0].mxu0 %v5857
        %v5949 = vpop.f32.mrb[0].mxu0
        %v5950 = vadd.f32 0.0, %v5949
        %v5951 = vpop.f32.mrb[0].mxu0
        %v5952 = vadd.f32 0.0, %v5951
        %v5953 = vpop.f32.mrb[0].mxu0
        %v5954 = vadd.f32 0.0, %v5953
        %v5955 = vpop.f32.mrb[0].mxu0
        %v5956 = vadd.f32 0.0, %v5955
        %5957 = vmatprep.mubr.bf16.mxu0 0
        %5958 = vmatmul.mubr.bf16.gmra.mrb[0].mxu0 %v5860
        %v5959 = vpop.f32.mrb[0].mxu0
        %v5960 = vadd.f32 0.0, %v5959
        %v5961 = vpop.f32.mrb[0].mxu0
        %v5962 = vadd.f32 0.0, %v5961
        %v5963 = vpop.f32.mrb[0].mxu0
        %v5964 = vadd.f32 0.0, %v5963
        %v5965 = vpop.f32.mrb[0].mxu0
        %v5966 = vadd.f32 0.0, %v5965
        %5967 = vmatprep.mubr.bf16.mxu0 0
        %5968 = vmatmul.mubr.bf16.gmra.mrb[0].mxu0 %v5863
        %v5969 = vpop.f32.mrb[0].mxu0
        %v5970 = vadd.f32 0.0, %v5969
        %v5971 = vpop.f32.mrb[0].mxu0
        %v5972 = vadd.f32 0.0, %v5971
        %v5973 = vpop.f32.mrb[0].mxu0
        %v5974 = vadd.f32 0.0, %v5973
        %v5975 = vpop.f32.mrb[0].mxu0
        %v5976 = vadd.f32 0.0, %v5975
        %5977 = vdwg.mxu0
        %5978 = vmatprep.subr.bf16.mxu0 0
        %5979 = vmatpush1.bf16.msra.mxu0 %v5819
        %5980 = vmatprep.subr.bf16.mxu0 0
        %5981 = vmatpush1.bf16.msra.mxu0 %v5822
        %5982 = vmatprep.subr.bf16.mxu0 0
        %5983 = vmatpush1.bf16.msra.mxu0 %v5825
        %5984 = vmatprep.subr.bf16.mxu0 0
        %5985 = vmatpush1.bf16.msra.mxu0 %v5828
        %5986 = vmatprep.subr.bf16.mxu0 0
        %5987 = vmatpush1.bf16.msra.mxu0 0
        %5988 = vmatprep.subr.bf16.mxu0 0
        %5989 = vmatpush1.bf16.msra.mxu0 0
        %5990 = vmatprep.subr.bf16.mxu0 0
        %5991 = vmatpush1.bf16.msra.mxu0 0
        %5992 = vmatprep.subr.bf16.mxu0 0
        %5993 = vmatpush1.bf16.msra.mxu0 0
        %5994 = vmatprep.subr.bf16.mxu0 0
        %5995 = vmatpush1.bf16.msra.mxu0 0
        %5996 = vmatprep.subr.bf16.mxu0 0
        %5997 = vmatpush1.bf16.msra.mxu0 0
        %5998 = vmatprep.subr.bf16.mxu0 0
        %5999 = vmatpush1.bf16.msra.mxu0 0
        %6000 = vmatprep.subr.bf16.mxu0 0
        %6001 = vmatpush1.bf16.msra.mxu0 0
        %6002 = vmatprep.subr.bf16.mxu0 0
        %6003 = vmatpush1.bf16.msra.mxu0 0
        %6004 = vmatprep.subr.bf16.mxu0 0
        %6005 = vmatpush1.bf16.msra.mxu0 0
        %6006 = vmatprep.subr.bf16.mxu0 0
        %6007 = vmatpush1.bf16.msra.mxu0 0
        %6008 = vmatprep.subr.bf16.mxu0 0
        %6009 = vmatpush1.bf16.msra.mxu0 0
        %6010 = vmatprep.mubr.bf16.mxu0 0
        %6011 = vmatmul.mubr.bf16.gmra.mrb[0].mxu0 %v5842
        %v6012 = vpop.f32.mrb[0].mxu0
        %v6013 = vadd.f32 0.0, %v6012
        %v6014 = vpop.f32.mrb[0].mxu0
        %v6015 = vpop.f32.mrb[0].mxu0
        %v6016 = vadd.f32 0.0, %v6015
        %v6017 = vpop.f32.mrb[0].mxu0
        %6018 = vmatprep.mubr.bf16.mxu0 0
        %6019 = vmatmul.mubr.bf16.gmra.mrb[0].mxu0 %v5845
        %v6020 = vpop.f32.mrb[0].mxu0
        %v6021 = vadd.f32 0.0, %v6020
        %v6022 = vpop.f32.mrb[0].mxu0
        %v6023 = vpop.f32.mrb[0].mxu0
        %v6024 = vadd.f32 0.0, %v6023
        %v6025 = vpop.f32.mrb[0].mxu0
        %6026 = vmatprep.mubr.bf16.mxu0 0
        %6027 = vmatmul.mubr.bf16.gmra.mrb[0].mxu0 %v5848
        %v6028 = vpop.f32.mrb[0].mxu0
        %v6029 = vadd.f32 0.0, %v6028
        %v6030 = vpop.f32.mrb[0].mxu0
        %v6031 = vpop.f32.mrb[0].mxu0
        %v6032 = vadd.f32 0.0, %v6031
        %v6033 = vpop.f32.mrb[0].mxu0
        %6034 = vmatprep.mubr.bf16.mxu0 0
        %6035 = vmatmul.mubr.bf16.gmra.mrb[0].mxu0 %v5851
        %v6036 = vpop.f32.mrb[0].mxu0
        %v6037 = vadd.f32 0.0, %v6036
        %v6038 = vpop.f32.mrb[0].mxu0
        %v6039 = vpop.f32.mrb[0].mxu0
        %v6040 = vadd.f32 0.0, %v6039
        %v6041 = vpop.f32.mrb[0].mxu0
        %6042 = vmatprep.mubr.bf16.mxu0 0
        %6043 = vmatmul.mubr.bf16.gmra.mrb[0].mxu0 %v5854
        %v6044 = vpop.f32.mrb[0].mxu0
        %v6045 = vadd.f32 0.0, %v6044
        %v6046 = vpop.f32.mrb[0].mxu0
        %v6047 = vpop.f32.mrb[0].mxu0
        %v6048 = vadd.f32 0.0, %v6047
        %v6049 = vpop.f32.mrb[0].mxu0
        %6050 = vmatprep.mubr.bf16.mxu0 0
        %6051 = vmatmul.mubr.bf16.gmra.mrb[0].mxu0 %v5857
        %v6052 = vpop.f32.mrb[0].mxu0
        %v6053 = vadd.f32 0.0, %v6052
        %v6054 = vpop.f32.mrb[0].mxu0
        %v6055 = vpop.f32.mrb[0].mxu0
        %v6056 = vadd.f32 0.0, %v6055
        %v6057 = vpop.f32.mrb[0].mxu0
        %6058 = vmatprep.mubr.bf16.mxu0 0
        %6059 = vmatmul.mubr.bf16.gmra.mrb[0].mxu0 %v5860
        %v6060 = vpop.f32.mrb[0].mxu0
        %v6061 = vadd.f32 0.0, %v6060
        %v6062 = vpop.f32.mrb[0].mxu0
        %v6063 = vpop.f32.mrb[0].mxu0
        %v6064 = vadd.f32 0.0, %v6063
        %v6065 = vpop.f32.mrb[0].mxu0
        %6066 = vmatprep.mubr.bf16.mxu0 0
        %6067 = vmatmul.mubr.bf16.gmra.mrb[0].mxu0 %v5863
        %v6068 = vpop.f32.mrb[0].mxu0
        %v6069 = vadd.f32 0.0, %v6068
        %v6070 = vpop.f32.mrb[0].mxu0
        %v6071 = vpop.f32.mrb[0].mxu0
        %v6072 = vadd.f32 0.0, %v6071
        %v6073 = vpop.f32.mrb[0].mxu0
        %6074 = vdwg.mxu0
        %v6075 = vadd.f32 %v5247, %v5900
        %v6076 = vadd.f32 %v5248, %v5902
        %v6077 = vadd.f32 %v5249, %v6013
        %v6078 = vadd.f32 %v5250, %v5904
        %v6079 = vadd.f32 %v5251, %v5906
        %v6080 = vadd.f32 %v5252, %v6016
        %v6081 = vadd.f32 %v5253, %v5910
        %v6082 = vadd.f32 %v5254, %v5912
        %v6083 = vadd.f32 %v5255, %v6021
        %v6084 = vadd.f32 %v5256, %v5914
        %v6085 = vadd.f32 %v5257, %v5916
        %v6086 = vadd.f32 %v5258, %v6024
        %v6087 = vadd.f32 %v5259, %v5920
        %v6088 = vadd.f32 %v5260, %v5922
        %v6089 = vadd.f32 %v5261, %v6029
        %v6090 = vadd.f32 %v5262, %v5924
        %v6091 = vadd.f32 %v5263, %v5926
        %v6092 = vadd.f32 %v5264, %v6032
        %v6093 = vadd.f32 %v5265, %v5930
        %v6094 = vadd.f32 %v5266, %v5932
        %v6095 = vadd.f32 %v5267, %v6037
        %v6096 = vadd.f32 %v5268, %v5934
        %v6097 = vadd.f32 %v5269, %v5936
        %v6098 = vadd.f32 %v5270, %v6040
        %v6099 = vadd.f32 %v5271, %v5940
        %v6100 = vadd.f32 %v5272, %v5942
        %v6101 = vadd.f32 %v5273, %v6045
        %v6102 = vadd.f32 %v5274, %v5944
        %v6103 = vadd.f32 %v5275, %v5946
        %v6104 = vadd.f32 %v5276, %v6048
        %v6105 = vadd.f32 %v5277, %v5950
        %v6106 = vadd.f32 %v5278, %v5952
        %v6107 = vadd.f32 %v5279, %v6053
        %v6108 = vadd.f32 %v5280, %v5954
        %v6109 = vadd.f32 %v5281, %v5956
        %v6110 = vadd.f32 %v5282, %v6056
        %v6111 = vadd.f32 %v5283, %v5960
        %v6112 = vadd.f32 %v5284, %v5962
        %v6113 = vadd.f32 %v5285, %v6061
        %v6114 = vadd.f32 %v5286, %v5964
        %v6115 = vadd.f32 %v5287, %v5966
        %v6116 = vadd.f32 %v5288, %v6064
        %v6117 = vadd.f32 %v5289, %v5970
        %v6118 = vadd.f32 %v5290, %v5972
        %v6119 = vadd.f32 %v5291, %v6069
        %v6120 = vadd.f32 %v5292, %v5974
        %v6121 = vadd.f32 %v5293, %v5976
        %v6122 = vadd.f32 %v5294, %v6072
        %v6124 = vsel %vm3066, %v2945, 0
        %v6127 = vsel %vm3066, %v2948, 0
        %v6130 = vsel %vm3066, %v2951, 0
        %v6133 = vsel %vm3066, %v2954, 0
        %v6136 = vsel %vm3066, %v2957, 0
        %v6139 = vsel %vm3066, %v2960, 0
        %v6142 = vsel %vm3066, %v2963, 0
        %v6145 = vsel %vm3066, %v2966, 0
        %v6148 = vsel %vm3066, %v2969, 0
        %v6151 = vsel %vm3066, %v2972, 0
        %v6154 = vsel %vm3066, %v2975, 0
        %v6157 = vsel %vm3066, %v2978, 0
        %v6160 = vsel %vm3066, %v2981, 0
        %v6163 = vsel %vm3066, %v2984, 0
        %v6166 = vsel %vm3066, %v2987, 0
        %v6169 = vsel %vm3066, %v2990, 0
        %6171 = vmatprep.subr.bf16.mxu0 0
        %6172 = vmatpush1.bf16.xpose.msra.mxu0 %v6148
        %6173 = vmatprep.subr.bf16.mxu0 0
        %6174 = vmatpush1.bf16.xpose.msra.mxu0 %v6151
        %6175 = vmatprep.subr.bf16.mxu0 0
        %6176 = vmatpush1.bf16.xpose.msra.mxu0 %v6154
        %6177 = vmatprep.subr.bf16.mxu0 0
        %6178 = vmatpush1.bf16.xpose.msra.mxu0 %v6157
        %6179 = vmatprep.subr.bf16.mxu0 0
        %6180 = vmatpush1.bf16.xpose.msra.mxu0 %v6160
        %6181 = vmatprep.subr.bf16.mxu0 0
        %6182 = vmatpush1.bf16.xpose.msra.mxu0 %v6163
        %6183 = vmatprep.subr.bf16.mxu0 0
        %6184 = vmatpush1.bf16.xpose.msra.mxu0 %v6166
        %6185 = vmatprep.subr.bf16.mxu0 0
        %6186 = vmatpush1.bf16.xpose.msra.mxu0 %v6169
        %6187 = vmatprep.subr.bf16.mxu0 0
        %6188 = vmatpush1.bf16.xpose.msra.mxu0 0
        %6189 = vmatprep.subr.bf16.mxu0 0
        %6190 = vmatpush1.bf16.xpose.msra.mxu0 0
        %6191 = vmatprep.subr.bf16.mxu0 0
        %6192 = vmatpush1.bf16.xpose.msra.mxu0 0
        %6193 = vmatprep.subr.bf16.mxu0 0
        %6194 = vmatpush1.bf16.xpose.msra.mxu0 0
        %6195 = vmatprep.subr.bf16.mxu0 0
        %6196 = vmatpush1.bf16.xpose.msra.mxu0 0
        %6197 = vmatprep.subr.bf16.mxu0 0
        %6198 = vmatpush1.bf16.xpose.msra.mxu0 0
        %6199 = vmatprep.subr.bf16.mxu0 0
        %6200 = vmatpush1.bf16.xpose.msra.mxu0 0
        %6201 = vmatprep.subr.bf16.mxu0 0
        %6202 = vmatpush1.bf16.xpose.msra.mxu0 0
        %6203 = vmatprep.mubr.bf16.mxu0 0
        %6204 = vmatmul.mubr.bf16.gmra.mrb[0].mxu0 %v6124
        %v6205 = vpop.f32.mrb[0].mxu0
        %v6206 = vadd.f32 %v3050, %v6205
        %v6207 = vpop.f32.mrb[0].mxu0
        %v6208 = vpop.f32.mrb[0].mxu0
        %v6209 = vadd.f32 %v3051, %v6208
        %v6210 = vpop.f32.mrb[0].mxu0
        %6211 = vmatprep.mubr.bf16.mxu0 0
        %6212 = vmatmul.mubr.bf16.gmra.mrb[0].mxu0 %v6127
        %v6213 = vpop.f32.mrb[0].mxu0
        %v6214 = vadd.f32 %v3052, %v6213
        %v6215 = vpop.f32.mrb[0].mxu0
        %v6216 = vpop.f32.mrb[0].mxu0
        %v6217 = vadd.f32 %v3053, %v6216
        %v6218 = vpop.f32.mrb[0].mxu0
        %6219 = vmatprep.mubr.bf16.mxu0 0
        %6220 = vmatmul.mubr.bf16.gmra.mrb[0].mxu0 %v6130
        %v6221 = vpop.f32.mrb[0].mxu0
        %v6222 = vadd.f32 %v3054, %v6221
        %v6223 = vpop.f32.mrb[0].mxu0
        %v6224 = vpop.f32.mrb[0].mxu0
        %v6225 = vadd.f32 %v3055, %v6224
        %v6226 = vpop.f32.mrb[0].mxu0
        %6227 = vmatprep.mubr.bf16.mxu0 0
        %6228 = vmatmul.mubr.bf16.gmra.mrb[0].mxu0 %v6133
        %v6229 = vpop.f32.mrb[0].mxu0
        %v6230 = vadd.f32 %v3056, %v6229
        %v6231 = vpop.f32.mrb[0].mxu0
        %v6232 = vpop.f32.mrb[0].mxu0
        %v6233 = vadd.f32 %v3057, %v6232
        %v6234 = vpop.f32.mrb[0].mxu0
        %6235 = vmatprep.mubr.bf16.mxu0 0
        %6236 = vmatmul.mubr.bf16.gmra.mrb[0].mxu0 %v6136
        %v6237 = vpop.f32.mrb[0].mxu0
        %v6238 = vadd.f32 %v3058, %v6237
        %v6239 = vpop.f32.mrb[0].mxu0
        %v6240 = vpop.f32.mrb[0].mxu0
        %v6241 = vadd.f32 %v3059, %v6240
        %v6242 = vpop.f32.mrb[0].mxu0
        %6243 = vmatprep.mubr.bf16.mxu0 0
        %6244 = vmatmul.mubr.bf16.gmra.mrb[0].mxu0 %v6139
        %v6245 = vpop.f32.mrb[0].mxu0
        %v6246 = vadd.f32 %v3060, %v6245
        %v6247 = vpop.f32.mrb[0].mxu0
        %v6248 = vpop.f32.mrb[0].mxu0
        %v6249 = vadd.f32 %v3061, %v6248
        %v6250 = vpop.f32.mrb[0].mxu0
        %6251 = vmatprep.mubr.bf16.mxu0 0
        %6252 = vmatmul.mubr.bf16.gmra.mrb[0].mxu0 %v6142
        %v6253 = vpop.f32.mrb[0].mxu0
        %v6254 = vadd.f32 %v3062, %v6253
        %v6255 = vpop.f32.mrb[0].mxu0
        %v6256 = vpop.f32.mrb[0].mxu0
        %v6257 = vadd.f32 %v3063, %v6256
        %v6258 = vpop.f32.mrb[0].mxu0
        %6259 = vmatprep.mubr.bf16.mxu0 0
        %6260 = vmatmul.mubr.bf16.gmra.mrb[0].mxu0 %v6145
        %v6261 = vpop.f32.mrb[0].mxu0
        %v6262 = vadd.f32 %v3064, %v6261
        %v6263 = vpop.f32.mrb[0].mxu0
        %v6264 = vpop.f32.mrb[0].mxu0
        %v6265 = vadd.f32 %v3065, %v6264
        %v6266 = vpop.f32.mrb[0].mxu0
        %6267 = vdwg.mxu0
        %6268 = vmax.xlane.f32.xlu0 %v6206
        %v6269 = vpop.xlane.xlu0 %6268
        %6270 = vmax.xlane.f32.xlu0 %v6209
        %v6271 = vpop.xlane.xlu0 %6270
        %6272 = vmax.xlane.f32.xlu0 %v6214
        %v6273 = vpop.xlane.xlu0 %6272
        %6274 = vmax.xlane.f32.xlu0 %v6217
        %v6275 = vpop.xlane.xlu0 %6274
        %6276 = vmax.xlane.f32.xlu0 %v6222
        %v6277 = vpop.xlane.xlu0 %6276
        %6278 = vmax.xlane.f32.xlu0 %v6225
        %v6279 = vpop.xlane.xlu0 %6278
        %6280 = vmax.xlane.f32.xlu0 %v6230
        %v6281 = vpop.xlane.xlu0 %6280
        %6282 = vmax.xlane.f32.xlu0 %v6233
        %v6283 = vpop.xlane.xlu0 %6282
        %6284 = vmax.xlane.f32.xlu0 %v6238
        %v6285 = vpop.xlane.xlu0 %6284
        %6286 = vmax.xlane.f32.xlu0 %v6241
        %v6287 = vpop.xlane.xlu0 %6286
        %6288 = vmax.xlane.f32.xlu0 %v6246
        %v6289 = vpop.xlane.xlu0 %6288
        %6290 = vmax.xlane.f32.xlu0 %v6249
        %v6291 = vpop.xlane.xlu0 %6290
        %6292 = vmax.xlane.f32.xlu0 %v6254
        %v6293 = vpop.xlane.xlu0 %6292
        %6294 = vmax.xlane.f32.xlu0 %v6257
        %v6295 = vpop.xlane.xlu0 %6294
        %6296 = vmax.xlane.f32.xlu0 %v6262
        %v6297 = vpop.xlane.xlu0 %6296
        %6298 = vmax.xlane.f32.xlu0 %v6265
        %v6299 = vpop.xlane.xlu0 %6298
        %v6300 = vsub.f32 %v6206, %v6269
        %v6301 = vsub.f32 %v6209, %v6271
        %v6302 = vsub.f32 %v6214, %v6273
        %v6303 = vsub.f32 %v6217, %v6275
        %v6304 = vsub.f32 %v6222, %v6277
        %v6305 = vsub.f32 %v6225, %v6279
        %v6306 = vsub.f32 %v6230, %v6281
        %v6307 = vsub.f32 %v6233, %v6283
        %v6308 = vsub.f32 %v6238, %v6285
        %v6309 = vsub.f32 %v6241, %v6287
        %v6310 = vsub.f32 %v6246, %v6289
        %v6311 = vsub.f32 %v6249, %v6291
        %v6312 = vsub.f32 %v6254, %v6293
        %v6313 = vsub.f32 %v6257, %v6295
        %v6314 = vsub.f32 %v6262, %v6297
        %v6315 = vsub.f32 %v6265, %v6299
        %v6316 = vmul.f32 %v6300, 1.442695
        %v6317 = vpow.pop %v6316
        %v6318 = vmul.f32 %v6301, 1.442695
        %v6319 = vpow.pop %v6318
        %v6320 = vmul.f32 %v6302, 1.442695
        %v6321 = vpow.pop %v6320
        %v6322 = vmul.f32 %v6303, 1.442695
        %v6323 = vpow.pop %v6322
        %v6324 = vmul.f32 %v6304, 1.442695
        %v6325 = vpow.pop %v6324
        %v6326 = vmul.f32 %v6305, 1.442695
        %v6327 = vpow.pop %v6326
        %v6328 = vmul.f32 %v6306, 1.442695
        %v6329 = vpow.pop %v6328
        %v6330 = vmul.f32 %v6307, 1.442695
        %v6331 = vpow.pop %v6330
        %v6332 = vmul.f32 %v6308, 1.442695
        %v6333 = vpow.pop %v6332
        %v6334 = vmul.f32 %v6309, 1.442695
        %v6335 = vpow.pop %v6334
        %v6336 = vmul.f32 %v6310, 1.442695
        %v6337 = vpow.pop %v6336
        %v6338 = vmul.f32 %v6311, 1.442695
        %v6339 = vpow.pop %v6338
        %v6340 = vmul.f32 %v6312, 1.442695
        %v6341 = vpow.pop %v6340
        %v6342 = vmul.f32 %v6313, 1.442695
        %v6343 = vpow.pop %v6342
        %v6344 = vmul.f32 %v6314, 1.442695
        %v6345 = vpow.pop %v6344
        %v6346 = vmul.f32 %v6315, 1.442695
        %v6347 = vpow.pop %v6346
        %6348 = vadd.xlane.f32.xlu0 %v6317
        %v6349 = vpop.xlane.xlu0 %6348
        %6350 = vadd.xlane.f32.xlu0 %v6319
        %v6351 = vpop.xlane.xlu0 %6350
        %6352 = vadd.xlane.f32.xlu0 %v6321
        %v6353 = vpop.xlane.xlu0 %6352
        %6354 = vadd.xlane.f32.xlu0 %v6323
        %v6355 = vpop.xlane.xlu0 %6354
        %6356 = vadd.xlane.f32.xlu0 %v6325
        %v6357 = vpop.xlane.xlu0 %6356
        %6358 = vadd.xlane.f32.xlu0 %v6327
        %v6359 = vpop.xlane.xlu0 %6358
        %6360 = vadd.xlane.f32.xlu0 %v6329
        %v6361 = vpop.xlane.xlu0 %6360
        %6362 = vadd.xlane.f32.xlu0 %v6331
        %v6363 = vpop.xlane.xlu0 %6362
        %6364 = vadd.xlane.f32.xlu0 %v6333
        %v6365 = vpop.xlane.xlu0 %6364
        %6366 = vadd.xlane.f32.xlu0 %v6335
        %v6367 = vpop.xlane.xlu0 %6366
        %6368 = vadd.xlane.f32.xlu0 %v6337
        %v6369 = vpop.xlane.xlu0 %6368
        %6370 = vadd.xlane.f32.xlu0 %v6339
        %v6371 = vpop.xlane.xlu0 %6370
        %6372 = vadd.xlane.f32.xlu0 %v6341
        %v6373 = vpop.xlane.xlu0 %6372
        %6374 = vadd.xlane.f32.xlu0 %v6343
        %v6375 = vpop.xlane.xlu0 %6374
        %6376 = vadd.xlane.f32.xlu0 %v6345
        %v6377 = vpop.xlane.xlu0 %6376
        %6378 = vadd.xlane.f32.xlu0 %v6347
        %v6379 = vpop.xlane.xlu0 %6378
        %v6380 = vrcp.pop %v6349
        %v6381 = vrcp.pop %v6351
        %v6382 = vrcp.pop %v6353
        %v6383 = vrcp.pop %v6355
        %v6384 = vrcp.pop %v6357
        %v6385 = vrcp.pop %v6359
        %v6386 = vrcp.pop %v6361
        %v6387 = vrcp.pop %v6363
        %v6388 = vrcp.pop %v6365
        %v6389 = vrcp.pop %v6367
        %v6390 = vrcp.pop %v6369
        %v6391 = vrcp.pop %v6371
        %v6392 = vrcp.pop %v6373
        %v6393 = vrcp.pop %v6375
        %v6394 = vrcp.pop %v6377
        %v6395 = vrcp.pop %v6379
        %v6396 = vmul.f32 %v6317, %v6380
        %v6397 = vmul.f32 %v6319, %v6381
        %v6398 = vmul.f32 %v6321, %v6382
        %v6399 = vmul.f32 %v6323, %v6383
        %v6400 = vmul.f32 %v6325, %v6384
        %v6401 = vmul.f32 %v6327, %v6385
        %v6402 = vmul.f32 %v6329, %v6386
        %v6403 = vmul.f32 %v6331, %v6387
        %v6404 = vmul.f32 %v6333, %v6388
        %v6405 = vmul.f32 %v6335, %v6389
        %v6406 = vmul.f32 %v6337, %v6390
        %v6407 = vmul.f32 %v6339, %v6391
        %v6408 = vmul.f32 %v6341, %v6392
        %v6409 = vmul.f32 %v6343, %v6393
        %v6410 = vmul.f32 %v6345, %v6394
        %v6411 = vmul.f32 %v6347, %v6395
        %v6412 = vpack.c.bf16 %v6397, %v6396
        %v6413 = vpack.c.bf16 %v6399, %v6398
        %v6414 = vpack.c.bf16 %v6401, %v6400
        %v6415 = vpack.c.bf16 %v6403, %v6402
        %v6416 = vpack.c.bf16 %v6405, %v6404
        %v6417 = vpack.c.bf16 %v6407, %v6406
        %v6418 = vpack.c.bf16 %v6409, %v6408
        %v6419 = vpack.c.bf16 %v6411, %v6410
        %6420 = vmatprep.subr.bf16.mxu0 0
        %6421 = vmatpush1.bf16.msra.mxu0 %v2993
        %6422 = vmatprep.subr.bf16.mxu0 0
        %6423 = vmatpush1.bf16.msra.mxu0 %v2996
        %6424 = vmatprep.subr.bf16.mxu0 0
        %6425 = vmatpush1.bf16.msra.mxu0 %v2999
        %6426 = vmatprep.subr.bf16.mxu0 0
        %6427 = vmatpush1.bf16.msra.mxu0 %v3002
        %6428 = vmatprep.subr.bf16.mxu0 0
        %6429 = vmatpush1.bf16.msra.mxu0 %v3005
        %6430 = vmatprep.subr.bf16.mxu0 0
        %6431 = vmatpush1.bf16.msra.mxu0 %v3008
        %6432 = vmatprep.subr.bf16.mxu0 0
        %6433 = vmatpush1.bf16.msra.mxu0 %v3011
        %6434 = vmatprep.subr.bf16.mxu0 0
        %6435 = vmatpush1.bf16.msra.mxu0 %v3014
        %6436 = vmatprep.subr.bf16.mxu0 0
        %6437 = vmatpush1.bf16.msra.mxu0 0
        %6438 = vmatprep.subr.bf16.mxu0 0
        %6439 = vmatpush1.bf16.msra.mxu0 0
        %6440 = vmatprep.subr.bf16.mxu0 0
        %6441 = vmatpush1.bf16.msra.mxu0 0
        %6442 = vmatprep.subr.bf16.mxu0 0
        %6443 = vmatpush1.bf16.msra.mxu0 0
        %6444 = vmatprep.subr.bf16.mxu0 0
        %6445 = vmatpush1.bf16.msra.mxu0 0
        %6446 = vmatprep.subr.bf16.mxu0 0
        %6447 = vmatpush1.bf16.msra.mxu0 0
        %6448 = vmatprep.subr.bf16.mxu0 0
        %6449 = vmatpush1.bf16.msra.mxu0 0
        %6450 = vmatprep.subr.bf16.mxu0 0
        %6451 = vmatpush1.bf16.msra.mxu0 0
        %6452 = vmatprep.mubr.bf16.mxu0 0
        %6453 = vmatmul.mubr.bf16.gmra.mrb[0].mxu0 %v6412
        %v6454 = vpop.f32.mrb[0].mxu0
        %v6455 = vadd.f32 0.0, %v6454
        %v6456 = vpop.f32.mrb[0].mxu0
        %v6457 = vpop.f32.mrb[0].mxu0
        %v6458 = vadd.f32 0.0, %v6457
        %v6459 = vpop.f32.mrb[0].mxu0
        %6460 = vmatprep.mubr.bf16.mxu0 0
        %6461 = vmatmul.mubr.bf16.gmra.mrb[0].mxu0 %v6413
        %v6462 = vpop.f32.mrb[0].mxu0
        %v6463 = vadd.f32 0.0, %v6462
        %v6464 = vpop.f32.mrb[0].mxu0
        %v6465 = vpop.f32.mrb[0].mxu0
        %v6466 = vadd.f32 0.0, %v6465
        %v6467 = vpop.f32.mrb[0].mxu0
        %6468 = vmatprep.mubr.bf16.mxu0 0
        %6469 = vmatmul.mubr.bf16.gmra.mrb[0].mxu0 %v6414
        %v6470 = vpop.f32.mrb[0].mxu0
        %v6471 = vadd.f32 0.0, %v6470
        %v6472 = vpop.f32.mrb[0].mxu0
        %v6473 = vpop.f32.mrb[0].mxu0
        %v6474 = vadd.f32 0.0, %v6473
        %v6475 = vpop.f32.mrb[0].mxu0
        %6476 = vmatprep.mubr.bf16.mxu0 0
        %6477 = vmatmul.mubr.bf16.gmra.mrb[0].mxu0 %v6415
        %v6478 = vpop.f32.mrb[0].mxu0
        %v6479 = vadd.f32 0.0, %v6478
        %v6480 = vpop.f32.mrb[0].mxu0
        %v6481 = vpop.f32.mrb[0].mxu0
        %v6482 = vadd.f32 0.0, %v6481
        %v6483 = vpop.f32.mrb[0].mxu0
        %6484 = vmatprep.mubr.bf16.mxu0 0
        %6485 = vmatmul.mubr.bf16.gmra.mrb[0].mxu0 %v6416
        %v6486 = vpop.f32.mrb[0].mxu0
        %v6487 = vadd.f32 0.0, %v6486
        %v6488 = vpop.f32.mrb[0].mxu0
        %v6489 = vpop.f32.mrb[0].mxu0
        %v6490 = vadd.f32 0.0, %v6489
        %v6491 = vpop.f32.mrb[0].mxu0
        %6492 = vmatprep.mubr.bf16.mxu0 0
        %6493 = vmatmul.mubr.bf16.gmra.mrb[0].mxu0 %v6417
        %v6494 = vpop.f32.mrb[0].mxu0
        %v6495 = vadd.f32 0.0, %v6494
        %v6496 = vpop.f32.mrb[0].mxu0
        %v6497 = vpop.f32.mrb[0].mxu0
        %v6498 = vadd.f32 0.0, %v6497
        %v6499 = vpop.f32.mrb[0].mxu0
        %6500 = vmatprep.mubr.bf16.mxu0 0
        %6501 = vmatmul.mubr.bf16.gmra.mrb[0].mxu0 %v6418
        %v6502 = vpop.f32.mrb[0].mxu0
        %v6503 = vadd.f32 0.0, %v6502
        %v6504 = vpop.f32.mrb[0].mxu0
        %v6505 = vpop.f32.mrb[0].mxu0
        %v6506 = vadd.f32 0.0, %v6505
        %v6507 = vpop.f32.mrb[0].mxu0
        %6508 = vmatprep.mubr.bf16.mxu0 0
        %6509 = vmatmul.mubr.bf16.gmra.mrb[0].mxu0 %v6419
        %v6510 = vpop.f32.mrb[0].mxu0
        %v6511 = vadd.f32 0.0, %v6510
        %v6512 = vpop.f32.mrb[0].mxu0
        %v6513 = vpop.f32.mrb[0].mxu0
        %v6514 = vadd.f32 0.0, %v6513
        %v6515 = vpop.f32.mrb[0].mxu0
        %6516 = vdwg.mxu0
        %v6517 = vpack.c.bf16 %v6458, %v6455
        %v6518 = vpack.c.bf16 %v6466, %v6463
        %v6519 = vpack.c.bf16 %v6474, %v6471
        %v6520 = vpack.c.bf16 %v6482, %v6479
        %v6521 = vpack.c.bf16 %v6490, %v6487
        %v6522 = vpack.c.bf16 %v6498, %v6495
        %v6523 = vpack.c.bf16 %v6506, %v6503
        %v6524 = vpack.c.bf16 %v6514, %v6511
        %v6541 = vunpack.c.l.b16 %v533
        %v6542 = vunpack.c.h.b16 %v533
        %v6543 = vunpack.c.l.b16 %v534
        %v6544 = vunpack.c.l.b16 %v535
        %v6545 = vunpack.c.h.b16 %v535
        %v6546 = vunpack.c.l.b16 %v536
        %v6547 = vunpack.c.l.b16 %v537
        %v6548 = vunpack.c.h.b16 %v537
        %v6549 = vunpack.c.l.b16 %v538
        %v6550 = vunpack.c.l.b16 %v539
        %v6551 = vunpack.c.h.b16 %v539
        %v6552 = vunpack.c.l.b16 %v540
        %v6553 = vunpack.c.l.b16 %v541
        %v6554 = vunpack.c.h.b16 %v541
        %v6555 = vunpack.c.l.b16 %v542
        %v6556 = vunpack.c.l.b16 %v543
        %v6557 = vunpack.c.h.b16 %v543
        %v6558 = vunpack.c.l.b16 %v544
        %v6559 = vunpack.c.l.b16 %v545
        %v6560 = vunpack.c.h.b16 %v545
        %v6561 = vunpack.c.l.b16 %v546
        %v6562 = vunpack.c.l.b16 %v547
        %v6563 = vunpack.c.h.b16 %v547
        %v6564 = vunpack.c.l.b16 %v548
        %v6565 = vpack.c.b16 %v6544, %v6541
        %v6566 = vpack.c.b16 %v6545, %v6542
        %v6567 = vpack.c.b16 %v6546, %v6543
        %v6568 = vpack.c.b16 %v6550, %v6547
        %v6569 = vpack.c.b16 %v6551, %v6548
        %v6570 = vpack.c.b16 %v6552, %v6549
        %v6571 = vpack.c.b16 %v6556, %v6553
        %v6572 = vpack.c.b16 %v6557, %v6554
        %v6573 = vpack.c.b16 %v6558, %v6555
        %v6574 = vpack.c.b16 %v6562, %v6559
        %v6575 = vpack.c.b16 %v6563, %v6560
        %v6576 = vpack.c.b16 %v6564, %v6561
        %v6590 = vsel %vm3066, %v6517, 0
        %v6593 = vsel %vm3066, %v6518, 0
        %v6596 = vsel %vm3066, %v6519, 0
        %v6599 = vsel %vm3066, %v6520, 0
        %v6602 = vsel %vm3066, %v6521, 0
        %v6605 = vsel %vm3066, %v6522, 0
        %v6608 = vsel %vm3066, %v6523, 0
        %v6611 = vsel %vm3066, %v6524, 0
        %6613 = vmatprep.subr.bf16.mxu0 %v6566
        %6614 = vmatpush1.bf16.msra.mxu0 %v6565
        %6615 = vmatprep.subr.bf16.mxu0 %v6569
        %6616 = vmatpush1.bf16.msra.mxu0 %v6568
        %6617 = vmatprep.subr.bf16.mxu0 %v6572
        %6618 = vmatpush1.bf16.msra.mxu0 %v6571
        %6619 = vmatprep.subr.bf16.mxu0 %v6575
        %6620 = vmatpush1.bf16.msra.mxu0 %v6574
        %6621 = vmatprep.subr.bf16.mxu0 0
        %6622 = vmatpush1.bf16.msra.mxu0 0
        %6623 = vmatprep.subr.bf16.mxu0 0
        %6624 = vmatpush1.bf16.msra.mxu0 0
        %6625 = vmatprep.subr.bf16.mxu0 0
        %6626 = vmatpush1.bf16.msra.mxu0 0
        %6627 = vmatprep.subr.bf16.mxu0 0
        %6628 = vmatpush1.bf16.msra.mxu0 0
        %6629 = vmatprep.subr.bf16.mxu0 0
        %6630 = vmatpush1.bf16.msra.mxu0 0
        %6631 = vmatprep.subr.bf16.mxu0 0
        %6632 = vmatpush1.bf16.msra.mxu0 0
        %6633 = vmatprep.subr.bf16.mxu0 0
        %6634 = vmatpush1.bf16.msra.mxu0 0
        %6635 = vmatprep.subr.bf16.mxu0 0
        %6636 = vmatpush1.bf16.msra.mxu0 0
        %6637 = vmatprep.subr.bf16.mxu0 0
        %6638 = vmatpush1.bf16.msra.mxu0 0
        %6639 = vmatprep.subr.bf16.mxu0 0
        %6640 = vmatpush1.bf16.msra.mxu0 0
        %6641 = vmatprep.subr.bf16.mxu0 0
        %6642 = vmatpush1.bf16.msra.mxu0 0
        %6643 = vmatprep.subr.bf16.mxu0 0
        %6644 = vmatpush1.bf16.msra.mxu0 0
        %6645 = vmatprep.mubr.bf16.mxu0 0
        %6646 = vmatmul.mubr.bf16.gmra.mrb[0].mxu0 %v6590
        %v6647 = vpop.f32.mrb[0].mxu0
        %v6648 = vadd.f32 0.0, %v6647
        %v6649 = vpop.f32.mrb[0].mxu0
        %v6650 = vadd.f32 0.0, %v6649
        %v6651 = vpop.f32.mrb[0].mxu0
        %v6652 = vadd.f32 0.0, %v6651
        %v6653 = vpop.f32.mrb[0].mxu0
        %v6654 = vadd.f32 0.0, %v6653
        %6655 = vmatprep.mubr.bf16.mxu0 0
        %6656 = vmatmul.mubr.bf16.gmra.mrb[0].mxu0 %v6593
        %v6657 = vpop.f32.mrb[0].mxu0
        %v6658 = vadd.f32 0.0, %v6657
        %v6659 = vpop.f32.mrb[0].mxu0
        %v6660 = vadd.f32 0.0, %v6659
        %v6661 = vpop.f32.mrb[0].mxu0
        %v6662 = vadd.f32 0.0, %v6661
        %v6663 = vpop.f32.mrb[0].mxu0
        %v6664 = vadd.f32 0.0, %v6663
        %6665 = vmatprep.mubr.bf16.mxu0 0
        %6666 = vmatmul.mubr.bf16.gmra.mrb[0].mxu0 %v6596
        %v6667 = vpop.f32.mrb[0].mxu0
        %v6668 = vadd.f32 0.0, %v6667
        %v6669 = vpop.f32.mrb[0].mxu0
        %v6670 = vadd.f32 0.0, %v6669
        %v6671 = vpop.f32.mrb[0].mxu0
        %v6672 = vadd.f32 0.0, %v6671
        %v6673 = vpop.f32.mrb[0].mxu0
        %v6674 = vadd.f32 0.0, %v6673
        %6675 = vmatprep.mubr.bf16.mxu0 0
        %6676 = vmatmul.mubr.bf16.gmra.mrb[0].mxu0 %v6599
        %v6677 = vpop.f32.mrb[0].mxu0
        %v6678 = vadd.f32 0.0, %v6677
        %v6679 = vpop.f32.mrb[0].mxu0
        %v6680 = vadd.f32 0.0, %v6679
        %v6681 = vpop.f32.mrb[0].mxu0
        %v6682 = vadd.f32 0.0, %v6681
        %v6683 = vpop.f32.mrb[0].mxu0
        %v6684 = vadd.f32 0.0, %v6683
        %6685 = vmatprep.mubr.bf16.mxu0 0
        %6686 = vmatmul.mubr.bf16.gmra.mrb[0].mxu0 %v6602
        %v6687 = vpop.f32.mrb[0].mxu0
        %v6688 = vadd.f32 0.0, %v6687
        %v6689 = vpop.f32.mrb[0].mxu0
        %v6690 = vadd.f32 0.0, %v6689
        %v6691 = vpop.f32.mrb[0].mxu0
        %v6692 = vadd.f32 0.0, %v6691
        %v6693 = vpop.f32.mrb[0].mxu0
        %v6694 = vadd.f32 0.0, %v6693
        %6695 = vmatprep.mubr.bf16.mxu0 0
        %6696 = vmatmul.mubr.bf16.gmra.mrb[0].mxu0 %v6605
        %v6697 = vpop.f32.mrb[0].mxu0
        %v6698 = vadd.f32 0.0, %v6697
        %v6699 = vpop.f32.mrb[0].mxu0
        %v6700 = vadd.f32 0.0, %v6699
        %v6701 = vpop.f32.mrb[0].mxu0
        %v6702 = vadd.f32 0.0, %v6701
        %v6703 = vpop.f32.mrb[0].mxu0
        %v6704 = vadd.f32 0.0, %v6703
        %6705 = vmatprep.mubr.bf16.mxu0 0
        %6706 = vmatmul.mubr.bf16.gmra.mrb[0].mxu0 %v6608
        %v6707 = vpop.f32.mrb[0].mxu0
        %v6708 = vadd.f32 0.0, %v6707
        %v6709 = vpop.f32.mrb[0].mxu0
        %v6710 = vadd.f32 0.0, %v6709
        %v6711 = vpop.f32.mrb[0].mxu0
        %v6712 = vadd.f32 0.0, %v6711
        %v6713 = vpop.f32.mrb[0].mxu0
        %v6714 = vadd.f32 0.0, %v6713
        %6715 = vmatprep.mubr.bf16.mxu0 0
        %6716 = vmatmul.mubr.bf16.gmra.mrb[0].mxu0 %v6611
        %v6717 = vpop.f32.mrb[0].mxu0
        %v6718 = vadd.f32 0.0, %v6717
        %v6719 = vpop.f32.mrb[0].mxu0
        %v6720 = vadd.f32 0.0, %v6719
        %v6721 = vpop.f32.mrb[0].mxu0
        %v6722 = vadd.f32 0.0, %v6721
        %v6723 = vpop.f32.mrb[0].mxu0
        %v6724 = vadd.f32 0.0, %v6723
        %6725 = vdwg.mxu0
        %6726 = vmatprep.subr.bf16.mxu0 0
        %6727 = vmatpush1.bf16.msra.mxu0 %v6567
        %6728 = vmatprep.subr.bf16.mxu0 0
        %6729 = vmatpush1.bf16.msra.mxu0 %v6570
        %6730 = vmatprep.subr.bf16.mxu0 0
        %6731 = vmatpush1.bf16.msra.mxu0 %v6573
        %6732 = vmatprep.subr.bf16.mxu0 0
        %6733 = vmatpush1.bf16.msra.mxu0 %v6576
        %6734 = vmatprep.subr.bf16.mxu0 0
        %6735 = vmatpush1.bf16.msra.mxu0 0
        %6736 = vmatprep.subr.bf16.mxu0 0
        %6737 = vmatpush1.bf16.msra.mxu0 0
        %6738 = vmatprep.subr.bf16.mxu0 0
        %6739 = vmatpush1.bf16.msra.mxu0 0
        %6740 = vmatprep.subr.bf16.mxu0 0
        %6741 = vmatpush1.bf16.msra.mxu0 0
        %6742 = vmatprep.subr.bf16.mxu0 0
        %6743 = vmatpush1.bf16.msra.mxu0 0
        %6744 = vmatprep.subr.bf16.mxu0 0
        %6745 = vmatpush1.bf16.msra.mxu0 0
        %6746 = vmatprep.subr.bf16.mxu0 0
        %6747 = vmatpush1.bf16.msra.mxu0 0
        %6748 = vmatprep.subr.bf16.mxu0 0
        %6749 = vmatpush1.bf16.msra.mxu0 0
        %6750 = vmatprep.subr.bf16.mxu0 0
        %6751 = vmatpush1.bf16.msra.mxu0 0
        %6752 = vmatprep.subr.bf16.mxu0 0
        %6753 = vmatpush1.bf16.msra.mxu0 0
        %6754 = vmatprep.subr.bf16.mxu0 0
        %6755 = vmatpush1.bf16.msra.mxu0 0
        %6756 = vmatprep.subr.bf16.mxu0 0
        %6757 = vmatpush1.bf16.msra.mxu0 0
        %6758 = vmatprep.mubr.bf16.mxu0 0
        %6759 = vmatmul.mubr.bf16.gmra.mrb[0].mxu0 %v6590
        %v6760 = vpop.f32.mrb[0].mxu0
        %v6761 = vadd.f32 0.0, %v6760
        %v6762 = vpop.f32.mrb[0].mxu0
        %v6763 = vpop.f32.mrb[0].mxu0
        %v6764 = vadd.f32 0.0, %v6763
        %v6765 = vpop.f32.mrb[0].mxu0
        %6766 = vmatprep.mubr.bf16.mxu0 0
        %6767 = vmatmul.mubr.bf16.gmra.mrb[0].mxu0 %v6593
        %v6768 = vpop.f32.mrb[0].mxu0
        %v6769 = vadd.f32 0.0, %v6768
        %v6770 = vpop.f32.mrb[0].mxu0
        %v6771 = vpop.f32.mrb[0].mxu0
        %v6772 = vadd.f32 0.0, %v6771
        %v6773 = vpop.f32.mrb[0].mxu0
        %6774 = vmatprep.mubr.bf16.mxu0 0
        %6775 = vmatmul.mubr.bf16.gmra.mrb[0].mxu0 %v6596
        %v6776 = vpop.f32.mrb[0].mxu0
        %v6777 = vadd.f32 0.0, %v6776
        %v6778 = vpop.f32.mrb[0].mxu0
        %v6779 = vpop.f32.mrb[0].mxu0
        %v6780 = vadd.f32 0.0, %v6779
        %v6781 = vpop.f32.mrb[0].mxu0
        %6782 = vmatprep.mubr.bf16.mxu0 0
        %6783 = vmatmul.mubr.bf16.gmra.mrb[0].mxu0 %v6599
        %v6784 = vpop.f32.mrb[0].mxu0
        %v6785 = vadd.f32 0.0, %v6784
        %v6786 = vpop.f32.mrb[0].mxu0
        %v6787 = vpop.f32.mrb[0].mxu0
        %v6788 = vadd.f32 0.0, %v6787
        %v6789 = vpop.f32.mrb[0].mxu0
        %6790 = vmatprep.mubr.bf16.mxu0 0
        %6791 = vmatmul.mubr.bf16.gmra.mrb[0].mxu0 %v6602
        %v6792 = vpop.f32.mrb[0].mxu0
        %v6793 = vadd.f32 0.0, %v6792
        %v6794 = vpop.f32.mrb[0].mxu0
        %v6795 = vpop.f32.mrb[0].mxu0
        %v6796 = vadd.f32 0.0, %v6795
        %v6797 = vpop.f32.mrb[0].mxu0
        %6798 = vmatprep.mubr.bf16.mxu0 0
        %6799 = vmatmul.mubr.bf16.gmra.mrb[0].mxu0 %v6605
        %v6800 = vpop.f32.mrb[0].mxu0
        %v6801 = vadd.f32 0.0, %v6800
        %v6802 = vpop.f32.mrb[0].mxu0
        %v6803 = vpop.f32.mrb[0].mxu0
        %v6804 = vadd.f32 0.0, %v6803
        %v6805 = vpop.f32.mrb[0].mxu0
        %6806 = vmatprep.mubr.bf16.mxu0 0
        %6807 = vmatmul.mubr.bf16.gmra.mrb[0].mxu0 %v6608
        %v6808 = vpop.f32.mrb[0].mxu0
        %v6809 = vadd.f32 0.0, %v6808
        %v6810 = vpop.f32.mrb[0].mxu0
        %v6811 = vpop.f32.mrb[0].mxu0
        %v6812 = vadd.f32 0.0, %v6811
        %v6813 = vpop.f32.mrb[0].mxu0
        %6814 = vmatprep.mubr.bf16.mxu0 0
        %6815 = vmatmul.mubr.bf16.gmra.mrb[0].mxu0 %v6611
        %v6816 = vpop.f32.mrb[0].mxu0
        %v6817 = vadd.f32 0.0, %v6816
        %v6818 = vpop.f32.mrb[0].mxu0
        %v6819 = vpop.f32.mrb[0].mxu0
        %v6820 = vadd.f32 0.0, %v6819
        %v6821 = vpop.f32.mrb[0].mxu0
        %6822 = vdwg.mxu0
        %v6823 = vadd.f32 %v6075, %v6648
        %v6824 = vadd.f32 %v6076, %v6650
        %v6825 = vadd.f32 %v6077, %v6761
        %v6826 = vadd.f32 %v6078, %v6652
        %v6827 = vadd.f32 %v6079, %v6654
        %v6828 = vadd.f32 %v6080, %v6764
        %v6829 = vadd.f32 %v6081, %v6658
        %v6830 = vadd.f32 %v6082, %v6660
        %v6831 = vadd.f32 %v6083, %v6769
        %v6832 = vadd.f32 %v6084, %v6662
        %v6833 = vadd.f32 %v6085, %v6664
        %v6834 = vadd.f32 %v6086, %v6772
        %v6835 = vadd.f32 %v6087, %v6668
        %v6836 = vadd.f32 %v6088, %v6670
        %v6837 = vadd.f32 %v6089, %v6777
        %v6838 = vadd.f32 %v6090, %v6672
        %v6839 = vadd.f32 %v6091, %v6674
        %v6840 = vadd.f32 %v6092, %v6780
        %v6841 = vadd.f32 %v6093, %v6678
        %v6842 = vadd.f32 %v6094, %v6680
        %v6843 = vadd.f32 %v6095, %v6785
        %v6844 = vadd.f32 %v6096, %v6682
        %v6845 = vadd.f32 %v6097, %v6684
        %v6846 = vadd.f32 %v6098, %v6788
        %v6847 = vadd.f32 %v6099, %v6688
        %v6848 = vadd.f32 %v6100, %v6690
        %v6849 = vadd.f32 %v6101, %v6793
        %v6850 = vadd.f32 %v6102, %v6692
        %v6851 = vadd.f32 %v6103, %v6694
        %v6852 = vadd.f32 %v6104, %v6796
        %v6853 = vadd.f32 %v6105, %v6698
        %v6854 = vadd.f32 %v6106, %v6700
        %v6855 = vadd.f32 %v6107, %v6801
        %v6856 = vadd.f32 %v6108, %v6702
        %v6857 = vadd.f32 %v6109, %v6704
        %v6858 = vadd.f32 %v6110, %v6804
        %v6859 = vadd.f32 %v6111, %v6708
        %v6860 = vadd.f32 %v6112, %v6710
        %v6861 = vadd.f32 %v6113, %v6809
        %v6862 = vadd.f32 %v6114, %v6712
        %v6863 = vadd.f32 %v6115, %v6714
        %v6864 = vadd.f32 %v6116, %v6812
        %v6865 = vadd.f32 %v6117, %v6718
        %v6866 = vadd.f32 %v6118, %v6720
        %v6867 = vadd.f32 %v6119, %v6817
        %v6868 = vadd.f32 %v6120, %v6722
        %v6869 = vadd.f32 %v6121, %v6724
        %v6870 = vadd.f32 %v6122, %v6820
        %6879 = vrot.lane.b32.xlu0 %v2945, 64
        %v6880 = vpop.permute.xlu0 %6879
        %6881 = vrot.lane.b32.xlu0 %v2948, 64
        %v6882 = vpop.permute.xlu0 %6881
        %6883 = vrot.lane.b32.xlu0 %v2951, 64
        %v6884 = vpop.permute.xlu0 %6883
        %6885 = vrot.lane.b32.xlu0 %v2954, 64
        %v6886 = vpop.permute.xlu0 %6885
        %6887 = vrot.lane.b32.xlu0 %v2957, 64
        %v6888 = vpop.permute.xlu0 %6887
        %6889 = vrot.lane.b32.xlu0 %v2960, 64
        %v6890 = vpop.permute.xlu0 %6889
        %6891 = vrot.lane.b32.xlu0 %v2963, 64
        %v6892 = vpop.permute.xlu0 %6891
        %6893 = vrot.lane.b32.xlu0 %v2966, 64
        %v6894 = vpop.permute.xlu0 %6893
        %6903 = vrot.lane.b32.xlu0 %v2969, 64
        %v6904 = vpop.permute.xlu0 %6903
        %6905 = vrot.lane.b32.xlu0 %v2972, 64
        %v6906 = vpop.permute.xlu0 %6905
        %6907 = vrot.lane.b32.xlu0 %v2975, 64
        %v6908 = vpop.permute.xlu0 %6907
        %6909 = vrot.lane.b32.xlu0 %v2978, 64
        %v6910 = vpop.permute.xlu0 %6909
        %6911 = vrot.lane.b32.xlu0 %v2981, 64
        %v6912 = vpop.permute.xlu0 %6911
        %6913 = vrot.lane.b32.xlu0 %v2984, 64
        %v6914 = vpop.permute.xlu0 %6913
        %6915 = vrot.lane.b32.xlu0 %v2987, 64
        %v6916 = vpop.permute.xlu0 %6915
        %6917 = vrot.lane.b32.xlu0 %v2990, 64
        %v6918 = vpop.permute.xlu0 %6917
        %v6920 = vsel %vm3066, %v6880, 0
        %v6923 = vsel %vm3066, %v6882, 0
        %v6926 = vsel %vm3066, %v6884, 0
        %v6929 = vsel %vm3066, %v6886, 0
        %v6932 = vsel %vm3066, %v6888, 0
        %v6935 = vsel %vm3066, %v6890, 0
        %v6938 = vsel %vm3066, %v6892, 0
        %v6941 = vsel %vm3066, %v6894, 0
        %v6944 = vsel %vm3066, %v6904, 0
        %v6947 = vsel %vm3066, %v6906, 0
        %v6950 = vsel %vm3066, %v6908, 0
        %v6953 = vsel %vm3066, %v6910, 0
        %v6956 = vsel %vm3066, %v6912, 0
        %v6959 = vsel %vm3066, %v6914, 0
        %v6962 = vsel %vm3066, %v6916, 0
        %v6965 = vsel %vm3066, %v6918, 0
        %6967 = vmatprep.subr.bf16.mxu0 0
        %6968 = vmatpush1.bf16.xpose.msra.mxu0 %v6944
        %6969 = vmatprep.subr.bf16.mxu0 0
        %6970 = vmatpush1.bf16.xpose.msra.mxu0 %v6947
        %6971 = vmatprep.subr.bf16.mxu0 0
        %6972 = vmatpush1.bf16.xpose.msra.mxu0 %v6950
        %6973 = vmatprep.subr.bf16.mxu0 0
        %6974 = vmatpush1.bf16.xpose.msra.mxu0 %v6953
        %6975 = vmatprep.subr.bf16.mxu0 0
        %6976 = vmatpush1.bf16.xpose.msra.mxu0 %v6956
        %6977 = vmatprep.subr.bf16.mxu0 0
        %6978 = vmatpush1.bf16.xpose.msra.mxu0 %v6959
        %6979 = vmatprep.subr.bf16.mxu0 0
        %6980 = vmatpush1.bf16.xpose.msra.mxu0 %v6962
        %6981 = vmatprep.subr.bf16.mxu0 0
        %6982 = vmatpush1.bf16.xpose.msra.mxu0 %v6965
        %6983 = vmatprep.subr.bf16.mxu0 0
        %6984 = vmatpush1.bf16.xpose.msra.mxu0 0
        %6985 = vmatprep.subr.bf16.mxu0 0
        %6986 = vmatpush1.bf16.xpose.msra.mxu0 0
        %6987 = vmatprep.subr.bf16.mxu0 0
        %6988 = vmatpush1.bf16.xpose.msra.mxu0 0
        %6989 = vmatprep.subr.bf16.mxu0 0
        %6990 = vmatpush1.bf16.xpose.msra.mxu0 0
        %6991 = vmatprep.subr.bf16.mxu0 0
        %6992 = vmatpush1.bf16.xpose.msra.mxu0 0
        %6993 = vmatprep.subr.bf16.mxu0 0
        %6994 = vmatpush1.bf16.xpose.msra.mxu0 0
        %6995 = vmatprep.subr.bf16.mxu0 0
        %6996 = vmatpush1.bf16.xpose.msra.mxu0 0
        %6997 = vmatprep.subr.bf16.mxu0 0
        %6998 = vmatpush1.bf16.xpose.msra.mxu0 0
        %6999 = vmatprep.mubr.bf16.mxu0 0
        %7000 = vmatmul.mubr.bf16.gmra.mrb[0].mxu0 %v6920
        %v7001 = vpop.f32.mrb[0].mxu0
        %v7002 = vadd.f32 %v3050, %v7001
        %v7003 = vpop.f32.mrb[0].mxu0
        %v7004 = vpop.f32.mrb[0].mxu0
        %v7005 = vadd.f32 %v3051, %v7004
        %v7006 = vpop.f32.mrb[0].mxu0
        %7007 = vmatprep.mubr.bf16.mxu0 0
        %7008 = vmatmul.mubr.bf16.gmra.mrb[0].mxu0 %v6923
        %v7009 = vpop.f32.mrb[0].mxu0
        %v7010 = vadd.f32 %v3052, %v7009
        %v7011 = vpop.f32.mrb[0].mxu0
        %v7012 = vpop.f32.mrb[0].mxu0
        %v7013 = vadd.f32 %v3053, %v7012
        %v7014 = vpop.f32.mrb[0].mxu0
        %7015 = vmatprep.mubr.bf16.mxu0 0
        %7016 = vmatmul.mubr.bf16.gmra.mrb[0].mxu0 %v6926
        %v7017 = vpop.f32.mrb[0].mxu0
        %v7018 = vadd.f32 %v3054, %v7017
        %v7019 = vpop.f32.mrb[0].mxu0
        %v7020 = vpop.f32.mrb[0].mxu0
        %v7021 = vadd.f32 %v3055, %v7020
        %v7022 = vpop.f32.mrb[0].mxu0
        %7023 = vmatprep.mubr.bf16.mxu0 0
        %7024 = vmatmul.mubr.bf16.gmra.mrb[0].mxu0 %v6929
        %v7025 = vpop.f32.mrb[0].mxu0
        %v7026 = vadd.f32 %v3056, %v7025
        %v7027 = vpop.f32.mrb[0].mxu0
        %v7028 = vpop.f32.mrb[0].mxu0
        %v7029 = vadd.f32 %v3057, %v7028
        %v7030 = vpop.f32.mrb[0].mxu0
        %7031 = vmatprep.mubr.bf16.mxu0 0
        %7032 = vmatmul.mubr.bf16.gmra.mrb[0].mxu0 %v6932
        %v7033 = vpop.f32.mrb[0].mxu0
        %v7034 = vadd.f32 %v3058, %v7033
        %v7035 = vpop.f32.mrb[0].mxu0
        %v7036 = vpop.f32.mrb[0].mxu0
        %v7037 = vadd.f32 %v3059, %v7036
        %v7038 = vpop.f32.mrb[0].mxu0
        %7039 = vmatprep.mubr.bf16.mxu0 0
        %7040 = vmatmul.mubr.bf16.gmra.mrb[0].mxu0 %v6935
        %v7041 = vpop.f32.mrb[0].mxu0
        %v7042 = vadd.f32 %v3060, %v7041
        %v7043 = vpop.f32.mrb[0].mxu0
        %v7044 = vpop.f32.mrb[0].mxu0
        %v7045 = vadd.f32 %v3061, %v7044
        %v7046 = vpop.f32.mrb[0].mxu0
        %7047 = vmatprep.mubr.bf16.mxu0 0
        %7048 = vmatmul.mubr.bf16.gmra.mrb[0].mxu0 %v6938
        %v7049 = vpop.f32.mrb[0].mxu0
        %v7050 = vadd.f32 %v3062, %v7049
        %v7051 = vpop.f32.mrb[0].mxu0
        %v7052 = vpop.f32.mrb[0].mxu0
        %v7053 = vadd.f32 %v3063, %v7052
        %v7054 = vpop.f32.mrb[0].mxu0
        %7055 = vmatprep.mubr.bf16.mxu0 0
        %7056 = vmatmul.mubr.bf16.gmra.mrb[0].mxu0 %v6941
        %v7057 = vpop.f32.mrb[0].mxu0
        %v7058 = vadd.f32 %v3064, %v7057
        %v7059 = vpop.f32.mrb[0].mxu0
        %v7060 = vpop.f32.mrb[0].mxu0
        %v7061 = vadd.f32 %v3065, %v7060
        %v7062 = vpop.f32.mrb[0].mxu0
        %7063 = vdwg.mxu0
        %7064 = vmax.xlane.f32.xlu0 %v7002
        %v7065 = vpop.xlane.xlu0 %7064
        %7066 = vmax.xlane.f32.xlu0 %v7005
        %v7067 = vpop.xlane.xlu0 %7066
        %7068 = vmax.xlane.f32.xlu0 %v7010
        %v7069 = vpop.xlane.xlu0 %7068
        %7070 = vmax.xlane.f32.xlu0 %v7013
        %v7071 = vpop.xlane.xlu0 %7070
        %7072 = vmax.xlane.f32.xlu0 %v7018
        %v7073 = vpop.xlane.xlu0 %7072
        %7074 = vmax.xlane.f32.xlu0 %v7021
        %v7075 = vpop.xlane.xlu0 %7074
        %7076 = vmax.xlane.f32.xlu0 %v7026
        %v7077 = vpop.xlane.xlu0 %7076
        %7078 = vmax.xlane.f32.xlu0 %v7029
        %v7079 = vpop.xlane.xlu0 %7078
        %7080 = vmax.xlane.f32.xlu0 %v7034
        %v7081 = vpop.xlane.xlu0 %7080
        %7082 = vmax.xlane.f32.xlu0 %v7037
        %v7083 = vpop.xlane.xlu0 %7082
        %7084 = vmax.xlane.f32.xlu0 %v7042
        %v7085 = vpop.xlane.xlu0 %7084
        %7086 = vmax.xlane.f32.xlu0 %v7045
        %v7087 = vpop.xlane.xlu0 %7086
        %7088 = vmax.xlane.f32.xlu0 %v7050
        %v7089 = vpop.xlane.xlu0 %7088
        %7090 = vmax.xlane.f32.xlu0 %v7053
        %v7091 = vpop.xlane.xlu0 %7090
        %7092 = vmax.xlane.f32.xlu0 %v7058
        %v7093 = vpop.xlane.xlu0 %7092
        %7094 = vmax.xlane.f32.xlu0 %v7061
        %v7095 = vpop.xlane.xlu0 %7094
        %v7096 = vsub.f32 %v7002, %v7065
        %v7097 = vsub.f32 %v7005, %v7067
        %v7098 = vsub.f32 %v7010, %v7069
        %v7099 = vsub.f32 %v7013, %v7071
        %v7100 = vsub.f32 %v7018, %v7073
        %v7101 = vsub.f32 %v7021, %v7075
        %v7102 = vsub.f32 %v7026, %v7077
        %v7103 = vsub.f32 %v7029, %v7079
        %v7104 = vsub.f32 %v7034, %v7081
        %v7105 = vsub.f32 %v7037, %v7083
        %v7106 = vsub.f32 %v7042, %v7085
        %v7107 = vsub.f32 %v7045, %v7087
        %v7108 = vsub.f32 %v7050, %v7089
        %v7109 = vsub.f32 %v7053, %v7091
        %v7110 = vsub.f32 %v7058, %v7093
        %v7111 = vsub.f32 %v7061, %v7095
        %v7112 = vmul.f32 %v7096, 1.442695
        %v7113 = vpow.pop %v7112
        %v7114 = vmul.f32 %v7097, 1.442695
        %v7115 = vpow.pop %v7114
        %v7116 = vmul.f32 %v7098, 1.442695
        %v7117 = vpow.pop %v7116
        %v7118 = vmul.f32 %v7099, 1.442695
        %v7119 = vpow.pop %v7118
        %v7120 = vmul.f32 %v7100, 1.442695
        %v7121 = vpow.pop %v7120
        %v7122 = vmul.f32 %v7101, 1.442695
        %v7123 = vpow.pop %v7122
        %v7124 = vmul.f32 %v7102, 1.442695
        %v7125 = vpow.pop %v7124
        %v7126 = vmul.f32 %v7103, 1.442695
        %v7127 = vpow.pop %v7126
        %v7128 = vmul.f32 %v7104, 1.442695
        %v7129 = vpow.pop %v7128
        %v7130 = vmul.f32 %v7105, 1.442695
        %v7131 = vpow.pop %v7130
        %v7132 = vmul.f32 %v7106, 1.442695
        %v7133 = vpow.pop %v7132
        %v7134 = vmul.f32 %v7107, 1.442695
        %v7135 = vpow.pop %v7134
        %v7136 = vmul.f32 %v7108, 1.442695
        %v7137 = vpow.pop %v7136
        %v7138 = vmul.f32 %v7109, 1.442695
        %v7139 = vpow.pop %v7138
        %v7140 = vmul.f32 %v7110, 1.442695
        %v7141 = vpow.pop %v7140
        %v7142 = vmul.f32 %v7111, 1.442695
        %v7143 = vpow.pop %v7142
        %7144 = vadd.xlane.f32.xlu0 %v7113
        %v7145 = vpop.xlane.xlu0 %7144
        %7146 = vadd.xlane.f32.xlu0 %v7115
        %v7147 = vpop.xlane.xlu0 %7146
        %7148 = vadd.xlane.f32.xlu0 %v7117
        %v7149 = vpop.xlane.xlu0 %7148
        %7150 = vadd.xlane.f32.xlu0 %v7119
        %v7151 = vpop.xlane.xlu0 %7150
        %7152 = vadd.xlane.f32.xlu0 %v7121
        %v7153 = vpop.xlane.xlu0 %7152
        %7154 = vadd.xlane.f32.xlu0 %v7123
        %v7155 = vpop.xlane.xlu0 %7154
        %7156 = vadd.xlane.f32.xlu0 %v7125
        %v7157 = vpop.xlane.xlu0 %7156
        %7158 = vadd.xlane.f32.xlu0 %v7127
        %v7159 = vpop.xlane.xlu0 %7158
        %7160 = vadd.xlane.f32.xlu0 %v7129
        %v7161 = vpop.xlane.xlu0 %7160
        %7162 = vadd.xlane.f32.xlu0 %v7131
        %v7163 = vpop.xlane.xlu0 %7162
        %7164 = vadd.xlane.f32.xlu0 %v7133
        %v7165 = vpop.xlane.xlu0 %7164
        %7166 = vadd.xlane.f32.xlu0 %v7135
        %v7167 = vpop.xlane.xlu0 %7166
        %7168 = vadd.xlane.f32.xlu0 %v7137
        %v7169 = vpop.xlane.xlu0 %7168
        %7170 = vadd.xlane.f32.xlu0 %v7139
        %v7171 = vpop.xlane.xlu0 %7170
        %7172 = vadd.xlane.f32.xlu0 %v7141
        %v7173 = vpop.xlane.xlu0 %7172
        %7174 = vadd.xlane.f32.xlu0 %v7143
        %v7175 = vpop.xlane.xlu0 %7174
        %v7176 = vrcp.pop %v7145
        %v7177 = vrcp.pop %v7147
        %v7178 = vrcp.pop %v7149
        %v7179 = vrcp.pop %v7151
        %v7180 = vrcp.pop %v7153
        %v7181 = vrcp.pop %v7155
        %v7182 = vrcp.pop %v7157
        %v7183 = vrcp.pop %v7159
        %v7184 = vrcp.pop %v7161
        %v7185 = vrcp.pop %v7163
        %v7186 = vrcp.pop %v7165
        %v7187 = vrcp.pop %v7167
        %v7188 = vrcp.pop %v7169
        %v7189 = vrcp.pop %v7171
        %v7190 = vrcp.pop %v7173
        %v7191 = vrcp.pop %v7175
        %v7192 = vmul.f32 %v7113, %v7176
        %v7193 = vmul.f32 %v7115, %v7177
        %v7194 = vmul.f32 %v7117, %v7178
        %v7195 = vmul.f32 %v7119, %v7179
        %v7196 = vmul.f32 %v7121, %v7180
        %v7197 = vmul.f32 %v7123, %v7181
        %v7198 = vmul.f32 %v7125, %v7182
        %v7199 = vmul.f32 %v7127, %v7183
        %v7200 = vmul.f32 %v7129, %v7184
        %v7201 = vmul.f32 %v7131, %v7185
        %v7202 = vmul.f32 %v7133, %v7186
        %v7203 = vmul.f32 %v7135, %v7187
        %v7204 = vmul.f32 %v7137, %v7188
        %v7205 = vmul.f32 %v7139, %v7189
        %v7206 = vmul.f32 %v7141, %v7190
        %v7207 = vmul.f32 %v7143, %v7191
        %v7208 = vpack.c.bf16 %v7193, %v7192
        %v7209 = vpack.c.bf16 %v7195, %v7194
        %v7210 = vpack.c.bf16 %v7197, %v7196
        %v7211 = vpack.c.bf16 %v7199, %v7198
        %v7212 = vpack.c.bf16 %v7201, %v7200
        %v7213 = vpack.c.bf16 %v7203, %v7202
        %v7214 = vpack.c.bf16 %v7205, %v7204
        %v7215 = vpack.c.bf16 %v7207, %v7206
        %7224 = vrot.lane.b32.xlu0 %v2993, 64
        %v7225 = vpop.permute.xlu0 %7224
        %7226 = vrot.lane.b32.xlu0 %v2996, 64
        %v7227 = vpop.permute.xlu0 %7226
        %7228 = vrot.lane.b32.xlu0 %v2999, 64
        %v7229 = vpop.permute.xlu0 %7228
        %7230 = vrot.lane.b32.xlu0 %v3002, 64
        %v7231 = vpop.permute.xlu0 %7230
        %7232 = vrot.lane.b32.xlu0 %v3005, 64
        %v7233 = vpop.permute.xlu0 %7232
        %7234 = vrot.lane.b32.xlu0 %v3008, 64
        %v7235 = vpop.permute.xlu0 %7234
        %7236 = vrot.lane.b32.xlu0 %v3011, 64
        %v7237 = vpop.permute.xlu0 %7236
        %7238 = vrot.lane.b32.xlu0 %v3014, 64
        %v7239 = vpop.permute.xlu0 %7238
        %7248 = vmatprep.subr.bf16.mxu0 0
        %7249 = vmatpush1.bf16.msra.mxu0 %v7225
        %7250 = vmatprep.subr.bf16.mxu0 0
        %7251 = vmatpush1.bf16.msra.mxu0 %v7227
        %7252 = vmatprep.subr.bf16.mxu0 0
        %7253 = vmatpush1.bf16.msra.mxu0 %v7229
        %7254 = vmatprep.subr.bf16.mxu0 0
        %7255 = vmatpush1.bf16.msra.mxu0 %v7231
        %7256 = vmatprep.subr.bf16.mxu0 0
        %7257 = vmatpush1.bf16.msra.mxu0 %v7233
        %7258 = vmatprep.subr.bf16.mxu0 0
        %7259 = vmatpush1.bf16.msra.mxu0 %v7235
        %7260 = vmatprep.subr.bf16.mxu0 0
        %7261 = vmatpush1.bf16.msra.mxu0 %v7237
        %7262 = vmatprep.subr.bf16.mxu0 0
        %7263 = vmatpush1.bf16.msra.mxu0 %v7239
        %7264 = vmatprep.subr.bf16.mxu0 0
        %7265 = vmatpush1.bf16.msra.mxu0 0
        %7266 = vmatprep.subr.bf16.mxu0 0
        %7267 = vmatpush1.bf16.msra.mxu0 0
        %7268 = vmatprep.subr.bf16.mxu0 0
        %7269 = vmatpush1.bf16.msra.mxu0 0
        %7270 = vmatprep.subr.bf16.mxu0 0
        %7271 = vmatpush1.bf16.msra.mxu0 0
        %7272 = vmatprep.subr.bf16.mxu0 0
        %7273 = vmatpush1.bf16.msra.mxu0 0
        %7274 = vmatprep.subr.bf16.mxu0 0
        %7275 = vmatpush1.bf16.msra.mxu0 0
        %7276 = vmatprep.subr.bf16.mxu0 0
        %7277 = vmatpush1.bf16.msra.mxu0 0
        %7278 = vmatprep.subr.bf16.mxu0 0
        %7279 = vmatpush1.bf16.msra.mxu0 0
        %7280 = vmatprep.mubr.bf16.mxu0 0
        %7281 = vmatmul.mubr.bf16.gmra.mrb[0].mxu0 %v7208
        %v7282 = vpop.f32.mrb[0].mxu0
        %v7283 = vadd.f32 0.0, %v7282
        %v7284 = vpop.f32.mrb[0].mxu0
        %v7285 = vpop.f32.mrb[0].mxu0
        %v7286 = vadd.f32 0.0, %v7285
        %v7287 = vpop.f32.mrb[0].mxu0
        %7288 = vmatprep.mubr.bf16.mxu0 0
        %7289 = vmatmul.mubr.bf16.gmra.mrb[0].mxu0 %v7209
        %v7290 = vpop.f32.mrb[0].mxu0
        %v7291 = vadd.f32 0.0, %v7290
        %v7292 = vpop.f32.mrb[0].mxu0
        %v7293 = vpop.f32.mrb[0].mxu0
        %v7294 = vadd.f32 0.0, %v7293
        %v7295 = vpop.f32.mrb[0].mxu0
        %7296 = vmatprep.mubr.bf16.mxu0 0
        %7297 = vmatmul.mubr.bf16.gmra.mrb[0].mxu0 %v7210
        %v7298 = vpop.f32.mrb[0].mxu0
        %v7299 = vadd.f32 0.0, %v7298
        %v7300 = vpop.f32.mrb[0].mxu0
        %v7301 = vpop.f32.mrb[0].mxu0
        %v7302 = vadd.f32 0.0, %v7301
        %v7303 = vpop.f32.mrb[0].mxu0
        %7304 = vmatprep.mubr.bf16.mxu0 0
        %7305 = vmatmul.mubr.bf16.gmra.mrb[0].mxu0 %v7211
        %v7306 = vpop.f32.mrb[0].mxu0
        %v7307 = vadd.f32 0.0, %v7306
        %v7308 = vpop.f32.mrb[0].mxu0
        %v7309 = vpop.f32.mrb[0].mxu0
        %v7310 = vadd.f32 0.0, %v7309
        %v7311 = vpop.f32.mrb[0].mxu0
        %7312 = vmatprep.mubr.bf16.mxu0 0
        %7313 = vmatmul.mubr.bf16.gmra.mrb[0].mxu0 %v7212
        %v7314 = vpop.f32.mrb[0].mxu0
        %v7315 = vadd.f32 0.0, %v7314
        %v7316 = vpop.f32.mrb[0].mxu0
        %v7317 = vpop.f32.mrb[0].mxu0
        %v7318 = vadd.f32 0.0, %v7317
        %v7319 = vpop.f32.mrb[0].mxu0
        %7320 = vmatprep.mubr.bf16.mxu0 0
        %7321 = vmatmul.mubr.bf16.gmra.mrb[0].mxu0 %v7213
        %v7322 = vpop.f32.mrb[0].mxu0
        %v7323 = vadd.f32 0.0, %v7322
        %v7324 = vpop.f32.mrb[0].mxu0
        %v7325 = vpop.f32.mrb[0].mxu0
        %v7326 = vadd.f32 0.0, %v7325
        %v7327 = vpop.f32.mrb[0].mxu0
        %7328 = vmatprep.mubr.bf16.mxu0 0
        %7329 = vmatmul.mubr.bf16.gmra.mrb[0].mxu0 %v7214
        %v7330 = vpop.f32.mrb[0].mxu0
        %v7331 = vadd.f32 0.0, %v7330
        %v7332 = vpop.f32.mrb[0].mxu0
        %v7333 = vpop.f32.mrb[0].mxu0
        %v7334 = vadd.f32 0.0, %v7333
        %v7335 = vpop.f32.mrb[0].mxu0
        %7336 = vmatprep.mubr.bf16.mxu0 0
        %7337 = vmatmul.mubr.bf16.gmra.mrb[0].mxu0 %v7215
        %v7338 = vpop.f32.mrb[0].mxu0
        %v7339 = vadd.f32 0.0, %v7338
        %v7340 = vpop.f32.mrb[0].mxu0
        %v7341 = vpop.f32.mrb[0].mxu0
        %v7342 = vadd.f32 0.0, %v7341
        %v7343 = vpop.f32.mrb[0].mxu0
        %7344 = vdwg.mxu0
        %v7345 = vpack.c.bf16 %v7286, %v7283
        %v7346 = vpack.c.bf16 %v7294, %v7291
        %v7347 = vpack.c.bf16 %v7302, %v7299
        %v7348 = vpack.c.bf16 %v7310, %v7307
        %v7349 = vpack.c.bf16 %v7318, %v7315
        %v7350 = vpack.c.bf16 %v7326, %v7323
        %v7351 = vpack.c.bf16 %v7334, %v7331
        %v7352 = vpack.c.bf16 %v7342, %v7339
        %v7369 = vunpack.c.l.b16 %v549
        %v7370 = vunpack.c.h.b16 %v549
        %v7371 = vunpack.c.l.b16 %v550
        %v7372 = vunpack.c.l.b16 %v551
        %v7373 = vunpack.c.h.b16 %v551
        %v7374 = vunpack.c.l.b16 %v552
        %v7375 = vunpack.c.l.b16 %v553
        %v7376 = vunpack.c.h.b16 %v553
        %v7377 = vunpack.c.l.b16 %v554
        %v7378 = vunpack.c.l.b16 %v555
        %v7379 = vunpack.c.h.b16 %v555
        %v7380 = vunpack.c.l.b16 %v556
        %v7381 = vunpack.c.l.b16 %v557
        %v7382 = vunpack.c.h.b16 %v557
        %v7383 = vunpack.c.l.b16 %v558
        %v7384 = vunpack.c.l.b16 %v559
        %v7385 = vunpack.c.h.b16 %v559
        %v7386 = vunpack.c.l.b16 %v560
        %v7387 = vunpack.c.l.b16 %v561
        %v7388 = vunpack.c.h.b16 %v561
        %v7389 = vunpack.c.l.b16 %v562
        %v7390 = vunpack.c.l.b16 %v563
        %v7391 = vunpack.c.h.b16 %v563
        %v7392 = vunpack.c.l.b16 %v564
        %v7393 = vpack.c.b16 %v7372, %v7369
        %v7394 = vpack.c.b16 %v7373, %v7370
        %v7395 = vpack.c.b16 %v7374, %v7371
        %v7396 = vpack.c.b16 %v7378, %v7375
        %v7397 = vpack.c.b16 %v7379, %v7376
        %v7398 = vpack.c.b16 %v7380, %v7377
        %v7399 = vpack.c.b16 %v7384, %v7381
        %v7400 = vpack.c.b16 %v7385, %v7382
        %v7401 = vpack.c.b16 %v7386, %v7383
        %v7402 = vpack.c.b16 %v7390, %v7387
        %v7403 = vpack.c.b16 %v7391, %v7388
        %v7404 = vpack.c.b16 %v7392, %v7389
        %v7418 = vsel %vm3066, %v7345, 0
        %v7421 = vsel %vm3066, %v7346, 0
        %v7424 = vsel %vm3066, %v7347, 0
        %v7427 = vsel %vm3066, %v7348, 0
        %v7430 = vsel %vm3066, %v7349, 0
        %v7433 = vsel %vm3066, %v7350, 0
        %v7436 = vsel %vm3066, %v7351, 0
        %v7439 = vsel %vm3066, %v7352, 0
        %7441 = vmatprep.subr.bf16.mxu0 %v7394
        %7442 = vmatpush1.bf16.msra.mxu0 %v7393
        %7443 = vmatprep.subr.bf16.mxu0 %v7397
        %7444 = vmatpush1.bf16.msra.mxu0 %v7396
        %7445 = vmatprep.subr.bf16.mxu0 %v7400
        %7446 = vmatpush1.bf16.msra.mxu0 %v7399
        %7447 = vmatprep.subr.bf16.mxu0 %v7403
        %7448 = vmatpush1.bf16.msra.mxu0 %v7402
        %7449 = vmatprep.subr.bf16.mxu0 0
        %7450 = vmatpush1.bf16.msra.mxu0 0
        %7451 = vmatprep.subr.bf16.mxu0 0
        %7452 = vmatpush1.bf16.msra.mxu0 0
        %7453 = vmatprep.subr.bf16.mxu0 0
        %7454 = vmatpush1.bf16.msra.mxu0 0
        %7455 = vmatprep.subr.bf16.mxu0 0
        %7456 = vmatpush1.bf16.msra.mxu0 0
        %7457 = vmatprep.subr.bf16.mxu0 0
        %7458 = vmatpush1.bf16.msra.mxu0 0
        %7459 = vmatprep.subr.bf16.mxu0 0
        %7460 = vmatpush1.bf16.msra.mxu0 0
        %7461 = vmatprep.subr.bf16.mxu0 0
        %7462 = vmatpush1.bf16.msra.mxu0 0
        %7463 = vmatprep.subr.bf16.mxu0 0
        %7464 = vmatpush1.bf16.msra.mxu0 0
        %7465 = vmatprep.subr.bf16.mxu0 0
        %7466 = vmatpush1.bf16.msra.mxu0 0
        %7467 = vmatprep.subr.bf16.mxu0 0
        %7468 = vmatpush1.bf16.msra.mxu0 0
        %7469 = vmatprep.subr.bf16.mxu0 0
        %7470 = vmatpush1.bf16.msra.mxu0 0
        %7471 = vmatprep.subr.bf16.mxu0 0
        %7472 = vmatpush1.bf16.msra.mxu0 0
        %7473 = vmatprep.mubr.bf16.mxu0 0
        %7474 = vmatmul.mubr.bf16.gmra.mrb[0].mxu0 %v7418
        %v7475 = vpop.f32.mrb[0].mxu0
        %v7476 = vadd.f32 0.0, %v7475
        %v7477 = vpop.f32.mrb[0].mxu0
        %v7478 = vadd.f32 0.0, %v7477
        %v7479 = vpop.f32.mrb[0].mxu0
        %v7480 = vadd.f32 0.0, %v7479
        %v7481 = vpop.f32.mrb[0].mxu0
        %v7482 = vadd.f32 0.0, %v7481
        %7483 = vmatprep.mubr.bf16.mxu0 0
        %7484 = vmatmul.mubr.bf16.gmra.mrb[0].mxu0 %v7421
        %v7485 = vpop.f32.mrb[0].mxu0
        %v7486 = vadd.f32 0.0, %v7485
        %v7487 = vpop.f32.mrb[0].mxu0
        %v7488 = vadd.f32 0.0, %v7487
        %v7489 = vpop.f32.mrb[0].mxu0
        %v7490 = vadd.f32 0.0, %v7489
        %v7491 = vpop.f32.mrb[0].mxu0
        %v7492 = vadd.f32 0.0, %v7491
        %7493 = vmatprep.mubr.bf16.mxu0 0
        %7494 = vmatmul.mubr.bf16.gmra.mrb[0].mxu0 %v7424
        %v7495 = vpop.f32.mrb[0].mxu0
        %v7496 = vadd.f32 0.0, %v7495
        %v7497 = vpop.f32.mrb[0].mxu0
        %v7498 = vadd.f32 0.0, %v7497
        %v7499 = vpop.f32.mrb[0].mxu0
        %v7500 = vadd.f32 0.0, %v7499
        %v7501 = vpop.f32.mrb[0].mxu0
        %v7502 = vadd.f32 0.0, %v7501
        %7503 = vmatprep.mubr.bf16.mxu0 0
        %7504 = vmatmul.mubr.bf16.gmra.mrb[0].mxu0 %v7427
        %v7505 = vpop.f32.mrb[0].mxu0
        %v7506 = vadd.f32 0.0, %v7505
        %v7507 = vpop.f32.mrb[0].mxu0
        %v7508 = vadd.f32 0.0, %v7507
        %v7509 = vpop.f32.mrb[0].mxu0
        %v7510 = vadd.f32 0.0, %v7509
        %v7511 = vpop.f32.mrb[0].mxu0
        %v7512 = vadd.f32 0.0, %v7511
        %7513 = vmatprep.mubr.bf16.mxu0 0
        %7514 = vmatmul.mubr.bf16.gmra.mrb[0].mxu0 %v7430
        %v7515 = vpop.f32.mrb[0].mxu0
        %v7516 = vadd.f32 0.0, %v7515
        %v7517 = vpop.f32.mrb[0].mxu0
        %v7518 = vadd.f32 0.0, %v7517
        %v7519 = vpop.f32.mrb[0].mxu0
        %v7520 = vadd.f32 0.0, %v7519
        %v7521 = vpop.f32.mrb[0].mxu0
        %v7522 = vadd.f32 0.0, %v7521
        %7523 = vmatprep.mubr.bf16.mxu0 0
        %7524 = vmatmul.mubr.bf16.gmra.mrb[0].mxu0 %v7433
        %v7525 = vpop.f32.mrb[0].mxu0
        %v7526 = vadd.f32 0.0, %v7525
        %v7527 = vpop.f32.mrb[0].mxu0
        %v7528 = vadd.f32 0.0, %v7527
        %v7529 = vpop.f32.mrb[0].mxu0
        %v7530 = vadd.f32 0.0, %v7529
        %v7531 = vpop.f32.mrb[0].mxu0
        %v7532 = vadd.f32 0.0, %v7531
        %7533 = vmatprep.mubr.bf16.mxu0 0
        %7534 = vmatmul.mubr.bf16.gmra.mrb[0].mxu0 %v7436
        %v7535 = vpop.f32.mrb[0].mxu0
        %v7536 = vadd.f32 0.0, %v7535
        %v7537 = vpop.f32.mrb[0].mxu0
        %v7538 = vadd.f32 0.0, %v7537
        %v7539 = vpop.f32.mrb[0].mxu0
        %v7540 = vadd.f32 0.0, %v7539
        %v7541 = vpop.f32.mrb[0].mxu0
        %v7542 = vadd.f32 0.0, %v7541
        %7543 = vmatprep.mubr.bf16.mxu0 0
        %7544 = vmatmul.mubr.bf16.gmra.mrb[0].mxu0 %v7439
        %v7545 = vpop.f32.mrb[0].mxu0
        %v7546 = vadd.f32 0.0, %v7545
        %v7547 = vpop.f32.mrb[0].mxu0
        %v7548 = vadd.f32 0.0, %v7547
        %v7549 = vpop.f32.mrb[0].mxu0
        %v7550 = vadd.f32 0.0, %v7549
        %v7551 = vpop.f32.mrb[0].mxu0
        %v7552 = vadd.f32 0.0, %v7551
        %7553 = vdwg.mxu0
        %7554 = vmatprep.subr.bf16.mxu0 0
        %7555 = vmatpush1.bf16.msra.mxu0 %v7395
        %7556 = vmatprep.subr.bf16.mxu0 0
        %7557 = vmatpush1.bf16.msra.mxu0 %v7398
        %7558 = vmatprep.subr.bf16.mxu0 0
        %7559 = vmatpush1.bf16.msra.mxu0 %v7401
        %7560 = vmatprep.subr.bf16.mxu0 0
        %7561 = vmatpush1.bf16.msra.mxu0 %v7404
        %7562 = vmatprep.subr.bf16.mxu0 0
        %7563 = vmatpush1.bf16.msra.mxu0 0
        %7564 = vmatprep.subr.bf16.mxu0 0
        %7565 = vmatpush1.bf16.msra.mxu0 0
        %7566 = vmatprep.subr.bf16.mxu0 0
        %7567 = vmatpush1.bf16.msra.mxu0 0
        %7568 = vmatprep.subr.bf16.mxu0 0
        %7569 = vmatpush1.bf16.msra.mxu0 0
        %7570 = vmatprep.subr.bf16.mxu0 0
        %7571 = vmatpush1.bf16.msra.mxu0 0
        %7572 = vmatprep.subr.bf16.mxu0 0
        %7573 = vmatpush1.bf16.msra.mxu0 0
        %7574 = vmatprep.subr.bf16.mxu0 0
        %7575 = vmatpush1.bf16.msra.mxu0 0
        %7576 = vmatprep.subr.bf16.mxu0 0
        %7577 = vmatpush1.bf16.msra.mxu0 0
        %7578 = vmatprep.subr.bf16.mxu0 0
        %7579 = vmatpush1.bf16.msra.mxu0 0
        %7580 = vmatprep.subr.bf16.mxu0 0
        %7581 = vmatpush1.bf16.msra.mxu0 0
        %7582 = vmatprep.subr.bf16.mxu0 0
        %7583 = vmatpush1.bf16.msra.mxu0 0
        %7584 = vmatprep.subr.bf16.mxu0 0
        %7585 = vmatpush1.bf16.msra.mxu0 0
        %7586 = vmatprep.mubr.bf16.mxu0 0
        %7587 = vmatmul.mubr.bf16.gmra.mrb[0].mxu0 %v7418
        %v7588 = vpop.f32.mrb[0].mxu0
        %v7589 = vadd.f32 0.0, %v7588
        %v7590 = vpop.f32.mrb[0].mxu0
        %v7591 = vpop.f32.mrb[0].mxu0
        %v7592 = vadd.f32 0.0, %v7591
        %v7593 = vpop.f32.mrb[0].mxu0
        %7594 = vmatprep.mubr.bf16.mxu0 0
        %7595 = vmatmul.mubr.bf16.gmra.mrb[0].mxu0 %v7421
        %v7596 = vpop.f32.mrb[0].mxu0
        %v7597 = vadd.f32 0.0, %v7596
        %v7598 = vpop.f32.mrb[0].mxu0
        %v7599 = vpop.f32.mrb[0].mxu0
        %v7600 = vadd.f32 0.0, %v7599
        %v7601 = vpop.f32.mrb[0].mxu0
        %7602 = vmatprep.mubr.bf16.mxu0 0
        %7603 = vmatmul.mubr.bf16.gmra.mrb[0].mxu0 %v7424
        %v7604 = vpop.f32.mrb[0].mxu0
        %v7605 = vadd.f32 0.0, %v7604
        %v7606 = vpop.f32.mrb[0].mxu0
        %v7607 = vpop.f32.mrb[0].mxu0
        %v7608 = vadd.f32 0.0, %v7607
        %v7609 = vpop.f32.mrb[0].mxu0
        %7610 = vmatprep.mubr.bf16.mxu0 0
        %7611 = vmatmul.mubr.bf16.gmra.mrb[0].mxu0 %v7427
        %v7612 = vpop.f32.mrb[0].mxu0
        %v7613 = vadd.f32 0.0, %v7612
        %v7614 = vpop.f32.mrb[0].mxu0
        %v7615 = vpop.f32.mrb[0].mxu0
        %v7616 = vadd.f32 0.0, %v7615
        %v7617 = vpop.f32.mrb[0].mxu0
        %7618 = vmatprep.mubr.bf16.mxu0 0
        %7619 = vmatmul.mubr.bf16.gmra.mrb[0].mxu0 %v7430
        %v7620 = vpop.f32.mrb[0].mxu0
        %v7621 = vadd.f32 0.0, %v7620
        %v7622 = vpop.f32.mrb[0].mxu0
        %v7623 = vpop.f32.mrb[0].mxu0
        %v7624 = vadd.f32 0.0, %v7623
        %v7625 = vpop.f32.mrb[0].mxu0
        %7626 = vmatprep.mubr.bf16.mxu0 0
        %7627 = vmatmul.mubr.bf16.gmra.mrb[0].mxu0 %v7433
        %v7628 = vpop.f32.mrb[0].mxu0
        %v7629 = vadd.f32 0.0, %v7628
        %v7630 = vpop.f32.mrb[0].mxu0
        %v7631 = vpop.f32.mrb[0].mxu0
        %v7632 = vadd.f32 0.0, %v7631
        %v7633 = vpop.f32.mrb[0].mxu0
        %7634 = vmatprep.mubr.bf16.mxu0 0
        %7635 = vmatmul.mubr.bf16.gmra.mrb[0].mxu0 %v7436
        %v7636 = vpop.f32.mrb[0].mxu0
        %v7637 = vadd.f32 0.0, %v7636
        %v7638 = vpop.f32.mrb[0].mxu0
        %v7639 = vpop.f32.mrb[0].mxu0
        %v7640 = vadd.f32 0.0, %v7639
        %v7641 = vpop.f32.mrb[0].mxu0
        %7642 = vmatprep.mubr.bf16.mxu0 0
        %7643 = vmatmul.mubr.bf16.gmra.mrb[0].mxu0 %v7439
        %v7644 = vpop.f32.mrb[0].mxu0
        %v7645 = vadd.f32 0.0, %v7644
        %v7646 = vpop.f32.mrb[0].mxu0
        %v7647 = vpop.f32.mrb[0].mxu0
        %v7648 = vadd.f32 0.0, %v7647
        %v7649 = vpop.f32.mrb[0].mxu0
        %7650 = vdwg.mxu0
        %v7651 = vadd.f32 %v6823, %v7476
        %v7652 = vadd.f32 %v6824, %v7478
        %v7653 = vadd.f32 %v6825, %v7589
        %v7654 = vadd.f32 %v6826, %v7480
        %v7655 = vadd.f32 %v6827, %v7482
        %v7656 = vadd.f32 %v6828, %v7592
        %v7657 = vadd.f32 %v6829, %v7486
        %v7658 = vadd.f32 %v6830, %v7488
        %v7659 = vadd.f32 %v6831, %v7597
        %v7660 = vadd.f32 %v6832, %v7490
        %v7661 = vadd.f32 %v6833, %v7492
        %v7662 = vadd.f32 %v6834, %v7600
        %v7663 = vadd.f32 %v6835, %v7496
        %v7664 = vadd.f32 %v6836, %v7498
        %v7665 = vadd.f32 %v6837, %v7605
        %v7666 = vadd.f32 %v6838, %v7500
        %v7667 = vadd.f32 %v6839, %v7502
        %v7668 = vadd.f32 %v6840, %v7608
        %v7669 = vadd.f32 %v6841, %v7506
        %v7670 = vadd.f32 %v6842, %v7508
        %v7671 = vadd.f32 %v6843, %v7613
        %v7672 = vadd.f32 %v6844, %v7510
        %v7673 = vadd.f32 %v6845, %v7512
        %v7674 = vadd.f32 %v6846, %v7616
        %v7675 = vadd.f32 %v6847, %v7516
        %v7676 = vadd.f32 %v6848, %v7518
        %v7677 = vadd.f32 %v6849, %v7621
        %v7678 = vadd.f32 %v6850, %v7520
        %v7679 = vadd.f32 %v6851, %v7522
        %v7680 = vadd.f32 %v6852, %v7624
        %v7681 = vadd.f32 %v6853, %v7526
        %v7682 = vadd.f32 %v6854, %v7528
        %v7683 = vadd.f32 %v6855, %v7629
        %v7684 = vadd.f32 %v6856, %v7530
        %v7685 = vadd.f32 %v6857, %v7532
        %v7686 = vadd.f32 %v6858, %v7632
        %v7687 = vadd.f32 %v6859, %v7536
        %v7688 = vadd.f32 %v6860, %v7538
        %v7689 = vadd.f32 %v6861, %v7637
        %v7690 = vadd.f32 %v6862, %v7540
        %v7691 = vadd.f32 %v6863, %v7542
        %v7692 = vadd.f32 %v6864, %v7640
        %v7693 = vadd.f32 %v6865, %v7546
        %v7694 = vadd.f32 %v6866, %v7548
        %v7695 = vadd.f32 %v6867, %v7645
        %v7696 = vadd.f32 %v6868, %v7550
        %v7697 = vadd.f32 %v6869, %v7552
        %v7698 = vadd.f32 %v6870, %v7648
        %v7699 = vld [vmem:[%s3] sm:$0x7]
        %v7701 = vlaneseq
        %v7702 = vshrl.u32 %v7701, 7
        %v7703 = vsub.s32 0, %v7702
        %v7704 = vrot.slane %v7699, %v7703
        %v7705 = vlaneseq
        %v7706 = vshrl.u32 %v7705, 7
        %v7707 = vsub.s32 1, %v7706
        %v7708 = vrot.slane %v7699, %v7707
        %v7709 = vlaneseq
        %v7710 = vshrl.u32 %v7709, 7
        %v7711 = vsub.s32 2, %v7710
        %v7712 = vrot.slane %v7699, %v7711
        %v7716 = vadd.f32 %v7651, %v7704
        %v7717 = vadd.f32 %v7652, %v7708
        %v7718 = vadd.f32 %v7653, %v7712
        %v7719 = vadd.f32 %v7654, %v7704
        %v7720 = vadd.f32 %v7655, %v7708
        %v7721 = vadd.f32 %v7656, %v7712
        %v7722 = vadd.f32 %v7657, %v7704
        %v7723 = vadd.f32 %v7658, %v7708
        %v7724 = vadd.f32 %v7659, %v7712
        %v7725 = vadd.f32 %v7660, %v7704
        %v7726 = vadd.f32 %v7661, %v7708
        %v7727 = vadd.f32 %v7662, %v7712
        %v7728 = vadd.f32 %v7663, %v7704
        %v7729 = vadd.f32 %v7664, %v7708
        %v7730 = vadd.f32 %v7665, %v7712
        %v7731 = vadd.f32 %v7666, %v7704
        %v7732 = vadd.f32 %v7667, %v7708
        %v7733 = vadd.f32 %v7668, %v7712
        %v7734 = vadd.f32 %v7669, %v7704
        %v7735 = vadd.f32 %v7670, %v7708
        %v7736 = vadd.f32 %v7671, %v7712
        %v7737 = vadd.f32 %v7672, %v7704
        %v7738 = vadd.f32 %v7673, %v7708
        %v7739 = vadd.f32 %v7674, %v7712
        %v7740 = vadd.f32 %v7675, %v7704
        %v7741 = vadd.f32 %v7676, %v7708
        %v7742 = vadd.f32 %v7677, %v7712
        %v7743 = vadd.f32 %v7678, %v7704
        %v7744 = vadd.f32 %v7679, %v7708
        %v7745 = vadd.f32 %v7680, %v7712
        %v7746 = vadd.f32 %v7681, %v7704
        %v7747 = vadd.f32 %v7682, %v7708
        %v7748 = vadd.f32 %v7683, %v7712
        %v7749 = vadd.f32 %v7684, %v7704
        %v7750 = vadd.f32 %v7685, %v7708
        %v7751 = vadd.f32 %v7686, %v7712
        %v7752 = vadd.f32 %v7687, %v7704
        %v7753 = vadd.f32 %v7688, %v7708
        %v7754 = vadd.f32 %v7689, %v7712
        %v7755 = vadd.f32 %v7690, %v7704
        %v7756 = vadd.f32 %v7691, %v7708
        %v7757 = vadd.f32 %v7692, %v7712
        %v7758 = vadd.f32 %v7693, %v7704
        %v7759 = vadd.f32 %v7694, %v7708
        %v7760 = vadd.f32 %v7695, %v7712
        %v7761 = vadd.f32 %v7696, %v7704
        %v7762 = vadd.f32 %v7697, %v7708
        %v7763 = vadd.f32 %v7698, %v7712
        %7764 = vst [vmem:[%s190] sm:$0xff] %v7716
        %7765 = vst [vmem:[%s190 + $0x8] sm:$0xff] %v7717
        %7766 = vst [vmem:[%s190 + $0x10] sm:$0xff] %v7718
        %7767 = vst [vmem:[%s190 + $0x18] sm:$0xff] %v7719
        %7768 = vst [vmem:[%s190 + $0x20] sm:$0xff] %v7720
        %7769 = vst [vmem:[%s190 + $0x28] sm:$0xff] %v7721
        %7770 = vst [vmem:[%s190 + $0x30] sm:$0xff] %v7722
        %7771 = vst [vmem:[%s190 + $0x38] sm:$0xff] %v7723
        %7772 = vst [vmem:[%s190 + $0x40] sm:$0xff] %v7724
        %7773 = vst [vmem:[%s190 + $0x48] sm:$0xff] %v7725
        %7774 = vst [vmem:[%s190 + $0x50] sm:$0xff] %v7726
        %7775 = vst [vmem:[%s190 + $0x58] sm:$0xff] %v7727
        %7776 = vst [vmem:[%s190 + $0x60] sm:$0xff] %v7728
        %7777 = vst [vmem:[%s190 + $0x68] sm:$0xff] %v7729
        %7778 = vst [vmem:[%s190 + $0x70] sm:$0xff] %v7730
        %7779 = vst [vmem:[%s190 + $0x78] sm:$0xff] %v7731
        %7780 = vst [vmem:[%s190 + $0x80] sm:$0xff] %v7732
        %7781 = vst [vmem:[%s190 + $0x88] sm:$0xff] %v7733
        %7782 = vst [vmem:[%s190 + $0x90] sm:$0xff] %v7734
        %7783 = vst [vmem:[%s190 + $0x98] sm:$0xff] %v7735
        %7784 = vst [vmem:[%s190 + $0xa0] sm:$0xff] %v7736
        %7785 = vst [vmem:[%s190 + $0xa8] sm:$0xff] %v7737
        %7786 = vst [vmem:[%s190 + $0xb0] sm:$0xff] %v7738
        %7787 = vst [vmem:[%s190 + $0xb8] sm:$0xff] %v7739
        %7788 = vst [vmem:[%s190 + $0xc0] sm:$0xff] %v7740
        %7789 = vst [vmem:[%s190 + $0xc8] sm:$0xff] %v7741
        %7790 = vst [vmem:[%s190 + $0xd0] sm:$0xff] %v7742
        %7791 = vst [vmem:[%s190 + $0xd8] sm:$0xff] %v7743
        %7792 = vst [vmem:[%s190 + $0xe0] sm:$0xff] %v7744
        %7793 = vst [vmem:[%s190 + $0xe8] sm:$0xff] %v7745
        %7794 = vst [vmem:[%s190 + $0xf0] sm:$0xff] %v7746
        %7795 = vst [vmem:[%s190 + $0xf8] sm:$0xff] %v7747
        %7796 = vst [vmem:[%s190 + $0x100] sm:$0xff] %v7748
        %7797 = vst [vmem:[%s190 + $0x108] sm:$0xff] %v7749
        %7798 = vst [vmem:[%s190 + $0x110] sm:$0xff] %v7750
        %7799 = vst [vmem:[%s190 + $0x118] sm:$0xff] %v7751
        %7800 = vst [vmem:[%s190 + $0x120] sm:$0xff] %v7752
        %7801 = vst [vmem:[%s190 + $0x128] sm:$0xff] %v7753
        %7802 = vst [vmem:[%s190 + $0x130] sm:$0xff] %v7754
        %7803 = vst [vmem:[%s190 + $0x138] sm:$0xff] %v7755
        %7804 = vst [vmem:[%s190 + $0x140] sm:$0xff] %v7756
        %7805 = vst [vmem:[%s190 + $0x148] sm:$0xff] %v7757
        %7806 = vst [vmem:[%s190 + $0x150] sm:$0xff] %v7758
        %7807 = vst [vmem:[%s190 + $0x158] sm:$0xff] %v7759
        %7808 = vst [vmem:[%s190 + $0x160] sm:$0xff] %v7760
        %7809 = vst [vmem:[%s190 + $0x168] sm:$0xff] %v7761
        %7810 = vst [vmem:[%s190 + $0x170] sm:$0xff] %v7762
        %7811 = vst [vmem:[%s190 + $0x178] sm:$0xff] %v7763
        %s7812 = sand.u32 %s115, 1
        %s7813 = scalar_lea.sflag [#allocation3], %s7812
        %s7814 = sand.u32 %s115, 1
        %s7815 = smul.addr %s7814, 384
        %s7816 = scalar_lea.vmem [#allocation2], %s7815
        // Predicated region
        $region37: #{multi_head_attention.1} parent=35 // pred_check
          %p7817 = pneg %p125
        $region38: #{multi_head_attention.1} parent=35 // pred_check_branch
          %7819 = sbr.rel (%p7817) target = $region40
        $region39: #{multi_head_attention.1} parent=35 // pred_region
          %s7821 = ssub.s32 6144, 6144
          %7822 = vsyncadd %s7813, %s7821
          %s7823 = smul.addr %s18, 48
          %s7824 = smul.addr %s7823, 128
          %s7825 = scalar_lea.hbm %s4, %s7824
          %s7826 = sshll.u32 %s7816, 4
          %s7827 = int_to_ptr.vmem [resolvable:$true] %s7826
          %7832 = dma.vmem_to_hbm [thread:$0]  %s7827, 6144, %s7825, %s7813, 384, 384, 24
        $region40: #{multi_head_attention.1} parent=35 // pred_fallthru
          _
      $region36: #{multi_head_attention.1} parent=5 // pred_fallthru
        _
      %p7833 = scmp.le.s32.totalorder 2, %s13
      // Predicated region
      $region41: #{multi_head_attention.1} parent=5 // pred_check
        %p7834 = pneg %p7833
      $region42: #{multi_head_attention.1} parent=5 // pred_check_branch
        %7836 = sbr.rel (%p7834) target = $region44
      $region43: #{multi_head_attention.1} parent=5 // pred_region
        %s7837 = ssub.s32 %s13, 2
        // Predicated region
        $region45: #{multi_head_attention.1} parent=43 // pred_check
          %p7838 = pneg %p131
        $region46: #{multi_head_attention.1} parent=43 // pred_check_branch
          %7840 = sbr.rel (%p7838) target = $region48
        $region47: #{multi_head_attention.1} parent=43 // pred_region
          %s7841 = sand.u32 %s116, 1
          %s7842 = scalar_lea.sflag [#allocation3], %s7841
          %s7843 = sand.u32 %s116, 1
          %s7844 = smul.addr %s7843, 384
          %s7845 = scalar_lea.vmem [#allocation2], %s7844
          %7846 = dma.done %s7842, 6144
        $region48: #{multi_head_attention.1} parent=43 // pred_fallthru
          _
      $region44: #{multi_head_attention.1} parent=5 // pred_fallthru
        _
    $region6: #{multi_head_attention.1} parent=1 // loop_footer
      %s17 = sadd.s32 1, %s13
    $region7: #{multi_head_attention.1} parent=1 // loop_footer_branch
      %12 = sbr.rel target = $region3
    $region8: #{multi_head_attention.1} parent=1 // loop_exit
      _
    %7847 = vsyncpa [#allocation3], 1
    %s7848 = scalar_lea.sflag [#allocation3], 1
    %7849 = vsyncpa %s7848, 1

</llo_original>
